<compile_context>
chip_gen: v7x
topology: tpu7x:2x2x1
jax: 0.10.0
libtpu: 0.0.40
codegen_flags: <defaults>
</compile_context>

<pallas_src>
import math
import functools

import jax
import jax.numpy as jnp
from jax.experimental import pallas as pl
from jax.experimental.pallas import tpu as pltpu

# ----------------------------- model config ---------------------------------
EMBED_DIM = 384
NUM_HEADS = 6
HEAD_DIM = EMBED_DIM // NUM_HEADS
MLP_DIM = 4 * EMBED_DIM
DEPTH = 2              # real model has 12; reduced for the small synthetic run
PATCH = 32             # stride-32 stem ("s32")
IN_CH = 3
LN_EPS = 1e-6
HEAD_PAD = 128         # head output padded from 3 -> 128 lanes (sliced in wrapper)
MAX_ROW_TILE = 512     # row tile for M-tiled kernels (85% vs 63% HBM roofline @256)
MAX_Q_TILE = 128       # query-row tile for the attention kernel (multiple of 8)
VMEM_LIMIT = 32 * 1024 * 1024   # explicit scoped-VMEM limit (v5e default is 16 MiB)

_ROWS_PARALLEL = pltpu.CompilerParams(
    dimension_semantics=("parallel",), vmem_limit_bytes=VMEM_LIMIT)
_ATTN_PARALLEL = pltpu.CompilerParams(
    dimension_semantics=("parallel", "parallel"), vmem_limit_bytes=VMEM_LIMIT)


def _row_tile(m):
    return m if m <= MAX_ROW_TILE else MAX_ROW_TILE


def _layernorm_f32(x, gamma, beta):
    mean = jnp.mean(x, axis=-1, keepdims=True)
    var = jnp.mean((x - mean) ** 2, axis=-1, keepdims=True)
    return (x - mean) * jax.lax.rsqrt(var + LN_EPS) * gamma + beta


def _gelu_tanh_f32(y):
    c = math.sqrt(2.0 / math.pi)
    return 0.5 * y * (1.0 + jnp.tanh(c * (y + 0.044715 * y * y * y)))


# ------------------------------ Pallas kernels -------------------------------
def _linear_kernel(x_ref, w_ref, b_ref, o_ref):
    """y = x @ w + b. x and w are bf16 (wrapper casts); accumulation in f32."""
    x = x_ref[...].astype(jnp.bfloat16)
    y = jnp.dot(x, w_ref[...], preferred_element_type=jnp.float32)
    y = y + b_ref[...].astype(jnp.float32)
    o_ref[...] = y.astype(o_ref.dtype)


def _ln_linear_kernel(x_ref, g_ref, b_ref, w_ref, wb_ref, o_ref):
    """y = LN(x) @ w + wb. LN in f32, matmul operands bf16.

    Note: when the grid row tile does not divide M, LN also runs over the
    padded tail rows of the last block; those rows are garbage but are never
    stored (Pallas masks out-of-bounds writes).
    """
    x = x_ref[...].astype(jnp.float32)
    h = _layernorm_f32(x, g_ref[...].astype(jnp.float32), b_ref[...].astype(jnp.float32))
    y = jnp.dot(h.astype(jnp.bfloat16), w_ref[...], preferred_element_type=jnp.float32)
    y = y + wb_ref[...].astype(jnp.float32)
    o_ref[...] = y.astype(o_ref.dtype)


def _ln_mlp_kernel(x_ref, g_ref, b_ref, w1_ref, b1_ref, w2_ref, b2_ref, o_ref):
    """out = x + fc2(GELU(fc1(LN(x)))). [tm, 4D] intermediate stays in VMEM."""
    x = x_ref[...].astype(jnp.float32)
    h = _layernorm_f32(x, g_ref[...].astype(jnp.float32), b_ref[...].astype(jnp.float32))
    h1 = jnp.dot(h.astype(jnp.bfloat16), w1_ref[...], preferred_element_type=jnp.float32)
    h1 = h1 + b1_ref[...].astype(jnp.float32)
    h1 = _gelu_tanh_f32(h1)     # TODO(synk): exact erf-GELU not used (tanh approx)
    y = jnp.dot(h1.astype(jnp.bfloat16), w2_ref[...], preferred_element_type=jnp.float32)
    y = y + b2_ref[...].astype(jnp.float32)
    o_ref[...] = (x + y).astype(o_ref.dtype)


def _attn_proj_kernel(q_ref, k_ref, v_ref, xres_ref, pw_ref, pb_ref, o_ref,
                      *, num_heads, head_dim):
    """out = x_res + proj(multi_head_softmax_attention(q, k, v)).

    q_ref  : [1, tq, D]   bf16 (scale already folded into the QKV weights)
    k_ref  : [1, S,  D]   bf16
    v_ref  : [1, S,  D]   bf16
    xres   : [1, tq, D]   f32 residual rows for this query tile
    pw_ref : [D, D] bf16 resident, pb_ref : [1, D]

    All BlockSpec slices are 128-lane aligned; the per-head split happens once
    per slab on VMEM-resident bf16 data (reshape+transpose), scores / context
    are head-batched einsums, and the output projection is a single K=384
    matmul on the lane-dense [tq, 384] context. Padded query rows (when tq
    does not divide S) are computed but never written back.
    """
    tq = q_ref.shape[1]
    s_len = k_ref.shape[1]

    q = q_ref[0].reshape(tq, num_heads, head_dim).transpose(1, 0, 2)     # [H, tq, dh]
    k = k_ref[0].reshape(s_len, num_heads, head_dim).transpose(1, 0, 2)  # [H, S,  dh]
    v = v_ref[0].reshape(s_len, num_heads, head_dim).transpose(1, 0, 2)  # [H, S,  dh]

    # scores: [H, tq, S] (bf16 MXU operands, f32 accumulation)
    s = jnp.einsum('hqd,hkd->hqk', q, k, preferred_element_type=jnp.float32)
    m = jnp.max(s, axis=-1, keepdims=True)
    p = jnp.exp(s - m)
    p = p * pl.reciprocal(jnp.sum(p, axis=-1, keepdims=True), approx=True)

    # context: [H, tq, dh] -> lane-dense [tq, D] bf16 for one K=384 proj matmul
    ctx = jnp.einsum('hqk,hkd->hqd', p.astype(jnp.bfloat16), v,
                     preferred_element_type=jnp.float32)
    ctx = ctx.astype(jnp.bfloat16).transpose(1, 0, 2).reshape(tq, num_heads * head_dim)

    y = jnp.dot(ctx, pw_ref[...], preferred_element_type=jnp.float32)
    y = y + xres_ref[0].astype(jnp.float32) + pb_ref[...].astype(jnp.float32)
    o_ref[0] = y.astype(o_ref.dtype)


def _ln_head_kernel(x_ref, g_ref, b_ref, w_ref, wb_ref, feat_ref, res_ref):
    """feat = LN(cls_tokens); res = feat @ w_pad + b_pad (128-lane padded head)."""
    x = x_ref[...].astype(jnp.float32)
    h = _layernorm_f32(x, g_ref[...].astype(jnp.float32), b_ref[...].astype(jnp.float32))
    feat_ref[...] = h.astype(feat_ref.dtype)
    y = jnp.dot(h.astype(jnp.bfloat16), w_ref[...], preferred_element_type=jnp.float32)
    y = y + wb_ref[...].astype(jnp.float32)
    res_ref[...] = y.astype(res_ref.dtype)


# ------------------------------ kernel wrappers -------------------------------
def linear(x, w_bf16, b):
    M, K = x.shape
    K2, N = w_bf16.shape
    assert K == K2
    tm = _row_tile(M)
    return pl.pallas_call(
        _linear_kernel,
        out_shape=jax.ShapeDtypeStruct((M, N), jnp.float32),
        grid=(pl.cdiv(M, tm),),
        in_specs=[
            pl.BlockSpec((tm, K), lambda i: (i, 0)),
            pl.BlockSpec((K, N), lambda i: (0, 0)),   # weight resident
            pl.BlockSpec((1, N), lambda i: (0, 0)),
        ],
        out_specs=pl.BlockSpec((tm, N), lambda i: (i, 0)),
        compiler_params=_ROWS_PARALLEL,
    )(x, w_bf16, b.reshape(1, N))


def ln_linear(x, gamma, beta, w_bf16, wb, out_dtype=jnp.float32):
    M, D = x.shape
    N = w_bf16.shape[1]
    tm = _row_tile(M)
    return pl.pallas_call(
        _ln_linear_kernel,
        out_shape=jax.ShapeDtypeStruct((M, N), out_dtype),
        grid=(pl.cdiv(M, tm),),
        in_specs=[
            pl.BlockSpec((tm, D), lambda i: (i, 0)),
            pl.BlockSpec((1, D), lambda i: (0, 0)),
            pl.BlockSpec((1, D), lambda i: (0, 0)),
            pl.BlockSpec((D, N), lambda i: (0, 0)),   # weight resident
            pl.BlockSpec((1, N), lambda i: (0, 0)),
        ],
        out_specs=pl.BlockSpec((tm, N), lambda i: (i, 0)),
        compiler_params=_ROWS_PARALLEL,
    )(x, gamma.reshape(1, D), beta.reshape(1, D), w_bf16, wb.reshape(1, N))


def ln_mlp_residual(x, gamma, beta, w1_bf16, b1, w2_bf16, b2):
    M, D = x.shape
    H = w1_bf16.shape[1]
    tm = _row_tile(M)
    return pl.pallas_call(
        _ln_mlp_kernel,
        out_shape=jax.ShapeDtypeStruct((M, D), jnp.float32),
        grid=(pl.cdiv(M, tm),),
        in_specs=[
            pl.BlockSpec((tm, D), lambda i: (i, 0)),
            pl.BlockSpec((1, D), lambda i: (0, 0)),
            pl.BlockSpec((1, D), lambda i: (0, 0)),
            pl.BlockSpec((D, H), lambda i: (0, 0)),   # weights resident
            pl.BlockSpec((1, H), lambda i: (0, 0)),
            pl.BlockSpec((H, D), lambda i: (0, 0)),
            pl.BlockSpec((1, D), lambda i: (0, 0)),
        ],
        out_specs=pl.BlockSpec((tm, D), lambda i: (i, 0)),
        compiler_params=_ROWS_PARALLEL,
    )(x, gamma.reshape(1, D), beta.reshape(1, D),
      w1_bf16, b1.reshape(1, H), w2_bf16, b2.reshape(1, D))


def attn_proj_residual(qkv_bf16, x, pw_bf16, pb):
    """qkv_bf16: [B, S, 3*D] bf16 lane-dense slab (scale pre-folded into Q)."""
    B, S, D3 = qkv_bf16.shape
    D = x.shape[-1]
    assert D3 == 3 * D
    tq = S if S <= MAX_Q_TILE else MAX_Q_TILE      # multiple of 8, or == S
    n_qt = pl.cdiv(S, tq)
    kernel = functools.partial(_attn_proj_kernel, num_heads=NUM_HEADS,
                               head_dim=HEAD_DIM)
    return pl.pallas_call(
        kernel,
        out_shape=jax.ShapeDtypeStruct((B, S, D), jnp.float32),
        grid=(B, n_qt),
        in_specs=[
            # same qkv array passed three times: q rows tiled, k / v full-S,
            # all column slices 128-lane aligned (block index 0 / 1 / 2 on the
            # last dim); k / v block indices are constant across the qi axis so
            # they are DMA'd once per batch element.
            pl.BlockSpec((1, tq, D), lambda b, qi: (b, qi, 0)),
            pl.BlockSpec((1, S, D), lambda b, qi: (b, 0, 1)),
            pl.BlockSpec((1, S, D), lambda b, qi: (b, 0, 2)),
            pl.BlockSpec((1, tq, D), lambda b, qi: (b, qi, 0)),   # residual rows
            pl.BlockSpec((D, D), lambda b, qi: (0, 0)),           # proj weight resident
            pl.BlockSpec((1, D), lambda b, qi: (0, 0)),
        ],
        out_specs=pl.BlockSpec((1, tq, D), lambda b, qi: (b, qi, 0)),
        compiler_params=_ATTN_PARALLEL,
    )(qkv_bf16, qkv_bf16, qkv_bf16, x, pw_bf16, pb.reshape(1, D))


def ln_head(x, gamma, beta, w_pad_bf16, wb_pad):
    B, D = x.shape
    N = w_pad_bf16.shape[1]
    return pl.pallas_call(
        _ln_head_kernel,
        out_shape=(jax.ShapeDtypeStruct((B, D), jnp.float32),
                   jax.ShapeDtypeStruct((B, N), jnp.float32)),
        grid=(1,),
        in_specs=[
            pl.BlockSpec((B, D), lambda i: (0, 0)),
            pl.BlockSpec((1, D), lambda i: (0, 0)),
            pl.BlockSpec((1, D), lambda i: (0, 0)),
            pl.BlockSpec((D, N), lambda i: (0, 0)),
            pl.BlockSpec((1, N), lambda i: (0, 0)),
        ],
        out_specs=(pl.BlockSpec((B, D), lambda i: (0, 0)),
                   pl.BlockSpec((B, N), lambda i: (0, 0))),
    )(x, gamma.reshape(1, D), beta.reshape(1, D), w_pad_bf16, wb_pad.reshape(1, N))


# ----------------------------- parameter init --------------------------------
def init_params(key):
    keys = iter(jax.random.split(key, 64))

    def nrm(shape, scale=0.02):
        return (scale * jax.random.normal(next(keys), shape)).astype(jnp.float32)

    patch_dim = IN_CH * PATCH * PATCH
    params = {
        "pe_w": nrm((patch_dim, EMBED_DIM)),
        "pe_b": jnp.zeros((EMBED_DIM,), jnp.float32),
        "cls": nrm((1, 1, EMBED_DIM)),
        "norm_g": jnp.ones((EMBED_DIM,), jnp.float32),
        "norm_b": jnp.zeros((EMBED_DIM,), jnp.float32),
        "fc_w": nrm((EMBED_DIM, 3)),
        "fc_b": jnp.zeros((3,), jnp.float32),
        "blocks": [],
    }
    for _ in range(DEPTH):
        params["blocks"].append({
            "ln1_g": jnp.ones((EMBED_DIM,), jnp.float32),
            "ln1_b": jnp.zeros((EMBED_DIM,), jnp.float32),
            "qkv_w": nrm((EMBED_DIM, 3 * EMBED_DIM)),
            "qkv_b": jnp.zeros((3 * EMBED_DIM,), jnp.float32),
            "proj_w": nrm((EMBED_DIM, EMBED_DIM)),
            "proj_b": jnp.zeros((EMBED_DIM,), jnp.float32),
            "ln2_g": jnp.ones((EMBED_DIM,), jnp.float32),
            "ln2_b": jnp.zeros((EMBED_DIM,), jnp.float32),
            "fc1_w": nrm((EMBED_DIM, MLP_DIM)),
            "fc1_b": jnp.zeros((MLP_DIM,), jnp.float32),
            "fc2_w": nrm((MLP_DIM, EMBED_DIM)),
            "fc2_b": jnp.zeros((EMBED_DIM,), jnp.float32),
        })
    return params


def init_pos_embed(key, num_tokens):
    return (0.02 * jax.random.normal(key, (1, num_tokens, EMBED_DIM))).astype(jnp.float32)


def prepare_params(params):
    """One-time prep:
      * cast MXU-facing weights to bf16 (halves weight DMA, bf16-native MXU),
      * fold the softmax scale (head_dim**-0.5, exactly 1/8) into the Q columns
        of qkv_w / qkv_b so the attention kernel never rescales q,
      * pad the 3-wide head to 128 lanes for unmasked lane-dense stores.
    """
    scale = HEAD_DIM ** -0.5
    p = dict(params)
    p["pe_w"] = params["pe_w"].astype(jnp.bfloat16)
    fc_w = jnp.zeros((EMBED_DIM, HEAD_PAD), jnp.float32).at[:, :3].set(params["fc_w"])
    fc_b = jnp.zeros((HEAD_PAD,), jnp.float32).at[:3].set(params["fc_b"])
    p["fc_w"] = fc_w.astype(jnp.bfloat16)
    p["fc_b"] = fc_b
    blocks = []
    for blk in params["blocks"]:
        nb = dict(blk)
        qkv_w = blk["qkv_w"].at[:, :EMBED_DIM].multiply(scale)
        qkv_b = blk["qkv_b"].at[:EMBED_DIM].multiply(scale)
        nb["qkv_w"] = qkv_w.astype(jnp.bfloat16)
        nb["qkv_b"] = qkv_b
        nb["proj_w"] = blk["proj_w"].astype(jnp.bfloat16)
        nb["fc1_w"] = blk["fc1_w"].astype(jnp.bfloat16)
        nb["fc2_w"] = blk["fc2_w"].astype(jnp.bfloat16)
        blocks.append(nb)
    p["blocks"] = blocks
    return p


# ------------------------------ forward pass ---------------------------------
def vit_mt_forward(params, pos_embed, img):
    """Returns (x, res) = (backbone feature [B, 384], head output [B, 3])."""
    B, C, H, W = img.shape
    nh, nw = H // PATCH, W // PATCH
    N = nh * nw
    D = EMBED_DIM

    # patchify (im2col) — NCHW -> [B*N, C*P*P]; conv-as-matmul done in Pallas.
    # TODO(synk): real model uses a ResNet-26 hybrid stem, not a single conv.
    patches = img.reshape(B, C, nh, PATCH, nw, PATCH)
    patches = patches.transpose(0, 2, 4, 1, 3, 5).reshape(B * N, C * PATCH * PATCH)
    patches = patches.astype(jnp.bfloat16)        # halve the largest input DMA
    x = linear(patches, params["pe_w"], params["pe_b"]).reshape(B, N, D)

    cls = jnp.broadcast_to(params["cls"], (B, 1, D))
    x = jnp.concatenate([cls, x], axis=1) + pos_embed          # [B, S, D] f32
    S = x.shape[1]

    for blk in params["blocks"]:
        # fused LN1 + QKV projection -> bf16 lane-dense [B*S, 3D] slab
        qkv = ln_linear(x.reshape(B * S, D), blk["ln1_g"], blk["ln1_b"],
                        blk["qkv_w"], blk["qkv_b"], out_dtype=jnp.bfloat16)
        # fused multi-head attention + output projection + residual add
        x = attn_proj_residual(qkv.reshape(B, S, 3 * D), x,
                               blk["proj_w"], blk["proj_b"])
        # fused LN2 + fc1 + GELU + fc2 + residual add
        x = ln_mlp_residual(x.reshape(B * S, D), blk["ln2_g"], blk["ln2_b"],
                            blk["fc1_w"], blk["fc1_b"],
                            blk["fc2_w"], blk["fc2_b"]).reshape(B, S, D)

    # final norm + cls-token pooling + (128-lane padded) head, fused
    cls_tok = x[:, 0]                                          # [B, 384]
    feat, res_pad = ln_head(cls_tok, params["norm_g"], params["norm_b"],
                            params["fc_w"], params["fc_b"])
    return feat, res_pad[:, :3]


# --------------------------------- main ---------------------------------------
if __name__ == "__main__":
    key = jax.random.PRNGKey(0)
    k_img, k_params, k_pos = jax.random.split(key, 3)

    B, H, W = 2, 64, 64                       # 2x2 = 4 patches @ stride 32
    img = jax.random.normal(k_img, (B, IN_CH, H, W), jnp.float32)

    params = prepare_params(init_params(k_params))
    num_tokens = (H // PATCH) * (W // PATCH) + 1
    pos_embed = init_pos_embed(k_pos, num_tokens)

    fwd = jax.jit(functools.partial(vit_mt_forward, params, pos_embed))
    feat, res = fwd(img)
    jax.block_until_ready((feat, res))

    assert feat.shape == (B, 384), feat.shape
    assert res.shape == (B, 3), res.shape
    assert feat.dtype == jnp.float32 and res.dtype == jnp.float32
    print("KERNEL_OK")
</pallas_src>

<mosaic_0001>
module attributes {stable_mosaic.version = 11 : i64} {
  func.func @_linear_kernel(%arg0: i32, %arg1: memref<8x3072xbf16, #tpu.memory_space<vmem>>, %arg2: memref<3072x384xbf16, #tpu.memory_space<vmem>>, %arg3: memref<1x384xf32, #tpu.memory_space<vmem>>, %arg4: memref<8x384xf32, #tpu.memory_space<vmem>>) attributes {dimension_semantics = [#tpu.dimension_semantics<parallel>], iteration_bounds = array<i64: 1>, scalar_prefetch = 0 : i64, scratch_operands = 0 : i64, tpu.core_type = #tpu.core_type<tc>, window_params = [{transform_indices = @transform_0, window_bounds = array<i64: 8, 3072>}, {pipeline_mode = #tpu.pipeline_mode<synchronous>, transform_indices = @transform_1, window_bounds = array<i64: 3072, 384>}, {pipeline_mode = #tpu.pipeline_mode<synchronous>, transform_indices = @transform_2, window_bounds = array<i64: 1, 384>}, {transform_indices = @transform_3, window_bounds = array<i64: 8, 384>}]} {
    %c0 = arith.constant 0 : index
    %c0_0 = arith.constant 0 : index
    %0 = vector.load %arg1[%c0, %c0_0] : memref<8x3072xbf16, #tpu.memory_space<vmem>>, vector<8x3072xbf16>
    %c0_1 = arith.constant 0 : index
    %c0_2 = arith.constant 0 : index
    %1 = vector.load %arg2[%c0_1, %c0_2] : memref<3072x384xbf16, #tpu.memory_space<vmem>>, vector<3072x384xbf16>
    %cst = arith.constant dense<0.000000e+00> : vector<8x384xf32>
    %2 = tpu.matmul %0, %1, %cst {dimension_numbers = #tpu.dot_dimension_numbers<[1], [0], [0], [1], [0, 0, 1, 1], [], []>} : vector<8x3072xbf16>, vector<3072x384xbf16>, vector<8x384xf32> -> vector<8x384xf32>
    %c0_3 = arith.constant 0 : index
    %c0_4 = arith.constant 0 : index
    %3 = vector.load %arg3[%c0_3, %c0_4] : memref<1x384xf32, #tpu.memory_space<vmem>>, vector<1x384xf32>
    %4 = vector.broadcast %3 : vector<1x384xf32> to vector<8x384xf32>
    %5 = arith.addf %2, %4 : vector<8x384xf32>
    %c0_5 = arith.constant 0 : index
    %c0_6 = arith.constant 0 : index
    %6 = vector.load %arg4[%c0_5, %c0_6] : memref<8x384xf32, #tpu.memory_space<vmem>>, vector<8x384xf32>
    tpu.vector_store %arg4[%c0_5, %c0_6], %5 {strides = array<i32>} : memref<8x384xf32, #tpu.memory_space<vmem>>, vector<8x384xf32>,
    return
  }
  func.func @transform_0(%arg0: i32) -> (i32, i32) {
    %c0_i32 = arith.constant 0 : i32
    %c0_i32_0 = arith.constant 0 : i32
    return %arg0, %c0_i32 : i32, i32
  }
  func.func @transform_1(%arg0: i32) -> (i32, i32) {
    %c0_i32 = arith.constant 0 : i32
    %c0_i32_0 = arith.constant 0 : i32
    %c0_i32_1 = arith.constant 0 : i32
    return %c0_i32, %c0_i32_0 : i32, i32
  }
  func.func @transform_2(%arg0: i32) -> (i32, i32) {
    %c0_i32 = arith.constant 0 : i32
    %c0_i32_0 = arith.constant 0 : i32
    %c0_i32_1 = arith.constant 0 : i32
    return %c0_i32, %c0_i32_0 : i32, i32
  }
  func.func @transform_3(%arg0: i32) -> (i32, i32) {
    %c0_i32 = arith.constant 0 : i32
    %c0_i32_0 = arith.constant 0 : i32
    return %arg0, %c0_i32 : i32, i32
  }
}

module attributes {stable_mosaic.version = 11 : i64} {
  func.func @_ln_linear_kernel(%arg0: i32, %arg1: memref<10x384xf32, #tpu.memory_space<vmem>>, %arg2: memref<1x384xf32, #tpu.memory_space<vmem>>, %arg3: memref<1x384xf32, #tpu.memory_space<vmem>>, %arg4: memref<384x1152xbf16, #tpu.memory_space<vmem>>, %arg5: memref<1x1152xf32, #tpu.memory_space<vmem>>, %arg6: memref<10x1152xbf16, #tpu.memory_space<vmem>>) attributes {dimension_semantics = [#tpu.dimension_semantics<parallel>], iteration_bounds = array<i64: 1>, scalar_prefetch = 0 : i64, scratch_operands = 0 : i64, tpu.core_type = #tpu.core_type<tc>, window_params = [{transform_indices = @transform_0, window_bounds = array<i64: 10, 384>}, {pipeline_mode = #tpu.pipeline_mode<synchronous>, transform_indices = @transform_1, window_bounds = array<i64: 1, 384>}, {pipeline_mode = #tpu.pipeline_mode<synchronous>, transform_indices = @transform_2, window_bounds = array<i64: 1, 384>}, {pipeline_mode = #tpu.pipeline_mode<synchronous>, transform_indices = @transform_3, window_bounds = array<i64: 384, 1152>}, {pipeline_mode = #tpu.pipeline_mode<synchronous>, transform_indices = @transform_4, window_bounds = array<i64: 1, 1152>}, {transform_indices = @transform_5, window_bounds = array<i64: 10, 1152>}]} {
    %c0 = arith.constant 0 : index
    %c0_0 = arith.constant 0 : index
    %0 = vector.load %arg1[%c0, %c0_0] : memref<10x384xf32, #tpu.memory_space<vmem>>, vector<10x384xf32>
    %c0_1 = arith.constant 0 : index
    %c0_2 = arith.constant 0 : index
    %1 = vector.load %arg2[%c0_1, %c0_2] : memref<1x384xf32, #tpu.memory_space<vmem>>, vector<1x384xf32>
    %c0_3 = arith.constant 0 : index
    %c0_4 = arith.constant 0 : index
    %2 = vector.load %arg3[%c0_3, %c0_4] : memref<1x384xf32, #tpu.memory_space<vmem>>, vector<1x384xf32>
    %cst = arith.constant dense<0.000000e+00> : vector<10xf32>
    %3 = vector.multi_reduction <add>, %0, %cst [1] : vector<10x384xf32> to vector<10xf32>
    %4 = vector.shape_cast %3 : vector<10xf32> to vector<10x1xf32>
    %cst_5 = arith.constant 3.840000e+02 : f32
    %5 = vector.broadcast %cst_5 : f32 to vector<10x1xf32>
    %6 = arith.divf %4, %5 : vector<10x1xf32>
    %7 = vector.broadcast %6 : vector<10x1xf32> to vector<10x384xf32>
    %8 = arith.subf %0, %7 : vector<10x384xf32>
    %9 = arith.mulf %8, %8 : vector<10x384xf32>
    %cst_6 = arith.constant dense<0.000000e+00> : vector<10xf32>
    %10 = vector.multi_reduction <add>, %9, %cst_6 [1] : vector<10x384xf32> to vector<10xf32>
    %11 = vector.shape_cast %10 : vector<10xf32> to vector<10x1xf32>
    %cst_7 = arith.constant 3.840000e+02 : f32
    %12 = vector.broadcast %cst_7 : f32 to vector<10x1xf32>
    %13 = arith.divf %11, %12 : vector<10x1xf32>
    %14 = vector.broadcast %6 : vector<10x1xf32> to vector<10x384xf32>
    %15 = arith.subf %0, %14 : vector<10x384xf32>
    %cst_8 = arith.constant 9.99999997E-7 : f32
    %16 = vector.broadcast %cst_8 : f32 to vector<10x1xf32>
    %17 = arith.addf %13, %16 : vector<10x1xf32>
    %18 = math.rsqrt %17 : vector<10x1xf32>
    %19 = vector.broadcast %18 : vector<10x1xf32> to vector<10x384xf32>
    %20 = arith.mulf %15, %19 : vector<10x384xf32>
    %21 = vector.broadcast %1 : vector<1x384xf32> to vector<10x384xf32>
    %22 = arith.mulf %20, %21 : vector<10x384xf32>
    %23 = vector.broadcast %2 : vector<1x384xf32> to vector<10x384xf32>
    %24 = arith.addf %22, %23 : vector<10x384xf32>
    %25 = arith.truncf %24 : vector<10x384xf32> to vector<10x384xbf16>
    %c0_9 = arith.constant 0 : index
    %c0_10 = arith.constant 0 : index
    %26 = vector.load %arg4[%c0_9, %c0_10] : memref<384x1152xbf16, #tpu.memory_space<vmem>>, vector<384x1152xbf16>
    %cst_11 = arith.constant dense<0.000000e+00> : vector<10x1152xf32>
    %27 = tpu.matmul %25, %26, %cst_11 {dimension_numbers = #tpu.dot_dimension_numbers<[1], [0], [0], [1], [0, 0, 1, 1], [], []>} : vector<10x384xbf16>, vector<384x1152xbf16>, vector<10x1152xf32> -> vector<10x1152xf32>
    %c0_12 = arith.constant 0 : index
    %c0_13 = arith.constant 0 : index
    %28 = vector.load %arg5[%c0_12, %c0_13] : memref<1x1152xf32, #tpu.memory_space<vmem>>, vector<1x1152xf32>
    %29 = vector.broadcast %28 : vector<1x1152xf32> to vector<10x1152xf32>
    %30 = arith.addf %27, %29 : vector<10x1152xf32>
    %31 = arith.truncf %30 : vector<10x1152xf32> to vector<10x1152xbf16>
    %c0_14 = arith.constant 0 : index
    %c0_15 = arith.constant 0 : index
    %32 = vector.load %arg6[%c0_14, %c0_15] : memref<10x1152xbf16, #tpu.memory_space<vmem>>, vector<10x1152xbf16>
    tpu.vector_store %arg6[%c0_14, %c0_15], %31 {strides = array<i32>} : memref<10x1152xbf16, #tpu.memory_space<vmem>>, vector<10x1152xbf16>,
    return
  }
  func.func @transform_0(%arg0: i32) -> (i32, i32) {
    %c0_i32 = arith.constant 0 : i32
    %c0_i32_0 = arith.constant 0 : i32
    return %arg0, %c0_i32 : i32, i32
  }
  func.func @transform_1(%arg0: i32) -> (i32, i32) {
    %c0_i32 = arith.constant 0 : i32
    %c0_i32_0 = arith.constant 0 : i32
    %c0_i32_1 = arith.constant 0 : i32
    return %c0_i32, %c0_i32_0 : i32, i32
  }
  func.func @transform_2(%arg0: i32) -> (i32, i32) {
    %c0_i32 = arith.constant 0 : i32
    %c0_i32_0 = arith.constant 0 : i32
    %c0_i32_1 = arith.constant 0 : i32
    return %c0_i32, %c0_i32_0 : i32, i32
  }
  func.func @transform_3(%arg0: i32) -> (i32, i32) {
    %c0_i32 = arith.constant 0 : i32
    %c0_i32_0 = arith.constant 0 : i32
    %c0_i32_1 = arith.constant 0 : i32
    return %c0_i32, %c0_i32_0 : i32, i32
  }
  func.func @transform_4(%arg0: i32) -> (i32, i32) {
    %c0_i32 = arith.constant 0 : i32
    %c0_i32_0 = arith.constant 0 : i32
    %c0_i32_1 = arith.constant 0 : i32
    return %c0_i32, %c0_i32_0 : i32, i32
  }
  func.func @transform_5(%arg0: i32) -> (i32, i32) {
    %c0_i32 = arith.constant 0 : i32
    %c0_i32_0 = arith.constant 0 : i32
    return %arg0, %c0_i32 : i32, i32
  }
}

module attributes {stable_mosaic.version = 11 : i64} {
  func.func @_attn_proj_kernel(%arg0: i32, %arg1: i32, %arg2: memref<1x5x384xbf16, #tpu.memory_space<vmem>>, %arg3: memref<1x5x384xbf16, #tpu.memory_space<vmem>>, %arg4: memref<1x5x384xbf16, #tpu.memory_space<vmem>>, %arg5: memref<1x5x384xf32, #tpu.memory_space<vmem>>, %arg6: memref<384x384xbf16, #tpu.memory_space<vmem>>, %arg7: memref<1x384xf32, #tpu.memory_space<vmem>>, %arg8: memref<1x5x384xf32, #tpu.memory_space<vmem>>) attributes {dimension_semantics = [#tpu.dimension_semantics<parallel>, #tpu.dimension_semantics<parallel>], iteration_bounds = array<i64: 2, 1>, scalar_prefetch = 0 : i64, scratch_operands = 0 : i64, tpu.core_type = #tpu.core_type<tc>, window_params = [{transform_indices = @transform_0, window_bounds = array<i64: 1, 5, 384>}, {transform_indices = @transform_1, window_bounds = array<i64: 1, 5, 384>}, {transform_indices = @transform_2, window_bounds = array<i64: 1, 5, 384>}, {transform_indices = @transform_3, window_bounds = array<i64: 1, 5, 384>}, {pipeline_mode = #tpu.pipeline_mode<synchronous>, transform_indices = @transform_4, window_bounds = array<i64: 384, 384>}, {pipeline_mode = #tpu.pipeline_mode<synchronous>, transform_indices = @transform_5, window_bounds = array<i64: 1, 384>}, {transform_indices = @transform_6, window_bounds = array<i64: 1, 5, 384>}]} {
    %c0 = arith.constant 0 : index
    %c0_0 = arith.constant 0 : index
    %c0_1 = arith.constant 0 : index
    %0 = vector.load %arg2[%c0, %c0_0, %c0_1] : memref<1x5x384xbf16, #tpu.memory_space<vmem>>, vector<1x5x384xbf16>
    %1 = vector.shape_cast %0 : vector<1x5x384xbf16> to vector<5x384xbf16>
    %2 = vector.shape_cast %1 : vector<5x384xbf16> to vector<5x6x64xbf16>
    %3 = tpu.transpose %2, [1, 0, 2] : vector<5x6x64xbf16> -> vector<6x5x64xbf16>
    %c0_2 = arith.constant 0 : index
    %c0_3 = arith.constant 0 : index
    %c0_4 = arith.constant 0 : index
    %4 = vector.load %arg3[%c0_2, %c0_3, %c0_4] : memref<1x5x384xbf16, #tpu.memory_space<vmem>>, vector<1x5x384xbf16>
    %5 = vector.shape_cast %4 : vector<1x5x384xbf16> to vector<5x384xbf16>
    %6 = vector.shape_cast %5 : vector<5x384xbf16> to vector<5x6x64xbf16>
    %7 = tpu.transpose %6, [1, 0, 2] : vector<5x6x64xbf16> -> vector<6x5x64xbf16>
    %c0_5 = arith.constant 0 : index
    %c0_6 = arith.constant 0 : index
    %c0_7 = arith.constant 0 : index
    %8 = vector.load %arg4[%c0_5, %c0_6, %c0_7] : memref<1x5x384xbf16, #tpu.memory_space<vmem>>, vector<1x5x384xbf16>
    %9 = vector.shape_cast %8 : vector<1x5x384xbf16> to vector<5x384xbf16>
    %10 = vector.shape_cast %9 : vector<5x384xbf16> to vector<5x6x64xbf16>
    %11 = tpu.transpose %10, [1, 0, 2] : vector<5x6x64xbf16> -> vector<6x5x64xbf16>
    "tpu.trace_start"() <{level = 10 : i32, message = "hqd,hkd->hqk"}> : () -> ()
    %cst = arith.constant dense<0.000000e+00> : vector<6x5x5xf32>
    %12 = tpu.matmul %3, %7, %cst {dimension_numbers = #tpu.dot_dimension_numbers<[2], [2], [1], [1], [0, 0, 0, 1, 1, 1], [0], [0]>} : vector<6x5x64xbf16>, vector<6x5x64xbf16>, vector<6x5x5xf32> -> vector<6x5x5xf32>
    "tpu.trace_stop"() : () -> ()
    %cst_8 = arith.constant dense<0xFF800000> : vector<6x5xf32>
    %13 = vector.multi_reduction <maximumf>, %12, %cst_8 [2] : vector<6x5x5xf32> to vector<6x5xf32>
    %14 = vector.shape_cast %13 : vector<6x5xf32> to vector<6x5x1xf32>
    %15 = vector.broadcast %14 : vector<6x5x1xf32> to vector<6x5x5xf32>
    %16 = arith.subf %12, %15 : vector<6x5x5xf32>
    %17 = math.exp %16 : vector<6x5x5xf32>
    %cst_9 = arith.constant dense<0.000000e+00> : vector<6x5xf32>
    %18 = vector.multi_reduction <add>, %17, %cst_9 [2] : vector<6x5x5xf32> to vector<6x5xf32>
    %19 = vector.shape_cast %18 : vector<6x5xf32> to vector<6x5x1xf32>
    %20 = tpu.reciprocal %19 {approx = true} : vector<6x5x1xf32> -> vector<6x5x1xf32>
    %21 = vector.broadcast %20 : vector<6x5x1xf32> to vector<6x5x5xf32>
    %22 = arith.mulf %17, %21 : vector<6x5x5xf32>
    %23 = arith.truncf %22 : vector<6x5x5xf32> to vector<6x5x5xbf16>
    "tpu.trace_start"() <{level = 10 : i32, message = "hqk,hkd->hqd"}> : () -> ()
    %cst_10 = arith.constant dense<0.000000e+00> : vector<6x5x64xf32>
    %24 = tpu.matmul %23, %11, %cst_10 {dimension_numbers = #tpu.dot_dimension_numbers<[2], [1], [1], [2], [0, 0, 0, 1, 1, 2], [0], [0]>} : vector<6x5x5xbf16>, vector<6x5x64xbf16>, vector<6x5x64xf32> -> vector<6x5x64xf32>
    "tpu.trace_stop"() : () -> ()
    %25 = arith.truncf %24 : vector<6x5x64xf32> to vector<6x5x64xbf16>
    %26 = tpu.transpose %25, [1, 0, 2] : vector<6x5x64xbf16> -> vector<5x6x64xbf16>
    %27 = vector.shape_cast %26 : vector<5x6x64xbf16> to vector<5x384xbf16>
    %c0_11 = arith.constant 0 : index
    %c0_12 = arith.constant 0 : index
    %28 = vector.load %arg6[%c0_11, %c0_12] : memref<384x384xbf16, #tpu.memory_space<vmem>>, vector<384x384xbf16>
    %cst_13 = arith.constant dense<0.000000e+00> : vector<5x384xf32>
    %29 = tpu.matmul %27, %28, %cst_13 {dimension_numbers = #tpu.dot_dimension_numbers<[1], [0], [0], [1], [0, 0, 1, 1], [], []>} : vector<5x384xbf16>, vector<384x384xbf16>, vector<5x384xf32> -> vector<5x384xf32>
    %c0_14 = arith.constant 0 : index
    %c0_15 = arith.constant 0 : index
    %c0_16 = arith.constant 0 : index
    %30 = vector.load %arg5[%c0_14, %c0_15, %c0_16] : memref<1x5x384xf32, #tpu.memory_space<vmem>>, vector<1x5x384xf32>
    %31 = vector.shape_cast %30 : vector<1x5x384xf32> to vector<5x384xf32>
    %32 = arith.addf %29, %31 : vector<5x384xf32>
    %c0_17 = arith.constant 0 : index
    %c0_18 = arith.constant 0 : index
    %33 = vector.load %arg7[%c0_17, %c0_18] : memref<1x384xf32, #tpu.memory_space<vmem>>, vector<1x384xf32>
    %34 = vector.broadcast %33 : vector<1x384xf32> to vector<5x384xf32>
    %35 = arith.addf %32, %34 : vector<5x384xf32>
    %c0_19 = arith.constant 0 : index
    %c0_20 = arith.constant 0 : index
    %c0_21 = arith.constant 0 : index
    %36 = vector.load %arg8[%c0_19, %c0_20, %c0_21] : memref<1x5x384xf32, #tpu.memory_space<vmem>>, vector<1x5x384xf32>
    %37 = vector.shape_cast %36 : vector<1x5x384xf32> to vector<5x384xf32>
    %38 = vector.shape_cast %35 : vector<5x384xf32> to vector<1x5x384xf32>
    tpu.vector_store %arg8[%c0_19, %c0_20, %c0_21], %38 {strides = array<i32>} : memref<1x5x384xf32, #tpu.memory_space<vmem>>, vector<1x5x384xf32>,
    return
  }
  func.func @transform_0(%arg0: i32, %arg1: i32) -> (i32, i32, i32) {
    %c0_i32 = arith.constant 0 : i32
    %c0_i32_0 = arith.constant 0 : i32
    return %arg0, %arg1, %c0_i32 : i32, i32, i32
  }
  func.func @transform_1(%arg0: i32, %arg1: i32) -> (i32, i32, i32) {
    %c0_i32 = arith.constant 0 : i32
    %c1_i32 = arith.constant 1 : i32
    %c0_i32_0 = arith.constant 0 : i32
    return %arg0, %c0_i32, %c1_i32 : i32, i32, i32
  }
  func.func @transform_2(%arg0: i32, %arg1: i32) -> (i32, i32, i32) {
    %c0_i32 = arith.constant 0 : i32
    %c2_i32 = arith.constant 2 : i32
    %c0_i32_0 = arith.constant 0 : i32
    return %arg0, %c0_i32, %c2_i32 : i32, i32, i32
  }
  func.func @transform_3(%arg0: i32, %arg1: i32) -> (i32, i32, i32) {
    %c0_i32 = arith.constant 0 : i32
    %c0_i32_0 = arith.constant 0 : i32
    return %arg0, %arg1, %c0_i32 : i32, i32, i32
  }
  func.func @transform_4(%arg0: i32, %arg1: i32) -> (i32, i32) {
    %c0_i32 = arith.constant 0 : i32
    %c0_i32_0 = arith.constant 0 : i32
    %c0_i32_1 = arith.constant 0 : i32
    return %c0_i32, %c0_i32_0 : i32, i32
  }
  func.func @transform_5(%arg0: i32, %arg1: i32) -> (i32, i32) {
    %c0_i32 = arith.constant 0 : i32
    %c0_i32_0 = arith.constant 0 : i32
    %c0_i32_1 = arith.constant 0 : i32
    return %c0_i32, %c0_i32_0 : i32, i32
  }
  func.func @transform_6(%arg0: i32, %arg1: i32) -> (i32, i32, i32) {
    %c0_i32 = arith.constant 0 : i32
    %c0_i32_0 = arith.constant 0 : i32
    return %arg0, %arg1, %c0_i32 : i32, i32, i32
  }
}

module attributes {stable_mosaic.version = 11 : i64} {
  func.func @_ln_mlp_kernel(%arg0: i32, %arg1: memref<10x384xf32, #tpu.memory_space<vmem>>, %arg2: memref<1x384xf32, #tpu.memory_space<vmem>>, %arg3: memref<1x384xf32, #tpu.memory_space<vmem>>, %arg4: memref<384x1536xbf16, #tpu.memory_space<vmem>>, %arg5: memref<1x1536xf32, #tpu.memory_space<vmem>>, %arg6: memref<1536x384xbf16, #tpu.memory_space<vmem>>, %arg7: memref<1x384xf32, #tpu.memory_space<vmem>>, %arg8: memref<10x384xf32, #tpu.memory_space<vmem>>) attributes {dimension_semantics = [#tpu.dimension_semantics<parallel>], iteration_bounds = array<i64: 1>, scalar_prefetch = 0 : i64, scratch_operands = 0 : i64, tpu.core_type = #tpu.core_type<tc>, window_params = [{transform_indices = @transform_0, window_bounds = array<i64: 10, 384>}, {pipeline_mode = #tpu.pipeline_mode<synchronous>, transform_indices = @transform_1, window_bounds = array<i64: 1, 384>}, {pipeline_mode = #tpu.pipeline_mode<synchronous>, transform_indices = @transform_2, window_bounds = array<i64: 1, 384>}, {pipeline_mode = #tpu.pipeline_mode<synchronous>, transform_indices = @transform_3, window_bounds = array<i64: 384, 1536>}, {pipeline_mode = #tpu.pipeline_mode<synchronous>, transform_indices = @transform_4, window_bounds = array<i64: 1, 1536>}, {pipeline_mode = #tpu.pipeline_mode<synchronous>, transform_indices = @transform_5, window_bounds = array<i64: 1536, 384>}, {pipeline_mode = #tpu.pipeline_mode<synchronous>, transform_indices = @transform_6, window_bounds = array<i64: 1, 384>}, {transform_indices = @transform_7, window_bounds = array<i64: 10, 384>}]} {
    %c0 = arith.constant 0 : index
    %c0_0 = arith.constant 0 : index
    %0 = vector.load %arg1[%c0, %c0_0] : memref<10x384xf32, #tpu.memory_space<vmem>>, vector<10x384xf32>
    %c0_1 = arith.constant 0 : index
    %c0_2 = arith.constant 0 : index
    %1 = vector.load %arg2[%c0_1, %c0_2] : memref<1x384xf32, #tpu.memory_space<vmem>>, vector<1x384xf32>
    %c0_3 = arith.constant 0 : index
    %c0_4 = arith.constant 0 : index
    %2 = vector.load %arg3[%c0_3, %c0_4] : memref<1x384xf32, #tpu.memory_space<vmem>>, vector<1x384xf32>
    %cst = arith.constant dense<0.000000e+00> : vector<10xf32>
    %3 = vector.multi_reduction <add>, %0, %cst [1] : vector<10x384xf32> to vector<10xf32>
    %4 = vector.shape_cast %3 : vector<10xf32> to vector<10x1xf32>
    %cst_5 = arith.constant 3.840000e+02 : f32
    %5 = vector.broadcast %cst_5 : f32 to vector<10x1xf32>
    %6 = arith.divf %4, %5 : vector<10x1xf32>
    %7 = vector.broadcast %6 : vector<10x1xf32> to vector<10x384xf32>
    %8 = arith.subf %0, %7 : vector<10x384xf32>
    %9 = arith.mulf %8, %8 : vector<10x384xf32>
    %cst_6 = arith.constant dense<0.000000e+00> : vector<10xf32>
    %10 = vector.multi_reduction <add>, %9, %cst_6 [1] : vector<10x384xf32> to vector<10xf32>
    %11 = vector.shape_cast %10 : vector<10xf32> to vector<10x1xf32>
    %cst_7 = arith.constant 3.840000e+02 : f32
    %12 = vector.broadcast %cst_7 : f32 to vector<10x1xf32>
    %13 = arith.divf %11, %12 : vector<10x1xf32>
    %14 = vector.broadcast %6 : vector<10x1xf32> to vector<10x384xf32>
    %15 = arith.subf %0, %14 : vector<10x384xf32>
    %cst_8 = arith.constant 9.99999997E-7 : f32
    %16 = vector.broadcast %cst_8 : f32 to vector<10x1xf32>
    %17 = arith.addf %13, %16 : vector<10x1xf32>
    %18 = math.rsqrt %17 : vector<10x1xf32>
    %19 = vector.broadcast %18 : vector<10x1xf32> to vector<10x384xf32>
    %20 = arith.mulf %15, %19 : vector<10x384xf32>
    %21 = vector.broadcast %1 : vector<1x384xf32> to vector<10x384xf32>
    %22 = arith.mulf %20, %21 : vector<10x384xf32>
    %23 = vector.broadcast %2 : vector<1x384xf32> to vector<10x384xf32>
    %24 = arith.addf %22, %23 : vector<10x384xf32>
    %25 = arith.truncf %24 : vector<10x384xf32> to vector<10x384xbf16>
    %c0_9 = arith.constant 0 : index
    %c0_10 = arith.constant 0 : index
    %26 = vector.load %arg4[%c0_9, %c0_10] : memref<384x1536xbf16, #tpu.memory_space<vmem>>, vector<384x1536xbf16>
    %cst_11 = arith.constant dense<0.000000e+00> : vector<10x1536xf32>
    %27 = tpu.matmul %25, %26, %cst_11 {dimension_numbers = #tpu.dot_dimension_numbers<[1], [0], [0], [1], [0, 0, 1, 1], [], []>} : vector<10x384xbf16>, vector<384x1536xbf16>, vector<10x1536xf32> -> vector<10x1536xf32>
    %c0_12 = arith.constant 0 : index
    %c0_13 = arith.constant 0 : index
    %28 = vector.load %arg5[%c0_12, %c0_13] : memref<1x1536xf32, #tpu.memory_space<vmem>>, vector<1x1536xf32>
    %29 = vector.broadcast %28 : vector<1x1536xf32> to vector<10x1536xf32>
    %30 = arith.addf %27, %29 : vector<10x1536xf32>
    %cst_14 = arith.constant 5.000000e-01 : f32
    %31 = vector.broadcast %cst_14 : f32 to vector<10x1536xf32>
    %32 = arith.mulf %31, %30 : vector<10x1536xf32>
    %cst_15 = arith.constant 4.471500e-02 : f32
    %33 = vector.broadcast %cst_15 : f32 to vector<10x1536xf32>
    %34 = arith.mulf %33, %30 : vector<10x1536xf32>
    %35 = arith.mulf %34, %30 : vector<10x1536xf32>
    %36 = arith.mulf %35, %30 : vector<10x1536xf32>
    %37 = arith.addf %30, %36 : vector<10x1536xf32>
    %cst_16 = arith.constant 0.797884583 : f32
    %38 = vector.broadcast %cst_16 : f32 to vector<10x1536xf32>
    %39 = arith.mulf %38, %37 : vector<10x1536xf32>
    %40 = math.tanh %39 : vector<10x1536xf32>
    %cst_17 = arith.constant 1.000000e+00 : f32
    %41 = vector.broadcast %cst_17 : f32 to vector<10x1536xf32>
    %42 = arith.addf %41, %40 : vector<10x1536xf32>
    %43 = arith.mulf %32, %42 : vector<10x1536xf32>
    %44 = arith.truncf %43 : vector<10x1536xf32> to vector<10x1536xbf16>
    %c0_18 = arith.constant 0 : index
    %c0_19 = arith.constant 0 : index
    %45 = vector.load %arg6[%c0_18, %c0_19] : memref<1536x384xbf16, #tpu.memory_space<vmem>>, vector<1536x384xbf16>
    %cst_20 = arith.constant dense<0.000000e+00> : vector<10x384xf32>
    %46 = tpu.matmul %44, %45, %cst_20 {dimension_numbers = #tpu.dot_dimension_numbers<[1], [0], [0], [1], [0, 0, 1, 1], [], []>} : vector<10x1536xbf16>, vector<1536x384xbf16>, vector<10x384xf32> -> vector<10x384xf32>
    %c0_21 = arith.constant 0 : index
    %c0_22 = arith.constant 0 : index
    %47 = vector.load %arg7[%c0_21, %c0_22] : memref<1x384xf32, #tpu.memory_space<vmem>>, vector<1x384xf32>
    %48 = vector.broadcast %47 : vector<1x384xf32> to vector<10x384xf32>
    %49 = arith.addf %46, %48 : vector<10x384xf32>
    %50 = arith.addf %0, %49 : vector<10x384xf32>
    %c0_23 = arith.constant 0 : index
    %c0_24 = arith.constant 0 : index
    %51 = vector.load %arg8[%c0_23, %c0_24] : memref<10x384xf32, #tpu.memory_space<vmem>>, vector<10x384xf32>
    tpu.vector_store %arg8[%c0_23, %c0_24], %50 {strides = array<i32>} : memref<10x384xf32, #tpu.memory_space<vmem>>, vector<10x384xf32>,
    return
  }
  func.func @transform_0(%arg0: i32) -> (i32, i32) {
    %c0_i32 = arith.constant 0 : i32
    %c0_i32_0 = arith.constant 0 : i32
    return %arg0, %c0_i32 : i32, i32
  }
  func.func @transform_1(%arg0: i32) -> (i32, i32) {
    %c0_i32 = arith.constant 0 : i32
    %c0_i32_0 = arith.constant 0 : i32
    %c0_i32_1 = arith.constant 0 : i32
    return %c0_i32, %c0_i32_0 : i32, i32
  }
  func.func @transform_2(%arg0: i32) -> (i32, i32) {
    %c0_i32 = arith.constant 0 : i32
    %c0_i32_0 = arith.constant 0 : i32
    %c0_i32_1 = arith.constant 0 : i32
    return %c0_i32, %c0_i32_0 : i32, i32
  }
  func.func @transform_3(%arg0: i32) -> (i32, i32) {
    %c0_i32 = arith.constant 0 : i32
    %c0_i32_0 = arith.constant 0 : i32
    %c0_i32_1 = arith.constant 0 : i32
    return %c0_i32, %c0_i32_0 : i32, i32
  }
  func.func @transform_4(%arg0: i32) -> (i32, i32) {
    %c0_i32 = arith.constant 0 : i32
    %c0_i32_0 = arith.constant 0 : i32
    %c0_i32_1 = arith.constant 0 : i32
    return %c0_i32, %c0_i32_0 : i32, i32
  }
  func.func @transform_5(%arg0: i32) -> (i32, i32) {
    %c0_i32 = arith.constant 0 : i32
    %c0_i32_0 = arith.constant 0 : i32
    %c0_i32_1 = arith.constant 0 : i32
    return %c0_i32, %c0_i32_0 : i32, i32
  }
  func.func @transform_6(%arg0: i32) -> (i32, i32) {
    %c0_i32 = arith.constant 0 : i32
    %c0_i32_0 = arith.constant 0 : i32
    %c0_i32_1 = arith.constant 0 : i32
    return %c0_i32, %c0_i32_0 : i32, i32
  }
  func.func @transform_7(%arg0: i32) -> (i32, i32) {
    %c0_i32 = arith.constant 0 : i32
    %c0_i32_0 = arith.constant 0 : i32
    return %arg0, %c0_i32 : i32, i32
  }
}

module attributes {stable_mosaic.version = 11 : i64} {
  func.func @_ln_head_kernel(%arg0: i32, %arg1: memref<2x384xf32, #tpu.memory_space<vmem>>, %arg2: memref<1x384xf32, #tpu.memory_space<vmem>>, %arg3: memref<1x384xf32, #tpu.memory_space<vmem>>, %arg4: memref<384x128xbf16, #tpu.memory_space<vmem>>, %arg5: memref<1x128xf32, #tpu.memory_space<vmem>>, %arg6: memref<2x384xf32, #tpu.memory_space<vmem>>, %arg7: memref<2x128xf32, #tpu.memory_space<vmem>>) attributes {dimension_semantics = [#tpu.dimension_semantics<arbitrary>], iteration_bounds = array<i64: 1>, scalar_prefetch = 0 : i64, scratch_operands = 0 : i64, tpu.core_type = #tpu.core_type<tc>, window_params = [{pipeline_mode = #tpu.pipeline_mode<synchronous>, transform_indices = @transform_0, window_bounds = array<i64: 2, 384>}, {pipeline_mode = #tpu.pipeline_mode<synchronous>, transform_indices = @transform_1, window_bounds = array<i64: 1, 384>}, {pipeline_mode = #tpu.pipeline_mode<synchronous>, transform_indices = @transform_2, window_bounds = array<i64: 1, 384>}, {pipeline_mode = #tpu.pipeline_mode<synchronous>, transform_indices = @transform_3, window_bounds = array<i64: 384, 128>}, {pipeline_mode = #tpu.pipeline_mode<synchronous>, transform_indices = @transform_4, window_bounds = array<i64: 1, 128>}, {pipeline_mode = #tpu.pipeline_mode<synchronous>, transform_indices = @transform_5, window_bounds = array<i64: 2, 384>}, {pipeline_mode = #tpu.pipeline_mode<synchronous>, transform_indices = @transform_6, window_bounds = array<i64: 2, 128>}]} {
    %c0 = arith.constant 0 : index
    %c0_0 = arith.constant 0 : index
    %0 = vector.load %arg1[%c0, %c0_0] : memref<2x384xf32, #tpu.memory_space<vmem>>, vector<2x384xf32>
    %c0_1 = arith.constant 0 : index
    %c0_2 = arith.constant 0 : index
    %1 = vector.load %arg2[%c0_1, %c0_2] : memref<1x384xf32, #tpu.memory_space<vmem>>, vector<1x384xf32>
    %c0_3 = arith.constant 0 : index
    %c0_4 = arith.constant 0 : index
    %2 = vector.load %arg3[%c0_3, %c0_4] : memref<1x384xf32, #tpu.memory_space<vmem>>, vector<1x384xf32>
    %cst = arith.constant dense<0.000000e+00> : vector<2xf32>
    %3 = vector.multi_reduction <add>, %0, %cst [1] : vector<2x384xf32> to vector<2xf32>
    %4 = vector.shape_cast %3 : vector<2xf32> to vector<2x1xf32>
    %cst_5 = arith.constant 3.840000e+02 : f32
    %5 = vector.broadcast %cst_5 : f32 to vector<2x1xf32>
    %6 = arith.divf %4, %5 : vector<2x1xf32>
    %7 = vector.broadcast %6 : vector<2x1xf32> to vector<2x384xf32>
    %8 = arith.subf %0, %7 : vector<2x384xf32>
    %9 = arith.mulf %8, %8 : vector<2x384xf32>
    %cst_6 = arith.constant dense<0.000000e+00> : vector<2xf32>
    %10 = vector.multi_reduction <add>, %9, %cst_6 [1] : vector<2x384xf32> to vector<2xf32>
    %11 = vector.shape_cast %10 : vector<2xf32> to vector<2x1xf32>
    %cst_7 = arith.constant 3.840000e+02 : f32
    %12 = vector.broadcast %cst_7 : f32 to vector<2x1xf32>
    %13 = arith.divf %11, %12 : vector<2x1xf32>
    %14 = vector.broadcast %6 : vector<2x1xf32> to vector<2x384xf32>
    %15 = arith.subf %0, %14 : vector<2x384xf32>
    %cst_8 = arith.constant 9.99999997E-7 : f32
    %16 = vector.broadcast %cst_8 : f32 to vector<2x1xf32>
    %17 = arith.addf %13, %16 : vector<2x1xf32>
    %18 = math.rsqrt %17 : vector<2x1xf32>
    %19 = vector.broadcast %18 : vector<2x1xf32> to vector<2x384xf32>
    %20 = arith.mulf %15, %19 : vector<2x384xf32>
    %21 = vector.broadcast %1 : vector<1x384xf32> to vector<2x384xf32>
    %22 = arith.mulf %20, %21 : vector<2x384xf32>
    %23 = vector.broadcast %2 : vector<1x384xf32> to vector<2x384xf32>
    %24 = arith.addf %22, %23 : vector<2x384xf32>
    %c0_9 = arith.constant 0 : index
    %c0_10 = arith.constant 0 : index
    %25 = vector.load %arg6[%c0_9, %c0_10] : memref<2x384xf32, #tpu.memory_space<vmem>>, vector<2x384xf32>
    tpu.vector_store %arg6[%c0_9, %c0_10], %24 {strides = array<i32>} : memref<2x384xf32, #tpu.memory_space<vmem>>, vector<2x384xf32>,
    %26 = arith.truncf %24 : vector<2x384xf32> to vector<2x384xbf16>
    %c0_11 = arith.constant 0 : index
    %c0_12 = arith.constant 0 : index
    %27 = vector.load %arg4[%c0_11, %c0_12] : memref<384x128xbf16, #tpu.memory_space<vmem>>, vector<384x128xbf16>
    %cst_13 = arith.constant dense<0.000000e+00> : vector<2x128xf32>
    %28 = tpu.matmul %26, %27, %cst_13 {dimension_numbers = #tpu.dot_dimension_numbers<[1], [0], [0], [1], [0, 0, 1, 1], [], []>} : vector<2x384xbf16>, vector<384x128xbf16>, vector<2x128xf32> -> vector<2x128xf32>
    %c0_14 = arith.constant 0 : index
    %c0_15 = arith.constant 0 : index
    %29 = vector.load %arg5[%c0_14, %c0_15] : memref<1x128xf32, #tpu.memory_space<vmem>>, vector<1x128xf32>
    %30 = vector.broadcast %29 : vector<1x128xf32> to vector<2x128xf32>
    %31 = arith.addf %28, %30 : vector<2x128xf32>
    %c0_16 = arith.constant 0 : index
    %c0_17 = arith.constant 0 : index
    %32 = vector.load %arg7[%c0_16, %c0_17] : memref<2x128xf32, #tpu.memory_space<vmem>>, vector<2x128xf32>
    tpu.vector_store %arg7[%c0_16, %c0_17], %31 {strides = array<i32>} : memref<2x128xf32, #tpu.memory_space<vmem>>, vector<2x128xf32>,
    return
  }
  func.func @transform_0(%arg0: i32) -> (i32, i32) {
    %c0_i32 = arith.constant 0 : i32
    %c0_i32_0 = arith.constant 0 : i32
    %c0_i32_1 = arith.constant 0 : i32
    return %c0_i32, %c0_i32_0 : i32, i32
  }
  func.func @transform_1(%arg0: i32) -> (i32, i32) {
    %c0_i32 = arith.constant 0 : i32
    %c0_i32_0 = arith.constant 0 : i32
    %c0_i32_1 = arith.constant 0 : i32
    return %c0_i32, %c0_i32_0 : i32, i32
  }
  func.func @transform_2(%arg0: i32) -> (i32, i32) {
    %c0_i32 = arith.constant 0 : i32
    %c0_i32_0 = arith.constant 0 : i32
    %c0_i32_1 = arith.constant 0 : i32
    return %c0_i32, %c0_i32_0 : i32, i32
  }
  func.func @transform_3(%arg0: i32) -> (i32, i32) {
    %c0_i32 = arith.constant 0 : i32
    %c0_i32_0 = arith.constant 0 : i32
    %c0_i32_1 = arith.constant 0 : i32
    return %c0_i32, %c0_i32_0 : i32, i32
  }
  func.func @transform_4(%arg0: i32) -> (i32, i32) {
    %c0_i32 = arith.constant 0 : i32
    %c0_i32_0 = arith.constant 0 : i32
    %c0_i32_1 = arith.constant 0 : i32
    return %c0_i32, %c0_i32_0 : i32, i32
  }
  func.func @transform_5(%arg0: i32) -> (i32, i32) {
    %c0_i32 = arith.constant 0 : i32
    %c0_i32_0 = arith.constant 0 : i32
    %c0_i32_1 = arith.constant 0 : i32
    return %c0_i32, %c0_i32_0 : i32, i32
  }
  func.func @transform_6(%arg0: i32) -> (i32, i32) {
    %c0_i32 = arith.constant 0 : i32
    %c0_i32_0 = arith.constant 0 : i32
    %c0_i32_1 = arith.constant 0 : i32
    return %c0_i32, %c0_i32_0 : i32, i32
  }
}

</mosaic_0001>

<llo_original>
// kernel: vit_mt_forward.9
$region0: #{vit_mt_forward.9}
  #allocation0 [shape = 'u32[]', space=smem, size = 0x4, offset = 0x4, fixed_abs, tag = 'smem constant byte address 0x4 - core index']
  #allocation1 [shape = 'u32[144,128]{1,0:T(1,128)}', space=vmem, size = 0x12000, scoped, tag = 'internal scratch']
  %s0 = inlined_call_operand.vmem [shape: f32[10,384], index: 0, kind: input, shape index: {}]
  %s1 = inlined_call_operand.vmem [shape: f32[1,384], index: 1, kind: input, shape index: {}]
  %s2 = inlined_call_operand.vmem [shape: f32[1,384], index: 2, kind: input, shape index: {}]
  %s3 = inlined_call_operand.vmem [shape: bf16[384,1152], index: 3, kind: input, shape index: {}]
  %s4 = inlined_call_operand.vmem [shape: f32[1,1152], index: 4, kind: input, shape index: {}]
  %s5 = inlined_call_operand.vmem [shape: bf16[10,1152], index: 5, kind: output, shape index: {}]
  %s6 = sld [smem:[#allocation0]]
  $region30: #{vit_mt_forward.9} parent=0
    _
  %s8 = ssub.s32 1, %s6
  %s9 = scalar_select 0, %s8, %s6
  // Predicated region
  $region2: #{vit_mt_forward.9} parent=0 // pred_check
    _
  $region3: #{vit_mt_forward.9} parent=0 // pred_check_branch
    %11 = sbr.rel (0) target = $region5
  $region4: #{vit_mt_forward.9} parent=0 // pred_region
    _
  $region5: #{vit_mt_forward.9} parent=0 // pred_fallthru
    _
  // Predicated region
  $region6: #{vit_mt_forward.9} parent=0 // pred_check
    _
  $region7: #{vit_mt_forward.9} parent=0 // pred_check_branch
    %13 = sbr.rel (0) target = $region9
  $region8: #{vit_mt_forward.9} parent=0 // pred_region
    _
  $region9: #{vit_mt_forward.9} parent=0 // pred_fallthru
    _
  // Predicated region
  $region10: #{vit_mt_forward.9} parent=0 // pred_check
    _
  $region11: #{vit_mt_forward.9} parent=0 // pred_check_branch
    %15 = sbr.rel (0) target = $region13
  $region12: #{vit_mt_forward.9} parent=0 // pred_region
    _
  $region13: #{vit_mt_forward.9} parent=0 // pred_fallthru
    _
  // Predicated region
  $region14: #{vit_mt_forward.9} parent=0 // pred_check
    _
  $region15: #{vit_mt_forward.9} parent=0 // pred_check_branch
    %17 = sbr.rel (0) target = $region17
  $region16: #{vit_mt_forward.9} parent=0 // pred_region
    _
  $region17: #{vit_mt_forward.9} parent=0 // pred_fallthru
    _
  // Predicated region
  $region18: #{vit_mt_forward.9} parent=0 // pred_check
    _
  $region19: #{vit_mt_forward.9} parent=0 // pred_check_branch
    %19 = sbr.rel (0) target = $region21
  $region20: #{vit_mt_forward.9} parent=0 // pred_region
    _
  $region21: #{vit_mt_forward.9} parent=0 // pred_fallthru
    _
  %v21 = vld [vmem:[%s0] sm:$0xff]
  %v22 = vld [vmem:[%s0 + $0x8] sm:$0xff]
  %v23 = vld [vmem:[%s0 + $0x10] sm:$0xff]
  %v24 = vld [vmem:[%s0 + $0x18] sm:$0x3]
  %v25 = vld [vmem:[%s0 + $0x20] sm:$0x3]
  %v26 = vld [vmem:[%s0 + $0x28] sm:$0x3]
  %v27 = vld [vmem:[%s1] sm:$0x7]
  %v28 = vld [vmem:[%s2] sm:$0x7]
  %v29 = vadd.f32 %v21, %v22
  %v30 = vadd.f32 %v29, %v23
  %31 = vadd.xlane.f32.xlu0 %v30
  %v32 = vpop.xlane.xlu0 %31
  %vm33 = vcmask 1041408
  %v34 = vsel %vm33, %v24, 0.0
  %v35 = vsel %vm33, %v25, 0.0
  %v36 = vadd.f32 %v34, %v35
  %v37 = vsel %vm33, %v26, 0.0
  %v38 = vadd.f32 %v36, %v37
  %39 = vadd.xlane.f32.xlu0 %v38
  %v40 = vpop.xlane.xlu0 %39
  %v41 = vrcp.pop 384.0
  %v42 = vmul.f32 %v32, %v41
  %v43 = vmul.f32 %v40, %v41
  %v44 = vsub.f32 %v21, %v42
  %v45 = vsub.f32 %v22, %v42
  %v46 = vsub.f32 %v23, %v42
  %v47 = vsub.f32 %v24, %v43
  %v48 = vsub.f32 %v25, %v43
  %v49 = vsub.f32 %v26, %v43
  %v50 = vmul.f32 %v44, %v44
  %v51 = vmul.f32 %v45, %v45
  %v52 = vmul.f32 %v46, %v46
  %v53 = vmul.f32 %v47, %v47
  %v54 = vmul.f32 %v48, %v48
  %v55 = vmul.f32 %v49, %v49
  %v56 = vadd.f32 %v50, %v51
  %v57 = vadd.f32 %v56, %v52
  %58 = vadd.xlane.f32.xlu0 %v57
  %v59 = vpop.xlane.xlu0 %58
  %v60 = vsel %vm33, %v53, 0.0
  %v61 = vsel %vm33, %v54, 0.0
  %v62 = vadd.f32 %v60, %v61
  %v63 = vsel %vm33, %v55, 0.0
  %v64 = vadd.f32 %v62, %v63
  %65 = vadd.xlane.f32.xlu0 %v64
  %v66 = vpop.xlane.xlu0 %65
  %v67 = vmul.f32 %v59, %v41
  %v68 = vmul.f32 %v66, %v41
  %v69 = vadd.f32 %v67, 1e-06
  %v70 = vadd.f32 %v68, 1e-06
  %v71 = vrsqrt.pop %v69
  %v72 = vrsqrt.pop %v70
  %v73 = vmul.f32 %v44, %v71
  %v74 = vmul.f32 %v45, %v71
  %v75 = vmul.f32 %v46, %v71
  %v76 = vmul.f32 %v47, %v72
  %v77 = vmul.f32 %v48, %v72
  %v78 = vmul.f32 %v49, %v72
  %v80 = vlaneseq
  %v81 = vshrl.u32 %v80, 7
  %v82 = vsub.s32 0, %v81
  %v83 = vrot.slane %v27, %v82
  %v84 = vlaneseq
  %v85 = vshrl.u32 %v84, 7
  %v86 = vsub.s32 1, %v85
  %v87 = vrot.slane %v27, %v86
  %v88 = vlaneseq
  %v89 = vshrl.u32 %v88, 7
  %v90 = vsub.s32 2, %v89
  %v91 = vrot.slane %v27, %v90
  %v95 = vmul.f32 %v73, %v83
  %v96 = vmul.f32 %v74, %v87
  %v97 = vmul.f32 %v75, %v91
  %v98 = vmul.f32 %v76, %v83
  %v99 = vmul.f32 %v77, %v87
  %v100 = vmul.f32 %v78, %v91
  %v102 = vlaneseq
  %v103 = vshrl.u32 %v102, 7
  %v104 = vsub.s32 0, %v103
  %v105 = vrot.slane %v28, %v104
  %v106 = vlaneseq
  %v107 = vshrl.u32 %v106, 7
  %v108 = vsub.s32 1, %v107
  %v109 = vrot.slane %v28, %v108
  %v110 = vlaneseq
  %v111 = vshrl.u32 %v110, 7
  %v112 = vsub.s32 2, %v111
  %v113 = vrot.slane %v28, %v112
  %v117 = vadd.f32 %v95, %v105
  %v118 = vadd.f32 %v96, %v109
  %v119 = vadd.f32 %v97, %v113
  %v120 = vadd.f32 %v98, %v105
  %v121 = vadd.f32 %v99, %v109
  %v122 = vadd.f32 %v100, %v113
  %v123 = vpack.c.bf16 %v120, %v117
  %v124 = vpack.c.bf16 %v121, %v118
  %v125 = vpack.c.bf16 %v122, %v119
  %v126 = vld [vmem:[%s3] sm:$0xff]
  %v127 = vld [vmem:[%s3 + $0x8] sm:$0xff]
  %v128 = vld [vmem:[%s3 + $0x10] sm:$0xff]
  %v129 = vld [vmem:[%s3 + $0x18] sm:$0xff]
  %v130 = vld [vmem:[%s3 + $0x20] sm:$0xf]
  %v131 = vld [vmem:[%s3 + $0x24] sm:$0xff]
  %v132 = vld [vmem:[%s3 + $0x2c] sm:$0xff]
  %v133 = vld [vmem:[%s3 + $0x34] sm:$0xff]
  %v134 = vld [vmem:[%s3 + $0x3c] sm:$0xff]
  %v135 = vld [vmem:[%s3 + $0x44] sm:$0xf]
  %v136 = vld [vmem:[%s3 + $0x48] sm:$0xff]
  %v137 = vld [vmem:[%s3 + $0x50] sm:$0xff]
  %v138 = vld [vmem:[%s3 + $0x58] sm:$0xff]
  %v139 = vld [vmem:[%s3 + $0x60] sm:$0xff]
  %v140 = vld [vmem:[%s3 + $0x68] sm:$0xf]
  %v141 = vld [vmem:[%s3 + $0x6c] sm:$0xff]
  %v142 = vld [vmem:[%s3 + $0x74] sm:$0xff]
  %v143 = vld [vmem:[%s3 + $0x7c] sm:$0xff]
  %v144 = vld [vmem:[%s3 + $0x84] sm:$0xff]
  %v145 = vld [vmem:[%s3 + $0x8c] sm:$0xf]
  %v146 = vld [vmem:[%s3 + $0x90] sm:$0xff]
  %v147 = vld [vmem:[%s3 + $0x98] sm:$0xff]
  %v148 = vld [vmem:[%s3 + $0xa0] sm:$0xff]
  %v149 = vld [vmem:[%s3 + $0xa8] sm:$0xff]
  %v150 = vld [vmem:[%s3 + $0xb0] sm:$0xf]
  %v151 = vld [vmem:[%s3 + $0xb4] sm:$0xff]
  %v152 = vld [vmem:[%s3 + $0xbc] sm:$0xff]
  %v153 = vld [vmem:[%s3 + $0xc4] sm:$0xff]
  %v154 = vld [vmem:[%s3 + $0xcc] sm:$0xff]
  %v155 = vld [vmem:[%s3 + $0xd4] sm:$0xf]
  %v156 = vld [vmem:[%s3 + $0xd8] sm:$0xff]
  %v157 = vld [vmem:[%s3 + $0xe0] sm:$0xff]
  %v158 = vld [vmem:[%s3 + $0xe8] sm:$0xff]
  %v159 = vld [vmem:[%s3 + $0xf0] sm:$0xff]
  %v160 = vld [vmem:[%s3 + $0xf8] sm:$0xf]
  %v161 = vld [vmem:[%s3 + $0xfc] sm:$0xff]
  %v162 = vld [vmem:[%s3 + $0x104] sm:$0xff]
  %v163 = vld [vmem:[%s3 + $0x10c] sm:$0xff]
  %v164 = vld [vmem:[%s3 + $0x114] sm:$0xff]
  %v165 = vld [vmem:[%s3 + $0x11c] sm:$0xf]
  %v166 = vld [vmem:[%s3 + $0x120] sm:$0xff]
  %v167 = vld [vmem:[%s3 + $0x128] sm:$0xff]
  %v168 = vld [vmem:[%s3 + $0x130] sm:$0xff]
  %v169 = vld [vmem:[%s3 + $0x138] sm:$0xff]
  %v170 = vld [vmem:[%s3 + $0x140] sm:$0xf]
  %v171 = vld [vmem:[%s3 + $0x144] sm:$0xff]
  %v172 = vld [vmem:[%s3 + $0x14c] sm:$0xff]
  %v173 = vld [vmem:[%s3 + $0x154] sm:$0xff]
  %v174 = vld [vmem:[%s3 + $0x15c] sm:$0xff]
  %v175 = vld [vmem:[%s3 + $0x164] sm:$0xf]
  %v176 = vld [vmem:[%s3 + $0x168] sm:$0xff]
  %v177 = vld [vmem:[%s3 + $0x170] sm:$0xff]
  %v178 = vld [vmem:[%s3 + $0x178] sm:$0xff]
  %v179 = vld [vmem:[%s3 + $0x180] sm:$0xff]
  %v180 = vld [vmem:[%s3 + $0x188] sm:$0xf]
  %v181 = vld [vmem:[%s3 + $0x18c] sm:$0xff]
  %v182 = vld [vmem:[%s3 + $0x194] sm:$0xff]
  %v183 = vld [vmem:[%s3 + $0x19c] sm:$0xff]
  %v184 = vld [vmem:[%s3 + $0x1a4] sm:$0xff]
  %v185 = vld [vmem:[%s3 + $0x1ac] sm:$0xf]
  %v186 = vld [vmem:[%s3 + $0x1b0] sm:$0xff]
  %v187 = vld [vmem:[%s3 + $0x1b8] sm:$0xff]
  %v188 = vld [vmem:[%s3 + $0x1c0] sm:$0xff]
  %v189 = vld [vmem:[%s3 + $0x1c8] sm:$0xff]
  %v190 = vld [vmem:[%s3 + $0x1d0] sm:$0xf]
  %v191 = vld [vmem:[%s3 + $0x1d4] sm:$0xff]
  %v192 = vld [vmem:[%s3 + $0x1dc] sm:$0xff]
  %v193 = vld [vmem:[%s3 + $0x1e4] sm:$0xff]
  %v194 = vld [vmem:[%s3 + $0x1ec] sm:$0xff]
  %v195 = vld [vmem:[%s3 + $0x1f4] sm:$0xf]
  %v196 = vld [vmem:[%s3 + $0x1f8] sm:$0xff]
  %v197 = vld [vmem:[%s3 + $0x200] sm:$0xff]
  %v198 = vld [vmem:[%s3 + $0x208] sm:$0xff]
  %v199 = vld [vmem:[%s3 + $0x210] sm:$0xff]
  %v200 = vld [vmem:[%s3 + $0x218] sm:$0xf]
  %v201 = vld [vmem:[%s3 + $0x21c] sm:$0xff]
  %v202 = vld [vmem:[%s3 + $0x224] sm:$0xff]
  %v203 = vld [vmem:[%s3 + $0x22c] sm:$0xff]
  %v204 = vld [vmem:[%s3 + $0x234] sm:$0xff]
  %v205 = vld [vmem:[%s3 + $0x23c] sm:$0xf]
  %v206 = vld [vmem:[%s3 + $0x240] sm:$0xff]
  %v207 = vld [vmem:[%s3 + $0x248] sm:$0xff]
  %v208 = vld [vmem:[%s3 + $0x250] sm:$0xff]
  %v209 = vld [vmem:[%s3 + $0x258] sm:$0xff]
  %v210 = vld [vmem:[%s3 + $0x260] sm:$0xf]
  %v211 = vld [vmem:[%s3 + $0x264] sm:$0xff]
  %v212 = vld [vmem:[%s3 + $0x26c] sm:$0xff]
  %v213 = vld [vmem:[%s3 + $0x274] sm:$0xff]
  %v214 = vld [vmem:[%s3 + $0x27c] sm:$0xff]
  %v215 = vld [vmem:[%s3 + $0x284] sm:$0xf]
  %v216 = vld [vmem:[%s3 + $0x288] sm:$0xff]
  %v217 = vld [vmem:[%s3 + $0x290] sm:$0xff]
  %v218 = vld [vmem:[%s3 + $0x298] sm:$0xff]
  %v219 = vld [vmem:[%s3 + $0x2a0] sm:$0xff]
  %v220 = vld [vmem:[%s3 + $0x2a8] sm:$0xf]
  %v221 = vld [vmem:[%s3 + $0x2ac] sm:$0xff]
  %v222 = vld [vmem:[%s3 + $0x2b4] sm:$0xff]
  %v223 = vld [vmem:[%s3 + $0x2bc] sm:$0xff]
  %v224 = vld [vmem:[%s3 + $0x2c4] sm:$0xff]
  %v225 = vld [vmem:[%s3 + $0x2cc] sm:$0xf]
  %v226 = vld [vmem:[%s3 + $0x2d0] sm:$0xff]
  %v227 = vld [vmem:[%s3 + $0x2d8] sm:$0xff]
  %v228 = vld [vmem:[%s3 + $0x2e0] sm:$0xff]
  %v229 = vld [vmem:[%s3 + $0x2e8] sm:$0xff]
  %v230 = vld [vmem:[%s3 + $0x2f0] sm:$0xf]
  %v231 = vld [vmem:[%s3 + $0x2f4] sm:$0xff]
  %v232 = vld [vmem:[%s3 + $0x2fc] sm:$0xff]
  %v233 = vld [vmem:[%s3 + $0x304] sm:$0xff]
  %v234 = vld [vmem:[%s3 + $0x30c] sm:$0xff]
  %v235 = vld [vmem:[%s3 + $0x314] sm:$0xf]
  %v236 = vld [vmem:[%s3 + $0x318] sm:$0xff]
  %v237 = vld [vmem:[%s3 + $0x320] sm:$0xff]
  %v238 = vld [vmem:[%s3 + $0x328] sm:$0xff]
  %v239 = vld [vmem:[%s3 + $0x330] sm:$0xff]
  %v240 = vld [vmem:[%s3 + $0x338] sm:$0xf]
  %v241 = vld [vmem:[%s3 + $0x33c] sm:$0xff]
  %v242 = vld [vmem:[%s3 + $0x344] sm:$0xff]
  %v243 = vld [vmem:[%s3 + $0x34c] sm:$0xff]
  %v244 = vld [vmem:[%s3 + $0x354] sm:$0xff]
  %v245 = vld [vmem:[%s3 + $0x35c] sm:$0xf]
  %v246 = vld [vmem:[%s3 + $0x360] sm:$0xff]
  %v247 = vld [vmem:[%s3 + $0x368] sm:$0xff]
  %v248 = vld [vmem:[%s3 + $0x370] sm:$0xff]
  %v249 = vld [vmem:[%s3 + $0x378] sm:$0xff]
  %v250 = vld [vmem:[%s3 + $0x380] sm:$0xf]
  %v251 = vld [vmem:[%s3 + $0x384] sm:$0xff]
  %v252 = vld [vmem:[%s3 + $0x38c] sm:$0xff]
  %v253 = vld [vmem:[%s3 + $0x394] sm:$0xff]
  %v254 = vld [vmem:[%s3 + $0x39c] sm:$0xff]
  %v255 = vld [vmem:[%s3 + $0x3a4] sm:$0xf]
  %v256 = vld [vmem:[%s3 + $0x3a8] sm:$0xff]
  %v257 = vld [vmem:[%s3 + $0x3b0] sm:$0xff]
  %v258 = vld [vmem:[%s3 + $0x3b8] sm:$0xff]
  %v259 = vld [vmem:[%s3 + $0x3c0] sm:$0xff]
  %v260 = vld [vmem:[%s3 + $0x3c8] sm:$0xf]
  %v261 = vld [vmem:[%s3 + $0x3cc] sm:$0xff]
  %v262 = vld [vmem:[%s3 + $0x3d4] sm:$0xff]
  %v263 = vld [vmem:[%s3 + $0x3dc] sm:$0xff]
  %v264 = vld [vmem:[%s3 + $0x3e4] sm:$0xff]
  %v265 = vld [vmem:[%s3 + $0x3ec] sm:$0xf]
  %v266 = vld [vmem:[%s3 + $0x3f0] sm:$0xff]
  %v267 = vld [vmem:[%s3 + $0x3f8] sm:$0xff]
  %v268 = vld [vmem:[%s3 + $0x400] sm:$0xff]
  %v269 = vld [vmem:[%s3 + $0x408] sm:$0xff]
  %v270 = vld [vmem:[%s3 + $0x410] sm:$0xf]
  %v271 = vld [vmem:[%s3 + $0x414] sm:$0xff]
  %v272 = vld [vmem:[%s3 + $0x41c] sm:$0xff]
  %v273 = vld [vmem:[%s3 + $0x424] sm:$0xff]
  %v274 = vld [vmem:[%s3 + $0x42c] sm:$0xff]
  %v275 = vld [vmem:[%s3 + $0x434] sm:$0xf]
  %v276 = vld [vmem:[%s3 + $0x438] sm:$0xff]
  %v277 = vld [vmem:[%s3 + $0x440] sm:$0xff]
  %v278 = vld [vmem:[%s3 + $0x448] sm:$0xff]
  %v279 = vld [vmem:[%s3 + $0x450] sm:$0xff]
  %v280 = vld [vmem:[%s3 + $0x458] sm:$0xf]
  %v281 = vld [vmem:[%s3 + $0x45c] sm:$0xff]
  %v282 = vld [vmem:[%s3 + $0x464] sm:$0xff]
  %v283 = vld [vmem:[%s3 + $0x46c] sm:$0xff]
  %v284 = vld [vmem:[%s3 + $0x474] sm:$0xff]
  %v285 = vld [vmem:[%s3 + $0x47c] sm:$0xf]
  %v286 = vld [vmem:[%s3 + $0x480] sm:$0xff]
  %v287 = vld [vmem:[%s3 + $0x488] sm:$0xff]
  %v288 = vld [vmem:[%s3 + $0x490] sm:$0xff]
  %v289 = vld [vmem:[%s3 + $0x498] sm:$0xff]
  %v290 = vld [vmem:[%s3 + $0x4a0] sm:$0xf]
  %v291 = vld [vmem:[%s3 + $0x4a4] sm:$0xff]
  %v292 = vld [vmem:[%s3 + $0x4ac] sm:$0xff]
  %v293 = vld [vmem:[%s3 + $0x4b4] sm:$0xff]
  %v294 = vld [vmem:[%s3 + $0x4bc] sm:$0xff]
  %v295 = vld [vmem:[%s3 + $0x4c4] sm:$0xf]
  %v296 = vld [vmem:[%s3 + $0x4c8] sm:$0xff]
  %v297 = vld [vmem:[%s3 + $0x4d0] sm:$0xff]
  %v298 = vld [vmem:[%s3 + $0x4d8] sm:$0xff]
  %v299 = vld [vmem:[%s3 + $0x4e0] sm:$0xff]
  %v300 = vld [vmem:[%s3 + $0x4e8] sm:$0xf]
  %v301 = vld [vmem:[%s3 + $0x4ec] sm:$0xff]
  %v302 = vld [vmem:[%s3 + $0x4f4] sm:$0xff]
  %v303 = vld [vmem:[%s3 + $0x4fc] sm:$0xff]
  %v304 = vld [vmem:[%s3 + $0x504] sm:$0xff]
  %v305 = vld [vmem:[%s3 + $0x50c] sm:$0xf]
  %v306 = vld [vmem:[%s3 + $0x510] sm:$0xff]
  %v307 = vld [vmem:[%s3 + $0x518] sm:$0xff]
  %v308 = vld [vmem:[%s3 + $0x520] sm:$0xff]
  %v309 = vld [vmem:[%s3 + $0x528] sm:$0xff]
  %v310 = vld [vmem:[%s3 + $0x530] sm:$0xf]
  %v311 = vld [vmem:[%s3 + $0x534] sm:$0xff]
  %v312 = vld [vmem:[%s3 + $0x53c] sm:$0xff]
  %v313 = vld [vmem:[%s3 + $0x544] sm:$0xff]
  %v314 = vld [vmem:[%s3 + $0x54c] sm:$0xff]
  %v315 = vld [vmem:[%s3 + $0x554] sm:$0xf]
  %v316 = vld [vmem:[%s3 + $0x558] sm:$0xff]
  %v317 = vld [vmem:[%s3 + $0x560] sm:$0xff]
  %v318 = vld [vmem:[%s3 + $0x568] sm:$0xff]
  %v319 = vld [vmem:[%s3 + $0x570] sm:$0xff]
  %v320 = vld [vmem:[%s3 + $0x578] sm:$0xf]
  %v321 = vld [vmem:[%s3 + $0x57c] sm:$0xff]
  %v322 = vld [vmem:[%s3 + $0x584] sm:$0xff]
  %v323 = vld [vmem:[%s3 + $0x58c] sm:$0xff]
  %v324 = vld [vmem:[%s3 + $0x594] sm:$0xff]
  %v325 = vld [vmem:[%s3 + $0x59c] sm:$0xf]
  %v326 = vld [vmem:[%s3 + $0x5a0] sm:$0xff]
  %v327 = vld [vmem:[%s3 + $0x5a8] sm:$0xff]
  %v328 = vld [vmem:[%s3 + $0x5b0] sm:$0xff]
  %v329 = vld [vmem:[%s3 + $0x5b8] sm:$0xff]
  %v330 = vld [vmem:[%s3 + $0x5c0] sm:$0xf]
  %v331 = vld [vmem:[%s3 + $0x5c4] sm:$0xff]
  %v332 = vld [vmem:[%s3 + $0x5cc] sm:$0xff]
  %v333 = vld [vmem:[%s3 + $0x5d4] sm:$0xff]
  %v334 = vld [vmem:[%s3 + $0x5dc] sm:$0xff]
  %v335 = vld [vmem:[%s3 + $0x5e4] sm:$0xf]
  %v336 = vld [vmem:[%s3 + $0x5e8] sm:$0xff]
  %v337 = vld [vmem:[%s3 + $0x5f0] sm:$0xff]
  %v338 = vld [vmem:[%s3 + $0x5f8] sm:$0xff]
  %v339 = vld [vmem:[%s3 + $0x600] sm:$0xff]
  %v340 = vld [vmem:[%s3 + $0x608] sm:$0xf]
  %v341 = vld [vmem:[%s3 + $0x60c] sm:$0xff]
  %v342 = vld [vmem:[%s3 + $0x614] sm:$0xff]
  %v343 = vld [vmem:[%s3 + $0x61c] sm:$0xff]
  %v344 = vld [vmem:[%s3 + $0x624] sm:$0xff]
  %v345 = vld [vmem:[%s3 + $0x62c] sm:$0xf]
  %v346 = vld [vmem:[%s3 + $0x630] sm:$0xff]
  %v347 = vld [vmem:[%s3 + $0x638] sm:$0xff]
  %v348 = vld [vmem:[%s3 + $0x640] sm:$0xff]
  %v349 = vld [vmem:[%s3 + $0x648] sm:$0xff]
  %v350 = vld [vmem:[%s3 + $0x650] sm:$0xf]
  %v351 = vld [vmem:[%s3 + $0x654] sm:$0xff]
  %v352 = vld [vmem:[%s3 + $0x65c] sm:$0xff]
  %v353 = vld [vmem:[%s3 + $0x664] sm:$0xff]
  %v354 = vld [vmem:[%s3 + $0x66c] sm:$0xff]
  %v355 = vld [vmem:[%s3 + $0x674] sm:$0xf]
  %v356 = vld [vmem:[%s3 + $0x678] sm:$0xff]
  %v357 = vld [vmem:[%s3 + $0x680] sm:$0xff]
  %v358 = vld [vmem:[%s3 + $0x688] sm:$0xff]
  %v359 = vld [vmem:[%s3 + $0x690] sm:$0xff]
  %v360 = vld [vmem:[%s3 + $0x698] sm:$0xf]
  %v361 = vld [vmem:[%s3 + $0x69c] sm:$0xff]
  %v362 = vld [vmem:[%s3 + $0x6a4] sm:$0xff]
  %v363 = vld [vmem:[%s3 + $0x6ac] sm:$0xff]
  %v364 = vld [vmem:[%s3 + $0x6b4] sm:$0xff]
  %v365 = vld [vmem:[%s3 + $0x6bc] sm:$0xf]
  %v366 = vld [vmem:[%s4] sm:$0xff]
  %v367 = vld [vmem:[%s4 + $0x8] sm:$0x1]
  %v370 = vlaneseq
  %v371 = vshrl.u32 %v370, 7
  %v372 = vsub.s32 0, %v371
  %v373 = vrot.slane %v366, %v372
  %v374 = vlaneseq
  %v375 = vshrl.u32 %v374, 7
  %v376 = vsub.s32 1, %v375
  %v377 = vrot.slane %v366, %v376
  %v378 = vlaneseq
  %v379 = vshrl.u32 %v378, 7
  %v380 = vsub.s32 2, %v379
  %v381 = vrot.slane %v366, %v380
  %v382 = vlaneseq
  %v383 = vshrl.u32 %v382, 7
  %v384 = vsub.s32 3, %v383
  %v385 = vrot.slane %v366, %v384
  %v386 = vlaneseq
  %v387 = vshrl.u32 %v386, 7
  %v388 = vsub.s32 4, %v387
  %v389 = vrot.slane %v366, %v388
  %v390 = vlaneseq
  %v391 = vshrl.u32 %v390, 7
  %v392 = vsub.s32 5, %v391
  %v393 = vrot.slane %v366, %v392
  %v394 = vlaneseq
  %v395 = vshrl.u32 %v394, 7
  %v396 = vsub.s32 6, %v395
  %v397 = vrot.slane %v366, %v396
  %v398 = vlaneseq
  %v399 = vshrl.u32 %v398, 7
  %v400 = vsub.s32 7, %v399
  %v401 = vrot.slane %v366, %v400
  %v402 = vlaneseq
  %v403 = vshrl.u32 %v402, 7
  %v404 = vsub.s32 0, %v403
  %v405 = vrot.slane %v367, %v404
  %v655 = vunpack.c.l.b16 %v126
  %v656 = vunpack.c.h.b16 %v126
  %v657 = vunpack.c.l.b16 %v127
  %v658 = vunpack.c.h.b16 %v127
  %v659 = vunpack.c.l.b16 %v128
  %v660 = vunpack.c.h.b16 %v128
  %v661 = vunpack.c.l.b16 %v129
  %v662 = vunpack.c.h.b16 %v129
  %v663 = vunpack.c.l.b16 %v130
  %v664 = vunpack.c.l.b16 %v131
  %v665 = vunpack.c.h.b16 %v131
  %v666 = vunpack.c.l.b16 %v132
  %v667 = vunpack.c.h.b16 %v132
  %v668 = vunpack.c.l.b16 %v133
  %v669 = vunpack.c.h.b16 %v133
  %v670 = vunpack.c.l.b16 %v134
  %v671 = vunpack.c.h.b16 %v134
  %v672 = vunpack.c.l.b16 %v135
  %v673 = vunpack.c.l.b16 %v136
  %v674 = vunpack.c.h.b16 %v136
  %v675 = vunpack.c.l.b16 %v137
  %v676 = vunpack.c.h.b16 %v137
  %v677 = vunpack.c.l.b16 %v138
  %v678 = vunpack.c.h.b16 %v138
  %v679 = vunpack.c.l.b16 %v139
  %v680 = vunpack.c.h.b16 %v139
  %v681 = vunpack.c.l.b16 %v140
  %v682 = vunpack.c.l.b16 %v141
  %v683 = vunpack.c.h.b16 %v141
  %v684 = vunpack.c.l.b16 %v142
  %v685 = vunpack.c.h.b16 %v142
  %v686 = vunpack.c.l.b16 %v143
  %v687 = vunpack.c.h.b16 %v143
  %v688 = vunpack.c.l.b16 %v144
  %v689 = vunpack.c.h.b16 %v144
  %v690 = vunpack.c.l.b16 %v145
  %v691 = vunpack.c.l.b16 %v146
  %v692 = vunpack.c.h.b16 %v146
  %v693 = vunpack.c.l.b16 %v147
  %v694 = vunpack.c.h.b16 %v147
  %v695 = vunpack.c.l.b16 %v148
  %v696 = vunpack.c.h.b16 %v148
  %v697 = vunpack.c.l.b16 %v149
  %v698 = vunpack.c.h.b16 %v149
  %v699 = vunpack.c.l.b16 %v150
  %v700 = vunpack.c.l.b16 %v151
  %v701 = vunpack.c.h.b16 %v151
  %v702 = vunpack.c.l.b16 %v152
  %v703 = vunpack.c.h.b16 %v152
  %v704 = vunpack.c.l.b16 %v153
  %v705 = vunpack.c.h.b16 %v153
  %v706 = vunpack.c.l.b16 %v154
  %v707 = vunpack.c.h.b16 %v154
  %v708 = vunpack.c.l.b16 %v155
  %v709 = vunpack.c.l.b16 %v156
  %v710 = vunpack.c.h.b16 %v156
  %v711 = vunpack.c.l.b16 %v157
  %v712 = vunpack.c.h.b16 %v157
  %v713 = vunpack.c.l.b16 %v158
  %v714 = vunpack.c.h.b16 %v158
  %v715 = vunpack.c.l.b16 %v159
  %v716 = vunpack.c.h.b16 %v159
  %v717 = vunpack.c.l.b16 %v160
  %v718 = vunpack.c.l.b16 %v161
  %v719 = vunpack.c.h.b16 %v161
  %v720 = vunpack.c.l.b16 %v162
  %v721 = vunpack.c.h.b16 %v162
  %v722 = vunpack.c.l.b16 %v163
  %v723 = vunpack.c.h.b16 %v163
  %v724 = vunpack.c.l.b16 %v164
  %v725 = vunpack.c.h.b16 %v164
  %v726 = vunpack.c.l.b16 %v165
  %v727 = vunpack.c.l.b16 %v166
  %v728 = vunpack.c.h.b16 %v166
  %v729 = vunpack.c.l.b16 %v167
  %v730 = vunpack.c.h.b16 %v167
  %v731 = vunpack.c.l.b16 %v168
  %v732 = vunpack.c.h.b16 %v168
  %v733 = vunpack.c.l.b16 %v169
  %v734 = vunpack.c.h.b16 %v169
  %v735 = vunpack.c.l.b16 %v170
  %v736 = vunpack.c.l.b16 %v171
  %v737 = vunpack.c.h.b16 %v171
  %v738 = vunpack.c.l.b16 %v172
  %v739 = vunpack.c.h.b16 %v172
  %v740 = vunpack.c.l.b16 %v173
  %v741 = vunpack.c.h.b16 %v173
  %v742 = vunpack.c.l.b16 %v174
  %v743 = vunpack.c.h.b16 %v174
  %v744 = vunpack.c.l.b16 %v175
  %v745 = vunpack.c.l.b16 %v176
  %v746 = vunpack.c.h.b16 %v176
  %v747 = vunpack.c.l.b16 %v177
  %v748 = vunpack.c.h.b16 %v177
  %v749 = vunpack.c.l.b16 %v178
  %v750 = vunpack.c.h.b16 %v178
  %v751 = vunpack.c.l.b16 %v179
  %v752 = vunpack.c.h.b16 %v179
  %v753 = vunpack.c.l.b16 %v180
  %v754 = vunpack.c.l.b16 %v181
  %v755 = vunpack.c.h.b16 %v181
  %v756 = vunpack.c.l.b16 %v182
  %v757 = vunpack.c.h.b16 %v182
  %v758 = vunpack.c.l.b16 %v183
  %v759 = vunpack.c.h.b16 %v183
  %v760 = vunpack.c.l.b16 %v184
  %v761 = vunpack.c.h.b16 %v184
  %v762 = vunpack.c.l.b16 %v185
  %v763 = vunpack.c.l.b16 %v186
  %v764 = vunpack.c.h.b16 %v186
  %v765 = vunpack.c.l.b16 %v187
  %v766 = vunpack.c.h.b16 %v187
  %v767 = vunpack.c.l.b16 %v188
  %v768 = vunpack.c.h.b16 %v188
  %v769 = vunpack.c.l.b16 %v189
  %v770 = vunpack.c.h.b16 %v189
  %v771 = vunpack.c.l.b16 %v190
  %v772 = vunpack.c.l.b16 %v191
  %v773 = vunpack.c.h.b16 %v191
  %v774 = vunpack.c.l.b16 %v192
  %v775 = vunpack.c.h.b16 %v192
  %v776 = vunpack.c.l.b16 %v193
  %v777 = vunpack.c.h.b16 %v193
  %v778 = vunpack.c.l.b16 %v194
  %v779 = vunpack.c.h.b16 %v194
  %v780 = vunpack.c.l.b16 %v195
  %v781 = vunpack.c.l.b16 %v196
  %v782 = vunpack.c.h.b16 %v196
  %v783 = vunpack.c.l.b16 %v197
  %v784 = vunpack.c.h.b16 %v197
  %v785 = vunpack.c.l.b16 %v198
  %v786 = vunpack.c.h.b16 %v198
  %v787 = vunpack.c.l.b16 %v199
  %v788 = vunpack.c.h.b16 %v199
  %v789 = vunpack.c.l.b16 %v200
  %v790 = vunpack.c.l.b16 %v201
  %v791 = vunpack.c.h.b16 %v201
  %v792 = vunpack.c.l.b16 %v202
  %v793 = vunpack.c.h.b16 %v202
  %v794 = vunpack.c.l.b16 %v203
  %v795 = vunpack.c.h.b16 %v203
  %v796 = vunpack.c.l.b16 %v204
  %v797 = vunpack.c.h.b16 %v204
  %v798 = vunpack.c.l.b16 %v205
  %v799 = vunpack.c.l.b16 %v206
  %v800 = vunpack.c.h.b16 %v206
  %v801 = vunpack.c.l.b16 %v207
  %v802 = vunpack.c.h.b16 %v207
  %v803 = vunpack.c.l.b16 %v208
  %v804 = vunpack.c.h.b16 %v208
  %v805 = vunpack.c.l.b16 %v209
  %v806 = vunpack.c.h.b16 %v209
  %v807 = vunpack.c.l.b16 %v210
  %v808 = vunpack.c.l.b16 %v211
  %v809 = vunpack.c.h.b16 %v211
  %v810 = vunpack.c.l.b16 %v212
  %v811 = vunpack.c.h.b16 %v212
  %v812 = vunpack.c.l.b16 %v213
  %v813 = vunpack.c.h.b16 %v213
  %v814 = vunpack.c.l.b16 %v214
  %v815 = vunpack.c.h.b16 %v214
  %v816 = vunpack.c.l.b16 %v215
  %v817 = vunpack.c.l.b16 %v216
  %v818 = vunpack.c.h.b16 %v216
  %v819 = vunpack.c.l.b16 %v217
  %v820 = vunpack.c.h.b16 %v217
  %v821 = vunpack.c.l.b16 %v218
  %v822 = vunpack.c.h.b16 %v218
  %v823 = vunpack.c.l.b16 %v219
  %v824 = vunpack.c.h.b16 %v219
  %v825 = vunpack.c.l.b16 %v220
  %v826 = vunpack.c.l.b16 %v221
  %v827 = vunpack.c.h.b16 %v221
  %v828 = vunpack.c.l.b16 %v222
  %v829 = vunpack.c.h.b16 %v222
  %v830 = vunpack.c.l.b16 %v223
  %v831 = vunpack.c.h.b16 %v223
  %v832 = vunpack.c.l.b16 %v224
  %v833 = vunpack.c.h.b16 %v224
  %v834 = vunpack.c.l.b16 %v225
  %v835 = vunpack.c.l.b16 %v226
  %v836 = vunpack.c.h.b16 %v226
  %v837 = vunpack.c.l.b16 %v227
  %v838 = vunpack.c.h.b16 %v227
  %v839 = vunpack.c.l.b16 %v228
  %v840 = vunpack.c.h.b16 %v228
  %v841 = vunpack.c.l.b16 %v229
  %v842 = vunpack.c.h.b16 %v229
  %v843 = vunpack.c.l.b16 %v230
  %v844 = vunpack.c.l.b16 %v231
  %v845 = vunpack.c.h.b16 %v231
  %v846 = vunpack.c.l.b16 %v232
  %v847 = vunpack.c.h.b16 %v232
  %v848 = vunpack.c.l.b16 %v233
  %v849 = vunpack.c.h.b16 %v233
  %v850 = vunpack.c.l.b16 %v234
  %v851 = vunpack.c.h.b16 %v234
  %v852 = vunpack.c.l.b16 %v235
  %v853 = vunpack.c.l.b16 %v236
  %v854 = vunpack.c.h.b16 %v236
  %v855 = vunpack.c.l.b16 %v237
  %v856 = vunpack.c.h.b16 %v237
  %v857 = vunpack.c.l.b16 %v238
  %v858 = vunpack.c.h.b16 %v238
  %v859 = vunpack.c.l.b16 %v239
  %v860 = vunpack.c.h.b16 %v239
  %v861 = vunpack.c.l.b16 %v240
  %v862 = vunpack.c.l.b16 %v241
  %v863 = vunpack.c.h.b16 %v241
  %v864 = vunpack.c.l.b16 %v242
  %v865 = vunpack.c.h.b16 %v242
  %v866 = vunpack.c.l.b16 %v243
  %v867 = vunpack.c.h.b16 %v243
  %v868 = vunpack.c.l.b16 %v244
  %v869 = vunpack.c.h.b16 %v244
  %v870 = vunpack.c.l.b16 %v245
  %v871 = vunpack.c.l.b16 %v246
  %v872 = vunpack.c.h.b16 %v246
  %v873 = vunpack.c.l.b16 %v247
  %v874 = vunpack.c.h.b16 %v247
  %v875 = vunpack.c.l.b16 %v248
  %v876 = vunpack.c.h.b16 %v248
  %v877 = vunpack.c.l.b16 %v249
  %v878 = vunpack.c.h.b16 %v249
  %v879 = vunpack.c.l.b16 %v250
  %v880 = vunpack.c.l.b16 %v251
  %v881 = vunpack.c.h.b16 %v251
  %v882 = vunpack.c.l.b16 %v252
  %v883 = vunpack.c.h.b16 %v252
  %v884 = vunpack.c.l.b16 %v253
  %v885 = vunpack.c.h.b16 %v253
  %v886 = vunpack.c.l.b16 %v254
  %v887 = vunpack.c.h.b16 %v254
  %v888 = vunpack.c.l.b16 %v255
  %v889 = vunpack.c.l.b16 %v256
  %v890 = vunpack.c.h.b16 %v256
  %v891 = vunpack.c.l.b16 %v257
  %v892 = vunpack.c.h.b16 %v257
  %v893 = vunpack.c.l.b16 %v258
  %v894 = vunpack.c.h.b16 %v258
  %v895 = vunpack.c.l.b16 %v259
  %v896 = vunpack.c.h.b16 %v259
  %v897 = vunpack.c.l.b16 %v260
  %v898 = vunpack.c.l.b16 %v261
  %v899 = vunpack.c.h.b16 %v261
  %v900 = vunpack.c.l.b16 %v262
  %v901 = vunpack.c.h.b16 %v262
  %v902 = vunpack.c.l.b16 %v263
  %v903 = vunpack.c.h.b16 %v263
  %v904 = vunpack.c.l.b16 %v264
  %v905 = vunpack.c.h.b16 %v264
  %v906 = vunpack.c.l.b16 %v265
  %v907 = vunpack.c.l.b16 %v266
  %v908 = vunpack.c.h.b16 %v266
  %v909 = vunpack.c.l.b16 %v267
  %v910 = vunpack.c.h.b16 %v267
  %v911 = vunpack.c.l.b16 %v268
  %v912 = vunpack.c.h.b16 %v268
  %v913 = vunpack.c.l.b16 %v269
  %v914 = vunpack.c.h.b16 %v269
  %v915 = vunpack.c.l.b16 %v270
  %v916 = vunpack.c.l.b16 %v271
  %v917 = vunpack.c.h.b16 %v271
  %v918 = vunpack.c.l.b16 %v272
  %v919 = vunpack.c.h.b16 %v272
  %v920 = vunpack.c.l.b16 %v273
  %v921 = vunpack.c.h.b16 %v273
  %v922 = vunpack.c.l.b16 %v274
  %v923 = vunpack.c.h.b16 %v274
  %v924 = vunpack.c.l.b16 %v275
  %v925 = vunpack.c.l.b16 %v276
  %v926 = vunpack.c.h.b16 %v276
  %v927 = vunpack.c.l.b16 %v277
  %v928 = vunpack.c.h.b16 %v277
  %v929 = vunpack.c.l.b16 %v278
  %v930 = vunpack.c.h.b16 %v278
  %v931 = vunpack.c.l.b16 %v279
  %v932 = vunpack.c.h.b16 %v279
  %v933 = vunpack.c.l.b16 %v280
  %v934 = vunpack.c.l.b16 %v281
  %v935 = vunpack.c.h.b16 %v281
  %v936 = vunpack.c.l.b16 %v282
  %v937 = vunpack.c.h.b16 %v282
  %v938 = vunpack.c.l.b16 %v283
  %v939 = vunpack.c.h.b16 %v283
  %v940 = vunpack.c.l.b16 %v284
  %v941 = vunpack.c.h.b16 %v284
  %v942 = vunpack.c.l.b16 %v285
  %v943 = vunpack.c.l.b16 %v286
  %v944 = vunpack.c.h.b16 %v286
  %v945 = vunpack.c.l.b16 %v287
  %v946 = vunpack.c.h.b16 %v287
  %v947 = vunpack.c.l.b16 %v288
  %v948 = vunpack.c.h.b16 %v288
  %v949 = vunpack.c.l.b16 %v289
  %v950 = vunpack.c.h.b16 %v289
  %v951 = vunpack.c.l.b16 %v290
  %v952 = vunpack.c.l.b16 %v291
  %v953 = vunpack.c.h.b16 %v291
  %v954 = vunpack.c.l.b16 %v292
  %v955 = vunpack.c.h.b16 %v292
  %v956 = vunpack.c.l.b16 %v293
  %v957 = vunpack.c.h.b16 %v293
  %v958 = vunpack.c.l.b16 %v294
  %v959 = vunpack.c.h.b16 %v294
  %v960 = vunpack.c.l.b16 %v295
  %v961 = vunpack.c.l.b16 %v296
  %v962 = vunpack.c.h.b16 %v296
  %v963 = vunpack.c.l.b16 %v297
  %v964 = vunpack.c.h.b16 %v297
  %v965 = vunpack.c.l.b16 %v298
  %v966 = vunpack.c.h.b16 %v298
  %v967 = vunpack.c.l.b16 %v299
  %v968 = vunpack.c.h.b16 %v299
  %v969 = vunpack.c.l.b16 %v300
  %v970 = vunpack.c.l.b16 %v301
  %v971 = vunpack.c.h.b16 %v301
  %v972 = vunpack.c.l.b16 %v302
  %v973 = vunpack.c.h.b16 %v302
  %v974 = vunpack.c.l.b16 %v303
  %v975 = vunpack.c.h.b16 %v303
  %v976 = vunpack.c.l.b16 %v304
  %v977 = vunpack.c.h.b16 %v304
  %v978 = vunpack.c.l.b16 %v305
  %v979 = vunpack.c.l.b16 %v306
  %v980 = vunpack.c.h.b16 %v306
  %v981 = vunpack.c.l.b16 %v307
  %v982 = vunpack.c.h.b16 %v307
  %v983 = vunpack.c.l.b16 %v308
  %v984 = vunpack.c.h.b16 %v308
  %v985 = vunpack.c.l.b16 %v309
  %v986 = vunpack.c.h.b16 %v309
  %v987 = vunpack.c.l.b16 %v310
  %v988 = vunpack.c.l.b16 %v311
  %v989 = vunpack.c.h.b16 %v311
  %v990 = vunpack.c.l.b16 %v312
  %v991 = vunpack.c.h.b16 %v312
  %v992 = vunpack.c.l.b16 %v313
  %v993 = vunpack.c.h.b16 %v313
  %v994 = vunpack.c.l.b16 %v314
  %v995 = vunpack.c.h.b16 %v314
  %v996 = vunpack.c.l.b16 %v315
  %v997 = vunpack.c.l.b16 %v316
  %v998 = vunpack.c.h.b16 %v316
  %v999 = vunpack.c.l.b16 %v317
  %v1000 = vunpack.c.h.b16 %v317
  %v1001 = vunpack.c.l.b16 %v318
  %v1002 = vunpack.c.h.b16 %v318
  %v1003 = vunpack.c.l.b16 %v319
  %v1004 = vunpack.c.h.b16 %v319
  %v1005 = vunpack.c.l.b16 %v320
  %v1006 = vunpack.c.l.b16 %v321
  %v1007 = vunpack.c.h.b16 %v321
  %v1008 = vunpack.c.l.b16 %v322
  %v1009 = vunpack.c.h.b16 %v322
  %v1010 = vunpack.c.l.b16 %v323
  %v1011 = vunpack.c.h.b16 %v323
  %v1012 = vunpack.c.l.b16 %v324
  %v1013 = vunpack.c.h.b16 %v324
  %v1014 = vunpack.c.l.b16 %v325
  %v1015 = vunpack.c.l.b16 %v326
  %v1016 = vunpack.c.h.b16 %v326
  %v1017 = vunpack.c.l.b16 %v327
  %v1018 = vunpack.c.h.b16 %v327
  %v1019 = vunpack.c.l.b16 %v328
  %v1020 = vunpack.c.h.b16 %v328
  %v1021 = vunpack.c.l.b16 %v329
  %v1022 = vunpack.c.h.b16 %v329
  %v1023 = vunpack.c.l.b16 %v330
  %v1024 = vunpack.c.l.b16 %v331
  %v1025 = vunpack.c.h.b16 %v331
  %v1026 = vunpack.c.l.b16 %v332
  %v1027 = vunpack.c.h.b16 %v332
  %v1028 = vunpack.c.l.b16 %v333
  %v1029 = vunpack.c.h.b16 %v333
  %v1030 = vunpack.c.l.b16 %v334
  %v1031 = vunpack.c.h.b16 %v334
  %v1032 = vunpack.c.l.b16 %v335
  %v1033 = vunpack.c.l.b16 %v336
  %v1034 = vunpack.c.h.b16 %v336
  %v1035 = vunpack.c.l.b16 %v337
  %v1036 = vunpack.c.h.b16 %v337
  %v1037 = vunpack.c.l.b16 %v338
  %v1038 = vunpack.c.h.b16 %v338
  %v1039 = vunpack.c.l.b16 %v339
  %v1040 = vunpack.c.h.b16 %v339
  %v1041 = vunpack.c.l.b16 %v340
  %v1042 = vunpack.c.l.b16 %v341
  %v1043 = vunpack.c.h.b16 %v341
  %v1044 = vunpack.c.l.b16 %v342
  %v1045 = vunpack.c.h.b16 %v342
  %v1046 = vunpack.c.l.b16 %v343
  %v1047 = vunpack.c.h.b16 %v343
  %v1048 = vunpack.c.l.b16 %v344
  %v1049 = vunpack.c.h.b16 %v344
  %v1050 = vunpack.c.l.b16 %v345
  %v1051 = vunpack.c.l.b16 %v346
  %v1052 = vunpack.c.h.b16 %v346
  %v1053 = vunpack.c.l.b16 %v347
  %v1054 = vunpack.c.h.b16 %v347
  %v1055 = vunpack.c.l.b16 %v348
  %v1056 = vunpack.c.h.b16 %v348
  %v1057 = vunpack.c.l.b16 %v349
  %v1058 = vunpack.c.h.b16 %v349
  %v1059 = vunpack.c.l.b16 %v350
  %v1060 = vunpack.c.l.b16 %v351
  %v1061 = vunpack.c.h.b16 %v351
  %v1062 = vunpack.c.l.b16 %v352
  %v1063 = vunpack.c.h.b16 %v352
  %v1064 = vunpack.c.l.b16 %v353
  %v1065 = vunpack.c.h.b16 %v353
  %v1066 = vunpack.c.l.b16 %v354
  %v1067 = vunpack.c.h.b16 %v354
  %v1068 = vunpack.c.l.b16 %v355
  %v1069 = vunpack.c.l.b16 %v356
  %v1070 = vunpack.c.h.b16 %v356
  %v1071 = vunpack.c.l.b16 %v357
  %v1072 = vunpack.c.h.b16 %v357
  %v1073 = vunpack.c.l.b16 %v358
  %v1074 = vunpack.c.h.b16 %v358
  %v1075 = vunpack.c.l.b16 %v359
  %v1076 = vunpack.c.h.b16 %v359
  %v1077 = vunpack.c.l.b16 %v360
  %v1078 = vunpack.c.l.b16 %v361
  %v1079 = vunpack.c.h.b16 %v361
  %v1080 = vunpack.c.l.b16 %v362
  %v1081 = vunpack.c.h.b16 %v362
  %v1082 = vunpack.c.l.b16 %v363
  %v1083 = vunpack.c.h.b16 %v363
  %v1084 = vunpack.c.l.b16 %v364
  %v1085 = vunpack.c.h.b16 %v364
  %v1086 = vunpack.c.l.b16 %v365
  %v1087 = vpack.c.b16 %v664, %v655
  %v1088 = vpack.c.b16 %v665, %v656
  %v1089 = vpack.c.b16 %v666, %v657
  %v1090 = vpack.c.b16 %v667, %v658
  %v1091 = vpack.c.b16 %v668, %v659
  %v1092 = vpack.c.b16 %v669, %v660
  %v1093 = vpack.c.b16 %v670, %v661
  %v1094 = vpack.c.b16 %v671, %v662
  %v1095 = vpack.c.b16 %v672, %v663
  %v1096 = vpack.c.b16 %v682, %v673
  %v1097 = vpack.c.b16 %v683, %v674
  %v1098 = vpack.c.b16 %v684, %v675
  %v1099 = vpack.c.b16 %v685, %v676
  %v1100 = vpack.c.b16 %v686, %v677
  %v1101 = vpack.c.b16 %v687, %v678
  %v1102 = vpack.c.b16 %v688, %v679
  %v1103 = vpack.c.b16 %v689, %v680
  %v1104 = vpack.c.b16 %v690, %v681
  %v1105 = vpack.c.b16 %v700, %v691
  %v1106 = vpack.c.b16 %v701, %v692
  %v1107 = vpack.c.b16 %v702, %v693
  %v1108 = vpack.c.b16 %v703, %v694
  %v1109 = vpack.c.b16 %v704, %v695
  %v1110 = vpack.c.b16 %v705, %v696
  %v1111 = vpack.c.b16 %v706, %v697
  %v1112 = vpack.c.b16 %v707, %v698
  %v1113 = vpack.c.b16 %v708, %v699
  %v1114 = vpack.c.b16 %v718, %v709
  %v1115 = vpack.c.b16 %v719, %v710
  %v1116 = vpack.c.b16 %v720, %v711
  %v1117 = vpack.c.b16 %v721, %v712
  %v1118 = vpack.c.b16 %v722, %v713
  %v1119 = vpack.c.b16 %v723, %v714
  %v1120 = vpack.c.b16 %v724, %v715
  %v1121 = vpack.c.b16 %v725, %v716
  %v1122 = vpack.c.b16 %v726, %v717
  %v1123 = vpack.c.b16 %v736, %v727
  %v1124 = vpack.c.b16 %v737, %v728
  %v1125 = vpack.c.b16 %v738, %v729
  %v1126 = vpack.c.b16 %v739, %v730
  %v1127 = vpack.c.b16 %v740, %v731
  %v1128 = vpack.c.b16 %v741, %v732
  %v1129 = vpack.c.b16 %v742, %v733
  %v1130 = vpack.c.b16 %v743, %v734
  %v1131 = vpack.c.b16 %v744, %v735
  %v1132 = vpack.c.b16 %v754, %v745
  %v1133 = vpack.c.b16 %v755, %v746
  %v1134 = vpack.c.b16 %v756, %v747
  %v1135 = vpack.c.b16 %v757, %v748
  %v1136 = vpack.c.b16 %v758, %v749
  %v1137 = vpack.c.b16 %v759, %v750
  %v1138 = vpack.c.b16 %v760, %v751
  %v1139 = vpack.c.b16 %v761, %v752
  %v1140 = vpack.c.b16 %v762, %v753
  %v1141 = vpack.c.b16 %v772, %v763
  %v1142 = vpack.c.b16 %v773, %v764
  %v1143 = vpack.c.b16 %v774, %v765
  %v1144 = vpack.c.b16 %v775, %v766
  %v1145 = vpack.c.b16 %v776, %v767
  %v1146 = vpack.c.b16 %v777, %v768
  %v1147 = vpack.c.b16 %v778, %v769
  %v1148 = vpack.c.b16 %v779, %v770
  %v1149 = vpack.c.b16 %v780, %v771
  %v1150 = vpack.c.b16 %v790, %v781
  %v1151 = vpack.c.b16 %v791, %v782
  %v1152 = vpack.c.b16 %v792, %v783
  %v1153 = vpack.c.b16 %v793, %v784
  %v1154 = vpack.c.b16 %v794, %v785
  %v1155 = vpack.c.b16 %v795, %v786
  %v1156 = vpack.c.b16 %v796, %v787
  %v1157 = vpack.c.b16 %v797, %v788
  %v1158 = vpack.c.b16 %v798, %v789
  %v1159 = vpack.c.b16 %v808, %v799
  %v1160 = vpack.c.b16 %v809, %v800
  %v1161 = vpack.c.b16 %v810, %v801
  %v1162 = vpack.c.b16 %v811, %v802
  %v1163 = vpack.c.b16 %v812, %v803
  %v1164 = vpack.c.b16 %v813, %v804
  %v1165 = vpack.c.b16 %v814, %v805
  %v1166 = vpack.c.b16 %v815, %v806
  %v1167 = vpack.c.b16 %v816, %v807
  %v1168 = vpack.c.b16 %v826, %v817
  %v1169 = vpack.c.b16 %v827, %v818
  %v1170 = vpack.c.b16 %v828, %v819
  %v1171 = vpack.c.b16 %v829, %v820
  %v1172 = vpack.c.b16 %v830, %v821
  %v1173 = vpack.c.b16 %v831, %v822
  %v1174 = vpack.c.b16 %v832, %v823
  %v1175 = vpack.c.b16 %v833, %v824
  %v1176 = vpack.c.b16 %v834, %v825
  %v1177 = vpack.c.b16 %v844, %v835
  %v1178 = vpack.c.b16 %v845, %v836
  %v1179 = vpack.c.b16 %v846, %v837
  %v1180 = vpack.c.b16 %v847, %v838
  %v1181 = vpack.c.b16 %v848, %v839
  %v1182 = vpack.c.b16 %v849, %v840
  %v1183 = vpack.c.b16 %v850, %v841
  %v1184 = vpack.c.b16 %v851, %v842
  %v1185 = vpack.c.b16 %v852, %v843
  %v1186 = vpack.c.b16 %v862, %v853
  %v1187 = vpack.c.b16 %v863, %v854
  %v1188 = vpack.c.b16 %v864, %v855
  %v1189 = vpack.c.b16 %v865, %v856
  %v1190 = vpack.c.b16 %v866, %v857
  %v1191 = vpack.c.b16 %v867, %v858
  %v1192 = vpack.c.b16 %v868, %v859
  %v1193 = vpack.c.b16 %v869, %v860
  %v1194 = vpack.c.b16 %v870, %v861
  %v1195 = vpack.c.b16 %v880, %v871
  %v1196 = vpack.c.b16 %v881, %v872
  %v1197 = vpack.c.b16 %v882, %v873
  %v1198 = vpack.c.b16 %v883, %v874
  %v1199 = vpack.c.b16 %v884, %v875
  %v1200 = vpack.c.b16 %v885, %v876
  %v1201 = vpack.c.b16 %v886, %v877
  %v1202 = vpack.c.b16 %v887, %v878
  %v1203 = vpack.c.b16 %v888, %v879
  %v1204 = vpack.c.b16 %v898, %v889
  %v1205 = vpack.c.b16 %v899, %v890
  %v1206 = vpack.c.b16 %v900, %v891
  %v1207 = vpack.c.b16 %v901, %v892
  %v1208 = vpack.c.b16 %v902, %v893
  %v1209 = vpack.c.b16 %v903, %v894
  %v1210 = vpack.c.b16 %v904, %v895
  %v1211 = vpack.c.b16 %v905, %v896
  %v1212 = vpack.c.b16 %v906, %v897
  %v1213 = vpack.c.b16 %v916, %v907
  %v1214 = vpack.c.b16 %v917, %v908
  %v1215 = vpack.c.b16 %v918, %v909
  %v1216 = vpack.c.b16 %v919, %v910
  %v1217 = vpack.c.b16 %v920, %v911
  %v1218 = vpack.c.b16 %v921, %v912
  %v1219 = vpack.c.b16 %v922, %v913
  %v1220 = vpack.c.b16 %v923, %v914
  %v1221 = vpack.c.b16 %v924, %v915
  %v1222 = vpack.c.b16 %v934, %v925
  %v1223 = vpack.c.b16 %v935, %v926
  %v1224 = vpack.c.b16 %v936, %v927
  %v1225 = vpack.c.b16 %v937, %v928
  %v1226 = vpack.c.b16 %v938, %v929
  %v1227 = vpack.c.b16 %v939, %v930
  %v1228 = vpack.c.b16 %v940, %v931
  %v1229 = vpack.c.b16 %v941, %v932
  %v1230 = vpack.c.b16 %v942, %v933
  %v1231 = vpack.c.b16 %v952, %v943
  %v1232 = vpack.c.b16 %v953, %v944
  %v1233 = vpack.c.b16 %v954, %v945
  %v1234 = vpack.c.b16 %v955, %v946
  %v1235 = vpack.c.b16 %v956, %v947
  %v1236 = vpack.c.b16 %v957, %v948
  %v1237 = vpack.c.b16 %v958, %v949
  %v1238 = vpack.c.b16 %v959, %v950
  %v1239 = vpack.c.b16 %v960, %v951
  %v1240 = vpack.c.b16 %v970, %v961
  %v1241 = vpack.c.b16 %v971, %v962
  %v1242 = vpack.c.b16 %v972, %v963
  %v1243 = vpack.c.b16 %v973, %v964
  %v1244 = vpack.c.b16 %v974, %v965
  %v1245 = vpack.c.b16 %v975, %v966
  %v1246 = vpack.c.b16 %v976, %v967
  %v1247 = vpack.c.b16 %v977, %v968
  %v1248 = vpack.c.b16 %v978, %v969
  %v1249 = vpack.c.b16 %v988, %v979
  %v1250 = vpack.c.b16 %v989, %v980
  %v1251 = vpack.c.b16 %v990, %v981
  %v1252 = vpack.c.b16 %v991, %v982
  %v1253 = vpack.c.b16 %v992, %v983
  %v1254 = vpack.c.b16 %v993, %v984
  %v1255 = vpack.c.b16 %v994, %v985
  %v1256 = vpack.c.b16 %v995, %v986
  %v1257 = vpack.c.b16 %v996, %v987
  %v1258 = vpack.c.b16 %v1006, %v997
  %v1259 = vpack.c.b16 %v1007, %v998
  %v1260 = vpack.c.b16 %v1008, %v999
  %v1261 = vpack.c.b16 %v1009, %v1000
  %v1262 = vpack.c.b16 %v1010, %v1001
  %v1263 = vpack.c.b16 %v1011, %v1002
  %v1264 = vpack.c.b16 %v1012, %v1003
  %v1265 = vpack.c.b16 %v1013, %v1004
  %v1266 = vpack.c.b16 %v1014, %v1005
  %v1267 = vpack.c.b16 %v1024, %v1015
  %v1268 = vpack.c.b16 %v1025, %v1016
  %v1269 = vpack.c.b16 %v1026, %v1017
  %v1270 = vpack.c.b16 %v1027, %v1018
  %v1271 = vpack.c.b16 %v1028, %v1019
  %v1272 = vpack.c.b16 %v1029, %v1020
  %v1273 = vpack.c.b16 %v1030, %v1021
  %v1274 = vpack.c.b16 %v1031, %v1022
  %v1275 = vpack.c.b16 %v1032, %v1023
  %v1276 = vpack.c.b16 %v1042, %v1033
  %v1277 = vpack.c.b16 %v1043, %v1034
  %v1278 = vpack.c.b16 %v1044, %v1035
  %v1279 = vpack.c.b16 %v1045, %v1036
  %v1280 = vpack.c.b16 %v1046, %v1037
  %v1281 = vpack.c.b16 %v1047, %v1038
  %v1282 = vpack.c.b16 %v1048, %v1039
  %v1283 = vpack.c.b16 %v1049, %v1040
  %v1284 = vpack.c.b16 %v1050, %v1041
  %v1285 = vpack.c.b16 %v1060, %v1051
  %v1286 = vpack.c.b16 %v1061, %v1052
  %v1287 = vpack.c.b16 %v1062, %v1053
  %v1288 = vpack.c.b16 %v1063, %v1054
  %v1289 = vpack.c.b16 %v1064, %v1055
  %v1290 = vpack.c.b16 %v1065, %v1056
  %v1291 = vpack.c.b16 %v1066, %v1057
  %v1292 = vpack.c.b16 %v1067, %v1058
  %v1293 = vpack.c.b16 %v1068, %v1059
  %v1294 = vpack.c.b16 %v1078, %v1069
  %v1295 = vpack.c.b16 %v1079, %v1070
  %v1296 = vpack.c.b16 %v1080, %v1071
  %v1297 = vpack.c.b16 %v1081, %v1072
  %v1298 = vpack.c.b16 %v1082, %v1073
  %v1299 = vpack.c.b16 %v1083, %v1074
  %v1300 = vpack.c.b16 %v1084, %v1075
  %v1301 = vpack.c.b16 %v1085, %v1076
  %v1302 = vpack.c.b16 %v1086, %v1077
  %1519 = vmatprep.subr.bf16.mxu0 %v1088
  %1520 = vmatpush1.bf16.msra.mxu0 %v1087
  %1521 = vmatprep.subr.bf16.mxu0 %v1097
  %1522 = vmatpush1.bf16.msra.mxu0 %v1096
  %1523 = vmatprep.subr.bf16.mxu0 %v1106
  %1524 = vmatpush1.bf16.msra.mxu0 %v1105
  %1525 = vmatprep.subr.bf16.mxu0 %v1115
  %1526 = vmatpush1.bf16.msra.mxu0 %v1114
  %1527 = vmatprep.subr.bf16.mxu0 %v1124
  %1528 = vmatpush1.bf16.msra.mxu0 %v1123
  %1529 = vmatprep.subr.bf16.mxu0 %v1133
  %1530 = vmatpush1.bf16.msra.mxu0 %v1132
  %1531 = vmatprep.subr.bf16.mxu0 %v1142
  %1532 = vmatpush1.bf16.msra.mxu0 %v1141
  %1533 = vmatprep.subr.bf16.mxu0 %v1151
  %1534 = vmatpush1.bf16.msra.mxu0 %v1150
  %1535 = vmatprep.subr.bf16.mxu0 %v1160
  %1536 = vmatpush1.bf16.msra.mxu0 %v1159
  %1537 = vmatprep.subr.bf16.mxu0 %v1169
  %1538 = vmatpush1.bf16.msra.mxu0 %v1168
  %1539 = vmatprep.subr.bf16.mxu0 %v1178
  %1540 = vmatpush1.bf16.msra.mxu0 %v1177
  %1541 = vmatprep.subr.bf16.mxu0 %v1187
  %1542 = vmatpush1.bf16.msra.mxu0 %v1186
  %1543 = vmatprep.subr.bf16.mxu0 %v1196
  %1544 = vmatpush1.bf16.msra.mxu0 %v1195
  %1545 = vmatprep.subr.bf16.mxu0 %v1205
  %1546 = vmatpush1.bf16.msra.mxu0 %v1204
  %1547 = vmatprep.subr.bf16.mxu0 %v1214
  %1548 = vmatpush1.bf16.msra.mxu0 %v1213
  %1549 = vmatprep.subr.bf16.mxu0 %v1223
  %1550 = vmatpush1.bf16.msra.mxu0 %v1222
  %1551 = vmatprep.mubr.bf16.mxu0 %v124
  %1552 = vmatmul.mubr.bf16.gmra.mrb[0].mxu0 %v123
  %v1553 = vpop.f32.mrb[0].mxu0
  %v1554 = vadd.f32 %v373, %v1553
  %v1555 = vpop.f32.mrb[0].mxu0
  %v1556 = vadd.f32 %v377, %v1555
  %v1557 = vpop.f32.mrb[0].mxu0
  %v1558 = vadd.f32 %v373, %v1557
  %v1559 = vpop.f32.mrb[0].mxu0
  %v1560 = vadd.f32 %v377, %v1559
  %1561 = vdwg.mxu0
  %1562 = vmatprep.subr.bf16.mxu0 %v1232
  %1563 = vmatpush1.bf16.msra.mxu0 %v1231
  %1564 = vmatprep.subr.bf16.mxu0 %v1241
  %1565 = vmatpush1.bf16.msra.mxu0 %v1240
  %1566 = vmatprep.subr.bf16.mxu0 %v1250
  %1567 = vmatpush1.bf16.msra.mxu0 %v1249
  %1568 = vmatprep.subr.bf16.mxu0 %v1259
  %1569 = vmatpush1.bf16.msra.mxu0 %v1258
  %1570 = vmatprep.subr.bf16.mxu0 %v1268
  %1571 = vmatpush1.bf16.msra.mxu0 %v1267
  %1572 = vmatprep.subr.bf16.mxu0 %v1277
  %1573 = vmatpush1.bf16.msra.mxu0 %v1276
  %1574 = vmatprep.subr.bf16.mxu0 %v1286
  %1575 = vmatpush1.bf16.msra.mxu0 %v1285
  %1576 = vmatprep.subr.bf16.mxu0 %v1295
  %1577 = vmatpush1.bf16.msra.mxu0 %v1294
  %1578 = vmatprep.subr.bf16.mxu0 0
  %1579 = vmatpush1.bf16.msra.mxu0 0
  %1580 = vmatprep.subr.bf16.mxu0 0
  %1581 = vmatpush1.bf16.msra.mxu0 0
  %1582 = vmatprep.subr.bf16.mxu0 0
  %1583 = vmatpush1.bf16.msra.mxu0 0
  %1584 = vmatprep.subr.bf16.mxu0 0
  %1585 = vmatpush1.bf16.msra.mxu0 0
  %1586 = vmatprep.subr.bf16.mxu0 0
  %1587 = vmatpush1.bf16.msra.mxu0 0
  %1588 = vmatprep.subr.bf16.mxu0 0
  %1589 = vmatpush1.bf16.msra.mxu0 0
  %1590 = vmatprep.subr.bf16.mxu0 0
  %1591 = vmatpush1.bf16.msra.mxu0 0
  %1592 = vmatprep.subr.bf16.mxu0 0
  %1593 = vmatpush1.bf16.msra.mxu0 0
  %1594 = vmatprep.mubr.bf16.mxu0 0
  %1595 = vmatmul.mubr.bf16.gmra.mrb[0].mxu0 %v125
  %v1596 = vpop.f32.mrb[0].mxu0
  %v1597 = vadd.f32 %v1554, %v1596
  %v1598 = vpop.f32.mrb[0].mxu0
  %v1599 = vadd.f32 %v1556, %v1598
  %v1600 = vpop.f32.mrb[0].mxu0
  %v1601 = vadd.f32 %v1558, %v1600
  %v1602 = vpop.f32.mrb[0].mxu0
  %v1603 = vadd.f32 %v1560, %v1602
  %1604 = vdwg.mxu0
  %1605 = vmatprep.subr.bf16.mxu0 %v1090
  %1606 = vmatpush1.bf16.msra.mxu0 %v1089
  %1607 = vmatprep.subr.bf16.mxu0 %v1099
  %1608 = vmatpush1.bf16.msra.mxu0 %v1098
  %1609 = vmatprep.subr.bf16.mxu0 %v1108
  %1610 = vmatpush1.bf16.msra.mxu0 %v1107
  %1611 = vmatprep.subr.bf16.mxu0 %v1117
  %1612 = vmatpush1.bf16.msra.mxu0 %v1116
  %1613 = vmatprep.subr.bf16.mxu0 %v1126
  %1614 = vmatpush1.bf16.msra.mxu0 %v1125
  %1615 = vmatprep.subr.bf16.mxu0 %v1135
  %1616 = vmatpush1.bf16.msra.mxu0 %v1134
  %1617 = vmatprep.subr.bf16.mxu0 %v1144
  %1618 = vmatpush1.bf16.msra.mxu0 %v1143
  %1619 = vmatprep.subr.bf16.mxu0 %v1153
  %1620 = vmatpush1.bf16.msra.mxu0 %v1152
  %1621 = vmatprep.subr.bf16.mxu0 %v1162
  %1622 = vmatpush1.bf16.msra.mxu0 %v1161
  %1623 = vmatprep.subr.bf16.mxu0 %v1171
  %1624 = vmatpush1.bf16.msra.mxu0 %v1170
  %1625 = vmatprep.subr.bf16.mxu0 %v1180
  %1626 = vmatpush1.bf16.msra.mxu0 %v1179
  %1627 = vmatprep.subr.bf16.mxu0 %v1189
  %1628 = vmatpush1.bf16.msra.mxu0 %v1188
  %1629 = vmatprep.subr.bf16.mxu0 %v1198
  %1630 = vmatpush1.bf16.msra.mxu0 %v1197
  %1631 = vmatprep.subr.bf16.mxu0 %v1207
  %1632 = vmatpush1.bf16.msra.mxu0 %v1206
  %1633 = vmatprep.subr.bf16.mxu0 %v1216
  %1634 = vmatpush1.bf16.msra.mxu0 %v1215
  %1635 = vmatprep.subr.bf16.mxu0 %v1225
  %1636 = vmatpush1.bf16.msra.mxu0 %v1224
  %1637 = vmatprep.mubr.bf16.mxu0 %v124
  %1638 = vmatmul.mubr.bf16.gmra.mrb[0].mxu0 %v123
  %v1639 = vpop.f32.mrb[0].mxu0
  %v1640 = vadd.f32 %v381, %v1639
  %v1641 = vpop.f32.mrb[0].mxu0
  %v1642 = vadd.f32 %v385, %v1641
  %v1643 = vpop.f32.mrb[0].mxu0
  %v1644 = vadd.f32 %v381, %v1643
  %v1645 = vpop.f32.mrb[0].mxu0
  %v1646 = vadd.f32 %v385, %v1645
  %1647 = vdwg.mxu0
  %1648 = vmatprep.subr.bf16.mxu0 %v1234
  %1649 = vmatpush1.bf16.msra.mxu0 %v1233
  %1650 = vmatprep.subr.bf16.mxu0 %v1243
  %1651 = vmatpush1.bf16.msra.mxu0 %v1242
  %1652 = vmatprep.subr.bf16.mxu0 %v1252
  %1653 = vmatpush1.bf16.msra.mxu0 %v1251
  %1654 = vmatprep.subr.bf16.mxu0 %v1261
  %1655 = vmatpush1.bf16.msra.mxu0 %v1260
  %1656 = vmatprep.subr.bf16.mxu0 %v1270
  %1657 = vmatpush1.bf16.msra.mxu0 %v1269
  %1658 = vmatprep.subr.bf16.mxu0 %v1279
  %1659 = vmatpush1.bf16.msra.mxu0 %v1278
  %1660 = vmatprep.subr.bf16.mxu0 %v1288
  %1661 = vmatpush1.bf16.msra.mxu0 %v1287
  %1662 = vmatprep.subr.bf16.mxu0 %v1297
  %1663 = vmatpush1.bf16.msra.mxu0 %v1296
  %1664 = vmatprep.subr.bf16.mxu0 0
  %1665 = vmatpush1.bf16.msra.mxu0 0
  %1666 = vmatprep.subr.bf16.mxu0 0
  %1667 = vmatpush1.bf16.msra.mxu0 0
  %1668 = vmatprep.subr.bf16.mxu0 0
  %1669 = vmatpush1.bf16.msra.mxu0 0
  %1670 = vmatprep.subr.bf16.mxu0 0
  %1671 = vmatpush1.bf16.msra.mxu0 0
  %1672 = vmatprep.subr.bf16.mxu0 0
  %1673 = vmatpush1.bf16.msra.mxu0 0
  %1674 = vmatprep.subr.bf16.mxu0 0
  %1675 = vmatpush1.bf16.msra.mxu0 0
  %1676 = vmatprep.subr.bf16.mxu0 0
  %1677 = vmatpush1.bf16.msra.mxu0 0
  %1678 = vmatprep.subr.bf16.mxu0 0
  %1679 = vmatpush1.bf16.msra.mxu0 0
  %1680 = vmatprep.mubr.bf16.mxu0 0
  %1681 = vmatmul.mubr.bf16.gmra.mrb[0].mxu0 %v125
  %v1682 = vpop.f32.mrb[0].mxu0
  %v1683 = vadd.f32 %v1640, %v1682
  %v1684 = vpop.f32.mrb[0].mxu0
  %v1685 = vadd.f32 %v1642, %v1684
  %v1686 = vpop.f32.mrb[0].mxu0
  %v1687 = vadd.f32 %v1644, %v1686
  %v1688 = vpop.f32.mrb[0].mxu0
  %v1689 = vadd.f32 %v1646, %v1688
  %1690 = vdwg.mxu0
  %1691 = vmatprep.subr.bf16.mxu0 %v1092
  %1692 = vmatpush1.bf16.msra.mxu0 %v1091
  %1693 = vmatprep.subr.bf16.mxu0 %v1101
  %1694 = vmatpush1.bf16.msra.mxu0 %v1100
  %1695 = vmatprep.subr.bf16.mxu0 %v1110
  %1696 = vmatpush1.bf16.msra.mxu0 %v1109
  %1697 = vmatprep.subr.bf16.mxu0 %v1119
  %1698 = vmatpush1.bf16.msra.mxu0 %v1118
  %1699 = vmatprep.subr.bf16.mxu0 %v1128
  %1700 = vmatpush1.bf16.msra.mxu0 %v1127
  %1701 = vmatprep.subr.bf16.mxu0 %v1137
  %1702 = vmatpush1.bf16.msra.mxu0 %v1136
  %1703 = vmatprep.subr.bf16.mxu0 %v1146
  %1704 = vmatpush1.bf16.msra.mxu0 %v1145
  %1705 = vmatprep.subr.bf16.mxu0 %v1155
  %1706 = vmatpush1.bf16.msra.mxu0 %v1154
  %1707 = vmatprep.subr.bf16.mxu0 %v1164
  %1708 = vmatpush1.bf16.msra.mxu0 %v1163
  %1709 = vmatprep.subr.bf16.mxu0 %v1173
  %1710 = vmatpush1.bf16.msra.mxu0 %v1172
  %1711 = vmatprep.subr.bf16.mxu0 %v1182
  %1712 = vmatpush1.bf16.msra.mxu0 %v1181
  %1713 = vmatprep.subr.bf16.mxu0 %v1191
  %1714 = vmatpush1.bf16.msra.mxu0 %v1190
  %1715 = vmatprep.subr.bf16.mxu0 %v1200
  %1716 = vmatpush1.bf16.msra.mxu0 %v1199
  %1717 = vmatprep.subr.bf16.mxu0 %v1209
  %1718 = vmatpush1.bf16.msra.mxu0 %v1208
  %1719 = vmatprep.subr.bf16.mxu0 %v1218
  %1720 = vmatpush1.bf16.msra.mxu0 %v1217
  %1721 = vmatprep.subr.bf16.mxu0 %v1227
  %1722 = vmatpush1.bf16.msra.mxu0 %v1226
  %1723 = vmatprep.mubr.bf16.mxu0 %v124
  %1724 = vmatmul.mubr.bf16.gmra.mrb[0].mxu0 %v123
  %v1725 = vpop.f32.mrb[0].mxu0
  %v1726 = vadd.f32 %v389, %v1725
  %v1727 = vpop.f32.mrb[0].mxu0
  %v1728 = vadd.f32 %v393, %v1727
  %v1729 = vpop.f32.mrb[0].mxu0
  %v1730 = vadd.f32 %v389, %v1729
  %v1731 = vpop.f32.mrb[0].mxu0
  %v1732 = vadd.f32 %v393, %v1731
  %1733 = vdwg.mxu0
  %1734 = vmatprep.subr.bf16.mxu0 %v1236
  %1735 = vmatpush1.bf16.msra.mxu0 %v1235
  %1736 = vmatprep.subr.bf16.mxu0 %v1245
  %1737 = vmatpush1.bf16.msra.mxu0 %v1244
  %1738 = vmatprep.subr.bf16.mxu0 %v1254
  %1739 = vmatpush1.bf16.msra.mxu0 %v1253
  %1740 = vmatprep.subr.bf16.mxu0 %v1263
  %1741 = vmatpush1.bf16.msra.mxu0 %v1262
  %1742 = vmatprep.subr.bf16.mxu0 %v1272
  %1743 = vmatpush1.bf16.msra.mxu0 %v1271
  %1744 = vmatprep.subr.bf16.mxu0 %v1281
  %1745 = vmatpush1.bf16.msra.mxu0 %v1280
  %1746 = vmatprep.subr.bf16.mxu0 %v1290
  %1747 = vmatpush1.bf16.msra.mxu0 %v1289
  %1748 = vmatprep.subr.bf16.mxu0 %v1299
  %1749 = vmatpush1.bf16.msra.mxu0 %v1298
  %1750 = vmatprep.subr.bf16.mxu0 0
  %1751 = vmatpush1.bf16.msra.mxu0 0
  %1752 = vmatprep.subr.bf16.mxu0 0
  %1753 = vmatpush1.bf16.msra.mxu0 0
  %1754 = vmatprep.subr.bf16.mxu0 0
  %1755 = vmatpush1.bf16.msra.mxu0 0
  %1756 = vmatprep.subr.bf16.mxu0 0
  %1757 = vmatpush1.bf16.msra.mxu0 0
  %1758 = vmatprep.subr.bf16.mxu0 0
  %1759 = vmatpush1.bf16.msra.mxu0 0
  %1760 = vmatprep.subr.bf16.mxu0 0
  %1761 = vmatpush1.bf16.msra.mxu0 0
  %1762 = vmatprep.subr.bf16.mxu0 0
  %1763 = vmatpush1.bf16.msra.mxu0 0
  %1764 = vmatprep.subr.bf16.mxu0 0
  %1765 = vmatpush1.bf16.msra.mxu0 0
  %1766 = vmatprep.mubr.bf16.mxu0 0
  %1767 = vmatmul.mubr.bf16.gmra.mrb[0].mxu0 %v125
  %v1768 = vpop.f32.mrb[0].mxu0
  %v1769 = vadd.f32 %v1726, %v1768
  %v1770 = vpop.f32.mrb[0].mxu0
  %v1771 = vadd.f32 %v1728, %v1770
  %v1772 = vpop.f32.mrb[0].mxu0
  %v1773 = vadd.f32 %v1730, %v1772
  %v1774 = vpop.f32.mrb[0].mxu0
  %v1775 = vadd.f32 %v1732, %v1774
  %1776 = vdwg.mxu0
  %1777 = vmatprep.subr.bf16.mxu0 %v1094
  %1778 = vmatpush1.bf16.msra.mxu0 %v1093
  %1779 = vmatprep.subr.bf16.mxu0 %v1103
  %1780 = vmatpush1.bf16.msra.mxu0 %v1102
  %1781 = vmatprep.subr.bf16.mxu0 %v1112
  %1782 = vmatpush1.bf16.msra.mxu0 %v1111
  %1783 = vmatprep.subr.bf16.mxu0 %v1121
  %1784 = vmatpush1.bf16.msra.mxu0 %v1120
  %1785 = vmatprep.subr.bf16.mxu0 %v1130
  %1786 = vmatpush1.bf16.msra.mxu0 %v1129
  %1787 = vmatprep.subr.bf16.mxu0 %v1139
  %1788 = vmatpush1.bf16.msra.mxu0 %v1138
  %1789 = vmatprep.subr.bf16.mxu0 %v1148
  %1790 = vmatpush1.bf16.msra.mxu0 %v1147
  %1791 = vmatprep.subr.bf16.mxu0 %v1157
  %1792 = vmatpush1.bf16.msra.mxu0 %v1156
  %1793 = vmatprep.subr.bf16.mxu0 %v1166
  %1794 = vmatpush1.bf16.msra.mxu0 %v1165
  %1795 = vmatprep.subr.bf16.mxu0 %v1175
  %1796 = vmatpush1.bf16.msra.mxu0 %v1174
  %1797 = vmatprep.subr.bf16.mxu0 %v1184
  %1798 = vmatpush1.bf16.msra.mxu0 %v1183
  %1799 = vmatprep.subr.bf16.mxu0 %v1193
  %1800 = vmatpush1.bf16.msra.mxu0 %v1192
  %1801 = vmatprep.subr.bf16.mxu0 %v1202
  %1802 = vmatpush1.bf16.msra.mxu0 %v1201
  %1803 = vmatprep.subr.bf16.mxu0 %v1211
  %1804 = vmatpush1.bf16.msra.mxu0 %v1210
  %1805 = vmatprep.subr.bf16.mxu0 %v1220
  %1806 = vmatpush1.bf16.msra.mxu0 %v1219
  %1807 = vmatprep.subr.bf16.mxu0 %v1229
  %1808 = vmatpush1.bf16.msra.mxu0 %v1228
  %1809 = vmatprep.mubr.bf16.mxu0 %v124
  %1810 = vmatmul.mubr.bf16.gmra.mrb[0].mxu0 %v123
  %v1811 = vpop.f32.mrb[0].mxu0
  %v1812 = vadd.f32 %v397, %v1811
  %v1813 = vpop.f32.mrb[0].mxu0
  %v1814 = vadd.f32 %v401, %v1813
  %v1815 = vpop.f32.mrb[0].mxu0
  %v1816 = vadd.f32 %v397, %v1815
  %v1817 = vpop.f32.mrb[0].mxu0
  %v1818 = vadd.f32 %v401, %v1817
  %1819 = vdwg.mxu0
  %1820 = vmatprep.subr.bf16.mxu0 %v1238
  %1821 = vmatpush1.bf16.msra.mxu0 %v1237
  %1822 = vmatprep.subr.bf16.mxu0 %v1247
  %1823 = vmatpush1.bf16.msra.mxu0 %v1246
  %1824 = vmatprep.subr.bf16.mxu0 %v1256
  %1825 = vmatpush1.bf16.msra.mxu0 %v1255
  %1826 = vmatprep.subr.bf16.mxu0 %v1265
  %1827 = vmatpush1.bf16.msra.mxu0 %v1264
  %1828 = vmatprep.subr.bf16.mxu0 %v1274
  %1829 = vmatpush1.bf16.msra.mxu0 %v1273
  %1830 = vmatprep.subr.bf16.mxu0 %v1283
  %1831 = vmatpush1.bf16.msra.mxu0 %v1282
  %1832 = vmatprep.subr.bf16.mxu0 %v1292
  %1833 = vmatpush1.bf16.msra.mxu0 %v1291
  %1834 = vmatprep.subr.bf16.mxu0 %v1301
  %1835 = vmatpush1.bf16.msra.mxu0 %v1300
  %1836 = vmatprep.subr.bf16.mxu0 0
  %1837 = vmatpush1.bf16.msra.mxu0 0
  %1838 = vmatprep.subr.bf16.mxu0 0
  %1839 = vmatpush1.bf16.msra.mxu0 0
  %1840 = vmatprep.subr.bf16.mxu0 0
  %1841 = vmatpush1.bf16.msra.mxu0 0
  %1842 = vmatprep.subr.bf16.mxu0 0
  %1843 = vmatpush1.bf16.msra.mxu0 0
  %1844 = vmatprep.subr.bf16.mxu0 0
  %1845 = vmatpush1.bf16.msra.mxu0 0
  %1846 = vmatprep.subr.bf16.mxu0 0
  %1847 = vmatpush1.bf16.msra.mxu0 0
  %1848 = vmatprep.subr.bf16.mxu0 0
  %1849 = vmatpush1.bf16.msra.mxu0 0
  %1850 = vmatprep.subr.bf16.mxu0 0
  %1851 = vmatpush1.bf16.msra.mxu0 0
  %1852 = vmatprep.mubr.bf16.mxu0 0
  %1853 = vmatmul.mubr.bf16.gmra.mrb[0].mxu0 %v125
  %v1854 = vpop.f32.mrb[0].mxu0
  %v1855 = vadd.f32 %v1812, %v1854
  %v1856 = vpop.f32.mrb[0].mxu0
  %v1857 = vadd.f32 %v1814, %v1856
  %v1858 = vpop.f32.mrb[0].mxu0
  %v1859 = vadd.f32 %v1816, %v1858
  %v1860 = vpop.f32.mrb[0].mxu0
  %v1861 = vadd.f32 %v1818, %v1860
  %1862 = vdwg.mxu0
  %1863 = vmatprep.subr.bf16.mxu0 0
  %1864 = vmatpush1.bf16.msra.mxu0 %v1095
  %1865 = vmatprep.subr.bf16.mxu0 0
  %1866 = vmatpush1.bf16.msra.mxu0 %v1104
  %1867 = vmatprep.subr.bf16.mxu0 0
  %1868 = vmatpush1.bf16.msra.mxu0 %v1113
  %1869 = vmatprep.subr.bf16.mxu0 0
  %1870 = vmatpush1.bf16.msra.mxu0 %v1122
  %1871 = vmatprep.subr.bf16.mxu0 0
  %1872 = vmatpush1.bf16.msra.mxu0 %v1131
  %1873 = vmatprep.subr.bf16.mxu0 0
  %1874 = vmatpush1.bf16.msra.mxu0 %v1140
  %1875 = vmatprep.subr.bf16.mxu0 0
  %1876 = vmatpush1.bf16.msra.mxu0 %v1149
  %1877 = vmatprep.subr.bf16.mxu0 0
  %1878 = vmatpush1.bf16.msra.mxu0 %v1158
  %1879 = vmatprep.subr.bf16.mxu0 0
  %1880 = vmatpush1.bf16.msra.mxu0 %v1167
  %1881 = vmatprep.subr.bf16.mxu0 0
  %1882 = vmatpush1.bf16.msra.mxu0 %v1176
  %1883 = vmatprep.subr.bf16.mxu0 0
  %1884 = vmatpush1.bf16.msra.mxu0 %v1185
  %1885 = vmatprep.subr.bf16.mxu0 0
  %1886 = vmatpush1.bf16.msra.mxu0 %v1194
  %1887 = vmatprep.subr.bf16.mxu0 0
  %1888 = vmatpush1.bf16.msra.mxu0 %v1203
  %1889 = vmatprep.subr.bf16.mxu0 0
  %1890 = vmatpush1.bf16.msra.mxu0 %v1212
  %1891 = vmatprep.subr.bf16.mxu0 0
  %1892 = vmatpush1.bf16.msra.mxu0 %v1221
  %1893 = vmatprep.subr.bf16.mxu0 0
  %1894 = vmatpush1.bf16.msra.mxu0 %v1230
  %1895 = vmatprep.mubr.bf16.mxu0 %v124
  %1896 = vmatmul.mubr.bf16.gmra.mrb[0].mxu0 %v123
  %v1897 = vpop.f32.mrb[0].mxu0
  %v1898 = vadd.f32 %v405, %v1897
  %v1899 = vpop.f32.mrb[0].mxu0
  %v1900 = vpop.f32.mrb[0].mxu0
  %v1901 = vadd.f32 %v405, %v1900
  %v1902 = vpop.f32.mrb[0].mxu0
  %1903 = vdwg.mxu0
  %1904 = vmatprep.subr.bf16.mxu0 0
  %1905 = vmatpush1.bf16.msra.mxu0 %v1239
  %1906 = vmatprep.subr.bf16.mxu0 0
  %1907 = vmatpush1.bf16.msra.mxu0 %v1248
  %1908 = vmatprep.subr.bf16.mxu0 0
  %1909 = vmatpush1.bf16.msra.mxu0 %v1257
  %1910 = vmatprep.subr.bf16.mxu0 0
  %1911 = vmatpush1.bf16.msra.mxu0 %v1266
  %1912 = vmatprep.subr.bf16.mxu0 0
  %1913 = vmatpush1.bf16.msra.mxu0 %v1275
  %1914 = vmatprep.subr.bf16.mxu0 0
  %1915 = vmatpush1.bf16.msra.mxu0 %v1284
  %1916 = vmatprep.subr.bf16.mxu0 0
  %1917 = vmatpush1.bf16.msra.mxu0 %v1293
  %1918 = vmatprep.subr.bf16.mxu0 0
  %1919 = vmatpush1.bf16.msra.mxu0 %v1302
  %1920 = vmatprep.subr.bf16.mxu0 0
  %1921 = vmatpush1.bf16.msra.mxu0 0
  %1922 = vmatprep.subr.bf16.mxu0 0
  %1923 = vmatpush1.bf16.msra.mxu0 0
  %1924 = vmatprep.subr.bf16.mxu0 0
  %1925 = vmatpush1.bf16.msra.mxu0 0
  %1926 = vmatprep.subr.bf16.mxu0 0
  %1927 = vmatpush1.bf16.msra.mxu0 0
  %1928 = vmatprep.subr.bf16.mxu0 0
  %1929 = vmatpush1.bf16.msra.mxu0 0
  %1930 = vmatprep.subr.bf16.mxu0 0
  %1931 = vmatpush1.bf16.msra.mxu0 0
  %1932 = vmatprep.subr.bf16.mxu0 0
  %1933 = vmatpush1.bf16.msra.mxu0 0
  %1934 = vmatprep.subr.bf16.mxu0 0
  %1935 = vmatpush1.bf16.msra.mxu0 0
  %1936 = vmatprep.mubr.bf16.mxu0 0
  %1937 = vmatmul.mubr.bf16.gmra.mrb[0].mxu0 %v125
  %v1938 = vpop.f32.mrb[0].mxu0
  %v1939 = vadd.f32 %v1898, %v1938
  %v1940 = vpop.f32.mrb[0].mxu0
  %v1941 = vpop.f32.mrb[0].mxu0
  %v1942 = vadd.f32 %v1901, %v1941
  %v1943 = vpop.f32.mrb[0].mxu0
  %1944 = vdwg.mxu0
  %v1945 = vpack.c.bf16 %v1601, %v1597
  %v1946 = vpack.c.bf16 %v1603, %v1599
  %v1947 = vpack.c.bf16 %v1687, %v1683
  %v1948 = vpack.c.bf16 %v1689, %v1685
  %v1949 = vpack.c.bf16 %v1773, %v1769
  %v1950 = vpack.c.bf16 %v1775, %v1771
  %v1951 = vpack.c.bf16 %v1859, %v1855
  %v1952 = vpack.c.bf16 %v1861, %v1857
  %v1953 = vpack.c.bf16 %v1942, %v1939
  %v1963 = vunpack.c.l.b16 %v1945
  %v1964 = vunpack.c.l.b16 %v1946
  %v1965 = vunpack.c.l.b16 %v1947
  %v1966 = vunpack.c.l.b16 %v1948
  %v1967 = vunpack.c.l.b16 %v1949
  %v1968 = vunpack.c.l.b16 %v1950
  %v1969 = vunpack.c.l.b16 %v1951
  %v1970 = vunpack.c.l.b16 %v1952
  %v1971 = vunpack.c.l.b16 %v1953
  %v1972 = vunpack.c.h.b16 %v1945
  %v1973 = vunpack.c.h.b16 %v1946
  %v1974 = vunpack.c.h.b16 %v1947
  %v1975 = vunpack.c.h.b16 %v1948
  %v1976 = vunpack.c.h.b16 %v1949
  %v1977 = vunpack.c.h.b16 %v1950
  %v1978 = vunpack.c.h.b16 %v1951
  %v1979 = vunpack.c.h.b16 %v1952
  %v1980 = vunpack.c.h.b16 %v1953
  %v1981 = vpack.c.b16 %v1964, %v1963
  %v1982 = vpack.c.b16 %v1966, %v1965
  %v1983 = vpack.c.b16 %v1968, %v1967
  %v1984 = vpack.c.b16 %v1970, %v1969
  %v1985 = vpack.c.b16 %v1971, %v1971
  %v1986 = vpack.c.b16 %v1973, %v1972
  %v1987 = vpack.c.b16 %v1975, %v1974
  %v1988 = vpack.c.b16 %v1977, %v1976
  %v1989 = vpack.c.b16 %v1979, %v1978
  %v1990 = vpack.c.b16 %v1980, %v1980
  %2001 = vst [vmem:[%s5] sm:$0xff] %v1981
  %2002 = vst [vmem:[%s5 + $0x8] sm:$0xff] %v1982
  %2003 = vst [vmem:[%s5 + $0x10] sm:$0xff] %v1983
  %2004 = vst [vmem:[%s5 + $0x18] sm:$0xff] %v1984
  %2005 = vst [vmem:[%s5 + $0x20] sm:$0xf] %v1985
  %2006 = vst [vmem:[%s5 + $0x24] sm:$0x11] %v1986
  %2007 = vst [vmem:[%s5 + $0x2c] sm:$0x11] %v1987
  %2008 = vst [vmem:[%s5 + $0x34] sm:$0x11] %v1988
  %2009 = vst [vmem:[%s5 + $0x3c] sm:$0x11] %v1989
  %2010 = vst [vmem:[%s5 + $0x44] sm:$0x1] %v1990
  // Predicated region
  $region22: #{vit_mt_forward.9} parent=0 // pred_check
    _
  $region23: #{vit_mt_forward.9} parent=0 // pred_check_branch
    %2012 = sbr.rel (0) target = $region25
  $region24: #{vit_mt_forward.9} parent=0 // pred_region
    _
  $region25: #{vit_mt_forward.9} parent=0 // pred_fallthru
    _
  // Predicated region
  $region26: #{vit_mt_forward.9} parent=0 // pred_check
    _
  $region27: #{vit_mt_forward.9} parent=0 // pred_check_branch
    %2014 = sbr.rel (0) target = $region29
  $region28: #{vit_mt_forward.9} parent=0 // pred_region
    _
  $region29: #{vit_mt_forward.9} parent=0 // pred_fallthru
    _

// kernel: vit_mt_forward.10
$region0: #{vit_mt_forward.10}
  #allocation0 [shape = 'u32[]', space=smem, size = 0x4, offset = 0x4, fixed_abs, tag = 'smem constant byte address 0x4 - core index']
  #allocation1 [shape = 'u32[144,128]{1,0:T(1,128)}', space=vmem, size = 0x12000, scoped, tag = 'internal scratch']
  %s0 = inlined_call_operand.vmem [shape: bf16[2,5,1152], index: 0, kind: input, shape index: {}, may-alias: {0,1,2}]
  %s1 = inlined_call_operand.vmem [shape: bf16[2,5,1152], index: 1, kind: input, shape index: {}, may-alias: {0,1,2}]
  %s2 = inlined_call_operand.vmem [shape: bf16[2,5,1152], index: 2, kind: input, shape index: {}, may-alias: {0,1,2}]
  %s3 = inlined_call_operand.vmem [shape: f32[2,5,384], index: 3, kind: input, shape index: {}]
  %s4 = inlined_call_operand.vmem [shape: bf16[384,384], index: 4, kind: input, shape index: {}]
  %s5 = inlined_call_operand.vmem [shape: f32[1,384], index: 5, kind: input, shape index: {}]
  %s6 = inlined_call_operand.vmem [shape: f32[2,5,384], index: 6, kind: output, shape index: {}]
  %s7 = sld [smem:[#allocation0]]
  $region57: #{vit_mt_forward.10} parent=0
    _
  %s9 = ssub.s32 1, %s7
  %s10 = scalar_select 0, %s9, %s7
  loop: start=0, step=1, limit=4
  $region2: #{vit_mt_forward.10} parent=0 // loop_pre_header
    _
  $region3: #{vit_mt_forward.10} parent=0 // loop_header
    %s12 = sphi 0, %s16
    %p13 = scmp.ge.s32.totalorder %s12, 4
    %s19 = sphi 0, %s31
    %s20 = sphi 0, %s27
    %s21 = sphi 0, %s19
    %s22 = sphi 0, %s20
    %s23 = sphi 0, %s21
    %s24 = sphi 0, %s22
    %s36 = sphi 0, %s38
    %s39 = sphi 0, %s36
    %s40 = sphi 0, %s39
    %s56 = sphi 0, %s40
    %s62 = sphi 0, %s64
    %s65 = sphi 0, %s62
    %s66 = sphi 0, %s65
    %s82 = sphi 0, %s66
    %s88 = sphi 0, %s90
    %s91 = sphi 0, %s88
    %s92 = sphi 0, %s91
    %s108 = sphi 0, %s92
    %s116 = sphi 0, %s118
    %s119 = sphi 0, %s116
    %s120 = sphi 0, %s119
    %s136 = sphi 0, %s120
    %s140 = sphi 0, %s140
    %s142 = sphi 0, %s140
    %s143 = sphi 0, %s142
    %s157 = sphi 0, %s143
    %s161 = sphi 0, %s161
    %s163 = sphi 0, %s161
    %s164 = sphi 0, %s163
    %s178 = sphi 0, %s164
    %s186 = sphi 0, %s188
    %s189 = sphi 0, %s186
    %s190 = sphi 0, %s189
    %s206 = sphi 0, %s190
  $region4: #{vit_mt_forward.10} parent=0 // loop_header_branch
    %15 = sbr.rel (%p13) target = $region8
  $region5: #{vit_mt_forward.10} parent=0 // loop_body
    %s17 = ssub.s32 %s12, 1
    %s18 = ssub.s32 %s12, 2
    %s25 = sadd.s32 1, %s20
    %p26 = scmp.ge.s32.totalorder %s25, 1
    %s27 = scalar_select %p26, 0, %s25
    %s28 = sadd.s32 1, %s19
    %s29 = scalar_select %p26, %s28, %s19
    %p30 = scmp.ge.s32.totalorder %s29, 2
    %s31 = scalar_select %p30, 0, %s29
    %s32 = ssub.s32 %s19, %s31
    %s33 = ssub.s32 %s20, %s27
    %s34 = sor.u32 %s32, %s33
    %p35 = scmp.eq.s32.totalorder %s34, 0
    %s37 = sadd.s32 %s36, 1
    %s38 = scalar_select %p35, %s36, %s37
    %p41 = pneg %p35
    %p42 = scmp.eq.s32.totalorder %s12, 1
    %p43 = por %p41, %p42
    %p44 = scmp.ne.s32.totalorder %s36, %s39
    %p45 = scmp.eq.s32.totalorder %s12, 0
    %p46 = por %p44, %p45
    %p47 = scmp.ne.s32.totalorder %s36, %s39
    %p48 = scmp.eq.s32.totalorder %s17, 1
    %p49 = por %p47, %p48
    %p50 = scmp.ne.s32.totalorder %s39, %s40
    %p51 = scmp.eq.s32.totalorder %s17, 0
    %p52 = por %p50, %p51
    %p53 = scmp.ne.s32.totalorder %s39, %s40
    %p54 = scmp.eq.s32.totalorder %s18, 1
    %p55 = por %p53, %p54
    %p57 = scmp.ne.s32.totalorder %s40, %s56
    %p58 = scmp.eq.s32.totalorder %s18, 0
    %p59 = por %p57, %p58
    %s60 = ssub.s32 %s19, %s31
    %p61 = scmp.eq.s32.totalorder %s60, 0
    %s63 = sadd.s32 %s62, 1
    %s64 = scalar_select %p61, %s62, %s63
    %p67 = pneg %p61
    %p68 = scmp.eq.s32.totalorder %s12, 1
    %p69 = por %p67, %p68
    %p70 = scmp.ne.s32.totalorder %s62, %s65
    %p71 = scmp.eq.s32.totalorder %s12, 0
    %p72 = por %p70, %p71
    %p73 = scmp.ne.s32.totalorder %s62, %s65
    %p74 = scmp.eq.s32.totalorder %s17, 1
    %p75 = por %p73, %p74
    %p76 = scmp.ne.s32.totalorder %s65, %s66
    %p77 = scmp.eq.s32.totalorder %s17, 0
    %p78 = por %p76, %p77
    %p79 = scmp.ne.s32.totalorder %s65, %s66
    %p80 = scmp.eq.s32.totalorder %s18, 1
    %p81 = por %p79, %p80
    %p83 = scmp.ne.s32.totalorder %s66, %s82
    %p84 = scmp.eq.s32.totalorder %s18, 0
    %p85 = por %p83, %p84
    %s86 = ssub.s32 %s19, %s31
    %p87 = scmp.eq.s32.totalorder %s86, 0
    %s89 = sadd.s32 %s88, 1
    %s90 = scalar_select %p87, %s88, %s89
    %p93 = pneg %p87
    %p94 = scmp.eq.s32.totalorder %s12, 1
    %p95 = por %p93, %p94
    %p96 = scmp.ne.s32.totalorder %s88, %s91
    %p97 = scmp.eq.s32.totalorder %s12, 0
    %p98 = por %p96, %p97
    %p99 = scmp.ne.s32.totalorder %s88, %s91
    %p100 = scmp.eq.s32.totalorder %s17, 1
    %p101 = por %p99, %p100
    %p102 = scmp.ne.s32.totalorder %s91, %s92
    %p103 = scmp.eq.s32.totalorder %s17, 0
    %p104 = por %p102, %p103
    %p105 = scmp.ne.s32.totalorder %s91, %s92
    %p106 = scmp.eq.s32.totalorder %s18, 1
    %p107 = por %p105, %p106
    %p109 = scmp.ne.s32.totalorder %s92, %s108
    %p110 = scmp.eq.s32.totalorder %s18, 0
    %p111 = por %p109, %p110
    %s112 = ssub.s32 %s19, %s31
    %s113 = ssub.s32 %s20, %s27
    %s114 = sor.u32 %s112, %s113
    %p115 = scmp.eq.s32.totalorder %s114, 0
    %s117 = sadd.s32 %s116, 1
    %s118 = scalar_select %p115, %s116, %s117
    %p121 = pneg %p115
    %p122 = scmp.eq.s32.totalorder %s12, 1
    %p123 = por %p121, %p122
    %p124 = scmp.ne.s32.totalorder %s116, %s119
    %p125 = scmp.eq.s32.totalorder %s12, 0
    %p126 = por %p124, %p125
    %p127 = scmp.ne.s32.totalorder %s116, %s119
    %p128 = scmp.eq.s32.totalorder %s17, 1
    %p129 = por %p127, %p128
    %p130 = scmp.ne.s32.totalorder %s119, %s120
    %p131 = scmp.eq.s32.totalorder %s17, 0
    %p132 = por %p130, %p131
    %p133 = scmp.ne.s32.totalorder %s119, %s120
    %p134 = scmp.eq.s32.totalorder %s18, 1
    %p135 = por %p133, %p134
    %p137 = scmp.ne.s32.totalorder %s120, %s136
    %p138 = scmp.eq.s32.totalorder %s18, 0
    %p139 = por %p137, %p138
    %s141 = sadd.s32 %s140, 1
    %p144 = scmp.eq.s32.totalorder %s12, 1
    %p145 = scmp.ne.s32.totalorder %s140, %s142
    %p146 = scmp.eq.s32.totalorder %s12, 0
    %p147 = por %p145, %p146
    %p148 = scmp.ne.s32.totalorder %s140, %s142
    %p149 = scmp.eq.s32.totalorder %s17, 1
    %p150 = por %p148, %p149
    %p151 = scmp.ne.s32.totalorder %s142, %s143
    %p152 = scmp.eq.s32.totalorder %s17, 0
    %p153 = por %p151, %p152
    %p154 = scmp.ne.s32.totalorder %s142, %s143
    %p155 = scmp.eq.s32.totalorder %s18, 1
    %p156 = por %p154, %p155
    %p158 = scmp.ne.s32.totalorder %s143, %s157
    %p159 = scmp.eq.s32.totalorder %s18, 0
    %p160 = por %p158, %p159
    %s162 = sadd.s32 %s161, 1
    %p165 = scmp.eq.s32.totalorder %s12, 1
    %p166 = scmp.ne.s32.totalorder %s161, %s163
    %p167 = scmp.eq.s32.totalorder %s12, 0
    %p168 = por %p166, %p167
    %p169 = scmp.ne.s32.totalorder %s161, %s163
    %p170 = scmp.eq.s32.totalorder %s17, 1
    %p171 = por %p169, %p170
    %p172 = scmp.ne.s32.totalorder %s163, %s164
    %p173 = scmp.eq.s32.totalorder %s17, 0
    %p174 = por %p172, %p173
    %p175 = scmp.ne.s32.totalorder %s163, %s164
    %p176 = scmp.eq.s32.totalorder %s18, 1
    %p177 = por %p175, %p176
    %p179 = scmp.ne.s32.totalorder %s164, %s178
    %p180 = scmp.eq.s32.totalorder %s18, 0
    %p181 = por %p179, %p180
    %s182 = ssub.s32 %s19, %s31
    %s183 = ssub.s32 %s20, %s27
    %s184 = sor.u32 %s182, %s183
    %p185 = scmp.eq.s32.totalorder %s184, 0
    %s187 = sadd.s32 %s186, 1
    %s188 = scalar_select %p185, %s186, %s187
    %p191 = pneg %p185
    %p192 = scmp.eq.s32.totalorder %s12, 1
    %p193 = por %p191, %p192
    %p194 = scmp.ne.s32.totalorder %s186, %s189
    %p195 = scmp.eq.s32.totalorder %s12, 0
    %p196 = por %p194, %p195
    %p197 = scmp.ne.s32.totalorder %s186, %s189
    %p198 = scmp.eq.s32.totalorder %s17, 1
    %p199 = por %p197, %p198
    %p200 = scmp.ne.s32.totalorder %s189, %s190
    %p201 = scmp.eq.s32.totalorder %s17, 0
    %p202 = por %p200, %p201
    %p203 = scmp.ne.s32.totalorder %s189, %s190
    %p204 = scmp.eq.s32.totalorder %s18, 1
    %p205 = por %p203, %p204
    %p207 = scmp.ne.s32.totalorder %s190, %s206
    %p208 = scmp.eq.s32.totalorder %s18, 0
    %p209 = por %p207, %p208
    %p210 = scmp.le.s32.totalorder 1, %s12
    %p211 = scmp.lt.s32.totalorder %s12, 3
    %p212 = pnand %p210, %p211
    %p213 = pneg %p212
    // Predicated region
    $region9: #{vit_mt_forward.10} parent=5 // pred_check
      _
    $region10: #{vit_mt_forward.10} parent=5 // pred_check_branch
      %215 = sbr.rel (%p212) target = $region12
    $region11: #{vit_mt_forward.10} parent=5 // pred_region
      %s216 = ssub.s32 %s12, 1
      // Predicated region
      $region13: #{vit_mt_forward.10} parent=11 // pred_check
        %p217 = pneg %p153
      $region14: #{vit_mt_forward.10} parent=11 // pred_check_branch
        %219 = sbr.rel (%p217) target = $region16
      $region15: #{vit_mt_forward.10} parent=11 // pred_region
        _
      $region16: #{vit_mt_forward.10} parent=11 // pred_fallthru
        _
      // Predicated region
      $region17: #{vit_mt_forward.10} parent=11 // pred_check
        %p220 = pneg %p174
      $region18: #{vit_mt_forward.10} parent=11 // pred_check_branch
        %222 = sbr.rel (%p220) target = $region20
      $region19: #{vit_mt_forward.10} parent=11 // pred_region
        _
      $region20: #{vit_mt_forward.10} parent=11 // pred_fallthru
        _
    $region12: #{vit_mt_forward.10} parent=5 // pred_fallthru
      _
    %p223 = scmp.lt.s32.totalorder %s12, 2
    // Predicated region
    $region21: #{vit_mt_forward.10} parent=5 // pred_check
      %p224 = pneg %p223
    $region22: #{vit_mt_forward.10} parent=5 // pred_check_branch
      %226 = sbr.rel (%p224) target = $region24
    $region23: #{vit_mt_forward.10} parent=5 // pred_region
      // Predicated region
      $region25: #{vit_mt_forward.10} parent=23 // pred_check
        %p227 = pneg %p46
      $region26: #{vit_mt_forward.10} parent=23 // pred_check_branch
        %229 = sbr.rel (%p227) target = $region28
      $region27: #{vit_mt_forward.10} parent=23 // pred_region
        %p230 = scmp.lt.s32.totalorder %s19, 1
        %s231 = scalar_select %p230, %s19, 1
        %p232 = scmp.lt.s32.totalorder %s20, 0
        %s233 = scalar_select %p232, %s20, 0
        %s234 = smul.addr %s233, 9
        %s235 = smul.addr %s231, 9
        %s236 = sadd.s32 %s234, %s235
        %s237 = smul.addr %s236, 4
        %s238 = scalar_lea.vmem %s0, %s237
      $region28: #{vit_mt_forward.10} parent=23 // pred_fallthru
        _
      // Predicated region
      $region29: #{vit_mt_forward.10} parent=23 // pred_check
        %p239 = pneg %p72
      $region30: #{vit_mt_forward.10} parent=23 // pred_check_branch
        %241 = sbr.rel (%p239) target = $region32
      $region31: #{vit_mt_forward.10} parent=23 // pred_region
        %p242 = scmp.lt.s32.totalorder %s19, 1
        %s243 = scalar_select %p242, %s19, 1
        %s244 = smul.addr %s243, 9
        %s245 = sadd.s32 3, %s244
        %s246 = smul.addr %s245, 4
        %s247 = scalar_lea.vmem %s1, %s246
      $region32: #{vit_mt_forward.10} parent=23 // pred_fallthru
        _
      // Predicated region
      $region33: #{vit_mt_forward.10} parent=23 // pred_check
        %p248 = pneg %p98
      $region34: #{vit_mt_forward.10} parent=23 // pred_check_branch
        %250 = sbr.rel (%p248) target = $region36
      $region35: #{vit_mt_forward.10} parent=23 // pred_region
        %p251 = scmp.lt.s32.totalorder %s19, 1
        %s252 = scalar_select %p251, %s19, 1
        %s253 = smul.addr %s252, 9
        %s254 = sadd.s32 6, %s253
        %s255 = smul.addr %s254, 4
        %s256 = scalar_lea.vmem %s2, %s255
      $region36: #{vit_mt_forward.10} parent=23 // pred_fallthru
        _
      // Predicated region
      $region37: #{vit_mt_forward.10} parent=23 // pred_check
        %p257 = pneg %p126
      $region38: #{vit_mt_forward.10} parent=23 // pred_check_branch
        %259 = sbr.rel (%p257) target = $region40
      $region39: #{vit_mt_forward.10} parent=23 // pred_region
        %p260 = scmp.lt.s32.totalorder %s19, 1
        %s261 = scalar_select %p260, %s19, 1
        %p262 = scmp.lt.s32.totalorder %s20, 0
        %s263 = scalar_select %p262, %s20, 0
        %s264 = smul.addr %s263, 3
        %s265 = smul.addr %s261, 3
        %s266 = sadd.s32 %s264, %s265
        %s267 = smul.addr %s266, 8
        %s268 = scalar_lea.vmem %s3, %s267
      $region40: #{vit_mt_forward.10} parent=23 // pred_fallthru
        _
    $region24: #{vit_mt_forward.10} parent=5 // pred_fallthru
      _
    %p269 = scmp.le.s32.totalorder 1, %s12
    %p270 = scmp.lt.s32.totalorder %s12, 3
    %p271 = pnand %p269, %p270
    %p272 = pneg %p271
    // Predicated region
    $region41: #{vit_mt_forward.10} parent=5 // pred_check
      _
    $region42: #{vit_mt_forward.10} parent=5 // pred_check_branch
      %274 = sbr.rel (%p271) target = $region44
    $region43: #{vit_mt_forward.10} parent=5 // pred_region
      %s275 = ssub.s32 %s12, 1
      %p276 = scmp.lt.s32.totalorder %s21, 1
      %s277 = scalar_select %p276, %s21, 1
      %p278 = scmp.lt.s32.totalorder %s22, 0
      %s279 = scalar_select %p278, %s22, 0
      %s280 = smul.addr %s279, 9
      %s281 = smul.addr %s277, 9
      %s282 = sadd.s32 %s280, %s281
      %s283 = smul.addr %s282, 4
      %s284 = scalar_lea.vmem %s0, %s283
      %p285 = pneg %p52
      %p286 = pneg %p49
      %p287 = scmp.lt.s32.totalorder %s21, 1
      %s288 = scalar_select %p287, %s21, 1
      %s289 = smul.addr %s288, 9
      %s290 = sadd.s32 3, %s289
      %s291 = smul.addr %s290, 4
      %s292 = scalar_lea.vmem %s1, %s291
      %p293 = pneg %p78
      %p294 = pneg %p75
      %p295 = scmp.lt.s32.totalorder %s21, 1
      %s296 = scalar_select %p295, %s21, 1
      %s297 = smul.addr %s296, 9
      %s298 = sadd.s32 6, %s297
      %s299 = smul.addr %s298, 4
      %s300 = scalar_lea.vmem %s2, %s299
      %p301 = pneg %p104
      %p302 = pneg %p101
      %p303 = scmp.lt.s32.totalorder %s21, 1
      %s304 = scalar_select %p303, %s21, 1
      %p305 = scmp.lt.s32.totalorder %s22, 0
      %s306 = scalar_select %p305, %s22, 0
      %s307 = smul.addr %s306, 3
      %s308 = smul.addr %s304, 3
      %s309 = sadd.s32 %s307, %s308
      %s310 = smul.addr %s309, 8
      %s311 = scalar_lea.vmem %s3, %s310
      %p312 = pneg %p132
      %p313 = pneg %p129
      %p314 = pneg %p153
      %p315 = pneg %p150
      %p316 = pneg %p174
      %p317 = pneg %p171
      %p318 = pneg %p202
      %p319 = pneg %p199
      %p320 = scmp.lt.s32.totalorder %s21, 1
      %s321 = scalar_select %p320, %s21, 1
      %p322 = scmp.lt.s32.totalorder %s22, 0
      %s323 = scalar_select %p322, %s22, 0
      %s324 = smul.addr %s323, 3
      %s325 = smul.addr %s321, 3
      %s326 = sadd.s32 %s324, %s325
      %s327 = smul.addr %s326, 8
      %s328 = scalar_lea.vmem %s6, %s327
      %p329 = scmp.lt.s32.totalorder %s21, 1
      %s330 = scalar_select %p329, %s21, 1
      %p331 = scmp.lt.s32.totalorder %s22, 0
      %s332 = scalar_select %p331, %s22, 0
      %s333 = smul.addr %s332, 9
      %s334 = smul.addr %s330, 9
      %s335 = sadd.s32 %s333, %s334
      %s336 = smul.addr %s335, 4
      %s337 = scalar_lea.vmem %s0, %s336
      %p338 = scmp.lt.s32.totalorder %s21, 1
      %s339 = scalar_select %p338, %s21, 1
      %s340 = smul.addr %s339, 9
      %s341 = sadd.s32 3, %s340
      %s342 = smul.addr %s341, 4
      %s343 = scalar_lea.vmem %s1, %s342
      %p344 = scmp.lt.s32.totalorder %s21, 1
      %s345 = scalar_select %p344, %s21, 1
      %s346 = smul.addr %s345, 9
      %s347 = sadd.s32 6, %s346
      %s348 = smul.addr %s347, 4
      %s349 = scalar_lea.vmem %s2, %s348
      %p350 = scmp.lt.s32.totalorder %s21, 1
      %s351 = scalar_select %p350, %s21, 1
      %p352 = scmp.lt.s32.totalorder %s22, 0
      %s353 = scalar_select %p352, %s22, 0
      %s354 = smul.addr %s353, 3
      %s355 = smul.addr %s351, 3
      %s356 = sadd.s32 %s354, %s355
      %s357 = smul.addr %s356, 8
      %s358 = scalar_lea.vmem %s3, %s357
      %p359 = scmp.lt.s32.totalorder %s21, 1
      %s360 = scalar_select %p359, %s21, 1
      %p361 = scmp.lt.s32.totalorder %s22, 0
      %s362 = scalar_select %p361, %s22, 0
      %s363 = smul.addr %s362, 3
      %s364 = smul.addr %s360, 3
      %s365 = sadd.s32 %s363, %s364
      %s366 = smul.addr %s365, 8
      %s367 = scalar_lea.vmem %s6, %s366
      %v369 = vld [vmem:[%s337] sm:$0x77]
      %v370 = vld [vmem:[%s337 + $0x8] sm:$0x7]
      %v372 = vrot.slane %v369, 4
      %373 = vrot.lane.b32.xlu0 %v369, 64
      %v374 = vpop.permute.xlu0 %373
      %v375 = vrot.slane %v374, 4
      %378 = vrot.lane.b32.xlu0 %v370, 64
      %v379 = vpop.permute.xlu0 %378
      %v381 = vcombine.low %v369, %v370
      %v383 = vunpack.c.l.s4 1983009808
      %v384 = vunpack.c.0.s8 %v383
      %v385 = vlaneseq
      %v386 = vshrl.u32 %v385, 7
      %v387 = vsub.s32 %v384, %v386
      %v388 = vrot.slane %v381, %v387
      %v391 = vunpack.c.l.s4 1983009808
      %v392 = vunpack.c.0.s8 %v391
      %v393 = vlaneseq
      %v394 = vshrl.u32 %v393, 7
      %v395 = vsub.s32 %v392, %v394
      %v396 = vrot.slane %v372, %v395
      %v397 = vcombine.low %v388, %v396
      %v398 = vcombine.high %v388, %v396
      %v400 = vunpack.c.l.s4 1934713408
      %v401 = vunpack.c.0.s8 %v400
      %v402 = vlaneseq
      %v403 = vshrl.u32 %v402, 7
      %v404 = vsub.s32 %v401, %v403
      %v405 = vrot.slane %v397, %v404
      %v406 = vcombine.high %v405, 0
      %v408 = vunpack.c.l.s4 1934713408
      %v409 = vunpack.c.0.s8 %v408
      %v410 = vlaneseq
      %v411 = vshrl.u32 %v410, 7
      %v412 = vsub.s32 %v409, %v411
      %v413 = vrot.slane %v398, %v412
      %v414 = vcombine.low %v374, %v379
      %v416 = vunpack.c.l.s4 1983009808
      %v417 = vunpack.c.0.s8 %v416
      %v418 = vlaneseq
      %v419 = vshrl.u32 %v418, 7
      %v420 = vsub.s32 %v417, %v419
      %v421 = vrot.slane %v414, %v420
      %v424 = vunpack.c.l.s4 1983009808
      %v425 = vunpack.c.0.s8 %v424
      %v426 = vlaneseq
      %v427 = vshrl.u32 %v426, 7
      %v428 = vsub.s32 %v425, %v427
      %v429 = vrot.slane %v375, %v428
      %v430 = vcombine.low %v421, %v429
      %v431 = vcombine.high %v421, %v429
      %v433 = vunpack.c.l.s4 1934713408
      %v434 = vunpack.c.0.s8 %v433
      %v435 = vlaneseq
      %v436 = vshrl.u32 %v435, 7
      %v437 = vsub.s32 %v434, %v436
      %v438 = vrot.slane %v430, %v437
      %v439 = vcombine.high %v438, 0
      %v441 = vunpack.c.l.s4 1934713408
      %v442 = vunpack.c.0.s8 %v441
      %v443 = vlaneseq
      %v444 = vshrl.u32 %v443, 7
      %v445 = vsub.s32 %v442, %v444
      %v446 = vrot.slane %v431, %v445
      %v449 = vpack.i.b16 %v438, %v405
      %v451 = vshrl.u32 %v405, 16
      %v452 = vshrl.u32 %v438, 16
      %v453 = vpack.i.b16 %v452, %v451
      %v456 = vpack.i.b16 %v439, %v406
      %v457 = vshrl.u32 %v406, 16
      %v458 = vshrl.u32 %v439, 16
      %v459 = vpack.i.b16 %v458, %v457
      %v462 = vpack.i.b16 %v446, %v413
      %v464 = vcombine.low %v449, %v462
      %v466 = vunpack.c.l.s4 1983009808
      %v467 = vunpack.c.0.s8 %v466
      %v468 = vlaneseq
      %v469 = vshrl.u32 %v468, 7
      %v470 = vsub.s32 %v467, %v469
      %v471 = vrot.slane %v464, %v470
      %v474 = vunpack.c.l.s4 1983009808
      %v475 = vunpack.c.0.s8 %v474
      %v476 = vlaneseq
      %v477 = vshrl.u32 %v476, 7
      %v478 = vsub.s32 %v475, %v477
      %v479 = vrot.slane %v456, %v478
      %v480 = vcombine.low %v471, %v479
      %v481 = vcombine.high %v471, %v479
      %v483 = vunpack.c.l.s4 1934713408
      %v484 = vunpack.c.0.s8 %v483
      %v485 = vlaneseq
      %v486 = vshrl.u32 %v485, 7
      %v487 = vsub.s32 %v484, %v486
      %v488 = vrot.slane %v480, %v487
      %v489 = vcombine.high %v488, 0
      %v491 = vunpack.c.l.s4 1934713408
      %v492 = vunpack.c.0.s8 %v491
      %v493 = vlaneseq
      %v494 = vshrl.u32 %v493, 7
      %v495 = vsub.s32 %v492, %v494
      %v496 = vrot.slane %v481, %v495
      %v499 = vunpack.c.l.s4 1983009808
      %v500 = vunpack.c.0.s8 %v499
      %v501 = vlaneseq
      %v502 = vshrl.u32 %v501, 7
      %v503 = vsub.s32 %v500, %v502
      %v504 = vrot.slane %v453, %v503
      %v507 = vunpack.c.l.s4 1983009808
      %v508 = vunpack.c.0.s8 %v507
      %v509 = vlaneseq
      %v510 = vshrl.u32 %v509, 7
      %v511 = vsub.s32 %v508, %v510
      %v512 = vrot.slane %v459, %v511
      %v513 = vcombine.low %v504, %v512
      %v514 = vcombine.high %v504, %v512
      %v516 = vunpack.c.l.s4 1934713408
      %v517 = vunpack.c.0.s8 %v516
      %v518 = vlaneseq
      %v519 = vshrl.u32 %v518, 7
      %v520 = vsub.s32 %v517, %v519
      %v521 = vrot.slane %v513, %v520
      %v522 = vcombine.high %v521, 0
      %v524 = vunpack.c.l.s4 1934713408
      %v525 = vunpack.c.0.s8 %v524
      %v526 = vlaneseq
      %v527 = vshrl.u32 %v526, 7
      %v528 = vsub.s32 %v525, %v527
      %v529 = vrot.slane %v514, %v528
      %v532 = vpack.i.b16 %v521, %v488
      %v533 = vshrl.u32 %v488, 16
      %v534 = vshrl.u32 %v521, 16
      %v535 = vpack.i.b16 %v534, %v533
      %v538 = vpack.i.b16 %v522, %v489
      %v539 = vshrl.u32 %v489, 16
      %v540 = vshrl.u32 %v522, 16
      %v541 = vpack.i.b16 %v540, %v539
      %v544 = vpack.i.b16 %v529, %v496
      %v545 = vshrl.u32 %v496, 16
      %v546 = vshrl.u32 %v529, 16
      %v547 = vpack.i.b16 %v546, %v545
      %v548 = vld [vmem:[%s343] sm:$0x77]
      %v549 = vld [vmem:[%s343 + $0x8] sm:$0x7]
      %v551 = vrot.slane %v548, 4
      %552 = vrot.lane.b32.xlu0 %v548, 64
      %v553 = vpop.permute.xlu0 %552
      %v554 = vrot.slane %v553, 4
      %557 = vrot.lane.b32.xlu0 %v549, 64
      %v558 = vpop.permute.xlu0 %557
      %v560 = vcombine.low %v548, %v549
      %v562 = vunpack.c.l.s4 1983009808
      %v563 = vunpack.c.0.s8 %v562
      %v564 = vlaneseq
      %v565 = vshrl.u32 %v564, 7
      %v566 = vsub.s32 %v563, %v565
      %v567 = vrot.slane %v560, %v566
      %v570 = vunpack.c.l.s4 1983009808
      %v571 = vunpack.c.0.s8 %v570
      %v572 = vlaneseq
      %v573 = vshrl.u32 %v572, 7
      %v574 = vsub.s32 %v571, %v573
      %v575 = vrot.slane %v551, %v574
      %v576 = vcombine.low %v567, %v575
      %v577 = vcombine.high %v567, %v575
      %v579 = vunpack.c.l.s4 1934713408
      %v580 = vunpack.c.0.s8 %v579
      %v581 = vlaneseq
      %v582 = vshrl.u32 %v581, 7
      %v583 = vsub.s32 %v580, %v582
      %v584 = vrot.slane %v576, %v583
      %v585 = vcombine.high %v584, 0
      %v587 = vunpack.c.l.s4 1934713408
      %v588 = vunpack.c.0.s8 %v587
      %v589 = vlaneseq
      %v590 = vshrl.u32 %v589, 7
      %v591 = vsub.s32 %v588, %v590
      %v592 = vrot.slane %v577, %v591
      %v593 = vcombine.low %v553, %v558
      %v595 = vunpack.c.l.s4 1983009808
      %v596 = vunpack.c.0.s8 %v595
      %v597 = vlaneseq
      %v598 = vshrl.u32 %v597, 7
      %v599 = vsub.s32 %v596, %v598
      %v600 = vrot.slane %v593, %v599
      %v603 = vunpack.c.l.s4 1983009808
      %v604 = vunpack.c.0.s8 %v603
      %v605 = vlaneseq
      %v606 = vshrl.u32 %v605, 7
      %v607 = vsub.s32 %v604, %v606
      %v608 = vrot.slane %v554, %v607
      %v609 = vcombine.low %v600, %v608
      %v610 = vcombine.high %v600, %v608
      %v612 = vunpack.c.l.s4 1934713408
      %v613 = vunpack.c.0.s8 %v612
      %v614 = vlaneseq
      %v615 = vshrl.u32 %v614, 7
      %v616 = vsub.s32 %v613, %v615
      %v617 = vrot.slane %v609, %v616
      %v618 = vcombine.high %v617, 0
      %v620 = vunpack.c.l.s4 1934713408
      %v621 = vunpack.c.0.s8 %v620
      %v622 = vlaneseq
      %v623 = vshrl.u32 %v622, 7
      %v624 = vsub.s32 %v621, %v623
      %v625 = vrot.slane %v610, %v624
      %v628 = vpack.i.b16 %v617, %v584
      %v630 = vshrl.u32 %v584, 16
      %v631 = vshrl.u32 %v617, 16
      %v632 = vpack.i.b16 %v631, %v630
      %v635 = vpack.i.b16 %v618, %v585
      %v636 = vshrl.u32 %v585, 16
      %v637 = vshrl.u32 %v618, 16
      %v638 = vpack.i.b16 %v637, %v636
      %v641 = vpack.i.b16 %v625, %v592
      %v643 = vcombine.low %v628, %v641
      %v645 = vunpack.c.l.s4 1983009808
      %v646 = vunpack.c.0.s8 %v645
      %v647 = vlaneseq
      %v648 = vshrl.u32 %v647, 7
      %v649 = vsub.s32 %v646, %v648
      %v650 = vrot.slane %v643, %v649
      %v653 = vunpack.c.l.s4 1983009808
      %v654 = vunpack.c.0.s8 %v653
      %v655 = vlaneseq
      %v656 = vshrl.u32 %v655, 7
      %v657 = vsub.s32 %v654, %v656
      %v658 = vrot.slane %v635, %v657
      %v659 = vcombine.low %v650, %v658
      %v660 = vcombine.high %v650, %v658
      %v662 = vunpack.c.l.s4 1934713408
      %v663 = vunpack.c.0.s8 %v662
      %v664 = vlaneseq
      %v665 = vshrl.u32 %v664, 7
      %v666 = vsub.s32 %v663, %v665
      %v667 = vrot.slane %v659, %v666
      %v668 = vcombine.high %v667, 0
      %v670 = vunpack.c.l.s4 1934713408
      %v671 = vunpack.c.0.s8 %v670
      %v672 = vlaneseq
      %v673 = vshrl.u32 %v672, 7
      %v674 = vsub.s32 %v671, %v673
      %v675 = vrot.slane %v660, %v674
      %v678 = vunpack.c.l.s4 1983009808
      %v679 = vunpack.c.0.s8 %v678
      %v680 = vlaneseq
      %v681 = vshrl.u32 %v680, 7
      %v682 = vsub.s32 %v679, %v681
      %v683 = vrot.slane %v632, %v682
      %v686 = vunpack.c.l.s4 1983009808
      %v687 = vunpack.c.0.s8 %v686
      %v688 = vlaneseq
      %v689 = vshrl.u32 %v688, 7
      %v690 = vsub.s32 %v687, %v689
      %v691 = vrot.slane %v638, %v690
      %v692 = vcombine.low %v683, %v691
      %v693 = vcombine.high %v683, %v691
      %v695 = vunpack.c.l.s4 1934713408
      %v696 = vunpack.c.0.s8 %v695
      %v697 = vlaneseq
      %v698 = vshrl.u32 %v697, 7
      %v699 = vsub.s32 %v696, %v698
      %v700 = vrot.slane %v692, %v699
      %v701 = vcombine.high %v700, 0
      %v703 = vunpack.c.l.s4 1934713408
      %v704 = vunpack.c.0.s8 %v703
      %v705 = vlaneseq
      %v706 = vshrl.u32 %v705, 7
      %v707 = vsub.s32 %v704, %v706
      %v708 = vrot.slane %v693, %v707
      %v711 = vpack.i.b16 %v700, %v667
      %v712 = vshrl.u32 %v667, 16
      %v713 = vshrl.u32 %v700, 16
      %v714 = vpack.i.b16 %v713, %v712
      %v717 = vpack.i.b16 %v701, %v668
      %v718 = vshrl.u32 %v668, 16
      %v719 = vshrl.u32 %v701, 16
      %v720 = vpack.i.b16 %v719, %v718
      %v723 = vpack.i.b16 %v708, %v675
      %v724 = vshrl.u32 %v675, 16
      %v725 = vshrl.u32 %v708, 16
      %v726 = vpack.i.b16 %v725, %v724
      %v727 = vld [vmem:[%s349] sm:$0x77]
      %v728 = vld [vmem:[%s349 + $0x8] sm:$0x7]
      %v730 = vrot.slane %v727, 4
      %731 = vrot.lane.b32.xlu0 %v727, 64
      %v732 = vpop.permute.xlu0 %731
      %v733 = vrot.slane %v732, 4
      %736 = vrot.lane.b32.xlu0 %v728, 64
      %v737 = vpop.permute.xlu0 %736
      %v739 = vcombine.low %v727, %v728
      %v741 = vunpack.c.l.s4 1983009808
      %v742 = vunpack.c.0.s8 %v741
      %v743 = vlaneseq
      %v744 = vshrl.u32 %v743, 7
      %v745 = vsub.s32 %v742, %v744
      %v746 = vrot.slane %v739, %v745
      %v749 = vunpack.c.l.s4 1983009808
      %v750 = vunpack.c.0.s8 %v749
      %v751 = vlaneseq
      %v752 = vshrl.u32 %v751, 7
      %v753 = vsub.s32 %v750, %v752
      %v754 = vrot.slane %v730, %v753
      %v755 = vcombine.low %v746, %v754
      %v756 = vcombine.high %v746, %v754
      %v758 = vunpack.c.l.s4 1934713408
      %v759 = vunpack.c.0.s8 %v758
      %v760 = vlaneseq
      %v761 = vshrl.u32 %v760, 7
      %v762 = vsub.s32 %v759, %v761
      %v763 = vrot.slane %v755, %v762
      %v764 = vcombine.high %v763, 0
      %v766 = vunpack.c.l.s4 1934713408
      %v767 = vunpack.c.0.s8 %v766
      %v768 = vlaneseq
      %v769 = vshrl.u32 %v768, 7
      %v770 = vsub.s32 %v767, %v769
      %v771 = vrot.slane %v756, %v770
      %v772 = vcombine.low %v732, %v737
      %v774 = vunpack.c.l.s4 1983009808
      %v775 = vunpack.c.0.s8 %v774
      %v776 = vlaneseq
      %v777 = vshrl.u32 %v776, 7
      %v778 = vsub.s32 %v775, %v777
      %v779 = vrot.slane %v772, %v778
      %v782 = vunpack.c.l.s4 1983009808
      %v783 = vunpack.c.0.s8 %v782
      %v784 = vlaneseq
      %v785 = vshrl.u32 %v784, 7
      %v786 = vsub.s32 %v783, %v785
      %v787 = vrot.slane %v733, %v786
      %v788 = vcombine.low %v779, %v787
      %v789 = vcombine.high %v779, %v787
      %v791 = vunpack.c.l.s4 1934713408
      %v792 = vunpack.c.0.s8 %v791
      %v793 = vlaneseq
      %v794 = vshrl.u32 %v793, 7
      %v795 = vsub.s32 %v792, %v794
      %v796 = vrot.slane %v788, %v795
      %v797 = vcombine.high %v796, 0
      %v799 = vunpack.c.l.s4 1934713408
      %v800 = vunpack.c.0.s8 %v799
      %v801 = vlaneseq
      %v802 = vshrl.u32 %v801, 7
      %v803 = vsub.s32 %v800, %v802
      %v804 = vrot.slane %v789, %v803
      %v807 = vpack.i.b16 %v796, %v763
      %v809 = vshrl.u32 %v763, 16
      %v810 = vshrl.u32 %v796, 16
      %v811 = vpack.i.b16 %v810, %v809
      %v814 = vpack.i.b16 %v797, %v764
      %v815 = vshrl.u32 %v764, 16
      %v816 = vshrl.u32 %v797, 16
      %v817 = vpack.i.b16 %v816, %v815
      %v820 = vpack.i.b16 %v804, %v771
      %v822 = vcombine.low %v807, %v820
      %v824 = vunpack.c.l.s4 1983009808
      %v825 = vunpack.c.0.s8 %v824
      %v826 = vlaneseq
      %v827 = vshrl.u32 %v826, 7
      %v828 = vsub.s32 %v825, %v827
      %v829 = vrot.slane %v822, %v828
      %v832 = vunpack.c.l.s4 1983009808
      %v833 = vunpack.c.0.s8 %v832
      %v834 = vlaneseq
      %v835 = vshrl.u32 %v834, 7
      %v836 = vsub.s32 %v833, %v835
      %v837 = vrot.slane %v814, %v836
      %v838 = vcombine.low %v829, %v837
      %v839 = vcombine.high %v829, %v837
      %v841 = vunpack.c.l.s4 1934713408
      %v842 = vunpack.c.0.s8 %v841
      %v843 = vlaneseq
      %v844 = vshrl.u32 %v843, 7
      %v845 = vsub.s32 %v842, %v844
      %v846 = vrot.slane %v838, %v845
      %v847 = vcombine.high %v846, 0
      %v849 = vunpack.c.l.s4 1934713408
      %v850 = vunpack.c.0.s8 %v849
      %v851 = vlaneseq
      %v852 = vshrl.u32 %v851, 7
      %v853 = vsub.s32 %v850, %v852
      %v854 = vrot.slane %v839, %v853
      %v857 = vunpack.c.l.s4 1983009808
      %v858 = vunpack.c.0.s8 %v857
      %v859 = vlaneseq
      %v860 = vshrl.u32 %v859, 7
      %v861 = vsub.s32 %v858, %v860
      %v862 = vrot.slane %v811, %v861
      %v865 = vunpack.c.l.s4 1983009808
      %v866 = vunpack.c.0.s8 %v865
      %v867 = vlaneseq
      %v868 = vshrl.u32 %v867, 7
      %v869 = vsub.s32 %v866, %v868
      %v870 = vrot.slane %v817, %v869
      %v871 = vcombine.low %v862, %v870
      %v872 = vcombine.high %v862, %v870
      %v874 = vunpack.c.l.s4 1934713408
      %v875 = vunpack.c.0.s8 %v874
      %v876 = vlaneseq
      %v877 = vshrl.u32 %v876, 7
      %v878 = vsub.s32 %v875, %v877
      %v879 = vrot.slane %v871, %v878
      %v880 = vcombine.high %v879, 0
      %v882 = vunpack.c.l.s4 1934713408
      %v883 = vunpack.c.0.s8 %v882
      %v884 = vlaneseq
      %v885 = vshrl.u32 %v884, 7
      %v886 = vsub.s32 %v883, %v885
      %v887 = vrot.slane %v872, %v886
      %v890 = vpack.i.b16 %v879, %v846
      %v891 = vshrl.u32 %v846, 16
      %v892 = vshrl.u32 %v879, 16
      %v893 = vpack.i.b16 %v892, %v891
      %v896 = vpack.i.b16 %v880, %v847
      %v897 = vshrl.u32 %v847, 16
      %v898 = vshrl.u32 %v880, 16
      %v899 = vpack.i.b16 %v898, %v897
      %v902 = vpack.i.b16 %v887, %v854
      %v903 = vshrl.u32 %v854, 16
      %v904 = vshrl.u32 %v887, 16
      %v905 = vpack.i.b16 %v904, %v903
      %vm906 = vcmask 523264
      %v908 = vsel %vm906, %v532, 0
      %v911 = vsel %vm906, %v711, 0
      %913 = vmatprep.subr.bf16.mxu0 0
      %914 = vmatpush1.bf16.xpose.msra.mxu0 %v911
      %915 = vmatprep.subr.bf16.mxu0 0
      %916 = vmatpush1.bf16.xpose.msra.mxu0 0
      %917 = vmatprep.subr.bf16.mxu0 0
      %918 = vmatpush1.bf16.xpose.msra.mxu0 0
      %919 = vmatprep.subr.bf16.mxu0 0
      %920 = vmatpush1.bf16.xpose.msra.mxu0 0
      %921 = vmatprep.subr.bf16.mxu0 0
      %922 = vmatpush1.bf16.xpose.msra.mxu0 0
      %923 = vmatprep.subr.bf16.mxu0 0
      %924 = vmatpush1.bf16.xpose.msra.mxu0 0
      %925 = vmatprep.subr.bf16.mxu0 0
      %926 = vmatpush1.bf16.xpose.msra.mxu0 0
      %927 = vmatprep.subr.bf16.mxu0 0
      %928 = vmatpush1.bf16.xpose.msra.mxu0 0
      %929 = vmatprep.subr.bf16.mxu0 0
      %930 = vmatpush1.bf16.xpose.msra.mxu0 0
      %931 = vmatprep.subr.bf16.mxu0 0
      %932 = vmatpush1.bf16.xpose.msra.mxu0 0
      %933 = vmatprep.subr.bf16.mxu0 0
      %934 = vmatpush1.bf16.xpose.msra.mxu0 0
      %935 = vmatprep.subr.bf16.mxu0 0
      %936 = vmatpush1.bf16.xpose.msra.mxu0 0
      %937 = vmatprep.subr.bf16.mxu0 0
      %938 = vmatpush1.bf16.xpose.msra.mxu0 0
      %939 = vmatprep.subr.bf16.mxu0 0
      %940 = vmatpush1.bf16.xpose.msra.mxu0 0
      %941 = vmatprep.subr.bf16.mxu0 0
      %942 = vmatpush1.bf16.xpose.msra.mxu0 0
      %943 = vmatprep.subr.bf16.mxu0 0
      %944 = vmatpush1.bf16.xpose.msra.mxu0 0
      %945 = vmatprep.mubr.bf16.mxu0 0
      %946 = vmatmul.mubr.bf16.gmra.mrb[0].mxu0 %v908
      %v947 = vpop.f32.mrb[0].mxu0
      %v948 = vadd.f32 0.0, %v947
      %v949 = vpop.f32.mrb[0].mxu0
      %v950 = vpop.f32.mrb[0].mxu0
      %v951 = vpop.f32.mrb[0].mxu0
      %952 = vdwg.mxu0
      %v954 = vsel %vm906, %v535, 0
      %v957 = vsel %vm906, %v714, 0
      %959 = vmatprep.subr.bf16.mxu0 0
      %960 = vmatpush1.bf16.xpose.msra.mxu0 %v957
      %961 = vmatprep.subr.bf16.mxu0 0
      %962 = vmatpush1.bf16.xpose.msra.mxu0 0
      %963 = vmatprep.subr.bf16.mxu0 0
      %964 = vmatpush1.bf16.xpose.msra.mxu0 0
      %965 = vmatprep.subr.bf16.mxu0 0
      %966 = vmatpush1.bf16.xpose.msra.mxu0 0
      %967 = vmatprep.subr.bf16.mxu0 0
      %968 = vmatpush1.bf16.xpose.msra.mxu0 0
      %969 = vmatprep.subr.bf16.mxu0 0
      %970 = vmatpush1.bf16.xpose.msra.mxu0 0
      %971 = vmatprep.subr.bf16.mxu0 0
      %972 = vmatpush1.bf16.xpose.msra.mxu0 0
      %973 = vmatprep.subr.bf16.mxu0 0
      %974 = vmatpush1.bf16.xpose.msra.mxu0 0
      %975 = vmatprep.subr.bf16.mxu0 0
      %976 = vmatpush1.bf16.xpose.msra.mxu0 0
      %977 = vmatprep.subr.bf16.mxu0 0
      %978 = vmatpush1.bf16.xpose.msra.mxu0 0
      %979 = vmatprep.subr.bf16.mxu0 0
      %980 = vmatpush1.bf16.xpose.msra.mxu0 0
      %981 = vmatprep.subr.bf16.mxu0 0
      %982 = vmatpush1.bf16.xpose.msra.mxu0 0
      %983 = vmatprep.subr.bf16.mxu0 0
      %984 = vmatpush1.bf16.xpose.msra.mxu0 0
      %985 = vmatprep.subr.bf16.mxu0 0
      %986 = vmatpush1.bf16.xpose.msra.mxu0 0
      %987 = vmatprep.subr.bf16.mxu0 0
      %988 = vmatpush1.bf16.xpose.msra.mxu0 0
      %989 = vmatprep.subr.bf16.mxu0 0
      %990 = vmatpush1.bf16.xpose.msra.mxu0 0
      %991 = vmatprep.mubr.bf16.mxu0 0
      %992 = vmatmul.mubr.bf16.gmra.mrb[0].mxu0 %v954
      %v993 = vpop.f32.mrb[0].mxu0
      %v994 = vadd.f32 0.0, %v993
      %v995 = vpop.f32.mrb[0].mxu0
      %v996 = vpop.f32.mrb[0].mxu0
      %v997 = vpop.f32.mrb[0].mxu0
      %998 = vdwg.mxu0
      %v1000 = vsel %vm906, %v538, 0
      %v1003 = vsel %vm906, %v717, 0
      %1005 = vmatprep.subr.bf16.mxu0 0
      %1006 = vmatpush1.bf16.xpose.msra.mxu0 %v1003
      %1007 = vmatprep.subr.bf16.mxu0 0
      %1008 = vmatpush1.bf16.xpose.msra.mxu0 0
      %1009 = vmatprep.subr.bf16.mxu0 0
      %1010 = vmatpush1.bf16.xpose.msra.mxu0 0
      %1011 = vmatprep.subr.bf16.mxu0 0
      %1012 = vmatpush1.bf16.xpose.msra.mxu0 0
      %1013 = vmatprep.subr.bf16.mxu0 0
      %1014 = vmatpush1.bf16.xpose.msra.mxu0 0
      %1015 = vmatprep.subr.bf16.mxu0 0
      %1016 = vmatpush1.bf16.xpose.msra.mxu0 0
      %1017 = vmatprep.subr.bf16.mxu0 0
      %1018 = vmatpush1.bf16.xpose.msra.mxu0 0
      %1019 = vmatprep.subr.bf16.mxu0 0
      %1020 = vmatpush1.bf16.xpose.msra.mxu0 0
      %1021 = vmatprep.subr.bf16.mxu0 0
      %1022 = vmatpush1.bf16.xpose.msra.mxu0 0
      %1023 = vmatprep.subr.bf16.mxu0 0
      %1024 = vmatpush1.bf16.xpose.msra.mxu0 0
      %1025 = vmatprep.subr.bf16.mxu0 0
      %1026 = vmatpush1.bf16.xpose.msra.mxu0 0
      %1027 = vmatprep.subr.bf16.mxu0 0
      %1028 = vmatpush1.bf16.xpose.msra.mxu0 0
      %1029 = vmatprep.subr.bf16.mxu0 0
      %1030 = vmatpush1.bf16.xpose.msra.mxu0 0
      %1031 = vmatprep.subr.bf16.mxu0 0
      %1032 = vmatpush1.bf16.xpose.msra.mxu0 0
      %1033 = vmatprep.subr.bf16.mxu0 0
      %1034 = vmatpush1.bf16.xpose.msra.mxu0 0
      %1035 = vmatprep.subr.bf16.mxu0 0
      %1036 = vmatpush1.bf16.xpose.msra.mxu0 0
      %1037 = vmatprep.mubr.bf16.mxu0 0
      %1038 = vmatmul.mubr.bf16.gmra.mrb[0].mxu0 %v1000
      %v1039 = vpop.f32.mrb[0].mxu0
      %v1040 = vadd.f32 0.0, %v1039
      %v1041 = vpop.f32.mrb[0].mxu0
      %v1042 = vpop.f32.mrb[0].mxu0
      %v1043 = vpop.f32.mrb[0].mxu0
      %1044 = vdwg.mxu0
      %v1046 = vsel %vm906, %v541, 0
      %v1049 = vsel %vm906, %v720, 0
      %1051 = vmatprep.subr.bf16.mxu0 0
      %1052 = vmatpush1.bf16.xpose.msra.mxu0 %v1049
      %1053 = vmatprep.subr.bf16.mxu0 0
      %1054 = vmatpush1.bf16.xpose.msra.mxu0 0
      %1055 = vmatprep.subr.bf16.mxu0 0
      %1056 = vmatpush1.bf16.xpose.msra.mxu0 0
      %1057 = vmatprep.subr.bf16.mxu0 0
      %1058 = vmatpush1.bf16.xpose.msra.mxu0 0
      %1059 = vmatprep.subr.bf16.mxu0 0
      %1060 = vmatpush1.bf16.xpose.msra.mxu0 0
      %1061 = vmatprep.subr.bf16.mxu0 0
      %1062 = vmatpush1.bf16.xpose.msra.mxu0 0
      %1063 = vmatprep.subr.bf16.mxu0 0
      %1064 = vmatpush1.bf16.xpose.msra.mxu0 0
      %1065 = vmatprep.subr.bf16.mxu0 0
      %1066 = vmatpush1.bf16.xpose.msra.mxu0 0
      %1067 = vmatprep.subr.bf16.mxu0 0
      %1068 = vmatpush1.bf16.xpose.msra.mxu0 0
      %1069 = vmatprep.subr.bf16.mxu0 0
      %1070 = vmatpush1.bf16.xpose.msra.mxu0 0
      %1071 = vmatprep.subr.bf16.mxu0 0
      %1072 = vmatpush1.bf16.xpose.msra.mxu0 0
      %1073 = vmatprep.subr.bf16.mxu0 0
      %1074 = vmatpush1.bf16.xpose.msra.mxu0 0
      %1075 = vmatprep.subr.bf16.mxu0 0
      %1076 = vmatpush1.bf16.xpose.msra.mxu0 0
      %1077 = vmatprep.subr.bf16.mxu0 0
      %1078 = vmatpush1.bf16.xpose.msra.mxu0 0
      %1079 = vmatprep.subr.bf16.mxu0 0
      %1080 = vmatpush1.bf16.xpose.msra.mxu0 0
      %1081 = vmatprep.subr.bf16.mxu0 0
      %1082 = vmatpush1.bf16.xpose.msra.mxu0 0
      %1083 = vmatprep.mubr.bf16.mxu0 0
      %1084 = vmatmul.mubr.bf16.gmra.mrb[0].mxu0 %v1046
      %v1085 = vpop.f32.mrb[0].mxu0
      %v1086 = vadd.f32 0.0, %v1085
      %v1087 = vpop.f32.mrb[0].mxu0
      %v1088 = vpop.f32.mrb[0].mxu0
      %v1089 = vpop.f32.mrb[0].mxu0
      %1090 = vdwg.mxu0
      %v1092 = vsel %vm906, %v544, 0
      %v1095 = vsel %vm906, %v723, 0
      %1097 = vmatprep.subr.bf16.mxu0 0
      %1098 = vmatpush1.bf16.xpose.msra.mxu0 %v1095
      %1099 = vmatprep.subr.bf16.mxu0 0
      %1100 = vmatpush1.bf16.xpose.msra.mxu0 0
      %1101 = vmatprep.subr.bf16.mxu0 0
      %1102 = vmatpush1.bf16.xpose.msra.mxu0 0
      %1103 = vmatprep.subr.bf16.mxu0 0
      %1104 = vmatpush1.bf16.xpose.msra.mxu0 0
      %1105 = vmatprep.subr.bf16.mxu0 0
      %1106 = vmatpush1.bf16.xpose.msra.mxu0 0
      %1107 = vmatprep.subr.bf16.mxu0 0
      %1108 = vmatpush1.bf16.xpose.msra.mxu0 0
      %1109 = vmatprep.subr.bf16.mxu0 0
      %1110 = vmatpush1.bf16.xpose.msra.mxu0 0
      %1111 = vmatprep.subr.bf16.mxu0 0
      %1112 = vmatpush1.bf16.xpose.msra.mxu0 0
      %1113 = vmatprep.subr.bf16.mxu0 0
      %1114 = vmatpush1.bf16.xpose.msra.mxu0 0
      %1115 = vmatprep.subr.bf16.mxu0 0
      %1116 = vmatpush1.bf16.xpose.msra.mxu0 0
      %1117 = vmatprep.subr.bf16.mxu0 0
      %1118 = vmatpush1.bf16.xpose.msra.mxu0 0
      %1119 = vmatprep.subr.bf16.mxu0 0
      %1120 = vmatpush1.bf16.xpose.msra.mxu0 0
      %1121 = vmatprep.subr.bf16.mxu0 0
      %1122 = vmatpush1.bf16.xpose.msra.mxu0 0
      %1123 = vmatprep.subr.bf16.mxu0 0
      %1124 = vmatpush1.bf16.xpose.msra.mxu0 0
      %1125 = vmatprep.subr.bf16.mxu0 0
      %1126 = vmatpush1.bf16.xpose.msra.mxu0 0
      %1127 = vmatprep.subr.bf16.mxu0 0
      %1128 = vmatpush1.bf16.xpose.msra.mxu0 0
      %1129 = vmatprep.mubr.bf16.mxu0 0
      %1130 = vmatmul.mubr.bf16.gmra.mrb[0].mxu0 %v1092
      %v1131 = vpop.f32.mrb[0].mxu0
      %v1132 = vadd.f32 0.0, %v1131
      %v1133 = vpop.f32.mrb[0].mxu0
      %v1134 = vpop.f32.mrb[0].mxu0
      %v1135 = vpop.f32.mrb[0].mxu0
      %1136 = vdwg.mxu0
      %v1138 = vsel %vm906, %v547, 0
      %v1141 = vsel %vm906, %v726, 0
      %1143 = vmatprep.subr.bf16.mxu0 0
      %1144 = vmatpush1.bf16.xpose.msra.mxu0 %v1141
      %1145 = vmatprep.subr.bf16.mxu0 0
      %1146 = vmatpush1.bf16.xpose.msra.mxu0 0
      %1147 = vmatprep.subr.bf16.mxu0 0
      %1148 = vmatpush1.bf16.xpose.msra.mxu0 0
      %1149 = vmatprep.subr.bf16.mxu0 0
      %1150 = vmatpush1.bf16.xpose.msra.mxu0 0
      %1151 = vmatprep.subr.bf16.mxu0 0
      %1152 = vmatpush1.bf16.xpose.msra.mxu0 0
      %1153 = vmatprep.subr.bf16.mxu0 0
      %1154 = vmatpush1.bf16.xpose.msra.mxu0 0
      %1155 = vmatprep.subr.bf16.mxu0 0
      %1156 = vmatpush1.bf16.xpose.msra.mxu0 0
      %1157 = vmatprep.subr.bf16.mxu0 0
      %1158 = vmatpush1.bf16.xpose.msra.mxu0 0
      %1159 = vmatprep.subr.bf16.mxu0 0
      %1160 = vmatpush1.bf16.xpose.msra.mxu0 0
      %1161 = vmatprep.subr.bf16.mxu0 0
      %1162 = vmatpush1.bf16.xpose.msra.mxu0 0
      %1163 = vmatprep.subr.bf16.mxu0 0
      %1164 = vmatpush1.bf16.xpose.msra.mxu0 0
      %1165 = vmatprep.subr.bf16.mxu0 0
      %1166 = vmatpush1.bf16.xpose.msra.mxu0 0
      %1167 = vmatprep.subr.bf16.mxu0 0
      %1168 = vmatpush1.bf16.xpose.msra.mxu0 0
      %1169 = vmatprep.subr.bf16.mxu0 0
      %1170 = vmatpush1.bf16.xpose.msra.mxu0 0
      %1171 = vmatprep.subr.bf16.mxu0 0
      %1172 = vmatpush1.bf16.xpose.msra.mxu0 0
      %1173 = vmatprep.subr.bf16.mxu0 0
      %1174 = vmatpush1.bf16.xpose.msra.mxu0 0
      %1175 = vmatprep.mubr.bf16.mxu0 0
      %1176 = vmatmul.mubr.bf16.gmra.mrb[0].mxu0 %v1138
      %v1177 = vpop.f32.mrb[0].mxu0
      %v1178 = vadd.f32 0.0, %v1177
      %v1179 = vpop.f32.mrb[0].mxu0
      %v1180 = vpop.f32.mrb[0].mxu0
      %v1181 = vpop.f32.mrb[0].mxu0
      %1182 = vdwg.mxu0
      %vm1183 = vcmask 36864
      %v1184 = vsel %vm1183, %v948, -inf
      %1185 = vmax.xlane.f32.xlu0 %v1184
      %v1186 = vpop.xlane.xlu0 %1185
      %v1187 = vsel %vm1183, %v994, -inf
      %1188 = vmax.xlane.f32.xlu0 %v1187
      %v1189 = vpop.xlane.xlu0 %1188
      %v1190 = vsel %vm1183, %v1040, -inf
      %1191 = vmax.xlane.f32.xlu0 %v1190
      %v1192 = vpop.xlane.xlu0 %1191
      %v1193 = vsel %vm1183, %v1086, -inf
      %1194 = vmax.xlane.f32.xlu0 %v1193
      %v1195 = vpop.xlane.xlu0 %1194
      %v1196 = vsel %vm1183, %v1132, -inf
      %1197 = vmax.xlane.f32.xlu0 %v1196
      %v1198 = vpop.xlane.xlu0 %1197
      %v1199 = vsel %vm1183, %v1178, -inf
      %1200 = vmax.xlane.f32.xlu0 %v1199
      %v1201 = vpop.xlane.xlu0 %1200
      %v1202 = vsub.f32 %v948, %v1186
      %v1203 = vsub.f32 %v994, %v1189
      %v1204 = vsub.f32 %v1040, %v1192
      %v1205 = vsub.f32 %v1086, %v1195
      %v1206 = vsub.f32 %v1132, %v1198
      %v1207 = vsub.f32 %v1178, %v1201
      %v1208 = vmul.f32 %v1202, 1.442695
      %v1209 = vpow.pop %v1208
      %v1210 = vmul.f32 %v1203, 1.442695
      %v1211 = vpow.pop %v1210
      %v1212 = vmul.f32 %v1204, 1.442695
      %v1213 = vpow.pop %v1212
      %v1214 = vmul.f32 %v1205, 1.442695
      %v1215 = vpow.pop %v1214
      %v1216 = vmul.f32 %v1206, 1.442695
      %v1217 = vpow.pop %v1216
      %v1218 = vmul.f32 %v1207, 1.442695
      %v1219 = vpow.pop %v1218
      %v1220 = vsel %vm1183, %v1209, 0.0
      %1221 = vadd.xlane.f32.xlu0 %v1220
      %v1222 = vpop.xlane.xlu0 %1221
      %v1223 = vsel %vm1183, %v1211, 0.0
      %1224 = vadd.xlane.f32.xlu0 %v1223
      %v1225 = vpop.xlane.xlu0 %1224
      %v1226 = vsel %vm1183, %v1213, 0.0
      %1227 = vadd.xlane.f32.xlu0 %v1226
      %v1228 = vpop.xlane.xlu0 %1227
      %v1229 = vsel %vm1183, %v1215, 0.0
      %1230 = vadd.xlane.f32.xlu0 %v1229
      %v1231 = vpop.xlane.xlu0 %1230
      %v1232 = vsel %vm1183, %v1217, 0.0
      %1233 = vadd.xlane.f32.xlu0 %v1232
      %v1234 = vpop.xlane.xlu0 %1233
      %v1235 = vsel %vm1183, %v1219, 0.0
      %1236 = vadd.xlane.f32.xlu0 %v1235
      %v1237 = vpop.xlane.xlu0 %1236
      %v1238 = vrcp.pop %v1222
      %v1239 = vrcp.pop %v1225
      %v1240 = vrcp.pop %v1228
      %v1241 = vrcp.pop %v1231
      %v1242 = vrcp.pop %v1234
      %v1243 = vrcp.pop %v1237
      %v1244 = vmul.f32 %v1209, %v1238
      %v1245 = vmul.f32 %v1211, %v1239
      %v1246 = vmul.f32 %v1213, %v1240
      %v1247 = vmul.f32 %v1215, %v1241
      %v1248 = vmul.f32 %v1217, %v1242
      %v1249 = vmul.f32 %v1219, %v1243
      %v1250 = vpack.c.bf16 %v1244, %v1244
      %v1251 = vpack.c.bf16 %v1245, %v1245
      %v1252 = vpack.c.bf16 %v1246, %v1246
      %v1253 = vpack.c.bf16 %v1247, %v1247
      %v1254 = vpack.c.bf16 %v1248, %v1248
      %v1255 = vpack.c.bf16 %v1249, %v1249
      %vm1256 = vcmask 39936
      %v1258 = vsel %vm1256, %v1250, 0
      %vm1260 = vcmask 1041408
      %vm1261 = vcmask 1042432
      %v1262 = vsel %vm1260, 4294967295, 65535
      %v1263 = vsel %vm1261, %v1262, 0
      %v1265 = vand.u32 %v890, %v1263
      %1267 = vmatprep.subr.bf16.mxu0 0
      %1268 = vmatpush1.bf16.msra.mxu0 %v1265
      %1269 = vmatprep.subr.bf16.mxu0 0
      %1270 = vmatpush1.bf16.msra.mxu0 0
      %1271 = vmatprep.subr.bf16.mxu0 0
      %1272 = vmatpush1.bf16.msra.mxu0 0
      %1273 = vmatprep.subr.bf16.mxu0 0
      %1274 = vmatpush1.bf16.msra.mxu0 0
      %1275 = vmatprep.subr.bf16.mxu0 0
      %1276 = vmatpush1.bf16.msra.mxu0 0
      %1277 = vmatprep.subr.bf16.mxu0 0
      %1278 = vmatpush1.bf16.msra.mxu0 0
      %1279 = vmatprep.subr.bf16.mxu0 0
      %1280 = vmatpush1.bf16.msra.mxu0 0
      %1281 = vmatprep.subr.bf16.mxu0 0
      %1282 = vmatpush1.bf16.msra.mxu0 0
      %1283 = vmatprep.subr.bf16.mxu0 0
      %1284 = vmatpush1.bf16.msra.mxu0 0
      %1285 = vmatprep.subr.bf16.mxu0 0
      %1286 = vmatpush1.bf16.msra.mxu0 0
      %1287 = vmatprep.subr.bf16.mxu0 0
      %1288 = vmatpush1.bf16.msra.mxu0 0
      %1289 = vmatprep.subr.bf16.mxu0 0
      %1290 = vmatpush1.bf16.msra.mxu0 0
      %1291 = vmatprep.subr.bf16.mxu0 0
      %1292 = vmatpush1.bf16.msra.mxu0 0
      %1293 = vmatprep.subr.bf16.mxu0 0
      %1294 = vmatpush1.bf16.msra.mxu0 0
      %1295 = vmatprep.subr.bf16.mxu0 0
      %1296 = vmatpush1.bf16.msra.mxu0 0
      %1297 = vmatprep.subr.bf16.mxu0 0
      %1298 = vmatpush1.bf16.msra.mxu0 0
      %1299 = vmatprep.mubr.bf16.mxu0 0
      %1300 = vmatmul.mubr.bf16.gmra.mrb[0].mxu0 %v1258
      %v1301 = vpop.f32.mrb[0].mxu0
      %v1302 = vadd.f32 0.0, %v1301
      %v1303 = vpop.f32.mrb[0].mxu0
      %v1304 = vpop.f32.mrb[0].mxu0
      %v1305 = vpop.f32.mrb[0].mxu0
      %1306 = vdwg.mxu0
      %v1308 = vsel %vm1256, %v1251, 0
      %v1311 = vand.u32 %v893, %v1263
      %1313 = vmatprep.subr.bf16.mxu0 0
      %1314 = vmatpush1.bf16.msra.mxu0 %v1311
      %1315 = vmatprep.subr.bf16.mxu0 0
      %1316 = vmatpush1.bf16.msra.mxu0 0
      %1317 = vmatprep.subr.bf16.mxu0 0
      %1318 = vmatpush1.bf16.msra.mxu0 0
      %1319 = vmatprep.subr.bf16.mxu0 0
      %1320 = vmatpush1.bf16.msra.mxu0 0
      %1321 = vmatprep.subr.bf16.mxu0 0
      %1322 = vmatpush1.bf16.msra.mxu0 0
      %1323 = vmatprep.subr.bf16.mxu0 0
      %1324 = vmatpush1.bf16.msra.mxu0 0
      %1325 = vmatprep.subr.bf16.mxu0 0
      %1326 = vmatpush1.bf16.msra.mxu0 0
      %1327 = vmatprep.subr.bf16.mxu0 0
      %1328 = vmatpush1.bf16.msra.mxu0 0
      %1329 = vmatprep.subr.bf16.mxu0 0
      %1330 = vmatpush1.bf16.msra.mxu0 0
      %1331 = vmatprep.subr.bf16.mxu0 0
      %1332 = vmatpush1.bf16.msra.mxu0 0
      %1333 = vmatprep.subr.bf16.mxu0 0
      %1334 = vmatpush1.bf16.msra.mxu0 0
      %1335 = vmatprep.subr.bf16.mxu0 0
      %1336 = vmatpush1.bf16.msra.mxu0 0
      %1337 = vmatprep.subr.bf16.mxu0 0
      %1338 = vmatpush1.bf16.msra.mxu0 0
      %1339 = vmatprep.subr.bf16.mxu0 0
      %1340 = vmatpush1.bf16.msra.mxu0 0
      %1341 = vmatprep.subr.bf16.mxu0 0
      %1342 = vmatpush1.bf16.msra.mxu0 0
      %1343 = vmatprep.subr.bf16.mxu0 0
      %1344 = vmatpush1.bf16.msra.mxu0 0
      %1345 = vmatprep.mubr.bf16.mxu0 0
      %1346 = vmatmul.mubr.bf16.gmra.mrb[0].mxu0 %v1308
      %v1347 = vpop.f32.mrb[0].mxu0
      %v1348 = vadd.f32 0.0, %v1347
      %v1349 = vpop.f32.mrb[0].mxu0
      %v1350 = vpop.f32.mrb[0].mxu0
      %v1351 = vpop.f32.mrb[0].mxu0
      %1352 = vdwg.mxu0
      %v1354 = vsel %vm1256, %v1252, 0
      %v1357 = vand.u32 %v896, %v1263
      %1359 = vmatprep.subr.bf16.mxu0 0
      %1360 = vmatpush1.bf16.msra.mxu0 %v1357
      %1361 = vmatprep.subr.bf16.mxu0 0
      %1362 = vmatpush1.bf16.msra.mxu0 0
      %1363 = vmatprep.subr.bf16.mxu0 0
      %1364 = vmatpush1.bf16.msra.mxu0 0
      %1365 = vmatprep.subr.bf16.mxu0 0
      %1366 = vmatpush1.bf16.msra.mxu0 0
      %1367 = vmatprep.subr.bf16.mxu0 0
      %1368 = vmatpush1.bf16.msra.mxu0 0
      %1369 = vmatprep.subr.bf16.mxu0 0
      %1370 = vmatpush1.bf16.msra.mxu0 0
      %1371 = vmatprep.subr.bf16.mxu0 0
      %1372 = vmatpush1.bf16.msra.mxu0 0
      %1373 = vmatprep.subr.bf16.mxu0 0
      %1374 = vmatpush1.bf16.msra.mxu0 0
      %1375 = vmatprep.subr.bf16.mxu0 0
      %1376 = vmatpush1.bf16.msra.mxu0 0
      %1377 = vmatprep.subr.bf16.mxu0 0
      %1378 = vmatpush1.bf16.msra.mxu0 0
      %1379 = vmatprep.subr.bf16.mxu0 0
      %1380 = vmatpush1.bf16.msra.mxu0 0
      %1381 = vmatprep.subr.bf16.mxu0 0
      %1382 = vmatpush1.bf16.msra.mxu0 0
      %1383 = vmatprep.subr.bf16.mxu0 0
      %1384 = vmatpush1.bf16.msra.mxu0 0
      %1385 = vmatprep.subr.bf16.mxu0 0
      %1386 = vmatpush1.bf16.msra.mxu0 0
      %1387 = vmatprep.subr.bf16.mxu0 0
      %1388 = vmatpush1.bf16.msra.mxu0 0
      %1389 = vmatprep.subr.bf16.mxu0 0
      %1390 = vmatpush1.bf16.msra.mxu0 0
      %1391 = vmatprep.mubr.bf16.mxu0 0
      %1392 = vmatmul.mubr.bf16.gmra.mrb[0].mxu0 %v1354
      %v1393 = vpop.f32.mrb[0].mxu0
      %v1394 = vadd.f32 0.0, %v1393
      %v1395 = vpop.f32.mrb[0].mxu0
      %v1396 = vpop.f32.mrb[0].mxu0
      %v1397 = vpop.f32.mrb[0].mxu0
      %1398 = vdwg.mxu0
      %v1400 = vsel %vm1256, %v1253, 0
      %v1403 = vand.u32 %v899, %v1263
      %1405 = vmatprep.subr.bf16.mxu0 0
      %1406 = vmatpush1.bf16.msra.mxu0 %v1403
      %1407 = vmatprep.subr.bf16.mxu0 0
      %1408 = vmatpush1.bf16.msra.mxu0 0
      %1409 = vmatprep.subr.bf16.mxu0 0
      %1410 = vmatpush1.bf16.msra.mxu0 0
      %1411 = vmatprep.subr.bf16.mxu0 0
      %1412 = vmatpush1.bf16.msra.mxu0 0
      %1413 = vmatprep.subr.bf16.mxu0 0
      %1414 = vmatpush1.bf16.msra.mxu0 0
      %1415 = vmatprep.subr.bf16.mxu0 0
      %1416 = vmatpush1.bf16.msra.mxu0 0
      %1417 = vmatprep.subr.bf16.mxu0 0
      %1418 = vmatpush1.bf16.msra.mxu0 0
      %1419 = vmatprep.subr.bf16.mxu0 0
      %1420 = vmatpush1.bf16.msra.mxu0 0
      %1421 = vmatprep.subr.bf16.mxu0 0
      %1422 = vmatpush1.bf16.msra.mxu0 0
      %1423 = vmatprep.subr.bf16.mxu0 0
      %1424 = vmatpush1.bf16.msra.mxu0 0
      %1425 = vmatprep.subr.bf16.mxu0 0
      %1426 = vmatpush1.bf16.msra.mxu0 0
      %1427 = vmatprep.subr.bf16.mxu0 0
      %1428 = vmatpush1.bf16.msra.mxu0 0
      %1429 = vmatprep.subr.bf16.mxu0 0
      %1430 = vmatpush1.bf16.msra.mxu0 0
      %1431 = vmatprep.subr.bf16.mxu0 0
      %1432 = vmatpush1.bf16.msra.mxu0 0
      %1433 = vmatprep.subr.bf16.mxu0 0
      %1434 = vmatpush1.bf16.msra.mxu0 0
      %1435 = vmatprep.subr.bf16.mxu0 0
      %1436 = vmatpush1.bf16.msra.mxu0 0
      %1437 = vmatprep.mubr.bf16.mxu0 0
      %1438 = vmatmul.mubr.bf16.gmra.mrb[0].mxu0 %v1400
      %v1439 = vpop.f32.mrb[0].mxu0
      %v1440 = vadd.f32 0.0, %v1439
      %v1441 = vpop.f32.mrb[0].mxu0
      %v1442 = vpop.f32.mrb[0].mxu0
      %v1443 = vpop.f32.mrb[0].mxu0
      %1444 = vdwg.mxu0
      %v1446 = vsel %vm1256, %v1254, 0
      %v1449 = vand.u32 %v902, %v1263
      %1451 = vmatprep.subr.bf16.mxu0 0
      %1452 = vmatpush1.bf16.msra.mxu0 %v1449
      %1453 = vmatprep.subr.bf16.mxu0 0
      %1454 = vmatpush1.bf16.msra.mxu0 0
      %1455 = vmatprep.subr.bf16.mxu0 0
      %1456 = vmatpush1.bf16.msra.mxu0 0
      %1457 = vmatprep.subr.bf16.mxu0 0
      %1458 = vmatpush1.bf16.msra.mxu0 0
      %1459 = vmatprep.subr.bf16.mxu0 0
      %1460 = vmatpush1.bf16.msra.mxu0 0
      %1461 = vmatprep.subr.bf16.mxu0 0
      %1462 = vmatpush1.bf16.msra.mxu0 0
      %1463 = vmatprep.subr.bf16.mxu0 0
      %1464 = vmatpush1.bf16.msra.mxu0 0
      %1465 = vmatprep.subr.bf16.mxu0 0
      %1466 = vmatpush1.bf16.msra.mxu0 0
      %1467 = vmatprep.subr.bf16.mxu0 0
      %1468 = vmatpush1.bf16.msra.mxu0 0
      %1469 = vmatprep.subr.bf16.mxu0 0
      %1470 = vmatpush1.bf16.msra.mxu0 0
      %1471 = vmatprep.subr.bf16.mxu0 0
      %1472 = vmatpush1.bf16.msra.mxu0 0
      %1473 = vmatprep.subr.bf16.mxu0 0
      %1474 = vmatpush1.bf16.msra.mxu0 0
      %1475 = vmatprep.subr.bf16.mxu0 0
      %1476 = vmatpush1.bf16.msra.mxu0 0
      %1477 = vmatprep.subr.bf16.mxu0 0
      %1478 = vmatpush1.bf16.msra.mxu0 0
      %1479 = vmatprep.subr.bf16.mxu0 0
      %1480 = vmatpush1.bf16.msra.mxu0 0
      %1481 = vmatprep.subr.bf16.mxu0 0
      %1482 = vmatpush1.bf16.msra.mxu0 0
      %1483 = vmatprep.mubr.bf16.mxu0 0
      %1484 = vmatmul.mubr.bf16.gmra.mrb[0].mxu0 %v1446
      %v1485 = vpop.f32.mrb[0].mxu0
      %v1486 = vadd.f32 0.0, %v1485
      %v1487 = vpop.f32.mrb[0].mxu0
      %v1488 = vpop.f32.mrb[0].mxu0
      %v1489 = vpop.f32.mrb[0].mxu0
      %1490 = vdwg.mxu0
      %v1492 = vsel %vm1256, %v1255, 0
      %v1495 = vand.u32 %v905, %v1263
      %1497 = vmatprep.subr.bf16.mxu0 0
      %1498 = vmatpush1.bf16.msra.mxu0 %v1495
      %1499 = vmatprep.subr.bf16.mxu0 0
      %1500 = vmatpush1.bf16.msra.mxu0 0
      %1501 = vmatprep.subr.bf16.mxu0 0
      %1502 = vmatpush1.bf16.msra.mxu0 0
      %1503 = vmatprep.subr.bf16.mxu0 0
      %1504 = vmatpush1.bf16.msra.mxu0 0
      %1505 = vmatprep.subr.bf16.mxu0 0
      %1506 = vmatpush1.bf16.msra.mxu0 0
      %1507 = vmatprep.subr.bf16.mxu0 0
      %1508 = vmatpush1.bf16.msra.mxu0 0
      %1509 = vmatprep.subr.bf16.mxu0 0
      %1510 = vmatpush1.bf16.msra.mxu0 0
      %1511 = vmatprep.subr.bf16.mxu0 0
      %1512 = vmatpush1.bf16.msra.mxu0 0
      %1513 = vmatprep.subr.bf16.mxu0 0
      %1514 = vmatpush1.bf16.msra.mxu0 0
      %1515 = vmatprep.subr.bf16.mxu0 0
      %1516 = vmatpush1.bf16.msra.mxu0 0
      %1517 = vmatprep.subr.bf16.mxu0 0
      %1518 = vmatpush1.bf16.msra.mxu0 0
      %1519 = vmatprep.subr.bf16.mxu0 0
      %1520 = vmatpush1.bf16.msra.mxu0 0
      %1521 = vmatprep.subr.bf16.mxu0 0
      %1522 = vmatpush1.bf16.msra.mxu0 0
      %1523 = vmatprep.subr.bf16.mxu0 0
      %1524 = vmatpush1.bf16.msra.mxu0 0
      %1525 = vmatprep.subr.bf16.mxu0 0
      %1526 = vmatpush1.bf16.msra.mxu0 0
      %1527 = vmatprep.subr.bf16.mxu0 0
      %1528 = vmatpush1.bf16.msra.mxu0 0
      %1529 = vmatprep.mubr.bf16.mxu0 0
      %1530 = vmatmul.mubr.bf16.gmra.mrb[0].mxu0 %v1492
      %v1531 = vpop.f32.mrb[0].mxu0
      %v1532 = vadd.f32 0.0, %v1531
      %v1533 = vpop.f32.mrb[0].mxu0
      %v1534 = vpop.f32.mrb[0].mxu0
      %v1535 = vpop.f32.mrb[0].mxu0
      %1536 = vdwg.mxu0
      %v1537 = vpack.c.bf16 %v1302, %v1302
      %v1538 = vpack.c.bf16 %v1348, %v1348
      %v1539 = vpack.c.bf16 %v1486, %v1486
      %v1540 = vpack.c.bf16 %v1532, %v1532
      %v1541 = vcombine.low %v1537, %v1539
      %v1543 = vunpack.c.l.s4 1983009808
      %v1544 = vunpack.c.0.s8 %v1543
      %v1545 = vlaneseq
      %v1546 = vshrl.u32 %v1545, 7
      %v1547 = vsub.s32 %v1544, %v1546
      %v1548 = vrot.slane %v1541, %v1547
      %v1549 = vpack.c.bf16 %v1394, %v1394
      %v1551 = vunpack.c.l.s4 1983009808
      %v1552 = vunpack.c.0.s8 %v1551
      %v1553 = vlaneseq
      %v1554 = vshrl.u32 %v1553, 7
      %v1555 = vsub.s32 %v1552, %v1554
      %v1556 = vrot.slane %v1549, %v1555
      %v1557 = vcombine.low %v1548, %v1556
      %v1558 = vcombine.high %v1548, %v1556
      %v1560 = vunpack.c.l.s4 1934713408
      %v1561 = vunpack.c.0.s8 %v1560
      %v1562 = vlaneseq
      %v1563 = vshrl.u32 %v1562, 7
      %v1564 = vsub.s32 %v1561, %v1563
      %v1565 = vrot.slane %v1557, %v1564
      %v1566 = vcombine.high %v1565, 0
      %v1568 = vunpack.c.l.s4 1934713408
      %v1569 = vunpack.c.0.s8 %v1568
      %v1570 = vlaneseq
      %v1571 = vshrl.u32 %v1570, 7
      %v1572 = vsub.s32 %v1569, %v1571
      %v1573 = vrot.slane %v1558, %v1572
      %v1574 = vcombine.low %v1538, %v1540
      %v1576 = vunpack.c.l.s4 1983009808
      %v1577 = vunpack.c.0.s8 %v1576
      %v1578 = vlaneseq
      %v1579 = vshrl.u32 %v1578, 7
      %v1580 = vsub.s32 %v1577, %v1579
      %v1581 = vrot.slane %v1574, %v1580
      %v1582 = vpack.c.bf16 %v1440, %v1440
      %v1584 = vunpack.c.l.s4 1983009808
      %v1585 = vunpack.c.0.s8 %v1584
      %v1586 = vlaneseq
      %v1587 = vshrl.u32 %v1586, 7
      %v1588 = vsub.s32 %v1585, %v1587
      %v1589 = vrot.slane %v1582, %v1588
      %v1590 = vcombine.low %v1581, %v1589
      %v1591 = vcombine.high %v1581, %v1589
      %v1593 = vunpack.c.l.s4 1934713408
      %v1594 = vunpack.c.0.s8 %v1593
      %v1595 = vlaneseq
      %v1596 = vshrl.u32 %v1595, 7
      %v1597 = vsub.s32 %v1594, %v1596
      %v1598 = vrot.slane %v1590, %v1597
      %v1599 = vcombine.high %v1598, 0
      %v1601 = vunpack.c.l.s4 1934713408
      %v1602 = vunpack.c.0.s8 %v1601
      %v1603 = vlaneseq
      %v1604 = vshrl.u32 %v1603, 7
      %v1605 = vsub.s32 %v1602, %v1604
      %v1606 = vrot.slane %v1591, %v1605
      %v1609 = vpack.i.b16 %v1598, %v1565
      %v1611 = vshrl.u32 %v1565, 16
      %v1612 = vshrl.u32 %v1598, 16
      %v1613 = vpack.i.b16 %v1612, %v1611
      %v1616 = vpack.i.b16 %v1599, %v1566
      %v1617 = vshrl.u32 %v1566, 16
      %v1618 = vshrl.u32 %v1599, 16
      %v1619 = vpack.i.b16 %v1618, %v1617
      %v1622 = vpack.i.b16 %v1606, %v1573
      %v1624 = vcombine.low %v1609, %v1622
      %v1626 = vunpack.c.l.s4 1983009808
      %v1627 = vunpack.c.0.s8 %v1626
      %v1628 = vlaneseq
      %v1629 = vshrl.u32 %v1628, 7
      %v1630 = vsub.s32 %v1627, %v1629
      %v1631 = vrot.slane %v1624, %v1630
      %v1634 = vunpack.c.l.s4 1983009808
      %v1635 = vunpack.c.0.s8 %v1634
      %v1636 = vlaneseq
      %v1637 = vshrl.u32 %v1636, 7
      %v1638 = vsub.s32 %v1635, %v1637
      %v1639 = vrot.slane %v1616, %v1638
      %v1640 = vcombine.low %v1631, %v1639
      %v1641 = vcombine.high %v1631, %v1639
      %v1643 = vunpack.c.l.s4 1934713408
      %v1644 = vunpack.c.0.s8 %v1643
      %v1645 = vlaneseq
      %v1646 = vshrl.u32 %v1645, 7
      %v1647 = vsub.s32 %v1644, %v1646
      %v1648 = vrot.slane %v1640, %v1647
      %v1649 = vcombine.high %v1648, 0
      %v1651 = vunpack.c.l.s4 1934713408
      %v1652 = vunpack.c.0.s8 %v1651
      %v1653 = vlaneseq
      %v1654 = vshrl.u32 %v1653, 7
      %v1655 = vsub.s32 %v1652, %v1654
      %v1656 = vrot.slane %v1641, %v1655
      %v1659 = vunpack.c.l.s4 1983009808
      %v1660 = vunpack.c.0.s8 %v1659
      %v1661 = vlaneseq
      %v1662 = vshrl.u32 %v1661, 7
      %v1663 = vsub.s32 %v1660, %v1662
      %v1664 = vrot.slane %v1613, %v1663
      %v1667 = vunpack.c.l.s4 1983009808
      %v1668 = vunpack.c.0.s8 %v1667
      %v1669 = vlaneseq
      %v1670 = vshrl.u32 %v1669, 7
      %v1671 = vsub.s32 %v1668, %v1670
      %v1672 = vrot.slane %v1619, %v1671
      %v1673 = vcombine.low %v1664, %v1672
      %v1674 = vcombine.high %v1664, %v1672
      %v1676 = vunpack.c.l.s4 1934713408
      %v1677 = vunpack.c.0.s8 %v1676
      %v1678 = vlaneseq
      %v1679 = vshrl.u32 %v1678, 7
      %v1680 = vsub.s32 %v1677, %v1679
      %v1681 = vrot.slane %v1673, %v1680
      %v1682 = vcombine.high %v1681, 0
      %v1684 = vunpack.c.l.s4 1934713408
      %v1685 = vunpack.c.0.s8 %v1684
      %v1686 = vlaneseq
      %v1687 = vshrl.u32 %v1686, 7
      %v1688 = vsub.s32 %v1685, %v1687
      %v1689 = vrot.slane %v1674, %v1688
      %v1692 = vpack.i.b16 %v1681, %v1648
      %v1693 = vshrl.u32 %v1648, 16
      %v1694 = vshrl.u32 %v1681, 16
      %v1695 = vpack.i.b16 %v1694, %v1693
      %v1698 = vpack.i.b16 %v1682, %v1649
      %v1699 = vshrl.u32 %v1649, 16
      %v1700 = vshrl.u32 %v1682, 16
      %v1701 = vpack.i.b16 %v1700, %v1699
      %v1704 = vpack.i.b16 %v1689, %v1656
      %v1705 = vshrl.u32 %v1656, 16
      %v1706 = vshrl.u32 %v1689, 16
      %v1707 = vpack.i.b16 %v1706, %v1705
      %1708 = vrot.lane.b32.xlu0 %v1695, 64
      %v1709 = vpop.permute.xlu0 %1708
      %1710 = vrot.lane.b32.xlu0 %v1701, 64
      %v1711 = vpop.permute.xlu0 %1710
      %1712 = vrot.lane.b32.xlu0 %v1707, 64
      %v1713 = vpop.permute.xlu0 %1712
      %v1716 = vsel %vm906, %v1692, %v1709
      %v1720 = vsel %vm906, %v1698, %v1711
      %v1724 = vsel %vm906, %v1704, %v1713
      %v1726 = vld [vmem:[%s4] sm:$0xff]
      %v1727 = vld [vmem:[%s4 + $0x8] sm:$0xf]
      %v1728 = vld [vmem:[%s4 + $0xc] sm:$0xff]
      %v1729 = vld [vmem:[%s4 + $0x14] sm:$0xf]
      %v1730 = vld [vmem:[%s4 + $0x18] sm:$0xff]
      %v1731 = vld [vmem:[%s4 + $0x20] sm:$0xf]
      %v1732 = vld [vmem:[%s4 + $0x24] sm:$0xff]
      %v1733 = vld [vmem:[%s4 + $0x2c] sm:$0xf]
      %v1734 = vld [vmem:[%s4 + $0x30] sm:$0xff]
      %v1735 = vld [vmem:[%s4 + $0x38] sm:$0xf]
      %v1736 = vld [vmem:[%s4 + $0x3c] sm:$0xff]
      %v1737 = vld [vmem:[%s4 + $0x44] sm:$0xf]
      %v1738 = vld [vmem:[%s4 + $0x48] sm:$0xff]
      %v1739 = vld [vmem:[%s4 + $0x50] sm:$0xf]
      %v1740 = vld [vmem:[%s4 + $0x54] sm:$0xff]
      %v1741 = vld [vmem:[%s4 + $0x5c] sm:$0xf]
      %v1742 = vld [vmem:[%s4 + $0x60] sm:$0xff]
      %v1743 = vld [vmem:[%s4 + $0x68] sm:$0xf]
      %v1744 = vld [vmem:[%s4 + $0x6c] sm:$0xff]
      %v1745 = vld [vmem:[%s4 + $0x74] sm:$0xf]
      %v1746 = vld [vmem:[%s4 + $0x78] sm:$0xff]
      %v1747 = vld [vmem:[%s4 + $0x80] sm:$0xf]
      %v1748 = vld [vmem:[%s4 + $0x84] sm:$0xff]
      %v1749 = vld [vmem:[%s4 + $0x8c] sm:$0xf]
      %v1750 = vld [vmem:[%s4 + $0x90] sm:$0xff]
      %v1751 = vld [vmem:[%s4 + $0x98] sm:$0xf]
      %v1752 = vld [vmem:[%s4 + $0x9c] sm:$0xff]
      %v1753 = vld [vmem:[%s4 + $0xa4] sm:$0xf]
      %v1754 = vld [vmem:[%s4 + $0xa8] sm:$0xff]
      %v1755 = vld [vmem:[%s4 + $0xb0] sm:$0xf]
      %v1756 = vld [vmem:[%s4 + $0xb4] sm:$0xff]
      %v1757 = vld [vmem:[%s4 + $0xbc] sm:$0xf]
      %v1758 = vld [vmem:[%s4 + $0xc0] sm:$0xff]
      %v1759 = vld [vmem:[%s4 + $0xc8] sm:$0xf]
      %v1760 = vld [vmem:[%s4 + $0xcc] sm:$0xff]
      %v1761 = vld [vmem:[%s4 + $0xd4] sm:$0xf]
      %v1762 = vld [vmem:[%s4 + $0xd8] sm:$0xff]
      %v1763 = vld [vmem:[%s4 + $0xe0] sm:$0xf]
      %v1764 = vld [vmem:[%s4 + $0xe4] sm:$0xff]
      %v1765 = vld [vmem:[%s4 + $0xec] sm:$0xf]
      %v1766 = vld [vmem:[%s4 + $0xf0] sm:$0xff]
      %v1767 = vld [vmem:[%s4 + $0xf8] sm:$0xf]
      %v1768 = vld [vmem:[%s4 + $0xfc] sm:$0xff]
      %v1769 = vld [vmem:[%s4 + $0x104] sm:$0xf]
      %v1770 = vld [vmem:[%s4 + $0x108] sm:$0xff]
      %v1771 = vld [vmem:[%s4 + $0x110] sm:$0xf]
      %v1772 = vld [vmem:[%s4 + $0x114] sm:$0xff]
      %v1773 = vld [vmem:[%s4 + $0x11c] sm:$0xf]
      %v1774 = vld [vmem:[%s4 + $0x120] sm:$0xff]
      %v1775 = vld [vmem:[%s4 + $0x128] sm:$0xf]
      %v1776 = vld [vmem:[%s4 + $0x12c] sm:$0xff]
      %v1777 = vld [vmem:[%s4 + $0x134] sm:$0xf]
      %v1778 = vld [vmem:[%s4 + $0x138] sm:$0xff]
      %v1779 = vld [vmem:[%s4 + $0x140] sm:$0xf]
      %v1780 = vld [vmem:[%s4 + $0x144] sm:$0xff]
      %v1781 = vld [vmem:[%s4 + $0x14c] sm:$0xf]
      %v1782 = vld [vmem:[%s4 + $0x150] sm:$0xff]
      %v1783 = vld [vmem:[%s4 + $0x158] sm:$0xf]
      %v1784 = vld [vmem:[%s4 + $0x15c] sm:$0xff]
      %v1785 = vld [vmem:[%s4 + $0x164] sm:$0xf]
      %v1786 = vld [vmem:[%s4 + $0x168] sm:$0xff]
      %v1787 = vld [vmem:[%s4 + $0x170] sm:$0xf]
      %v1788 = vld [vmem:[%s4 + $0x174] sm:$0xff]
      %v1789 = vld [vmem:[%s4 + $0x17c] sm:$0xf]
      %v1790 = vld [vmem:[%s4 + $0x180] sm:$0xff]
      %v1791 = vld [vmem:[%s4 + $0x188] sm:$0xf]
      %v1792 = vld [vmem:[%s4 + $0x18c] sm:$0xff]
      %v1793 = vld [vmem:[%s4 + $0x194] sm:$0xf]
      %v1794 = vld [vmem:[%s4 + $0x198] sm:$0xff]
      %v1795 = vld [vmem:[%s4 + $0x1a0] sm:$0xf]
      %v1796 = vld [vmem:[%s4 + $0x1a4] sm:$0xff]
      %v1797 = vld [vmem:[%s4 + $0x1ac] sm:$0xf]
      %v1798 = vld [vmem:[%s4 + $0x1b0] sm:$0xff]
      %v1799 = vld [vmem:[%s4 + $0x1b8] sm:$0xf]
      %v1800 = vld [vmem:[%s4 + $0x1bc] sm:$0xff]
      %v1801 = vld [vmem:[%s4 + $0x1c4] sm:$0xf]
      %v1802 = vld [vmem:[%s4 + $0x1c8] sm:$0xff]
      %v1803 = vld [vmem:[%s4 + $0x1d0] sm:$0xf]
      %v1804 = vld [vmem:[%s4 + $0x1d4] sm:$0xff]
      %v1805 = vld [vmem:[%s4 + $0x1dc] sm:$0xf]
      %v1806 = vld [vmem:[%s4 + $0x1e0] sm:$0xff]
      %v1807 = vld [vmem:[%s4 + $0x1e8] sm:$0xf]
      %v1808 = vld [vmem:[%s4 + $0x1ec] sm:$0xff]
      %v1809 = vld [vmem:[%s4 + $0x1f4] sm:$0xf]
      %v1810 = vld [vmem:[%s4 + $0x1f8] sm:$0xff]
      %v1811 = vld [vmem:[%s4 + $0x200] sm:$0xf]
      %v1812 = vld [vmem:[%s4 + $0x204] sm:$0xff]
      %v1813 = vld [vmem:[%s4 + $0x20c] sm:$0xf]
      %v1814 = vld [vmem:[%s4 + $0x210] sm:$0xff]
      %v1815 = vld [vmem:[%s4 + $0x218] sm:$0xf]
      %v1816 = vld [vmem:[%s4 + $0x21c] sm:$0xff]
      %v1817 = vld [vmem:[%s4 + $0x224] sm:$0xf]
      %v1818 = vld [vmem:[%s4 + $0x228] sm:$0xff]
      %v1819 = vld [vmem:[%s4 + $0x230] sm:$0xf]
      %v1820 = vld [vmem:[%s4 + $0x234] sm:$0xff]
      %v1821 = vld [vmem:[%s4 + $0x23c] sm:$0xf]
      %v1822 = vld [vmem:[%s358] sm:$0x1f]
      %v1823 = vld [vmem:[%s358 + $0x8] sm:$0x1f]
      %v1824 = vld [vmem:[%s358 + $0x10] sm:$0x1f]
      %v1921 = vunpack.c.l.b16 %v1726
      %v1922 = vunpack.c.h.b16 %v1726
      %v1923 = vunpack.c.l.b16 %v1727
      %v1924 = vunpack.c.l.b16 %v1728
      %v1925 = vunpack.c.h.b16 %v1728
      %v1926 = vunpack.c.l.b16 %v1729
      %v1927 = vunpack.c.l.b16 %v1730
      %v1928 = vunpack.c.h.b16 %v1730
      %v1929 = vunpack.c.l.b16 %v1731
      %v1930 = vunpack.c.l.b16 %v1732
      %v1931 = vunpack.c.h.b16 %v1732
      %v1932 = vunpack.c.l.b16 %v1733
      %v1933 = vunpack.c.l.b16 %v1734
      %v1934 = vunpack.c.h.b16 %v1734
      %v1935 = vunpack.c.l.b16 %v1735
      %v1936 = vunpack.c.l.b16 %v1736
      %v1937 = vunpack.c.h.b16 %v1736
      %v1938 = vunpack.c.l.b16 %v1737
      %v1939 = vunpack.c.l.b16 %v1738
      %v1940 = vunpack.c.h.b16 %v1738
      %v1941 = vunpack.c.l.b16 %v1739
      %v1942 = vunpack.c.l.b16 %v1740
      %v1943 = vunpack.c.h.b16 %v1740
      %v1944 = vunpack.c.l.b16 %v1741
      %v1945 = vunpack.c.l.b16 %v1742
      %v1946 = vunpack.c.h.b16 %v1742
      %v1947 = vunpack.c.l.b16 %v1743
      %v1948 = vunpack.c.l.b16 %v1744
      %v1949 = vunpack.c.h.b16 %v1744
      %v1950 = vunpack.c.l.b16 %v1745
      %v1951 = vunpack.c.l.b16 %v1746
      %v1952 = vunpack.c.h.b16 %v1746
      %v1953 = vunpack.c.l.b16 %v1747
      %v1954 = vunpack.c.l.b16 %v1748
      %v1955 = vunpack.c.h.b16 %v1748
      %v1956 = vunpack.c.l.b16 %v1749
      %v1957 = vunpack.c.l.b16 %v1750
      %v1958 = vunpack.c.h.b16 %v1750
      %v1959 = vunpack.c.l.b16 %v1751
      %v1960 = vunpack.c.l.b16 %v1752
      %v1961 = vunpack.c.h.b16 %v1752
      %v1962 = vunpack.c.l.b16 %v1753
      %v1963 = vunpack.c.l.b16 %v1754
      %v1964 = vunpack.c.h.b16 %v1754
      %v1965 = vunpack.c.l.b16 %v1755
      %v1966 = vunpack.c.l.b16 %v1756
      %v1967 = vunpack.c.h.b16 %v1756
      %v1968 = vunpack.c.l.b16 %v1757
      %v1969 = vunpack.c.l.b16 %v1758
      %v1970 = vunpack.c.h.b16 %v1758
      %v1971 = vunpack.c.l.b16 %v1759
      %v1972 = vunpack.c.l.b16 %v1760
      %v1973 = vunpack.c.h.b16 %v1760
      %v1974 = vunpack.c.l.b16 %v1761
      %v1975 = vunpack.c.l.b16 %v1762
      %v1976 = vunpack.c.h.b16 %v1762
      %v1977 = vunpack.c.l.b16 %v1763
      %v1978 = vunpack.c.l.b16 %v1764
      %v1979 = vunpack.c.h.b16 %v1764
      %v1980 = vunpack.c.l.b16 %v1765
      %v1981 = vunpack.c.l.b16 %v1766
      %v1982 = vunpack.c.h.b16 %v1766
      %v1983 = vunpack.c.l.b16 %v1767
      %v1984 = vunpack.c.l.b16 %v1768
      %v1985 = vunpack.c.h.b16 %v1768
      %v1986 = vunpack.c.l.b16 %v1769
      %v1987 = vunpack.c.l.b16 %v1770
      %v1988 = vunpack.c.h.b16 %v1770
      %v1989 = vunpack.c.l.b16 %v1771
      %v1990 = vunpack.c.l.b16 %v1772
      %v1991 = vunpack.c.h.b16 %v1772
      %v1992 = vunpack.c.l.b16 %v1773
      %v1993 = vunpack.c.l.b16 %v1774
      %v1994 = vunpack.c.h.b16 %v1774
      %v1995 = vunpack.c.l.b16 %v1775
      %v1996 = vunpack.c.l.b16 %v1776
      %v1997 = vunpack.c.h.b16 %v1776
      %v1998 = vunpack.c.l.b16 %v1777
      %v1999 = vunpack.c.l.b16 %v1778
      %v2000 = vunpack.c.h.b16 %v1778
      %v2001 = vunpack.c.l.b16 %v1779
      %v2002 = vunpack.c.l.b16 %v1780
      %v2003 = vunpack.c.h.b16 %v1780
      %v2004 = vunpack.c.l.b16 %v1781
      %v2005 = vunpack.c.l.b16 %v1782
      %v2006 = vunpack.c.h.b16 %v1782
      %v2007 = vunpack.c.l.b16 %v1783
      %v2008 = vunpack.c.l.b16 %v1784
      %v2009 = vunpack.c.h.b16 %v1784
      %v2010 = vunpack.c.l.b16 %v1785
      %v2011 = vunpack.c.l.b16 %v1786
      %v2012 = vunpack.c.h.b16 %v1786
      %v2013 = vunpack.c.l.b16 %v1787
      %v2014 = vunpack.c.l.b16 %v1788
      %v2015 = vunpack.c.h.b16 %v1788
      %v2016 = vunpack.c.l.b16 %v1789
      %v2017 = vunpack.c.l.b16 %v1790
      %v2018 = vunpack.c.h.b16 %v1790
      %v2019 = vunpack.c.l.b16 %v1791
      %v2020 = vunpack.c.l.b16 %v1792
      %v2021 = vunpack.c.h.b16 %v1792
      %v2022 = vunpack.c.l.b16 %v1793
      %v2023 = vunpack.c.l.b16 %v1794
      %v2024 = vunpack.c.h.b16 %v1794
      %v2025 = vunpack.c.l.b16 %v1795
      %v2026 = vunpack.c.l.b16 %v1796
      %v2027 = vunpack.c.h.b16 %v1796
      %v2028 = vunpack.c.l.b16 %v1797
      %v2029 = vunpack.c.l.b16 %v1798
      %v2030 = vunpack.c.h.b16 %v1798
      %v2031 = vunpack.c.l.b16 %v1799
      %v2032 = vunpack.c.l.b16 %v1800
      %v2033 = vunpack.c.h.b16 %v1800
      %v2034 = vunpack.c.l.b16 %v1801
      %v2035 = vunpack.c.l.b16 %v1802
      %v2036 = vunpack.c.h.b16 %v1802
      %v2037 = vunpack.c.l.b16 %v1803
      %v2038 = vunpack.c.l.b16 %v1804
      %v2039 = vunpack.c.h.b16 %v1804
      %v2040 = vunpack.c.l.b16 %v1805
      %v2041 = vunpack.c.l.b16 %v1806
      %v2042 = vunpack.c.h.b16 %v1806
      %v2043 = vunpack.c.l.b16 %v1807
      %v2044 = vunpack.c.l.b16 %v1808
      %v2045 = vunpack.c.h.b16 %v1808
      %v2046 = vunpack.c.l.b16 %v1809
      %v2047 = vunpack.c.l.b16 %v1810
      %v2048 = vunpack.c.h.b16 %v1810
      %v2049 = vunpack.c.l.b16 %v1811
      %v2050 = vunpack.c.l.b16 %v1812
      %v2051 = vunpack.c.h.b16 %v1812
      %v2052 = vunpack.c.l.b16 %v1813
      %v2053 = vunpack.c.l.b16 %v1814
      %v2054 = vunpack.c.h.b16 %v1814
      %v2055 = vunpack.c.l.b16 %v1815
      %v2056 = vunpack.c.l.b16 %v1816
      %v2057 = vunpack.c.h.b16 %v1816
      %v2058 = vunpack.c.l.b16 %v1817
      %v2059 = vunpack.c.l.b16 %v1818
      %v2060 = vunpack.c.h.b16 %v1818
      %v2061 = vunpack.c.l.b16 %v1819
      %v2062 = vunpack.c.l.b16 %v1820
      %v2063 = vunpack.c.h.b16 %v1820
      %v2064 = vunpack.c.l.b16 %v1821
      %v2065 = vpack.c.b16 %v1924, %v1921
      %v2066 = vpack.c.b16 %v1925, %v1922
      %v2067 = vpack.c.b16 %v1926, %v1923
      %v2068 = vpack.c.b16 %v1930, %v1927
      %v2069 = vpack.c.b16 %v1931, %v1928
      %v2070 = vpack.c.b16 %v1932, %v1929
      %v2071 = vpack.c.b16 %v1936, %v1933
      %v2072 = vpack.c.b16 %v1937, %v1934
      %v2073 = vpack.c.b16 %v1938, %v1935
      %v2074 = vpack.c.b16 %v1942, %v1939
      %v2075 = vpack.c.b16 %v1943, %v1940
      %v2076 = vpack.c.b16 %v1944, %v1941
      %v2077 = vpack.c.b16 %v1948, %v1945
      %v2078 = vpack.c.b16 %v1949, %v1946
      %v2079 = vpack.c.b16 %v1950, %v1947
      %v2080 = vpack.c.b16 %v1954, %v1951
      %v2081 = vpack.c.b16 %v1955, %v1952
      %v2082 = vpack.c.b16 %v1956, %v1953
      %v2083 = vpack.c.b16 %v1960, %v1957
      %v2084 = vpack.c.b16 %v1961, %v1958
      %v2085 = vpack.c.b16 %v1962, %v1959
      %v2086 = vpack.c.b16 %v1966, %v1963
      %v2087 = vpack.c.b16 %v1967, %v1964
      %v2088 = vpack.c.b16 %v1968, %v1965
      %v2089 = vpack.c.b16 %v1972, %v1969
      %v2090 = vpack.c.b16 %v1973, %v1970
      %v2091 = vpack.c.b16 %v1974, %v1971
      %v2092 = vpack.c.b16 %v1978, %v1975
      %v2093 = vpack.c.b16 %v1979, %v1976
      %v2094 = vpack.c.b16 %v1980, %v1977
      %v2095 = vpack.c.b16 %v1984, %v1981
      %v2096 = vpack.c.b16 %v1985, %v1982
      %v2097 = vpack.c.b16 %v1986, %v1983
      %v2098 = vpack.c.b16 %v1990, %v1987
      %v2099 = vpack.c.b16 %v1991, %v1988
      %v2100 = vpack.c.b16 %v1992, %v1989
      %v2101 = vpack.c.b16 %v1996, %v1993
      %v2102 = vpack.c.b16 %v1997, %v1994
      %v2103 = vpack.c.b16 %v1998, %v1995
      %v2104 = vpack.c.b16 %v2002, %v1999
      %v2105 = vpack.c.b16 %v2003, %v2000
      %v2106 = vpack.c.b16 %v2004, %v2001
      %v2107 = vpack.c.b16 %v2008, %v2005
      %v2108 = vpack.c.b16 %v2009, %v2006
      %v2109 = vpack.c.b16 %v2010, %v2007
      %v2110 = vpack.c.b16 %v2014, %v2011
      %v2111 = vpack.c.b16 %v2015, %v2012
      %v2112 = vpack.c.b16 %v2016, %v2013
      %v2113 = vpack.c.b16 %v2020, %v2017
      %v2114 = vpack.c.b16 %v2021, %v2018
      %v2115 = vpack.c.b16 %v2022, %v2019
      %v2116 = vpack.c.b16 %v2026, %v2023
      %v2117 = vpack.c.b16 %v2027, %v2024
      %v2118 = vpack.c.b16 %v2028, %v2025
      %v2119 = vpack.c.b16 %v2032, %v2029
      %v2120 = vpack.c.b16 %v2033, %v2030
      %v2121 = vpack.c.b16 %v2034, %v2031
      %v2122 = vpack.c.b16 %v2038, %v2035
      %v2123 = vpack.c.b16 %v2039, %v2036
      %v2124 = vpack.c.b16 %v2040, %v2037
      %v2125 = vpack.c.b16 %v2044, %v2041
      %v2126 = vpack.c.b16 %v2045, %v2042
      %v2127 = vpack.c.b16 %v2046, %v2043
      %v2128 = vpack.c.b16 %v2050, %v2047
      %v2129 = vpack.c.b16 %v2051, %v2048
      %v2130 = vpack.c.b16 %v2052, %v2049
      %v2131 = vpack.c.b16 %v2056, %v2053
      %v2132 = vpack.c.b16 %v2057, %v2054
      %v2133 = vpack.c.b16 %v2058, %v2055
      %v2134 = vpack.c.b16 %v2062, %v2059
      %v2135 = vpack.c.b16 %v2063, %v2060
      %v2136 = vpack.c.b16 %v2064, %v2061
      %2209 = vmatprep.subr.bf16.mxu0 %v2066
      %2210 = vmatpush1.bf16.msra.mxu0 %v2065
      %2211 = vmatprep.subr.bf16.mxu0 %v2069
      %2212 = vmatpush1.bf16.msra.mxu0 %v2068
      %2213 = vmatprep.subr.bf16.mxu0 %v2072
      %2214 = vmatpush1.bf16.msra.mxu0 %v2071
      %2215 = vmatprep.subr.bf16.mxu0 %v2075
      %2216 = vmatpush1.bf16.msra.mxu0 %v2074
      %2217 = vmatprep.subr.bf16.mxu0 %v2078
      %2218 = vmatpush1.bf16.msra.mxu0 %v2077
      %2219 = vmatprep.subr.bf16.mxu0 %v2081
      %2220 = vmatpush1.bf16.msra.mxu0 %v2080
      %2221 = vmatprep.subr.bf16.mxu0 %v2084
      %2222 = vmatpush1.bf16.msra.mxu0 %v2083
      %2223 = vmatprep.subr.bf16.mxu0 %v2087
      %2224 = vmatpush1.bf16.msra.mxu0 %v2086
      %2225 = vmatprep.subr.bf16.mxu0 %v2090
      %2226 = vmatpush1.bf16.msra.mxu0 %v2089
      %2227 = vmatprep.subr.bf16.mxu0 %v2093
      %2228 = vmatpush1.bf16.msra.mxu0 %v2092
      %2229 = vmatprep.subr.bf16.mxu0 %v2096
      %2230 = vmatpush1.bf16.msra.mxu0 %v2095
      %2231 = vmatprep.subr.bf16.mxu0 %v2099
      %2232 = vmatpush1.bf16.msra.mxu0 %v2098
      %2233 = vmatprep.subr.bf16.mxu0 %v2102
      %2234 = vmatpush1.bf16.msra.mxu0 %v2101
      %2235 = vmatprep.subr.bf16.mxu0 %v2105
      %2236 = vmatpush1.bf16.msra.mxu0 %v2104
      %2237 = vmatprep.subr.bf16.mxu0 %v2108
      %2238 = vmatpush1.bf16.msra.mxu0 %v2107
      %2239 = vmatprep.subr.bf16.mxu0 %v2111
      %2240 = vmatpush1.bf16.msra.mxu0 %v2110
      %2241 = vmatprep.mubr.bf16.mxu0 %v1720
      %2242 = vmatmul.mubr.bf16.gmra.mrb[0].mxu0 %v1716
      %v2243 = vpop.f32.mrb[0].mxu0
      %v2244 = vadd.f32 %v1822, %v2243
      %v2245 = vpop.f32.mrb[0].mxu0
      %v2246 = vadd.f32 %v1823, %v2245
      %v2247 = vpop.f32.mrb[0].mxu0
      %v2248 = vpop.f32.mrb[0].mxu0
      %2249 = vdwg.mxu0
      %2250 = vmatprep.subr.bf16.mxu0 %v2114
      %2251 = vmatpush1.bf16.msra.mxu0 %v2113
      %2252 = vmatprep.subr.bf16.mxu0 %v2117
      %2253 = vmatpush1.bf16.msra.mxu0 %v2116
      %2254 = vmatprep.subr.bf16.mxu0 %v2120
      %2255 = vmatpush1.bf16.msra.mxu0 %v2119
      %2256 = vmatprep.subr.bf16.mxu0 %v2123
      %2257 = vmatpush1.bf16.msra.mxu0 %v2122
      %2258 = vmatprep.subr.bf16.mxu0 %v2126
      %2259 = vmatpush1.bf16.msra.mxu0 %v2125
      %2260 = vmatprep.subr.bf16.mxu0 %v2129
      %2261 = vmatpush1.bf16.msra.mxu0 %v2128
      %2262 = vmatprep.subr.bf16.mxu0 %v2132
      %2263 = vmatpush1.bf16.msra.mxu0 %v2131
      %2264 = vmatprep.subr.bf16.mxu0 %v2135
      %2265 = vmatpush1.bf16.msra.mxu0 %v2134
      %2266 = vmatprep.subr.bf16.mxu0 0
      %2267 = vmatpush1.bf16.msra.mxu0 0
      %2268 = vmatprep.subr.bf16.mxu0 0
      %2269 = vmatpush1.bf16.msra.mxu0 0
      %2270 = vmatprep.subr.bf16.mxu0 0
      %2271 = vmatpush1.bf16.msra.mxu0 0
      %2272 = vmatprep.subr.bf16.mxu0 0
      %2273 = vmatpush1.bf16.msra.mxu0 0
      %2274 = vmatprep.subr.bf16.mxu0 0
      %2275 = vmatpush1.bf16.msra.mxu0 0
      %2276 = vmatprep.subr.bf16.mxu0 0
      %2277 = vmatpush1.bf16.msra.mxu0 0
      %2278 = vmatprep.subr.bf16.mxu0 0
      %2279 = vmatpush1.bf16.msra.mxu0 0
      %2280 = vmatprep.subr.bf16.mxu0 0
      %2281 = vmatpush1.bf16.msra.mxu0 0
      %2282 = vmatprep.mubr.bf16.mxu0 0
      %2283 = vmatmul.mubr.bf16.gmra.mrb[0].mxu0 %v1724
      %v2284 = vpop.f32.mrb[0].mxu0
      %v2285 = vadd.f32 %v2244, %v2284
      %v2286 = vpop.f32.mrb[0].mxu0
      %v2287 = vadd.f32 %v2246, %v2286
      %v2288 = vpop.f32.mrb[0].mxu0
      %v2289 = vpop.f32.mrb[0].mxu0
      %2290 = vdwg.mxu0
      %2291 = vmatprep.subr.bf16.mxu0 0
      %2292 = vmatpush1.bf16.msra.mxu0 %v2067
      %2293 = vmatprep.subr.bf16.mxu0 0
      %2294 = vmatpush1.bf16.msra.mxu0 %v2070
      %2295 = vmatprep.subr.bf16.mxu0 0
      %2296 = vmatpush1.bf16.msra.mxu0 %v2073
      %2297 = vmatprep.subr.bf16.mxu0 0
      %2298 = vmatpush1.bf16.msra.mxu0 %v2076
      %2299 = vmatprep.subr.bf16.mxu0 0
      %2300 = vmatpush1.bf16.msra.mxu0 %v2079
      %2301 = vmatprep.subr.bf16.mxu0 0
      %2302 = vmatpush1.bf16.msra.mxu0 %v2082
      %2303 = vmatprep.subr.bf16.mxu0 0
      %2304 = vmatpush1.bf16.msra.mxu0 %v2085
      %2305 = vmatprep.subr.bf16.mxu0 0
      %2306 = vmatpush1.bf16.msra.mxu0 %v2088
      %2307 = vmatprep.subr.bf16.mxu0 0
      %2308 = vmatpush1.bf16.msra.mxu0 %v2091
      %2309 = vmatprep.subr.bf16.mxu0 0
      %2310 = vmatpush1.bf16.msra.mxu0 %v2094
      %2311 = vmatprep.subr.bf16.mxu0 0
      %2312 = vmatpush1.bf16.msra.mxu0 %v2097
      %2313 = vmatprep.subr.bf16.mxu0 0
      %2314 = vmatpush1.bf16.msra.mxu0 %v2100
      %2315 = vmatprep.subr.bf16.mxu0 0
      %2316 = vmatpush1.bf16.msra.mxu0 %v2103
      %2317 = vmatprep.subr.bf16.mxu0 0
      %2318 = vmatpush1.bf16.msra.mxu0 %v2106
      %2319 = vmatprep.subr.bf16.mxu0 0
      %2320 = vmatpush1.bf16.msra.mxu0 %v2109
      %2321 = vmatprep.subr.bf16.mxu0 0
      %2322 = vmatpush1.bf16.msra.mxu0 %v2112
      %2323 = vmatprep.mubr.bf16.mxu0 %v1720
      %2324 = vmatmul.mubr.bf16.gmra.mrb[0].mxu0 %v1716
      %v2325 = vpop.f32.mrb[0].mxu0
      %v2326 = vadd.f32 %v1824, %v2325
      %v2327 = vpop.f32.mrb[0].mxu0
      %v2328 = vpop.f32.mrb[0].mxu0
      %v2329 = vpop.f32.mrb[0].mxu0
      %2330 = vdwg.mxu0
      %2331 = vmatprep.subr.bf16.mxu0 0
      %2332 = vmatpush1.bf16.msra.mxu0 %v2115
      %2333 = vmatprep.subr.bf16.mxu0 0
      %2334 = vmatpush1.bf16.msra.mxu0 %v2118
      %2335 = vmatprep.subr.bf16.mxu0 0
      %2336 = vmatpush1.bf16.msra.mxu0 %v2121
      %2337 = vmatprep.subr.bf16.mxu0 0
      %2338 = vmatpush1.bf16.msra.mxu0 %v2124
      %2339 = vmatprep.subr.bf16.mxu0 0
      %2340 = vmatpush1.bf16.msra.mxu0 %v2127
      %2341 = vmatprep.subr.bf16.mxu0 0
      %2342 = vmatpush1.bf16.msra.mxu0 %v2130
      %2343 = vmatprep.subr.bf16.mxu0 0
      %2344 = vmatpush1.bf16.msra.mxu0 %v2133
      %2345 = vmatprep.subr.bf16.mxu0 0
      %2346 = vmatpush1.bf16.msra.mxu0 %v2136
      %2347 = vmatprep.subr.bf16.mxu0 0
      %2348 = vmatpush1.bf16.msra.mxu0 0
      %2349 = vmatprep.subr.bf16.mxu0 0
      %2350 = vmatpush1.bf16.msra.mxu0 0
      %2351 = vmatprep.subr.bf16.mxu0 0
      %2352 = vmatpush1.bf16.msra.mxu0 0
      %2353 = vmatprep.subr.bf16.mxu0 0
      %2354 = vmatpush1.bf16.msra.mxu0 0
      %2355 = vmatprep.subr.bf16.mxu0 0
      %2356 = vmatpush1.bf16.msra.mxu0 0
      %2357 = vmatprep.subr.bf16.mxu0 0
      %2358 = vmatpush1.bf16.msra.mxu0 0
      %2359 = vmatprep.subr.bf16.mxu0 0
      %2360 = vmatpush1.bf16.msra.mxu0 0
      %2361 = vmatprep.subr.bf16.mxu0 0
      %2362 = vmatpush1.bf16.msra.mxu0 0
      %2363 = vmatprep.mubr.bf16.mxu0 0
      %2364 = vmatmul.mubr.bf16.gmra.mrb[0].mxu0 %v1724
      %v2365 = vpop.f32.mrb[0].mxu0
      %v2366 = vadd.f32 %v2326, %v2365
      %v2367 = vpop.f32.mrb[0].mxu0
      %v2368 = vpop.f32.mrb[0].mxu0
      %v2369 = vpop.f32.mrb[0].mxu0
      %2370 = vdwg.mxu0
      %v2371 = vld [vmem:[%s5] sm:$0x7]
      %v2373 = vlaneseq
      %v2374 = vshrl.u32 %v2373, 7
      %v2375 = vsub.s32 0, %v2374
      %v2376 = vrot.slane %v2371, %v2375
      %v2377 = vlaneseq
      %v2378 = vshrl.u32 %v2377, 7
      %v2379 = vsub.s32 1, %v2378
      %v2380 = vrot.slane %v2371, %v2379
      %v2381 = vlaneseq
      %v2382 = vshrl.u32 %v2381, 7
      %v2383 = vsub.s32 2, %v2382
      %v2384 = vrot.slane %v2371, %v2383
      %v2388 = vadd.f32 %v2285, %v2376
      %v2389 = vadd.f32 %v2287, %v2380
      %v2390 = vadd.f32 %v2366, %v2384
      %2391 = vst [vmem:[%s367] sm:$0x1f] %v2388
      %2392 = vst [vmem:[%s367 + $0x8] sm:$0x1f] %v2389
      %2393 = vst [vmem:[%s367 + $0x10] sm:$0x1f] %v2390
      %p2394 = scmp.lt.s32.totalorder %s21, 1
      %s2395 = scalar_select %p2394, %s21, 1
      %p2396 = scmp.lt.s32.totalorder %s22, 0
      %s2397 = scalar_select %p2396, %s22, 0
      %s2398 = smul.addr %s2397, 3
      %s2399 = smul.addr %s2395, 3
      %s2400 = sadd.s32 %s2398, %s2399
      %s2401 = smul.addr %s2400, 8
      %s2402 = scalar_lea.vmem %s6, %s2401
      // Predicated region
      $region45: #{vit_mt_forward.10} parent=43 // pred_check
        %p2403 = pneg %p199
      $region46: #{vit_mt_forward.10} parent=43 // pred_check_branch
        %2405 = sbr.rel (%p2403) target = $region48
      $region47: #{vit_mt_forward.10} parent=43 // pred_region
        _
      $region48: #{vit_mt_forward.10} parent=43 // pred_fallthru
        _
    $region44: #{vit_mt_forward.10} parent=5 // pred_fallthru
      _
    %p2406 = scmp.le.s32.totalorder 2, %s12
    // Predicated region
    $region49: #{vit_mt_forward.10} parent=5 // pred_check
      %p2407 = pneg %p2406
    $region50: #{vit_mt_forward.10} parent=5 // pred_check_branch
      %2409 = sbr.rel (%p2407) target = $region52
    $region51: #{vit_mt_forward.10} parent=5 // pred_region
      %s2410 = ssub.s32 %s12, 2
      // Predicated region
      $region53: #{vit_mt_forward.10} parent=51 // pred_check
        %p2411 = pneg %p205
      $region54: #{vit_mt_forward.10} parent=51 // pred_check_branch
        %2413 = sbr.rel (%p2411) target = $region56
      $region55: #{vit_mt_forward.10} parent=51 // pred_region
        %p2414 = scmp.lt.s32.totalorder %s23, 1
        %s2415 = scalar_select %p2414, %s23, 1
        %p2416 = scmp.lt.s32.totalorder %s24, 0
        %s2417 = scalar_select %p2416, %s24, 0
        %s2418 = smul.addr %s2417, 3
        %s2419 = smul.addr %s2415, 3
        %s2420 = sadd.s32 %s2418, %s2419
        %s2421 = smul.addr %s2420, 8
        %s2422 = scalar_lea.vmem %s6, %s2421
      $region56: #{vit_mt_forward.10} parent=51 // pred_fallthru
        _
    $region52: #{vit_mt_forward.10} parent=5 // pred_fallthru
      _
  $region6: #{vit_mt_forward.10} parent=0 // loop_footer
    %s16 = sadd.s32 1, %s12
  $region7: #{vit_mt_forward.10} parent=0 // loop_footer_branch
    %11 = sbr.rel target = $region3
  $region8: #{vit_mt_forward.10} parent=0 // loop_exit
    _

// kernel: vit_mt_forward.8
$region0: #{vit_mt_forward.8}
  #allocation0 [shape = 'u32[]', space=smem, size = 0x4, offset = 0x4, fixed_abs, tag = 'smem constant byte address 0x4 - core index']
  #allocation1 [shape = 'u32[144,128]{1,0:T(1,128)}', space=vmem, size = 0x12000, scoped, tag = 'internal scratch']
  %s0 = inlined_call_operand.vmem [shape: bf16[8,3072], index: 0, kind: input, shape index: {}]
  %s1 = inlined_call_operand.vmem [shape: bf16[3072,384], index: 1, kind: input, shape index: {}]
  %s2 = inlined_call_operand.vmem [shape: f32[1,384], index: 2, kind: input, shape index: {}]
  %s3 = inlined_call_operand.vmem [shape: f32[8,384], index: 3, kind: output, shape index: {}]
  %s4 = sld [smem:[#allocation0]]
  $region22: #{vit_mt_forward.8} parent=0
    _
  %s6 = ssub.s32 1, %s4
  %s7 = scalar_select 0, %s6, %s4
  // Predicated region
  $region2: #{vit_mt_forward.8} parent=0 // pred_check
    _
  $region3: #{vit_mt_forward.8} parent=0 // pred_check_branch
    %9 = sbr.rel (0) target = $region5
  $region4: #{vit_mt_forward.8} parent=0 // pred_region
    _
  $region5: #{vit_mt_forward.8} parent=0 // pred_fallthru
    _
  // Predicated region
  $region6: #{vit_mt_forward.8} parent=0 // pred_check
    _
  $region7: #{vit_mt_forward.8} parent=0 // pred_check_branch
    %11 = sbr.rel (0) target = $region9
  $region8: #{vit_mt_forward.8} parent=0 // pred_region
    _
  $region9: #{vit_mt_forward.8} parent=0 // pred_fallthru
    _
  // Predicated region
  $region10: #{vit_mt_forward.8} parent=0 // pred_check
    _
  $region11: #{vit_mt_forward.8} parent=0 // pred_check_branch
    %13 = sbr.rel (0) target = $region13
  $region12: #{vit_mt_forward.8} parent=0 // pred_region
    _
  $region13: #{vit_mt_forward.8} parent=0 // pred_fallthru
    _
  %v15 = vld [vmem:[%s0] sm:$0xff]
  %v16 = vld [vmem:[%s0 + $0x8] sm:$0xff]
  %v17 = vld [vmem:[%s0 + $0x10] sm:$0xff]
  %v18 = vld [vmem:[%s0 + $0x18] sm:$0xff]
  %v19 = vld [vmem:[%s0 + $0x20] sm:$0xff]
  %v20 = vld [vmem:[%s0 + $0x28] sm:$0xff]
  %v21 = vld [vmem:[%s0 + $0x30] sm:$0xff]
  %v22 = vld [vmem:[%s0 + $0x38] sm:$0xff]
  %v23 = vld [vmem:[%s0 + $0x40] sm:$0xff]
  %v24 = vld [vmem:[%s0 + $0x48] sm:$0xff]
  %v25 = vld [vmem:[%s0 + $0x50] sm:$0xff]
  %v26 = vld [vmem:[%s0 + $0x58] sm:$0xff]
  %v27 = vld [vmem:[%s1] sm:$0xff]
  %v28 = vld [vmem:[%s1 + $0x8] sm:$0xf]
  %v29 = vld [vmem:[%s1 + $0xc] sm:$0xff]
  %v30 = vld [vmem:[%s1 + $0x14] sm:$0xf]
  %v31 = vld [vmem:[%s1 + $0x18] sm:$0xff]
  %v32 = vld [vmem:[%s1 + $0x20] sm:$0xf]
  %v33 = vld [vmem:[%s1 + $0x24] sm:$0xff]
  %v34 = vld [vmem:[%s1 + $0x2c] sm:$0xf]
  %v35 = vld [vmem:[%s1 + $0x30] sm:$0xff]
  %v36 = vld [vmem:[%s1 + $0x38] sm:$0xf]
  %v37 = vld [vmem:[%s1 + $0x3c] sm:$0xff]
  %v38 = vld [vmem:[%s1 + $0x44] sm:$0xf]
  %v39 = vld [vmem:[%s1 + $0x48] sm:$0xff]
  %v40 = vld [vmem:[%s1 + $0x50] sm:$0xf]
  %v41 = vld [vmem:[%s1 + $0x54] sm:$0xff]
  %v42 = vld [vmem:[%s1 + $0x5c] sm:$0xf]
  %v43 = vld [vmem:[%s1 + $0x60] sm:$0xff]
  %v44 = vld [vmem:[%s1 + $0x68] sm:$0xf]
  %v45 = vld [vmem:[%s1 + $0x6c] sm:$0xff]
  %v46 = vld [vmem:[%s1 + $0x74] sm:$0xf]
  %v47 = vld [vmem:[%s1 + $0x78] sm:$0xff]
  %v48 = vld [vmem:[%s1 + $0x80] sm:$0xf]
  %v49 = vld [vmem:[%s1 + $0x84] sm:$0xff]
  %v50 = vld [vmem:[%s1 + $0x8c] sm:$0xf]
  %v51 = vld [vmem:[%s1 + $0x90] sm:$0xff]
  %v52 = vld [vmem:[%s1 + $0x98] sm:$0xf]
  %v53 = vld [vmem:[%s1 + $0x9c] sm:$0xff]
  %v54 = vld [vmem:[%s1 + $0xa4] sm:$0xf]
  %v55 = vld [vmem:[%s1 + $0xa8] sm:$0xff]
  %v56 = vld [vmem:[%s1 + $0xb0] sm:$0xf]
  %v57 = vld [vmem:[%s1 + $0xb4] sm:$0xff]
  %v58 = vld [vmem:[%s1 + $0xbc] sm:$0xf]
  %v59 = vld [vmem:[%s1 + $0xc0] sm:$0xff]
  %v60 = vld [vmem:[%s1 + $0xc8] sm:$0xf]
  %v61 = vld [vmem:[%s1 + $0xcc] sm:$0xff]
  %v62 = vld [vmem:[%s1 + $0xd4] sm:$0xf]
  %v63 = vld [vmem:[%s1 + $0xd8] sm:$0xff]
  %v64 = vld [vmem:[%s1 + $0xe0] sm:$0xf]
  %v65 = vld [vmem:[%s1 + $0xe4] sm:$0xff]
  %v66 = vld [vmem:[%s1 + $0xec] sm:$0xf]
  %v67 = vld [vmem:[%s1 + $0xf0] sm:$0xff]
  %v68 = vld [vmem:[%s1 + $0xf8] sm:$0xf]
  %v69 = vld [vmem:[%s1 + $0xfc] sm:$0xff]
  %v70 = vld [vmem:[%s1 + $0x104] sm:$0xf]
  %v71 = vld [vmem:[%s1 + $0x108] sm:$0xff]
  %v72 = vld [vmem:[%s1 + $0x110] sm:$0xf]
  %v73 = vld [vmem:[%s1 + $0x114] sm:$0xff]
  %v74 = vld [vmem:[%s1 + $0x11c] sm:$0xf]
  %v75 = vld [vmem:[%s1 + $0x120] sm:$0xff]
  %v76 = vld [vmem:[%s1 + $0x128] sm:$0xf]
  %v77 = vld [vmem:[%s1 + $0x12c] sm:$0xff]
  %v78 = vld [vmem:[%s1 + $0x134] sm:$0xf]
  %v79 = vld [vmem:[%s1 + $0x138] sm:$0xff]
  %v80 = vld [vmem:[%s1 + $0x140] sm:$0xf]
  %v81 = vld [vmem:[%s1 + $0x144] sm:$0xff]
  %v82 = vld [vmem:[%s1 + $0x14c] sm:$0xf]
  %v83 = vld [vmem:[%s1 + $0x150] sm:$0xff]
  %v84 = vld [vmem:[%s1 + $0x158] sm:$0xf]
  %v85 = vld [vmem:[%s1 + $0x15c] sm:$0xff]
  %v86 = vld [vmem:[%s1 + $0x164] sm:$0xf]
  %v87 = vld [vmem:[%s1 + $0x168] sm:$0xff]
  %v88 = vld [vmem:[%s1 + $0x170] sm:$0xf]
  %v89 = vld [vmem:[%s1 + $0x174] sm:$0xff]
  %v90 = vld [vmem:[%s1 + $0x17c] sm:$0xf]
  %v91 = vld [vmem:[%s1 + $0x180] sm:$0xff]
  %v92 = vld [vmem:[%s1 + $0x188] sm:$0xf]
  %v93 = vld [vmem:[%s1 + $0x18c] sm:$0xff]
  %v94 = vld [vmem:[%s1 + $0x194] sm:$0xf]
  %v95 = vld [vmem:[%s1 + $0x198] sm:$0xff]
  %v96 = vld [vmem:[%s1 + $0x1a0] sm:$0xf]
  %v97 = vld [vmem:[%s1 + $0x1a4] sm:$0xff]
  %v98 = vld [vmem:[%s1 + $0x1ac] sm:$0xf]
  %v99 = vld [vmem:[%s1 + $0x1b0] sm:$0xff]
  %v100 = vld [vmem:[%s1 + $0x1b8] sm:$0xf]
  %v101 = vld [vmem:[%s1 + $0x1bc] sm:$0xff]
  %v102 = vld [vmem:[%s1 + $0x1c4] sm:$0xf]
  %v103 = vld [vmem:[%s1 + $0x1c8] sm:$0xff]
  %v104 = vld [vmem:[%s1 + $0x1d0] sm:$0xf]
  %v105 = vld [vmem:[%s1 + $0x1d4] sm:$0xff]
  %v106 = vld [vmem:[%s1 + $0x1dc] sm:$0xf]
  %v107 = vld [vmem:[%s1 + $0x1e0] sm:$0xff]
  %v108 = vld [vmem:[%s1 + $0x1e8] sm:$0xf]
  %v109 = vld [vmem:[%s1 + $0x1ec] sm:$0xff]
  %v110 = vld [vmem:[%s1 + $0x1f4] sm:$0xf]
  %v111 = vld [vmem:[%s1 + $0x1f8] sm:$0xff]
  %v112 = vld [vmem:[%s1 + $0x200] sm:$0xf]
  %v113 = vld [vmem:[%s1 + $0x204] sm:$0xff]
  %v114 = vld [vmem:[%s1 + $0x20c] sm:$0xf]
  %v115 = vld [vmem:[%s1 + $0x210] sm:$0xff]
  %v116 = vld [vmem:[%s1 + $0x218] sm:$0xf]
  %v117 = vld [vmem:[%s1 + $0x21c] sm:$0xff]
  %v118 = vld [vmem:[%s1 + $0x224] sm:$0xf]
  %v119 = vld [vmem:[%s1 + $0x228] sm:$0xff]
  %v120 = vld [vmem:[%s1 + $0x230] sm:$0xf]
  %v121 = vld [vmem:[%s1 + $0x234] sm:$0xff]
  %v122 = vld [vmem:[%s1 + $0x23c] sm:$0xf]
  %v123 = vld [vmem:[%s1 + $0x240] sm:$0xff]
  %v124 = vld [vmem:[%s1 + $0x248] sm:$0xf]
  %v125 = vld [vmem:[%s1 + $0x24c] sm:$0xff]
  %v126 = vld [vmem:[%s1 + $0x254] sm:$0xf]
  %v127 = vld [vmem:[%s1 + $0x258] sm:$0xff]
  %v128 = vld [vmem:[%s1 + $0x260] sm:$0xf]
  %v129 = vld [vmem:[%s1 + $0x264] sm:$0xff]
  %v130 = vld [vmem:[%s1 + $0x26c] sm:$0xf]
  %v131 = vld [vmem:[%s1 + $0x270] sm:$0xff]
  %v132 = vld [vmem:[%s1 + $0x278] sm:$0xf]
  %v133 = vld [vmem:[%s1 + $0x27c] sm:$0xff]
  %v134 = vld [vmem:[%s1 + $0x284] sm:$0xf]
  %v135 = vld [vmem:[%s1 + $0x288] sm:$0xff]
  %v136 = vld [vmem:[%s1 + $0x290] sm:$0xf]
  %v137 = vld [vmem:[%s1 + $0x294] sm:$0xff]
  %v138 = vld [vmem:[%s1 + $0x29c] sm:$0xf]
  %v139 = vld [vmem:[%s1 + $0x2a0] sm:$0xff]
  %v140 = vld [vmem:[%s1 + $0x2a8] sm:$0xf]
  %v141 = vld [vmem:[%s1 + $0x2ac] sm:$0xff]
  %v142 = vld [vmem:[%s1 + $0x2b4] sm:$0xf]
  %v143 = vld [vmem:[%s1 + $0x2b8] sm:$0xff]
  %v144 = vld [vmem:[%s1 + $0x2c0] sm:$0xf]
  %v145 = vld [vmem:[%s1 + $0x2c4] sm:$0xff]
  %v146 = vld [vmem:[%s1 + $0x2cc] sm:$0xf]
  %v147 = vld [vmem:[%s1 + $0x2d0] sm:$0xff]
  %v148 = vld [vmem:[%s1 + $0x2d8] sm:$0xf]
  %v149 = vld [vmem:[%s1 + $0x2dc] sm:$0xff]
  %v150 = vld [vmem:[%s1 + $0x2e4] sm:$0xf]
  %v151 = vld [vmem:[%s1 + $0x2e8] sm:$0xff]
  %v152 = vld [vmem:[%s1 + $0x2f0] sm:$0xf]
  %v153 = vld [vmem:[%s1 + $0x2f4] sm:$0xff]
  %v154 = vld [vmem:[%s1 + $0x2fc] sm:$0xf]
  %v155 = vld [vmem:[%s1 + $0x300] sm:$0xff]
  %v156 = vld [vmem:[%s1 + $0x308] sm:$0xf]
  %v157 = vld [vmem:[%s1 + $0x30c] sm:$0xff]
  %v158 = vld [vmem:[%s1 + $0x314] sm:$0xf]
  %v159 = vld [vmem:[%s1 + $0x318] sm:$0xff]
  %v160 = vld [vmem:[%s1 + $0x320] sm:$0xf]
  %v161 = vld [vmem:[%s1 + $0x324] sm:$0xff]
  %v162 = vld [vmem:[%s1 + $0x32c] sm:$0xf]
  %v163 = vld [vmem:[%s1 + $0x330] sm:$0xff]
  %v164 = vld [vmem:[%s1 + $0x338] sm:$0xf]
  %v165 = vld [vmem:[%s1 + $0x33c] sm:$0xff]
  %v166 = vld [vmem:[%s1 + $0x344] sm:$0xf]
  %v167 = vld [vmem:[%s1 + $0x348] sm:$0xff]
  %v168 = vld [vmem:[%s1 + $0x350] sm:$0xf]
  %v169 = vld [vmem:[%s1 + $0x354] sm:$0xff]
  %v170 = vld [vmem:[%s1 + $0x35c] sm:$0xf]
  %v171 = vld [vmem:[%s1 + $0x360] sm:$0xff]
  %v172 = vld [vmem:[%s1 + $0x368] sm:$0xf]
  %v173 = vld [vmem:[%s1 + $0x36c] sm:$0xff]
  %v174 = vld [vmem:[%s1 + $0x374] sm:$0xf]
  %v175 = vld [vmem:[%s1 + $0x378] sm:$0xff]
  %v176 = vld [vmem:[%s1 + $0x380] sm:$0xf]
  %v177 = vld [vmem:[%s1 + $0x384] sm:$0xff]
  %v178 = vld [vmem:[%s1 + $0x38c] sm:$0xf]
  %v179 = vld [vmem:[%s1 + $0x390] sm:$0xff]
  %v180 = vld [vmem:[%s1 + $0x398] sm:$0xf]
  %v181 = vld [vmem:[%s1 + $0x39c] sm:$0xff]
  %v182 = vld [vmem:[%s1 + $0x3a4] sm:$0xf]
  %v183 = vld [vmem:[%s1 + $0x3a8] sm:$0xff]
  %v184 = vld [vmem:[%s1 + $0x3b0] sm:$0xf]
  %v185 = vld [vmem:[%s1 + $0x3b4] sm:$0xff]
  %v186 = vld [vmem:[%s1 + $0x3bc] sm:$0xf]
  %v187 = vld [vmem:[%s1 + $0x3c0] sm:$0xff]
  %v188 = vld [vmem:[%s1 + $0x3c8] sm:$0xf]
  %v189 = vld [vmem:[%s1 + $0x3cc] sm:$0xff]
  %v190 = vld [vmem:[%s1 + $0x3d4] sm:$0xf]
  %v191 = vld [vmem:[%s1 + $0x3d8] sm:$0xff]
  %v192 = vld [vmem:[%s1 + $0x3e0] sm:$0xf]
  %v193 = vld [vmem:[%s1 + $0x3e4] sm:$0xff]
  %v194 = vld [vmem:[%s1 + $0x3ec] sm:$0xf]
  %v195 = vld [vmem:[%s1 + $0x3f0] sm:$0xff]
  %v196 = vld [vmem:[%s1 + $0x3f8] sm:$0xf]
  %v197 = vld [vmem:[%s1 + $0x3fc] sm:$0xff]
  %v198 = vld [vmem:[%s1 + $0x404] sm:$0xf]
  %v199 = vld [vmem:[%s1 + $0x408] sm:$0xff]
  %v200 = vld [vmem:[%s1 + $0x410] sm:$0xf]
  %v201 = vld [vmem:[%s1 + $0x414] sm:$0xff]
  %v202 = vld [vmem:[%s1 + $0x41c] sm:$0xf]
  %v203 = vld [vmem:[%s1 + $0x420] sm:$0xff]
  %v204 = vld [vmem:[%s1 + $0x428] sm:$0xf]
  %v205 = vld [vmem:[%s1 + $0x42c] sm:$0xff]
  %v206 = vld [vmem:[%s1 + $0x434] sm:$0xf]
  %v207 = vld [vmem:[%s1 + $0x438] sm:$0xff]
  %v208 = vld [vmem:[%s1 + $0x440] sm:$0xf]
  %v209 = vld [vmem:[%s1 + $0x444] sm:$0xff]
  %v210 = vld [vmem:[%s1 + $0x44c] sm:$0xf]
  %v211 = vld [vmem:[%s1 + $0x450] sm:$0xff]
  %v212 = vld [vmem:[%s1 + $0x458] sm:$0xf]
  %v213 = vld [vmem:[%s1 + $0x45c] sm:$0xff]
  %v214 = vld [vmem:[%s1 + $0x464] sm:$0xf]
  %v215 = vld [vmem:[%s1 + $0x468] sm:$0xff]
  %v216 = vld [vmem:[%s1 + $0x470] sm:$0xf]
  %v217 = vld [vmem:[%s1 + $0x474] sm:$0xff]
  %v218 = vld [vmem:[%s1 + $0x47c] sm:$0xf]
  %v219 = vld [vmem:[%s1 + $0x480] sm:$0xff]
  %v220 = vld [vmem:[%s1 + $0x488] sm:$0xf]
  %v221 = vld [vmem:[%s1 + $0x48c] sm:$0xff]
  %v222 = vld [vmem:[%s1 + $0x494] sm:$0xf]
  %v223 = vld [vmem:[%s1 + $0x498] sm:$0xff]
  %v224 = vld [vmem:[%s1 + $0x4a0] sm:$0xf]
  %v225 = vld [vmem:[%s1 + $0x4a4] sm:$0xff]
  %v226 = vld [vmem:[%s1 + $0x4ac] sm:$0xf]
  %v227 = vld [vmem:[%s1 + $0x4b0] sm:$0xff]
  %v228 = vld [vmem:[%s1 + $0x4b8] sm:$0xf]
  %v229 = vld [vmem:[%s1 + $0x4bc] sm:$0xff]
  %v230 = vld [vmem:[%s1 + $0x4c4] sm:$0xf]
  %v231 = vld [vmem:[%s1 + $0x4c8] sm:$0xff]
  %v232 = vld [vmem:[%s1 + $0x4d0] sm:$0xf]
  %v233 = vld [vmem:[%s1 + $0x4d4] sm:$0xff]
  %v234 = vld [vmem:[%s1 + $0x4dc] sm:$0xf]
  %v235 = vld [vmem:[%s1 + $0x4e0] sm:$0xff]
  %v236 = vld [vmem:[%s1 + $0x4e8] sm:$0xf]
  %v237 = vld [vmem:[%s1 + $0x4ec] sm:$0xff]
  %v238 = vld [vmem:[%s1 + $0x4f4] sm:$0xf]
  %v239 = vld [vmem:[%s1 + $0x4f8] sm:$0xff]
  %v240 = vld [vmem:[%s1 + $0x500] sm:$0xf]
  %v241 = vld [vmem:[%s1 + $0x504] sm:$0xff]
  %v242 = vld [vmem:[%s1 + $0x50c] sm:$0xf]
  %v243 = vld [vmem:[%s1 + $0x510] sm:$0xff]
  %v244 = vld [vmem:[%s1 + $0x518] sm:$0xf]
  %v245 = vld [vmem:[%s1 + $0x51c] sm:$0xff]
  %v246 = vld [vmem:[%s1 + $0x524] sm:$0xf]
  %v247 = vld [vmem:[%s1 + $0x528] sm:$0xff]
  %v248 = vld [vmem:[%s1 + $0x530] sm:$0xf]
  %v249 = vld [vmem:[%s1 + $0x534] sm:$0xff]
  %v250 = vld [vmem:[%s1 + $0x53c] sm:$0xf]
  %v251 = vld [vmem:[%s1 + $0x540] sm:$0xff]
  %v252 = vld [vmem:[%s1 + $0x548] sm:$0xf]
  %v253 = vld [vmem:[%s1 + $0x54c] sm:$0xff]
  %v254 = vld [vmem:[%s1 + $0x554] sm:$0xf]
  %v255 = vld [vmem:[%s1 + $0x558] sm:$0xff]
  %v256 = vld [vmem:[%s1 + $0x560] sm:$0xf]
  %v257 = vld [vmem:[%s1 + $0x564] sm:$0xff]
  %v258 = vld [vmem:[%s1 + $0x56c] sm:$0xf]
  %v259 = vld [vmem:[%s1 + $0x570] sm:$0xff]
  %v260 = vld [vmem:[%s1 + $0x578] sm:$0xf]
  %v261 = vld [vmem:[%s1 + $0x57c] sm:$0xff]
  %v262 = vld [vmem:[%s1 + $0x584] sm:$0xf]
  %v263 = vld [vmem:[%s1 + $0x588] sm:$0xff]
  %v264 = vld [vmem:[%s1 + $0x590] sm:$0xf]
  %v265 = vld [vmem:[%s1 + $0x594] sm:$0xff]
  %v266 = vld [vmem:[%s1 + $0x59c] sm:$0xf]
  %v267 = vld [vmem:[%s1 + $0x5a0] sm:$0xff]
  %v268 = vld [vmem:[%s1 + $0x5a8] sm:$0xf]
  %v269 = vld [vmem:[%s1 + $0x5ac] sm:$0xff]
  %v270 = vld [vmem:[%s1 + $0x5b4] sm:$0xf]
  %v271 = vld [vmem:[%s1 + $0x5b8] sm:$0xff]
  %v272 = vld [vmem:[%s1 + $0x5c0] sm:$0xf]
  %v273 = vld [vmem:[%s1 + $0x5c4] sm:$0xff]
  %v274 = vld [vmem:[%s1 + $0x5cc] sm:$0xf]
  %v275 = vld [vmem:[%s1 + $0x5d0] sm:$0xff]
  %v276 = vld [vmem:[%s1 + $0x5d8] sm:$0xf]
  %v277 = vld [vmem:[%s1 + $0x5dc] sm:$0xff]
  %v278 = vld [vmem:[%s1 + $0x5e4] sm:$0xf]
  %v279 = vld [vmem:[%s1 + $0x5e8] sm:$0xff]
  %v280 = vld [vmem:[%s1 + $0x5f0] sm:$0xf]
  %v281 = vld [vmem:[%s1 + $0x5f4] sm:$0xff]
  %v282 = vld [vmem:[%s1 + $0x5fc] sm:$0xf]
  %v283 = vld [vmem:[%s1 + $0x600] sm:$0xff]
  %v284 = vld [vmem:[%s1 + $0x608] sm:$0xf]
  %v285 = vld [vmem:[%s1 + $0x60c] sm:$0xff]
  %v286 = vld [vmem:[%s1 + $0x614] sm:$0xf]
  %v287 = vld [vmem:[%s1 + $0x618] sm:$0xff]
  %v288 = vld [vmem:[%s1 + $0x620] sm:$0xf]
  %v289 = vld [vmem:[%s1 + $0x624] sm:$0xff]
  %v290 = vld [vmem:[%s1 + $0x62c] sm:$0xf]
  %v291 = vld [vmem:[%s1 + $0x630] sm:$0xff]
  %v292 = vld [vmem:[%s1 + $0x638] sm:$0xf]
  %v293 = vld [vmem:[%s1 + $0x63c] sm:$0xff]
  %v294 = vld [vmem:[%s1 + $0x644] sm:$0xf]
  %v295 = vld [vmem:[%s1 + $0x648] sm:$0xff]
  %v296 = vld [vmem:[%s1 + $0x650] sm:$0xf]
  %v297 = vld [vmem:[%s1 + $0x654] sm:$0xff]
  %v298 = vld [vmem:[%s1 + $0x65c] sm:$0xf]
  %v299 = vld [vmem:[%s1 + $0x660] sm:$0xff]
  %v300 = vld [vmem:[%s1 + $0x668] sm:$0xf]
  %v301 = vld [vmem:[%s1 + $0x66c] sm:$0xff]
  %v302 = vld [vmem:[%s1 + $0x674] sm:$0xf]
  %v303 = vld [vmem:[%s1 + $0x678] sm:$0xff]
  %v304 = vld [vmem:[%s1 + $0x680] sm:$0xf]
  %v305 = vld [vmem:[%s1 + $0x684] sm:$0xff]
  %v306 = vld [vmem:[%s1 + $0x68c] sm:$0xf]
  %v307 = vld [vmem:[%s1 + $0x690] sm:$0xff]
  %v308 = vld [vmem:[%s1 + $0x698] sm:$0xf]
  %v309 = vld [vmem:[%s1 + $0x69c] sm:$0xff]
  %v310 = vld [vmem:[%s1 + $0x6a4] sm:$0xf]
  %v311 = vld [vmem:[%s1 + $0x6a8] sm:$0xff]
  %v312 = vld [vmem:[%s1 + $0x6b0] sm:$0xf]
  %v313 = vld [vmem:[%s1 + $0x6b4] sm:$0xff]
  %v314 = vld [vmem:[%s1 + $0x6bc] sm:$0xf]
  %v315 = vld [vmem:[%s1 + $0x6c0] sm:$0xff]
  %v316 = vld [vmem:[%s1 + $0x6c8] sm:$0xf]
  %v317 = vld [vmem:[%s1 + $0x6cc] sm:$0xff]
  %v318 = vld [vmem:[%s1 + $0x6d4] sm:$0xf]
  %v319 = vld [vmem:[%s1 + $0x6d8] sm:$0xff]
  %v320 = vld [vmem:[%s1 + $0x6e0] sm:$0xf]
  %v321 = vld [vmem:[%s1 + $0x6e4] sm:$0xff]
  %v322 = vld [vmem:[%s1 + $0x6ec] sm:$0xf]
  %v323 = vld [vmem:[%s1 + $0x6f0] sm:$0xff]
  %v324 = vld [vmem:[%s1 + $0x6f8] sm:$0xf]
  %v325 = vld [vmem:[%s1 + $0x6fc] sm:$0xff]
  %v326 = vld [vmem:[%s1 + $0x704] sm:$0xf]
  %v327 = vld [vmem:[%s1 + $0x708] sm:$0xff]
  %v328 = vld [vmem:[%s1 + $0x710] sm:$0xf]
  %v329 = vld [vmem:[%s1 + $0x714] sm:$0xff]
  %v330 = vld [vmem:[%s1 + $0x71c] sm:$0xf]
  %v331 = vld [vmem:[%s1 + $0x720] sm:$0xff]
  %v332 = vld [vmem:[%s1 + $0x728] sm:$0xf]
  %v333 = vld [vmem:[%s1 + $0x72c] sm:$0xff]
  %v334 = vld [vmem:[%s1 + $0x734] sm:$0xf]
  %v335 = vld [vmem:[%s1 + $0x738] sm:$0xff]
  %v336 = vld [vmem:[%s1 + $0x740] sm:$0xf]
  %v337 = vld [vmem:[%s1 + $0x744] sm:$0xff]
  %v338 = vld [vmem:[%s1 + $0x74c] sm:$0xf]
  %v339 = vld [vmem:[%s1 + $0x750] sm:$0xff]
  %v340 = vld [vmem:[%s1 + $0x758] sm:$0xf]
  %v341 = vld [vmem:[%s1 + $0x75c] sm:$0xff]
  %v342 = vld [vmem:[%s1 + $0x764] sm:$0xf]
  %v343 = vld [vmem:[%s1 + $0x768] sm:$0xff]
  %v344 = vld [vmem:[%s1 + $0x770] sm:$0xf]
  %v345 = vld [vmem:[%s1 + $0x774] sm:$0xff]
  %v346 = vld [vmem:[%s1 + $0x77c] sm:$0xf]
  %v347 = vld [vmem:[%s1 + $0x780] sm:$0xff]
  %v348 = vld [vmem:[%s1 + $0x788] sm:$0xf]
  %v349 = vld [vmem:[%s1 + $0x78c] sm:$0xff]
  %v350 = vld [vmem:[%s1 + $0x794] sm:$0xf]
  %v351 = vld [vmem:[%s1 + $0x798] sm:$0xff]
  %v352 = vld [vmem:[%s1 + $0x7a0] sm:$0xf]
  %v353 = vld [vmem:[%s1 + $0x7a4] sm:$0xff]
  %v354 = vld [vmem:[%s1 + $0x7ac] sm:$0xf]
  %v355 = vld [vmem:[%s1 + $0x7b0] sm:$0xff]
  %v356 = vld [vmem:[%s1 + $0x7b8] sm:$0xf]
  %v357 = vld [vmem:[%s1 + $0x7bc] sm:$0xff]
  %v358 = vld [vmem:[%s1 + $0x7c4] sm:$0xf]
  %v359 = vld [vmem:[%s1 + $0x7c8] sm:$0xff]
  %v360 = vld [vmem:[%s1 + $0x7d0] sm:$0xf]
  %v361 = vld [vmem:[%s1 + $0x7d4] sm:$0xff]
  %v362 = vld [vmem:[%s1 + $0x7dc] sm:$0xf]
  %v363 = vld [vmem:[%s1 + $0x7e0] sm:$0xff]
  %v364 = vld [vmem:[%s1 + $0x7e8] sm:$0xf]
  %v365 = vld [vmem:[%s1 + $0x7ec] sm:$0xff]
  %v366 = vld [vmem:[%s1 + $0x7f4] sm:$0xf]
  %v367 = vld [vmem:[%s1 + $0x7f8] sm:$0xff]
  %v368 = vld [vmem:[%s1 + $0x800] sm:$0xf]
  %v369 = vld [vmem:[%s1 + $0x804] sm:$0xff]
  %v370 = vld [vmem:[%s1 + $0x80c] sm:$0xf]
  %v371 = vld [vmem:[%s1 + $0x810] sm:$0xff]
  %v372 = vld [vmem:[%s1 + $0x818] sm:$0xf]
  %v373 = vld [vmem:[%s1 + $0x81c] sm:$0xff]
  %v374 = vld [vmem:[%s1 + $0x824] sm:$0xf]
  %v375 = vld [vmem:[%s1 + $0x828] sm:$0xff]
  %v376 = vld [vmem:[%s1 + $0x830] sm:$0xf]
  %v377 = vld [vmem:[%s1 + $0x834] sm:$0xff]
  %v378 = vld [vmem:[%s1 + $0x83c] sm:$0xf]
  %v379 = vld [vmem:[%s1 + $0x840] sm:$0xff]
  %v380 = vld [vmem:[%s1 + $0x848] sm:$0xf]
  %v381 = vld [vmem:[%s1 + $0x84c] sm:$0xff]
  %v382 = vld [vmem:[%s1 + $0x854] sm:$0xf]
  %v383 = vld [vmem:[%s1 + $0x858] sm:$0xff]
  %v384 = vld [vmem:[%s1 + $0x860] sm:$0xf]
  %v385 = vld [vmem:[%s1 + $0x864] sm:$0xff]
  %v386 = vld [vmem:[%s1 + $0x86c] sm:$0xf]
  %v387 = vld [vmem:[%s1 + $0x870] sm:$0xff]
  %v388 = vld [vmem:[%s1 + $0x878] sm:$0xf]
  %v389 = vld [vmem:[%s1 + $0x87c] sm:$0xff]
  %v390 = vld [vmem:[%s1 + $0x884] sm:$0xf]
  %v391 = vld [vmem:[%s1 + $0x888] sm:$0xff]
  %v392 = vld [vmem:[%s1 + $0x890] sm:$0xf]
  %v393 = vld [vmem:[%s1 + $0x894] sm:$0xff]
  %v394 = vld [vmem:[%s1 + $0x89c] sm:$0xf]
  %v395 = vld [vmem:[%s1 + $0x8a0] sm:$0xff]
  %v396 = vld [vmem:[%s1 + $0x8a8] sm:$0xf]
  %v397 = vld [vmem:[%s1 + $0x8ac] sm:$0xff]
  %v398 = vld [vmem:[%s1 + $0x8b4] sm:$0xf]
  %v399 = vld [vmem:[%s1 + $0x8b8] sm:$0xff]
  %v400 = vld [vmem:[%s1 + $0x8c0] sm:$0xf]
  %v401 = vld [vmem:[%s1 + $0x8c4] sm:$0xff]
  %v402 = vld [vmem:[%s1 + $0x8cc] sm:$0xf]
  %v403 = vld [vmem:[%s1 + $0x8d0] sm:$0xff]
  %v404 = vld [vmem:[%s1 + $0x8d8] sm:$0xf]
  %v405 = vld [vmem:[%s1 + $0x8dc] sm:$0xff]
  %v406 = vld [vmem:[%s1 + $0x8e4] sm:$0xf]
  %v407 = vld [vmem:[%s1 + $0x8e8] sm:$0xff]
  %v408 = vld [vmem:[%s1 + $0x8f0] sm:$0xf]
  %v409 = vld [vmem:[%s1 + $0x8f4] sm:$0xff]
  %v410 = vld [vmem:[%s1 + $0x8fc] sm:$0xf]
  %v411 = vld [vmem:[%s1 + $0x900] sm:$0xff]
  %v412 = vld [vmem:[%s1 + $0x908] sm:$0xf]
  %v413 = vld [vmem:[%s1 + $0x90c] sm:$0xff]
  %v414 = vld [vmem:[%s1 + $0x914] sm:$0xf]
  %v415 = vld [vmem:[%s1 + $0x918] sm:$0xff]
  %v416 = vld [vmem:[%s1 + $0x920] sm:$0xf]
  %v417 = vld [vmem:[%s1 + $0x924] sm:$0xff]
  %v418 = vld [vmem:[%s1 + $0x92c] sm:$0xf]
  %v419 = vld [vmem:[%s1 + $0x930] sm:$0xff]
  %v420 = vld [vmem:[%s1 + $0x938] sm:$0xf]
  %v421 = vld [vmem:[%s1 + $0x93c] sm:$0xff]
  %v422 = vld [vmem:[%s1 + $0x944] sm:$0xf]
  %v423 = vld [vmem:[%s1 + $0x948] sm:$0xff]
  %v424 = vld [vmem:[%s1 + $0x950] sm:$0xf]
  %v425 = vld [vmem:[%s1 + $0x954] sm:$0xff]
  %v426 = vld [vmem:[%s1 + $0x95c] sm:$0xf]
  %v427 = vld [vmem:[%s1 + $0x960] sm:$0xff]
  %v428 = vld [vmem:[%s1 + $0x968] sm:$0xf]
  %v429 = vld [vmem:[%s1 + $0x96c] sm:$0xff]
  %v430 = vld [vmem:[%s1 + $0x974] sm:$0xf]
  %v431 = vld [vmem:[%s1 + $0x978] sm:$0xff]
  %v432 = vld [vmem:[%s1 + $0x980] sm:$0xf]
  %v433 = vld [vmem:[%s1 + $0x984] sm:$0xff]
  %v434 = vld [vmem:[%s1 + $0x98c] sm:$0xf]
  %v435 = vld [vmem:[%s1 + $0x990] sm:$0xff]
  %v436 = vld [vmem:[%s1 + $0x998] sm:$0xf]
  %v437 = vld [vmem:[%s1 + $0x99c] sm:$0xff]
  %v438 = vld [vmem:[%s1 + $0x9a4] sm:$0xf]
  %v439 = vld [vmem:[%s1 + $0x9a8] sm:$0xff]
  %v440 = vld [vmem:[%s1 + $0x9b0] sm:$0xf]
  %v441 = vld [vmem:[%s1 + $0x9b4] sm:$0xff]
  %v442 = vld [vmem:[%s1 + $0x9bc] sm:$0xf]
  %v443 = vld [vmem:[%s1 + $0x9c0] sm:$0xff]
  %v444 = vld [vmem:[%s1 + $0x9c8] sm:$0xf]
  %v445 = vld [vmem:[%s1 + $0x9cc] sm:$0xff]
  %v446 = vld [vmem:[%s1 + $0x9d4] sm:$0xf]
  %v447 = vld [vmem:[%s1 + $0x9d8] sm:$0xff]
  %v448 = vld [vmem:[%s1 + $0x9e0] sm:$0xf]
  %v449 = vld [vmem:[%s1 + $0x9e4] sm:$0xff]
  %v450 = vld [vmem:[%s1 + $0x9ec] sm:$0xf]
  %v451 = vld [vmem:[%s1 + $0x9f0] sm:$0xff]
  %v452 = vld [vmem:[%s1 + $0x9f8] sm:$0xf]
  %v453 = vld [vmem:[%s1 + $0x9fc] sm:$0xff]
  %v454 = vld [vmem:[%s1 + $0xa04] sm:$0xf]
  %v455 = vld [vmem:[%s1 + $0xa08] sm:$0xff]
  %v456 = vld [vmem:[%s1 + $0xa10] sm:$0xf]
  %v457 = vld [vmem:[%s1 + $0xa14] sm:$0xff]
  %v458 = vld [vmem:[%s1 + $0xa1c] sm:$0xf]
  %v459 = vld [vmem:[%s1 + $0xa20] sm:$0xff]
  %v460 = vld [vmem:[%s1 + $0xa28] sm:$0xf]
  %v461 = vld [vmem:[%s1 + $0xa2c] sm:$0xff]
  %v462 = vld [vmem:[%s1 + $0xa34] sm:$0xf]
  %v463 = vld [vmem:[%s1 + $0xa38] sm:$0xff]
  %v464 = vld [vmem:[%s1 + $0xa40] sm:$0xf]
  %v465 = vld [vmem:[%s1 + $0xa44] sm:$0xff]
  %v466 = vld [vmem:[%s1 + $0xa4c] sm:$0xf]
  %v467 = vld [vmem:[%s1 + $0xa50] sm:$0xff]
  %v468 = vld [vmem:[%s1 + $0xa58] sm:$0xf]
  %v469 = vld [vmem:[%s1 + $0xa5c] sm:$0xff]
  %v470 = vld [vmem:[%s1 + $0xa64] sm:$0xf]
  %v471 = vld [vmem:[%s1 + $0xa68] sm:$0xff]
  %v472 = vld [vmem:[%s1 + $0xa70] sm:$0xf]
  %v473 = vld [vmem:[%s1 + $0xa74] sm:$0xff]
  %v474 = vld [vmem:[%s1 + $0xa7c] sm:$0xf]
  %v475 = vld [vmem:[%s1 + $0xa80] sm:$0xff]
  %v476 = vld [vmem:[%s1 + $0xa88] sm:$0xf]
  %v477 = vld [vmem:[%s1 + $0xa8c] sm:$0xff]
  %v478 = vld [vmem:[%s1 + $0xa94] sm:$0xf]
  %v479 = vld [vmem:[%s1 + $0xa98] sm:$0xff]
  %v480 = vld [vmem:[%s1 + $0xaa0] sm:$0xf]
  %v481 = vld [vmem:[%s1 + $0xaa4] sm:$0xff]
  %v482 = vld [vmem:[%s1 + $0xaac] sm:$0xf]
  %v483 = vld [vmem:[%s1 + $0xab0] sm:$0xff]
  %v484 = vld [vmem:[%s1 + $0xab8] sm:$0xf]
  %v485 = vld [vmem:[%s1 + $0xabc] sm:$0xff]
  %v486 = vld [vmem:[%s1 + $0xac4] sm:$0xf]
  %v487 = vld [vmem:[%s1 + $0xac8] sm:$0xff]
  %v488 = vld [vmem:[%s1 + $0xad0] sm:$0xf]
  %v489 = vld [vmem:[%s1 + $0xad4] sm:$0xff]
  %v490 = vld [vmem:[%s1 + $0xadc] sm:$0xf]
  %v491 = vld [vmem:[%s1 + $0xae0] sm:$0xff]
  %v492 = vld [vmem:[%s1 + $0xae8] sm:$0xf]
  %v493 = vld [vmem:[%s1 + $0xaec] sm:$0xff]
  %v494 = vld [vmem:[%s1 + $0xaf4] sm:$0xf]
  %v495 = vld [vmem:[%s1 + $0xaf8] sm:$0xff]
  %v496 = vld [vmem:[%s1 + $0xb00] sm:$0xf]
  %v497 = vld [vmem:[%s1 + $0xb04] sm:$0xff]
  %v498 = vld [vmem:[%s1 + $0xb0c] sm:$0xf]
  %v499 = vld [vmem:[%s1 + $0xb10] sm:$0xff]
  %v500 = vld [vmem:[%s1 + $0xb18] sm:$0xf]
  %v501 = vld [vmem:[%s1 + $0xb1c] sm:$0xff]
  %v502 = vld [vmem:[%s1 + $0xb24] sm:$0xf]
  %v503 = vld [vmem:[%s1 + $0xb28] sm:$0xff]
  %v504 = vld [vmem:[%s1 + $0xb30] sm:$0xf]
  %v505 = vld [vmem:[%s1 + $0xb34] sm:$0xff]
  %v506 = vld [vmem:[%s1 + $0xb3c] sm:$0xf]
  %v507 = vld [vmem:[%s1 + $0xb40] sm:$0xff]
  %v508 = vld [vmem:[%s1 + $0xb48] sm:$0xf]
  %v509 = vld [vmem:[%s1 + $0xb4c] sm:$0xff]
  %v510 = vld [vmem:[%s1 + $0xb54] sm:$0xf]
  %v511 = vld [vmem:[%s1 + $0xb58] sm:$0xff]
  %v512 = vld [vmem:[%s1 + $0xb60] sm:$0xf]
  %v513 = vld [vmem:[%s1 + $0xb64] sm:$0xff]
  %v514 = vld [vmem:[%s1 + $0xb6c] sm:$0xf]
  %v515 = vld [vmem:[%s1 + $0xb70] sm:$0xff]
  %v516 = vld [vmem:[%s1 + $0xb78] sm:$0xf]
  %v517 = vld [vmem:[%s1 + $0xb7c] sm:$0xff]
  %v518 = vld [vmem:[%s1 + $0xb84] sm:$0xf]
  %v519 = vld [vmem:[%s1 + $0xb88] sm:$0xff]
  %v520 = vld [vmem:[%s1 + $0xb90] sm:$0xf]
  %v521 = vld [vmem:[%s1 + $0xb94] sm:$0xff]
  %v522 = vld [vmem:[%s1 + $0xb9c] sm:$0xf]
  %v523 = vld [vmem:[%s1 + $0xba0] sm:$0xff]
  %v524 = vld [vmem:[%s1 + $0xba8] sm:$0xf]
  %v525 = vld [vmem:[%s1 + $0xbac] sm:$0xff]
  %v526 = vld [vmem:[%s1 + $0xbb4] sm:$0xf]
  %v527 = vld [vmem:[%s1 + $0xbb8] sm:$0xff]
  %v528 = vld [vmem:[%s1 + $0xbc0] sm:$0xf]
  %v529 = vld [vmem:[%s1 + $0xbc4] sm:$0xff]
  %v530 = vld [vmem:[%s1 + $0xbcc] sm:$0xf]
  %v531 = vld [vmem:[%s1 + $0xbd0] sm:$0xff]
  %v532 = vld [vmem:[%s1 + $0xbd8] sm:$0xf]
  %v533 = vld [vmem:[%s1 + $0xbdc] sm:$0xff]
  %v534 = vld [vmem:[%s1 + $0xbe4] sm:$0xf]
  %v535 = vld [vmem:[%s1 + $0xbe8] sm:$0xff]
  %v536 = vld [vmem:[%s1 + $0xbf0] sm:$0xf]
  %v537 = vld [vmem:[%s1 + $0xbf4] sm:$0xff]
  %v538 = vld [vmem:[%s1 + $0xbfc] sm:$0xf]
  %v539 = vld [vmem:[%s1 + $0xc00] sm:$0xff]
  %v540 = vld [vmem:[%s1 + $0xc08] sm:$0xf]
  %v541 = vld [vmem:[%s1 + $0xc0c] sm:$0xff]
  %v542 = vld [vmem:[%s1 + $0xc14] sm:$0xf]
  %v543 = vld [vmem:[%s1 + $0xc18] sm:$0xff]
  %v544 = vld [vmem:[%s1 + $0xc20] sm:$0xf]
  %v545 = vld [vmem:[%s1 + $0xc24] sm:$0xff]
  %v546 = vld [vmem:[%s1 + $0xc2c] sm:$0xf]
  %v547 = vld [vmem:[%s1 + $0xc30] sm:$0xff]
  %v548 = vld [vmem:[%s1 + $0xc38] sm:$0xf]
  %v549 = vld [vmem:[%s1 + $0xc3c] sm:$0xff]
  %v550 = vld [vmem:[%s1 + $0xc44] sm:$0xf]
  %v551 = vld [vmem:[%s1 + $0xc48] sm:$0xff]
  %v552 = vld [vmem:[%s1 + $0xc50] sm:$0xf]
  %v553 = vld [vmem:[%s1 + $0xc54] sm:$0xff]
  %v554 = vld [vmem:[%s1 + $0xc5c] sm:$0xf]
  %v555 = vld [vmem:[%s1 + $0xc60] sm:$0xff]
  %v556 = vld [vmem:[%s1 + $0xc68] sm:$0xf]
  %v557 = vld [vmem:[%s1 + $0xc6c] sm:$0xff]
  %v558 = vld [vmem:[%s1 + $0xc74] sm:$0xf]
  %v559 = vld [vmem:[%s1 + $0xc78] sm:$0xff]
  %v560 = vld [vmem:[%s1 + $0xc80] sm:$0xf]
  %v561 = vld [vmem:[%s1 + $0xc84] sm:$0xff]
  %v562 = vld [vmem:[%s1 + $0xc8c] sm:$0xf]
  %v563 = vld [vmem:[%s1 + $0xc90] sm:$0xff]
  %v564 = vld [vmem:[%s1 + $0xc98] sm:$0xf]
  %v565 = vld [vmem:[%s1 + $0xc9c] sm:$0xff]
  %v566 = vld [vmem:[%s1 + $0xca4] sm:$0xf]
  %v567 = vld [vmem:[%s1 + $0xca8] sm:$0xff]
  %v568 = vld [vmem:[%s1 + $0xcb0] sm:$0xf]
  %v569 = vld [vmem:[%s1 + $0xcb4] sm:$0xff]
  %v570 = vld [vmem:[%s1 + $0xcbc] sm:$0xf]
  %v571 = vld [vmem:[%s1 + $0xcc0] sm:$0xff]
  %v572 = vld [vmem:[%s1 + $0xcc8] sm:$0xf]
  %v573 = vld [vmem:[%s1 + $0xccc] sm:$0xff]
  %v574 = vld [vmem:[%s1 + $0xcd4] sm:$0xf]
  %v575 = vld [vmem:[%s1 + $0xcd8] sm:$0xff]
  %v576 = vld [vmem:[%s1 + $0xce0] sm:$0xf]
  %v577 = vld [vmem:[%s1 + $0xce4] sm:$0xff]
  %v578 = vld [vmem:[%s1 + $0xcec] sm:$0xf]
  %v579 = vld [vmem:[%s1 + $0xcf0] sm:$0xff]
  %v580 = vld [vmem:[%s1 + $0xcf8] sm:$0xf]
  %v581 = vld [vmem:[%s1 + $0xcfc] sm:$0xff]
  %v582 = vld [vmem:[%s1 + $0xd04] sm:$0xf]
  %v583 = vld [vmem:[%s1 + $0xd08] sm:$0xff]
  %v584 = vld [vmem:[%s1 + $0xd10] sm:$0xf]
  %v585 = vld [vmem:[%s1 + $0xd14] sm:$0xff]
  %v586 = vld [vmem:[%s1 + $0xd1c] sm:$0xf]
  %v587 = vld [vmem:[%s1 + $0xd20] sm:$0xff]
  %v588 = vld [vmem:[%s1 + $0xd28] sm:$0xf]
  %v589 = vld [vmem:[%s1 + $0xd2c] sm:$0xff]
  %v590 = vld [vmem:[%s1 + $0xd34] sm:$0xf]
  %v591 = vld [vmem:[%s1 + $0xd38] sm:$0xff]
  %v592 = vld [vmem:[%s1 + $0xd40] sm:$0xf]
  %v593 = vld [vmem:[%s1 + $0xd44] sm:$0xff]
  %v594 = vld [vmem:[%s1 + $0xd4c] sm:$0xf]
  %v595 = vld [vmem:[%s1 + $0xd50] sm:$0xff]
  %v596 = vld [vmem:[%s1 + $0xd58] sm:$0xf]
  %v597 = vld [vmem:[%s1 + $0xd5c] sm:$0xff]
  %v598 = vld [vmem:[%s1 + $0xd64] sm:$0xf]
  %v599 = vld [vmem:[%s1 + $0xd68] sm:$0xff]
  %v600 = vld [vmem:[%s1 + $0xd70] sm:$0xf]
  %v601 = vld [vmem:[%s1 + $0xd74] sm:$0xff]
  %v602 = vld [vmem:[%s1 + $0xd7c] sm:$0xf]
  %v603 = vld [vmem:[%s1 + $0xd80] sm:$0xff]
  %v604 = vld [vmem:[%s1 + $0xd88] sm:$0xf]
  %v605 = vld [vmem:[%s1 + $0xd8c] sm:$0xff]
  %v606 = vld [vmem:[%s1 + $0xd94] sm:$0xf]
  %v607 = vld [vmem:[%s1 + $0xd98] sm:$0xff]
  %v608 = vld [vmem:[%s1 + $0xda0] sm:$0xf]
  %v609 = vld [vmem:[%s1 + $0xda4] sm:$0xff]
  %v610 = vld [vmem:[%s1 + $0xdac] sm:$0xf]
  %v611 = vld [vmem:[%s1 + $0xdb0] sm:$0xff]
  %v612 = vld [vmem:[%s1 + $0xdb8] sm:$0xf]
  %v613 = vld [vmem:[%s1 + $0xdbc] sm:$0xff]
  %v614 = vld [vmem:[%s1 + $0xdc4] sm:$0xf]
  %v615 = vld [vmem:[%s1 + $0xdc8] sm:$0xff]
  %v616 = vld [vmem:[%s1 + $0xdd0] sm:$0xf]
  %v617 = vld [vmem:[%s1 + $0xdd4] sm:$0xff]
  %v618 = vld [vmem:[%s1 + $0xddc] sm:$0xf]
  %v619 = vld [vmem:[%s1 + $0xde0] sm:$0xff]
  %v620 = vld [vmem:[%s1 + $0xde8] sm:$0xf]
  %v621 = vld [vmem:[%s1 + $0xdec] sm:$0xff]
  %v622 = vld [vmem:[%s1 + $0xdf4] sm:$0xf]
  %v623 = vld [vmem:[%s1 + $0xdf8] sm:$0xff]
  %v624 = vld [vmem:[%s1 + $0xe00] sm:$0xf]
  %v625 = vld [vmem:[%s1 + $0xe04] sm:$0xff]
  %v626 = vld [vmem:[%s1 + $0xe0c] sm:$0xf]
  %v627 = vld [vmem:[%s1 + $0xe10] sm:$0xff]
  %v628 = vld [vmem:[%s1 + $0xe18] sm:$0xf]
  %v629 = vld [vmem:[%s1 + $0xe1c] sm:$0xff]
  %v630 = vld [vmem:[%s1 + $0xe24] sm:$0xf]
  %v631 = vld [vmem:[%s1 + $0xe28] sm:$0xff]
  %v632 = vld [vmem:[%s1 + $0xe30] sm:$0xf]
  %v633 = vld [vmem:[%s1 + $0xe34] sm:$0xff]
  %v634 = vld [vmem:[%s1 + $0xe3c] sm:$0xf]
  %v635 = vld [vmem:[%s1 + $0xe40] sm:$0xff]
  %v636 = vld [vmem:[%s1 + $0xe48] sm:$0xf]
  %v637 = vld [vmem:[%s1 + $0xe4c] sm:$0xff]
  %v638 = vld [vmem:[%s1 + $0xe54] sm:$0xf]
  %v639 = vld [vmem:[%s1 + $0xe58] sm:$0xff]
  %v640 = vld [vmem:[%s1 + $0xe60] sm:$0xf]
  %v641 = vld [vmem:[%s1 + $0xe64] sm:$0xff]
  %v642 = vld [vmem:[%s1 + $0xe6c] sm:$0xf]
  %v643 = vld [vmem:[%s1 + $0xe70] sm:$0xff]
  %v644 = vld [vmem:[%s1 + $0xe78] sm:$0xf]
  %v645 = vld [vmem:[%s1 + $0xe7c] sm:$0xff]
  %v646 = vld [vmem:[%s1 + $0xe84] sm:$0xf]
  %v647 = vld [vmem:[%s1 + $0xe88] sm:$0xff]
  %v648 = vld [vmem:[%s1 + $0xe90] sm:$0xf]
  %v649 = vld [vmem:[%s1 + $0xe94] sm:$0xff]
  %v650 = vld [vmem:[%s1 + $0xe9c] sm:$0xf]
  %v651 = vld [vmem:[%s1 + $0xea0] sm:$0xff]
  %v652 = vld [vmem:[%s1 + $0xea8] sm:$0xf]
  %v653 = vld [vmem:[%s1 + $0xeac] sm:$0xff]
  %v654 = vld [vmem:[%s1 + $0xeb4] sm:$0xf]
  %v655 = vld [vmem:[%s1 + $0xeb8] sm:$0xff]
  %v656 = vld [vmem:[%s1 + $0xec0] sm:$0xf]
  %v657 = vld [vmem:[%s1 + $0xec4] sm:$0xff]
  %v658 = vld [vmem:[%s1 + $0xecc] sm:$0xf]
  %v659 = vld [vmem:[%s1 + $0xed0] sm:$0xff]
  %v660 = vld [vmem:[%s1 + $0xed8] sm:$0xf]
  %v661 = vld [vmem:[%s1 + $0xedc] sm:$0xff]
  %v662 = vld [vmem:[%s1 + $0xee4] sm:$0xf]
  %v663 = vld [vmem:[%s1 + $0xee8] sm:$0xff]
  %v664 = vld [vmem:[%s1 + $0xef0] sm:$0xf]
  %v665 = vld [vmem:[%s1 + $0xef4] sm:$0xff]
  %v666 = vld [vmem:[%s1 + $0xefc] sm:$0xf]
  %v667 = vld [vmem:[%s1 + $0xf00] sm:$0xff]
  %v668 = vld [vmem:[%s1 + $0xf08] sm:$0xf]
  %v669 = vld [vmem:[%s1 + $0xf0c] sm:$0xff]
  %v670 = vld [vmem:[%s1 + $0xf14] sm:$0xf]
  %v671 = vld [vmem:[%s1 + $0xf18] sm:$0xff]
  %v672 = vld [vmem:[%s1 + $0xf20] sm:$0xf]
  %v673 = vld [vmem:[%s1 + $0xf24] sm:$0xff]
  %v674 = vld [vmem:[%s1 + $0xf2c] sm:$0xf]
  %v675 = vld [vmem:[%s1 + $0xf30] sm:$0xff]
  %v676 = vld [vmem:[%s1 + $0xf38] sm:$0xf]
  %v677 = vld [vmem:[%s1 + $0xf3c] sm:$0xff]
  %v678 = vld [vmem:[%s1 + $0xf44] sm:$0xf]
  %v679 = vld [vmem:[%s1 + $0xf48] sm:$0xff]
  %v680 = vld [vmem:[%s1 + $0xf50] sm:$0xf]
  %v681 = vld [vmem:[%s1 + $0xf54] sm:$0xff]
  %v682 = vld [vmem:[%s1 + $0xf5c] sm:$0xf]
  %v683 = vld [vmem:[%s1 + $0xf60] sm:$0xff]
  %v684 = vld [vmem:[%s1 + $0xf68] sm:$0xf]
  %v685 = vld [vmem:[%s1 + $0xf6c] sm:$0xff]
  %v686 = vld [vmem:[%s1 + $0xf74] sm:$0xf]
  %v687 = vld [vmem:[%s1 + $0xf78] sm:$0xff]
  %v688 = vld [vmem:[%s1 + $0xf80] sm:$0xf]
  %v689 = vld [vmem:[%s1 + $0xf84] sm:$0xff]
  %v690 = vld [vmem:[%s1 + $0xf8c] sm:$0xf]
  %v691 = vld [vmem:[%s1 + $0xf90] sm:$0xff]
  %v692 = vld [vmem:[%s1 + $0xf98] sm:$0xf]
  %v693 = vld [vmem:[%s1 + $0xf9c] sm:$0xff]
  %v694 = vld [vmem:[%s1 + $0xfa4] sm:$0xf]
  %v695 = vld [vmem:[%s1 + $0xfa8] sm:$0xff]
  %v696 = vld [vmem:[%s1 + $0xfb0] sm:$0xf]
  %v697 = vld [vmem:[%s1 + $0xfb4] sm:$0xff]
  %v698 = vld [vmem:[%s1 + $0xfbc] sm:$0xf]
  %v699 = vld [vmem:[%s1 + $0xfc0] sm:$0xff]
  %v700 = vld [vmem:[%s1 + $0xfc8] sm:$0xf]
  %v701 = vld [vmem:[%s1 + $0xfcc] sm:$0xff]
  %v702 = vld [vmem:[%s1 + $0xfd4] sm:$0xf]
  %v703 = vld [vmem:[%s1 + $0xfd8] sm:$0xff]
  %v704 = vld [vmem:[%s1 + $0xfe0] sm:$0xf]
  %v705 = vld [vmem:[%s1 + $0xfe4] sm:$0xff]
  %v706 = vld [vmem:[%s1 + $0xfec] sm:$0xf]
  %v707 = vld [vmem:[%s1 + $0xff0] sm:$0xff]
  %v708 = vld [vmem:[%s1 + $0xff8] sm:$0xf]
  %v709 = vld [vmem:[%s1 + $0xffc] sm:$0xff]
  %v710 = vld [vmem:[%s1 + $0x1004] sm:$0xf]
  %v711 = vld [vmem:[%s1 + $0x1008] sm:$0xff]
  %v712 = vld [vmem:[%s1 + $0x1010] sm:$0xf]
  %v713 = vld [vmem:[%s1 + $0x1014] sm:$0xff]
  %v714 = vld [vmem:[%s1 + $0x101c] sm:$0xf]
  %v715 = vld [vmem:[%s1 + $0x1020] sm:$0xff]
  %v716 = vld [vmem:[%s1 + $0x1028] sm:$0xf]
  %v717 = vld [vmem:[%s1 + $0x102c] sm:$0xff]
  %v718 = vld [vmem:[%s1 + $0x1034] sm:$0xf]
  %v719 = vld [vmem:[%s1 + $0x1038] sm:$0xff]
  %v720 = vld [vmem:[%s1 + $0x1040] sm:$0xf]
  %v721 = vld [vmem:[%s1 + $0x1044] sm:$0xff]
  %v722 = vld [vmem:[%s1 + $0x104c] sm:$0xf]
  %v723 = vld [vmem:[%s1 + $0x1050] sm:$0xff]
  %v724 = vld [vmem:[%s1 + $0x1058] sm:$0xf]
  %v725 = vld [vmem:[%s1 + $0x105c] sm:$0xff]
  %v726 = vld [vmem:[%s1 + $0x1064] sm:$0xf]
  %v727 = vld [vmem:[%s1 + $0x1068] sm:$0xff]
  %v728 = vld [vmem:[%s1 + $0x1070] sm:$0xf]
  %v729 = vld [vmem:[%s1 + $0x1074] sm:$0xff]
  %v730 = vld [vmem:[%s1 + $0x107c] sm:$0xf]
  %v731 = vld [vmem:[%s1 + $0x1080] sm:$0xff]
  %v732 = vld [vmem:[%s1 + $0x1088] sm:$0xf]
  %v733 = vld [vmem:[%s1 + $0x108c] sm:$0xff]
  %v734 = vld [vmem:[%s1 + $0x1094] sm:$0xf]
  %v735 = vld [vmem:[%s1 + $0x1098] sm:$0xff]
  %v736 = vld [vmem:[%s1 + $0x10a0] sm:$0xf]
  %v737 = vld [vmem:[%s1 + $0x10a4] sm:$0xff]
  %v738 = vld [vmem:[%s1 + $0x10ac] sm:$0xf]
  %v739 = vld [vmem:[%s1 + $0x10b0] sm:$0xff]
  %v740 = vld [vmem:[%s1 + $0x10b8] sm:$0xf]
  %v741 = vld [vmem:[%s1 + $0x10bc] sm:$0xff]
  %v742 = vld [vmem:[%s1 + $0x10c4] sm:$0xf]
  %v743 = vld [vmem:[%s1 + $0x10c8] sm:$0xff]
  %v744 = vld [vmem:[%s1 + $0x10d0] sm:$0xf]
  %v745 = vld [vmem:[%s1 + $0x10d4] sm:$0xff]
  %v746 = vld [vmem:[%s1 + $0x10dc] sm:$0xf]
  %v747 = vld [vmem:[%s1 + $0x10e0] sm:$0xff]
  %v748 = vld [vmem:[%s1 + $0x10e8] sm:$0xf]
  %v749 = vld [vmem:[%s1 + $0x10ec] sm:$0xff]
  %v750 = vld [vmem:[%s1 + $0x10f4] sm:$0xf]
  %v751 = vld [vmem:[%s1 + $0x10f8] sm:$0xff]
  %v752 = vld [vmem:[%s1 + $0x1100] sm:$0xf]
  %v753 = vld [vmem:[%s1 + $0x1104] sm:$0xff]
  %v754 = vld [vmem:[%s1 + $0x110c] sm:$0xf]
  %v755 = vld [vmem:[%s1 + $0x1110] sm:$0xff]
  %v756 = vld [vmem:[%s1 + $0x1118] sm:$0xf]
  %v757 = vld [vmem:[%s1 + $0x111c] sm:$0xff]
  %v758 = vld [vmem:[%s1 + $0x1124] sm:$0xf]
  %v759 = vld [vmem:[%s1 + $0x1128] sm:$0xff]
  %v760 = vld [vmem:[%s1 + $0x1130] sm:$0xf]
  %v761 = vld [vmem:[%s1 + $0x1134] sm:$0xff]
  %v762 = vld [vmem:[%s1 + $0x113c] sm:$0xf]
  %v763 = vld [vmem:[%s1 + $0x1140] sm:$0xff]
  %v764 = vld [vmem:[%s1 + $0x1148] sm:$0xf]
  %v765 = vld [vmem:[%s1 + $0x114c] sm:$0xff]
  %v766 = vld [vmem:[%s1 + $0x1154] sm:$0xf]
  %v767 = vld [vmem:[%s1 + $0x1158] sm:$0xff]
  %v768 = vld [vmem:[%s1 + $0x1160] sm:$0xf]
  %v769 = vld [vmem:[%s1 + $0x1164] sm:$0xff]
  %v770 = vld [vmem:[%s1 + $0x116c] sm:$0xf]
  %v771 = vld [vmem:[%s1 + $0x1170] sm:$0xff]
  %v772 = vld [vmem:[%s1 + $0x1178] sm:$0xf]
  %v773 = vld [vmem:[%s1 + $0x117c] sm:$0xff]
  %v774 = vld [vmem:[%s1 + $0x1184] sm:$0xf]
  %v775 = vld [vmem:[%s1 + $0x1188] sm:$0xff]
  %v776 = vld [vmem:[%s1 + $0x1190] sm:$0xf]
  %v777 = vld [vmem:[%s1 + $0x1194] sm:$0xff]
  %v778 = vld [vmem:[%s1 + $0x119c] sm:$0xf]
  %v779 = vld [vmem:[%s1 + $0x11a0] sm:$0xff]
  %v780 = vld [vmem:[%s1 + $0x11a8] sm:$0xf]
  %v781 = vld [vmem:[%s1 + $0x11ac] sm:$0xff]
  %v782 = vld [vmem:[%s1 + $0x11b4] sm:$0xf]
  %v783 = vld [vmem:[%s1 + $0x11b8] sm:$0xff]
  %v784 = vld [vmem:[%s1 + $0x11c0] sm:$0xf]
  %v785 = vld [vmem:[%s1 + $0x11c4] sm:$0xff]
  %v786 = vld [vmem:[%s1 + $0x11cc] sm:$0xf]
  %v787 = vld [vmem:[%s1 + $0x11d0] sm:$0xff]
  %v788 = vld [vmem:[%s1 + $0x11d8] sm:$0xf]
  %v789 = vld [vmem:[%s1 + $0x11dc] sm:$0xff]
  %v790 = vld [vmem:[%s1 + $0x11e4] sm:$0xf]
  %v791 = vld [vmem:[%s1 + $0x11e8] sm:$0xff]
  %v792 = vld [vmem:[%s1 + $0x11f0] sm:$0xf]
  %v793 = vld [vmem:[%s1 + $0x11f4] sm:$0xff]
  %v794 = vld [vmem:[%s1 + $0x11fc] sm:$0xf]
  %v795 = vld [vmem:[%s2] sm:$0x7]
  %v797 = vlaneseq
  %v798 = vshrl.u32 %v797, 7
  %v799 = vsub.s32 0, %v798
  %v800 = vrot.slane %v795, %v799
  %v801 = vlaneseq
  %v802 = vshrl.u32 %v801, 7
  %v803 = vsub.s32 1, %v802
  %v804 = vrot.slane %v795, %v803
  %v805 = vlaneseq
  %v806 = vshrl.u32 %v805, 7
  %v807 = vsub.s32 2, %v806
  %v808 = vrot.slane %v795, %v807
  %v824 = vunpack.c.l.b16 %v15
  %v825 = vunpack.c.h.b16 %v15
  %v826 = vunpack.c.l.b16 %v16
  %v827 = vunpack.c.h.b16 %v16
  %v828 = vunpack.c.l.b16 %v17
  %v829 = vunpack.c.h.b16 %v17
  %v830 = vunpack.c.l.b16 %v18
  %v831 = vunpack.c.h.b16 %v18
  %v832 = vunpack.c.l.b16 %v19
  %v833 = vunpack.c.h.b16 %v19
  %v834 = vunpack.c.l.b16 %v20
  %v835 = vunpack.c.h.b16 %v20
  %v836 = vunpack.c.l.b16 %v21
  %v837 = vunpack.c.h.b16 %v21
  %v838 = vunpack.c.l.b16 %v22
  %v839 = vunpack.c.h.b16 %v22
  %v840 = vunpack.c.l.b16 %v23
  %v841 = vunpack.c.h.b16 %v23
  %v842 = vunpack.c.l.b16 %v24
  %v843 = vunpack.c.h.b16 %v24
  %v844 = vunpack.c.l.b16 %v25
  %v845 = vunpack.c.h.b16 %v25
  %v846 = vunpack.c.l.b16 %v26
  %v847 = vunpack.c.h.b16 %v26
  %v848 = vpack.c.b16 %v824, %v824
  %v849 = vpack.c.b16 %v825, %v825
  %v850 = vpack.c.b16 %v826, %v826
  %v851 = vpack.c.b16 %v827, %v827
  %v852 = vpack.c.b16 %v828, %v828
  %v853 = vpack.c.b16 %v829, %v829
  %v854 = vpack.c.b16 %v830, %v830
  %v855 = vpack.c.b16 %v831, %v831
  %v856 = vpack.c.b16 %v832, %v832
  %v857 = vpack.c.b16 %v833, %v833
  %v858 = vpack.c.b16 %v834, %v834
  %v859 = vpack.c.b16 %v835, %v835
  %v860 = vpack.c.b16 %v836, %v836
  %v861 = vpack.c.b16 %v837, %v837
  %v862 = vpack.c.b16 %v838, %v838
  %v863 = vpack.c.b16 %v839, %v839
  %v864 = vpack.c.b16 %v840, %v840
  %v865 = vpack.c.b16 %v841, %v841
  %v866 = vpack.c.b16 %v842, %v842
  %v867 = vpack.c.b16 %v843, %v843
  %v868 = vpack.c.b16 %v844, %v844
  %v869 = vpack.c.b16 %v845, %v845
  %v870 = vpack.c.b16 %v846, %v846
  %v871 = vpack.c.b16 %v847, %v847
  %v1664 = vunpack.c.l.b16 %v27
  %v1665 = vunpack.c.h.b16 %v27
  %v1666 = vunpack.c.l.b16 %v28
  %v1667 = vunpack.c.l.b16 %v29
  %v1668 = vunpack.c.h.b16 %v29
  %v1669 = vunpack.c.l.b16 %v30
  %v1670 = vunpack.c.l.b16 %v31
  %v1671 = vunpack.c.h.b16 %v31
  %v1672 = vunpack.c.l.b16 %v32
  %v1673 = vunpack.c.l.b16 %v33
  %v1674 = vunpack.c.h.b16 %v33
  %v1675 = vunpack.c.l.b16 %v34
  %v1676 = vunpack.c.l.b16 %v35
  %v1677 = vunpack.c.h.b16 %v35
  %v1678 = vunpack.c.l.b16 %v36
  %v1679 = vunpack.c.l.b16 %v37
  %v1680 = vunpack.c.h.b16 %v37
  %v1681 = vunpack.c.l.b16 %v38
  %v1682 = vunpack.c.l.b16 %v39
  %v1683 = vunpack.c.h.b16 %v39
  %v1684 = vunpack.c.l.b16 %v40
  %v1685 = vunpack.c.l.b16 %v41
  %v1686 = vunpack.c.h.b16 %v41
  %v1687 = vunpack.c.l.b16 %v42
  %v1688 = vunpack.c.l.b16 %v43
  %v1689 = vunpack.c.h.b16 %v43
  %v1690 = vunpack.c.l.b16 %v44
  %v1691 = vunpack.c.l.b16 %v45
  %v1692 = vunpack.c.h.b16 %v45
  %v1693 = vunpack.c.l.b16 %v46
  %v1694 = vunpack.c.l.b16 %v47
  %v1695 = vunpack.c.h.b16 %v47
  %v1696 = vunpack.c.l.b16 %v48
  %v1697 = vunpack.c.l.b16 %v49
  %v1698 = vunpack.c.h.b16 %v49
  %v1699 = vunpack.c.l.b16 %v50
  %v1700 = vunpack.c.l.b16 %v51
  %v1701 = vunpack.c.h.b16 %v51
  %v1702 = vunpack.c.l.b16 %v52
  %v1703 = vunpack.c.l.b16 %v53
  %v1704 = vunpack.c.h.b16 %v53
  %v1705 = vunpack.c.l.b16 %v54
  %v1706 = vunpack.c.l.b16 %v55
  %v1707 = vunpack.c.h.b16 %v55
  %v1708 = vunpack.c.l.b16 %v56
  %v1709 = vunpack.c.l.b16 %v57
  %v1710 = vunpack.c.h.b16 %v57
  %v1711 = vunpack.c.l.b16 %v58
  %v1712 = vunpack.c.l.b16 %v59
  %v1713 = vunpack.c.h.b16 %v59
  %v1714 = vunpack.c.l.b16 %v60
  %v1715 = vunpack.c.l.b16 %v61
  %v1716 = vunpack.c.h.b16 %v61
  %v1717 = vunpack.c.l.b16 %v62
  %v1718 = vunpack.c.l.b16 %v63
  %v1719 = vunpack.c.h.b16 %v63
  %v1720 = vunpack.c.l.b16 %v64
  %v1721 = vunpack.c.l.b16 %v65
  %v1722 = vunpack.c.h.b16 %v65
  %v1723 = vunpack.c.l.b16 %v66
  %v1724 = vunpack.c.l.b16 %v67
  %v1725 = vunpack.c.h.b16 %v67
  %v1726 = vunpack.c.l.b16 %v68
  %v1727 = vunpack.c.l.b16 %v69
  %v1728 = vunpack.c.h.b16 %v69
  %v1729 = vunpack.c.l.b16 %v70
  %v1730 = vunpack.c.l.b16 %v71
  %v1731 = vunpack.c.h.b16 %v71
  %v1732 = vunpack.c.l.b16 %v72
  %v1733 = vunpack.c.l.b16 %v73
  %v1734 = vunpack.c.h.b16 %v73
  %v1735 = vunpack.c.l.b16 %v74
  %v1736 = vunpack.c.l.b16 %v75
  %v1737 = vunpack.c.h.b16 %v75
  %v1738 = vunpack.c.l.b16 %v76
  %v1739 = vunpack.c.l.b16 %v77
  %v1740 = vunpack.c.h.b16 %v77
  %v1741 = vunpack.c.l.b16 %v78
  %v1742 = vunpack.c.l.b16 %v79
  %v1743 = vunpack.c.h.b16 %v79
  %v1744 = vunpack.c.l.b16 %v80
  %v1745 = vunpack.c.l.b16 %v81
  %v1746 = vunpack.c.h.b16 %v81
  %v1747 = vunpack.c.l.b16 %v82
  %v1748 = vunpack.c.l.b16 %v83
  %v1749 = vunpack.c.h.b16 %v83
  %v1750 = vunpack.c.l.b16 %v84
  %v1751 = vunpack.c.l.b16 %v85
  %v1752 = vunpack.c.h.b16 %v85
  %v1753 = vunpack.c.l.b16 %v86
  %v1754 = vunpack.c.l.b16 %v87
  %v1755 = vunpack.c.h.b16 %v87
  %v1756 = vunpack.c.l.b16 %v88
  %v1757 = vunpack.c.l.b16 %v89
  %v1758 = vunpack.c.h.b16 %v89
  %v1759 = vunpack.c.l.b16 %v90
  %v1760 = vunpack.c.l.b16 %v91
  %v1761 = vunpack.c.h.b16 %v91
  %v1762 = vunpack.c.l.b16 %v92
  %v1763 = vunpack.c.l.b16 %v93
  %v1764 = vunpack.c.h.b16 %v93
  %v1765 = vunpack.c.l.b16 %v94
  %v1766 = vunpack.c.l.b16 %v95
  %v1767 = vunpack.c.h.b16 %v95
  %v1768 = vunpack.c.l.b16 %v96
  %v1769 = vunpack.c.l.b16 %v97
  %v1770 = vunpack.c.h.b16 %v97
  %v1771 = vunpack.c.l.b16 %v98
  %v1772 = vunpack.c.l.b16 %v99
  %v1773 = vunpack.c.h.b16 %v99
  %v1774 = vunpack.c.l.b16 %v100
  %v1775 = vunpack.c.l.b16 %v101
  %v1776 = vunpack.c.h.b16 %v101
  %v1777 = vunpack.c.l.b16 %v102
  %v1778 = vunpack.c.l.b16 %v103
  %v1779 = vunpack.c.h.b16 %v103
  %v1780 = vunpack.c.l.b16 %v104
  %v1781 = vunpack.c.l.b16 %v105
  %v1782 = vunpack.c.h.b16 %v105
  %v1783 = vunpack.c.l.b16 %v106
  %v1784 = vunpack.c.l.b16 %v107
  %v1785 = vunpack.c.h.b16 %v107
  %v1786 = vunpack.c.l.b16 %v108
  %v1787 = vunpack.c.l.b16 %v109
  %v1788 = vunpack.c.h.b16 %v109
  %v1789 = vunpack.c.l.b16 %v110
  %v1790 = vunpack.c.l.b16 %v111
  %v1791 = vunpack.c.h.b16 %v111
  %v1792 = vunpack.c.l.b16 %v112
  %v1793 = vunpack.c.l.b16 %v113
  %v1794 = vunpack.c.h.b16 %v113
  %v1795 = vunpack.c.l.b16 %v114
  %v1796 = vunpack.c.l.b16 %v115
  %v1797 = vunpack.c.h.b16 %v115
  %v1798 = vunpack.c.l.b16 %v116
  %v1799 = vunpack.c.l.b16 %v117
  %v1800 = vunpack.c.h.b16 %v117
  %v1801 = vunpack.c.l.b16 %v118
  %v1802 = vunpack.c.l.b16 %v119
  %v1803 = vunpack.c.h.b16 %v119
  %v1804 = vunpack.c.l.b16 %v120
  %v1805 = vunpack.c.l.b16 %v121
  %v1806 = vunpack.c.h.b16 %v121
  %v1807 = vunpack.c.l.b16 %v122
  %v1808 = vunpack.c.l.b16 %v123
  %v1809 = vunpack.c.h.b16 %v123
  %v1810 = vunpack.c.l.b16 %v124
  %v1811 = vunpack.c.l.b16 %v125
  %v1812 = vunpack.c.h.b16 %v125
  %v1813 = vunpack.c.l.b16 %v126
  %v1814 = vunpack.c.l.b16 %v127
  %v1815 = vunpack.c.h.b16 %v127
  %v1816 = vunpack.c.l.b16 %v128
  %v1817 = vunpack.c.l.b16 %v129
  %v1818 = vunpack.c.h.b16 %v129
  %v1819 = vunpack.c.l.b16 %v130
  %v1820 = vunpack.c.l.b16 %v131
  %v1821 = vunpack.c.h.b16 %v131
  %v1822 = vunpack.c.l.b16 %v132
  %v1823 = vunpack.c.l.b16 %v133
  %v1824 = vunpack.c.h.b16 %v133
  %v1825 = vunpack.c.l.b16 %v134
  %v1826 = vunpack.c.l.b16 %v135
  %v1827 = vunpack.c.h.b16 %v135
  %v1828 = vunpack.c.l.b16 %v136
  %v1829 = vunpack.c.l.b16 %v137
  %v1830 = vunpack.c.h.b16 %v137
  %v1831 = vunpack.c.l.b16 %v138
  %v1832 = vunpack.c.l.b16 %v139
  %v1833 = vunpack.c.h.b16 %v139
  %v1834 = vunpack.c.l.b16 %v140
  %v1835 = vunpack.c.l.b16 %v141
  %v1836 = vunpack.c.h.b16 %v141
  %v1837 = vunpack.c.l.b16 %v142
  %v1838 = vunpack.c.l.b16 %v143
  %v1839 = vunpack.c.h.b16 %v143
  %v1840 = vunpack.c.l.b16 %v144
  %v1841 = vunpack.c.l.b16 %v145
  %v1842 = vunpack.c.h.b16 %v145
  %v1843 = vunpack.c.l.b16 %v146
  %v1844 = vunpack.c.l.b16 %v147
  %v1845 = vunpack.c.h.b16 %v147
  %v1846 = vunpack.c.l.b16 %v148
  %v1847 = vunpack.c.l.b16 %v149
  %v1848 = vunpack.c.h.b16 %v149
  %v1849 = vunpack.c.l.b16 %v150
  %v1850 = vunpack.c.l.b16 %v151
  %v1851 = vunpack.c.h.b16 %v151
  %v1852 = vunpack.c.l.b16 %v152
  %v1853 = vunpack.c.l.b16 %v153
  %v1854 = vunpack.c.h.b16 %v153
  %v1855 = vunpack.c.l.b16 %v154
  %v1856 = vunpack.c.l.b16 %v155
  %v1857 = vunpack.c.h.b16 %v155
  %v1858 = vunpack.c.l.b16 %v156
  %v1859 = vunpack.c.l.b16 %v157
  %v1860 = vunpack.c.h.b16 %v157
  %v1861 = vunpack.c.l.b16 %v158
  %v1862 = vunpack.c.l.b16 %v159
  %v1863 = vunpack.c.h.b16 %v159
  %v1864 = vunpack.c.l.b16 %v160
  %v1865 = vunpack.c.l.b16 %v161
  %v1866 = vunpack.c.h.b16 %v161
  %v1867 = vunpack.c.l.b16 %v162
  %v1868 = vunpack.c.l.b16 %v163
  %v1869 = vunpack.c.h.b16 %v163
  %v1870 = vunpack.c.l.b16 %v164
  %v1871 = vunpack.c.l.b16 %v165
  %v1872 = vunpack.c.h.b16 %v165
  %v1873 = vunpack.c.l.b16 %v166
  %v1874 = vunpack.c.l.b16 %v167
  %v1875 = vunpack.c.h.b16 %v167
  %v1876 = vunpack.c.l.b16 %v168
  %v1877 = vunpack.c.l.b16 %v169
  %v1878 = vunpack.c.h.b16 %v169
  %v1879 = vunpack.c.l.b16 %v170
  %v1880 = vunpack.c.l.b16 %v171
  %v1881 = vunpack.c.h.b16 %v171
  %v1882 = vunpack.c.l.b16 %v172
  %v1883 = vunpack.c.l.b16 %v173
  %v1884 = vunpack.c.h.b16 %v173
  %v1885 = vunpack.c.l.b16 %v174
  %v1886 = vunpack.c.l.b16 %v175
  %v1887 = vunpack.c.h.b16 %v175
  %v1888 = vunpack.c.l.b16 %v176
  %v1889 = vunpack.c.l.b16 %v177
  %v1890 = vunpack.c.h.b16 %v177
  %v1891 = vunpack.c.l.b16 %v178
  %v1892 = vunpack.c.l.b16 %v179
  %v1893 = vunpack.c.h.b16 %v179
  %v1894 = vunpack.c.l.b16 %v180
  %v1895 = vunpack.c.l.b16 %v181
  %v1896 = vunpack.c.h.b16 %v181
  %v1897 = vunpack.c.l.b16 %v182
  %v1898 = vunpack.c.l.b16 %v183
  %v1899 = vunpack.c.h.b16 %v183
  %v1900 = vunpack.c.l.b16 %v184
  %v1901 = vunpack.c.l.b16 %v185
  %v1902 = vunpack.c.h.b16 %v185
  %v1903 = vunpack.c.l.b16 %v186
  %v1904 = vunpack.c.l.b16 %v187
  %v1905 = vunpack.c.h.b16 %v187
  %v1906 = vunpack.c.l.b16 %v188
  %v1907 = vunpack.c.l.b16 %v189
  %v1908 = vunpack.c.h.b16 %v189
  %v1909 = vunpack.c.l.b16 %v190
  %v1910 = vunpack.c.l.b16 %v191
  %v1911 = vunpack.c.h.b16 %v191
  %v1912 = vunpack.c.l.b16 %v192
  %v1913 = vunpack.c.l.b16 %v193
  %v1914 = vunpack.c.h.b16 %v193
  %v1915 = vunpack.c.l.b16 %v194
  %v1916 = vunpack.c.l.b16 %v195
  %v1917 = vunpack.c.h.b16 %v195
  %v1918 = vunpack.c.l.b16 %v196
  %v1919 = vunpack.c.l.b16 %v197
  %v1920 = vunpack.c.h.b16 %v197
  %v1921 = vunpack.c.l.b16 %v198
  %v1922 = vunpack.c.l.b16 %v199
  %v1923 = vunpack.c.h.b16 %v199
  %v1924 = vunpack.c.l.b16 %v200
  %v1925 = vunpack.c.l.b16 %v201
  %v1926 = vunpack.c.h.b16 %v201
  %v1927 = vunpack.c.l.b16 %v202
  %v1928 = vunpack.c.l.b16 %v203
  %v1929 = vunpack.c.h.b16 %v203
  %v1930 = vunpack.c.l.b16 %v204
  %v1931 = vunpack.c.l.b16 %v205
  %v1932 = vunpack.c.h.b16 %v205
  %v1933 = vunpack.c.l.b16 %v206
  %v1934 = vunpack.c.l.b16 %v207
  %v1935 = vunpack.c.h.b16 %v207
  %v1936 = vunpack.c.l.b16 %v208
  %v1937 = vunpack.c.l.b16 %v209
  %v1938 = vunpack.c.h.b16 %v209
  %v1939 = vunpack.c.l.b16 %v210
  %v1940 = vunpack.c.l.b16 %v211
  %v1941 = vunpack.c.h.b16 %v211
  %v1942 = vunpack.c.l.b16 %v212
  %v1943 = vunpack.c.l.b16 %v213
  %v1944 = vunpack.c.h.b16 %v213
  %v1945 = vunpack.c.l.b16 %v214
  %v1946 = vunpack.c.l.b16 %v215
  %v1947 = vunpack.c.h.b16 %v215
  %v1948 = vunpack.c.l.b16 %v216
  %v1949 = vunpack.c.l.b16 %v217
  %v1950 = vunpack.c.h.b16 %v217
  %v1951 = vunpack.c.l.b16 %v218
  %v1952 = vunpack.c.l.b16 %v219
  %v1953 = vunpack.c.h.b16 %v219
  %v1954 = vunpack.c.l.b16 %v220
  %v1955 = vunpack.c.l.b16 %v221
  %v1956 = vunpack.c.h.b16 %v221
  %v1957 = vunpack.c.l.b16 %v222
  %v1958 = vunpack.c.l.b16 %v223
  %v1959 = vunpack.c.h.b16 %v223
  %v1960 = vunpack.c.l.b16 %v224
  %v1961 = vunpack.c.l.b16 %v225
  %v1962 = vunpack.c.h.b16 %v225
  %v1963 = vunpack.c.l.b16 %v226
  %v1964 = vunpack.c.l.b16 %v227
  %v1965 = vunpack.c.h.b16 %v227
  %v1966 = vunpack.c.l.b16 %v228
  %v1967 = vunpack.c.l.b16 %v229
  %v1968 = vunpack.c.h.b16 %v229
  %v1969 = vunpack.c.l.b16 %v230
  %v1970 = vunpack.c.l.b16 %v231
  %v1971 = vunpack.c.h.b16 %v231
  %v1972 = vunpack.c.l.b16 %v232
  %v1973 = vunpack.c.l.b16 %v233
  %v1974 = vunpack.c.h.b16 %v233
  %v1975 = vunpack.c.l.b16 %v234
  %v1976 = vunpack.c.l.b16 %v235
  %v1977 = vunpack.c.h.b16 %v235
  %v1978 = vunpack.c.l.b16 %v236
  %v1979 = vunpack.c.l.b16 %v237
  %v1980 = vunpack.c.h.b16 %v237
  %v1981 = vunpack.c.l.b16 %v238
  %v1982 = vunpack.c.l.b16 %v239
  %v1983 = vunpack.c.h.b16 %v239
  %v1984 = vunpack.c.l.b16 %v240
  %v1985 = vunpack.c.l.b16 %v241
  %v1986 = vunpack.c.h.b16 %v241
  %v1987 = vunpack.c.l.b16 %v242
  %v1988 = vunpack.c.l.b16 %v243
  %v1989 = vunpack.c.h.b16 %v243
  %v1990 = vunpack.c.l.b16 %v244
  %v1991 = vunpack.c.l.b16 %v245
  %v1992 = vunpack.c.h.b16 %v245
  %v1993 = vunpack.c.l.b16 %v246
  %v1994 = vunpack.c.l.b16 %v247
  %v1995 = vunpack.c.h.b16 %v247
  %v1996 = vunpack.c.l.b16 %v248
  %v1997 = vunpack.c.l.b16 %v249
  %v1998 = vunpack.c.h.b16 %v249
  %v1999 = vunpack.c.l.b16 %v250
  %v2000 = vunpack.c.l.b16 %v251
  %v2001 = vunpack.c.h.b16 %v251
  %v2002 = vunpack.c.l.b16 %v252
  %v2003 = vunpack.c.l.b16 %v253
  %v2004 = vunpack.c.h.b16 %v253
  %v2005 = vunpack.c.l.b16 %v254
  %v2006 = vunpack.c.l.b16 %v255
  %v2007 = vunpack.c.h.b16 %v255
  %v2008 = vunpack.c.l.b16 %v256
  %v2009 = vunpack.c.l.b16 %v257
  %v2010 = vunpack.c.h.b16 %v257
  %v2011 = vunpack.c.l.b16 %v258
  %v2012 = vunpack.c.l.b16 %v259
  %v2013 = vunpack.c.h.b16 %v259
  %v2014 = vunpack.c.l.b16 %v260
  %v2015 = vunpack.c.l.b16 %v261
  %v2016 = vunpack.c.h.b16 %v261
  %v2017 = vunpack.c.l.b16 %v262
  %v2018 = vunpack.c.l.b16 %v263
  %v2019 = vunpack.c.h.b16 %v263
  %v2020 = vunpack.c.l.b16 %v264
  %v2021 = vunpack.c.l.b16 %v265
  %v2022 = vunpack.c.h.b16 %v265
  %v2023 = vunpack.c.l.b16 %v266
  %v2024 = vunpack.c.l.b16 %v267
  %v2025 = vunpack.c.h.b16 %v267
  %v2026 = vunpack.c.l.b16 %v268
  %v2027 = vunpack.c.l.b16 %v269
  %v2028 = vunpack.c.h.b16 %v269
  %v2029 = vunpack.c.l.b16 %v270
  %v2030 = vunpack.c.l.b16 %v271
  %v2031 = vunpack.c.h.b16 %v271
  %v2032 = vunpack.c.l.b16 %v272
  %v2033 = vunpack.c.l.b16 %v273
  %v2034 = vunpack.c.h.b16 %v273
  %v2035 = vunpack.c.l.b16 %v274
  %v2036 = vunpack.c.l.b16 %v275
  %v2037 = vunpack.c.h.b16 %v275
  %v2038 = vunpack.c.l.b16 %v276
  %v2039 = vunpack.c.l.b16 %v277
  %v2040 = vunpack.c.h.b16 %v277
  %v2041 = vunpack.c.l.b16 %v278
  %v2042 = vunpack.c.l.b16 %v279
  %v2043 = vunpack.c.h.b16 %v279
  %v2044 = vunpack.c.l.b16 %v280
  %v2045 = vunpack.c.l.b16 %v281
  %v2046 = vunpack.c.h.b16 %v281
  %v2047 = vunpack.c.l.b16 %v282
  %v2048 = vunpack.c.l.b16 %v283
  %v2049 = vunpack.c.h.b16 %v283
  %v2050 = vunpack.c.l.b16 %v284
  %v2051 = vunpack.c.l.b16 %v285
  %v2052 = vunpack.c.h.b16 %v285
  %v2053 = vunpack.c.l.b16 %v286
  %v2054 = vunpack.c.l.b16 %v287
  %v2055 = vunpack.c.h.b16 %v287
  %v2056 = vunpack.c.l.b16 %v288
  %v2057 = vunpack.c.l.b16 %v289
  %v2058 = vunpack.c.h.b16 %v289
  %v2059 = vunpack.c.l.b16 %v290
  %v2060 = vunpack.c.l.b16 %v291
  %v2061 = vunpack.c.h.b16 %v291
  %v2062 = vunpack.c.l.b16 %v292
  %v2063 = vunpack.c.l.b16 %v293
  %v2064 = vunpack.c.h.b16 %v293
  %v2065 = vunpack.c.l.b16 %v294
  %v2066 = vunpack.c.l.b16 %v295
  %v2067 = vunpack.c.h.b16 %v295
  %v2068 = vunpack.c.l.b16 %v296
  %v2069 = vunpack.c.l.b16 %v297
  %v2070 = vunpack.c.h.b16 %v297
  %v2071 = vunpack.c.l.b16 %v298
  %v2072 = vunpack.c.l.b16 %v299
  %v2073 = vunpack.c.h.b16 %v299
  %v2074 = vunpack.c.l.b16 %v300
  %v2075 = vunpack.c.l.b16 %v301
  %v2076 = vunpack.c.h.b16 %v301
  %v2077 = vunpack.c.l.b16 %v302
  %v2078 = vunpack.c.l.b16 %v303
  %v2079 = vunpack.c.h.b16 %v303
  %v2080 = vunpack.c.l.b16 %v304
  %v2081 = vunpack.c.l.b16 %v305
  %v2082 = vunpack.c.h.b16 %v305
  %v2083 = vunpack.c.l.b16 %v306
  %v2084 = vunpack.c.l.b16 %v307
  %v2085 = vunpack.c.h.b16 %v307
  %v2086 = vunpack.c.l.b16 %v308
  %v2087 = vunpack.c.l.b16 %v309
  %v2088 = vunpack.c.h.b16 %v309
  %v2089 = vunpack.c.l.b16 %v310
  %v2090 = vunpack.c.l.b16 %v311
  %v2091 = vunpack.c.h.b16 %v311
  %v2092 = vunpack.c.l.b16 %v312
  %v2093 = vunpack.c.l.b16 %v313
  %v2094 = vunpack.c.h.b16 %v313
  %v2095 = vunpack.c.l.b16 %v314
  %v2096 = vunpack.c.l.b16 %v315
  %v2097 = vunpack.c.h.b16 %v315
  %v2098 = vunpack.c.l.b16 %v316
  %v2099 = vunpack.c.l.b16 %v317
  %v2100 = vunpack.c.h.b16 %v317
  %v2101 = vunpack.c.l.b16 %v318
  %v2102 = vunpack.c.l.b16 %v319
  %v2103 = vunpack.c.h.b16 %v319
  %v2104 = vunpack.c.l.b16 %v320
  %v2105 = vunpack.c.l.b16 %v321
  %v2106 = vunpack.c.h.b16 %v321
  %v2107 = vunpack.c.l.b16 %v322
  %v2108 = vunpack.c.l.b16 %v323
  %v2109 = vunpack.c.h.b16 %v323
  %v2110 = vunpack.c.l.b16 %v324
  %v2111 = vunpack.c.l.b16 %v325
  %v2112 = vunpack.c.h.b16 %v325
  %v2113 = vunpack.c.l.b16 %v326
  %v2114 = vunpack.c.l.b16 %v327
  %v2115 = vunpack.c.h.b16 %v327
  %v2116 = vunpack.c.l.b16 %v328
  %v2117 = vunpack.c.l.b16 %v329
  %v2118 = vunpack.c.h.b16 %v329
  %v2119 = vunpack.c.l.b16 %v330
  %v2120 = vunpack.c.l.b16 %v331
  %v2121 = vunpack.c.h.b16 %v331
  %v2122 = vunpack.c.l.b16 %v332
  %v2123 = vunpack.c.l.b16 %v333
  %v2124 = vunpack.c.h.b16 %v333
  %v2125 = vunpack.c.l.b16 %v334
  %v2126 = vunpack.c.l.b16 %v335
  %v2127 = vunpack.c.h.b16 %v335
  %v2128 = vunpack.c.l.b16 %v336
  %v2129 = vunpack.c.l.b16 %v337
  %v2130 = vunpack.c.h.b16 %v337
  %v2131 = vunpack.c.l.b16 %v338
  %v2132 = vunpack.c.l.b16 %v339
  %v2133 = vunpack.c.h.b16 %v339
  %v2134 = vunpack.c.l.b16 %v340
  %v2135 = vunpack.c.l.b16 %v341
  %v2136 = vunpack.c.h.b16 %v341
  %v2137 = vunpack.c.l.b16 %v342
  %v2138 = vunpack.c.l.b16 %v343
  %v2139 = vunpack.c.h.b16 %v343
  %v2140 = vunpack.c.l.b16 %v344
  %v2141 = vunpack.c.l.b16 %v345
  %v2142 = vunpack.c.h.b16 %v345
  %v2143 = vunpack.c.l.b16 %v346
  %v2144 = vunpack.c.l.b16 %v347
  %v2145 = vunpack.c.h.b16 %v347
  %v2146 = vunpack.c.l.b16 %v348
  %v2147 = vunpack.c.l.b16 %v349
  %v2148 = vunpack.c.h.b16 %v349
  %v2149 = vunpack.c.l.b16 %v350
  %v2150 = vunpack.c.l.b16 %v351
  %v2151 = vunpack.c.h.b16 %v351
  %v2152 = vunpack.c.l.b16 %v352
  %v2153 = vunpack.c.l.b16 %v353
  %v2154 = vunpack.c.h.b16 %v353
  %v2155 = vunpack.c.l.b16 %v354
  %v2156 = vunpack.c.l.b16 %v355
  %v2157 = vunpack.c.h.b16 %v355
  %v2158 = vunpack.c.l.b16 %v356
  %v2159 = vunpack.c.l.b16 %v357
  %v2160 = vunpack.c.h.b16 %v357
  %v2161 = vunpack.c.l.b16 %v358
  %v2162 = vunpack.c.l.b16 %v359
  %v2163 = vunpack.c.h.b16 %v359
  %v2164 = vunpack.c.l.b16 %v360
  %v2165 = vunpack.c.l.b16 %v361
  %v2166 = vunpack.c.h.b16 %v361
  %v2167 = vunpack.c.l.b16 %v362
  %v2168 = vunpack.c.l.b16 %v363
  %v2169 = vunpack.c.h.b16 %v363
  %v2170 = vunpack.c.l.b16 %v364
  %v2171 = vunpack.c.l.b16 %v365
  %v2172 = vunpack.c.h.b16 %v365
  %v2173 = vunpack.c.l.b16 %v366
  %v2174 = vunpack.c.l.b16 %v367
  %v2175 = vunpack.c.h.b16 %v367
  %v2176 = vunpack.c.l.b16 %v368
  %v2177 = vunpack.c.l.b16 %v369
  %v2178 = vunpack.c.h.b16 %v369
  %v2179 = vunpack.c.l.b16 %v370
  %v2180 = vunpack.c.l.b16 %v371
  %v2181 = vunpack.c.h.b16 %v371
  %v2182 = vunpack.c.l.b16 %v372
  %v2183 = vunpack.c.l.b16 %v373
  %v2184 = vunpack.c.h.b16 %v373
  %v2185 = vunpack.c.l.b16 %v374
  %v2186 = vunpack.c.l.b16 %v375
  %v2187 = vunpack.c.h.b16 %v375
  %v2188 = vunpack.c.l.b16 %v376
  %v2189 = vunpack.c.l.b16 %v377
  %v2190 = vunpack.c.h.b16 %v377
  %v2191 = vunpack.c.l.b16 %v378
  %v2192 = vunpack.c.l.b16 %v379
  %v2193 = vunpack.c.h.b16 %v379
  %v2194 = vunpack.c.l.b16 %v380
  %v2195 = vunpack.c.l.b16 %v381
  %v2196 = vunpack.c.h.b16 %v381
  %v2197 = vunpack.c.l.b16 %v382
  %v2198 = vunpack.c.l.b16 %v383
  %v2199 = vunpack.c.h.b16 %v383
  %v2200 = vunpack.c.l.b16 %v384
  %v2201 = vunpack.c.l.b16 %v385
  %v2202 = vunpack.c.h.b16 %v385
  %v2203 = vunpack.c.l.b16 %v386
  %v2204 = vunpack.c.l.b16 %v387
  %v2205 = vunpack.c.h.b16 %v387
  %v2206 = vunpack.c.l.b16 %v388
  %v2207 = vunpack.c.l.b16 %v389
  %v2208 = vunpack.c.h.b16 %v389
  %v2209 = vunpack.c.l.b16 %v390
  %v2210 = vunpack.c.l.b16 %v391
  %v2211 = vunpack.c.h.b16 %v391
  %v2212 = vunpack.c.l.b16 %v392
  %v2213 = vunpack.c.l.b16 %v393
  %v2214 = vunpack.c.h.b16 %v393
  %v2215 = vunpack.c.l.b16 %v394
  %v2216 = vunpack.c.l.b16 %v395
  %v2217 = vunpack.c.h.b16 %v395
  %v2218 = vunpack.c.l.b16 %v396
  %v2219 = vunpack.c.l.b16 %v397
  %v2220 = vunpack.c.h.b16 %v397
  %v2221 = vunpack.c.l.b16 %v398
  %v2222 = vunpack.c.l.b16 %v399
  %v2223 = vunpack.c.h.b16 %v399
  %v2224 = vunpack.c.l.b16 %v400
  %v2225 = vunpack.c.l.b16 %v401
  %v2226 = vunpack.c.h.b16 %v401
  %v2227 = vunpack.c.l.b16 %v402
  %v2228 = vunpack.c.l.b16 %v403
  %v2229 = vunpack.c.h.b16 %v403
  %v2230 = vunpack.c.l.b16 %v404
  %v2231 = vunpack.c.l.b16 %v405
  %v2232 = vunpack.c.h.b16 %v405
  %v2233 = vunpack.c.l.b16 %v406
  %v2234 = vunpack.c.l.b16 %v407
  %v2235 = vunpack.c.h.b16 %v407
  %v2236 = vunpack.c.l.b16 %v408
  %v2237 = vunpack.c.l.b16 %v409
  %v2238 = vunpack.c.h.b16 %v409
  %v2239 = vunpack.c.l.b16 %v410
  %v2240 = vunpack.c.l.b16 %v411
  %v2241 = vunpack.c.h.b16 %v411
  %v2242 = vunpack.c.l.b16 %v412
  %v2243 = vunpack.c.l.b16 %v413
  %v2244 = vunpack.c.h.b16 %v413
  %v2245 = vunpack.c.l.b16 %v414
  %v2246 = vunpack.c.l.b16 %v415
  %v2247 = vunpack.c.h.b16 %v415
  %v2248 = vunpack.c.l.b16 %v416
  %v2249 = vunpack.c.l.b16 %v417
  %v2250 = vunpack.c.h.b16 %v417
  %v2251 = vunpack.c.l.b16 %v418
  %v2252 = vunpack.c.l.b16 %v419
  %v2253 = vunpack.c.h.b16 %v419
  %v2254 = vunpack.c.l.b16 %v420
  %v2255 = vunpack.c.l.b16 %v421
  %v2256 = vunpack.c.h.b16 %v421
  %v2257 = vunpack.c.l.b16 %v422
  %v2258 = vunpack.c.l.b16 %v423
  %v2259 = vunpack.c.h.b16 %v423
  %v2260 = vunpack.c.l.b16 %v424
  %v2261 = vunpack.c.l.b16 %v425
  %v2262 = vunpack.c.h.b16 %v425
  %v2263 = vunpack.c.l.b16 %v426
  %v2264 = vunpack.c.l.b16 %v427
  %v2265 = vunpack.c.h.b16 %v427
  %v2266 = vunpack.c.l.b16 %v428
  %v2267 = vunpack.c.l.b16 %v429
  %v2268 = vunpack.c.h.b16 %v429
  %v2269 = vunpack.c.l.b16 %v430
  %v2270 = vunpack.c.l.b16 %v431
  %v2271 = vunpack.c.h.b16 %v431
  %v2272 = vunpack.c.l.b16 %v432
  %v2273 = vunpack.c.l.b16 %v433
  %v2274 = vunpack.c.h.b16 %v433
  %v2275 = vunpack.c.l.b16 %v434
  %v2276 = vunpack.c.l.b16 %v435
  %v2277 = vunpack.c.h.b16 %v435
  %v2278 = vunpack.c.l.b16 %v436
  %v2279 = vunpack.c.l.b16 %v437
  %v2280 = vunpack.c.h.b16 %v437
  %v2281 = vunpack.c.l.b16 %v438
  %v2282 = vunpack.c.l.b16 %v439
  %v2283 = vunpack.c.h.b16 %v439
  %v2284 = vunpack.c.l.b16 %v440
  %v2285 = vunpack.c.l.b16 %v441
  %v2286 = vunpack.c.h.b16 %v441
  %v2287 = vunpack.c.l.b16 %v442
  %v2288 = vunpack.c.l.b16 %v443
  %v2289 = vunpack.c.h.b16 %v443
  %v2290 = vunpack.c.l.b16 %v444
  %v2291 = vunpack.c.l.b16 %v445
  %v2292 = vunpack.c.h.b16 %v445
  %v2293 = vunpack.c.l.b16 %v446
  %v2294 = vunpack.c.l.b16 %v447
  %v2295 = vunpack.c.h.b16 %v447
  %v2296 = vunpack.c.l.b16 %v448
  %v2297 = vunpack.c.l.b16 %v449
  %v2298 = vunpack.c.h.b16 %v449
  %v2299 = vunpack.c.l.b16 %v450
  %v2300 = vunpack.c.l.b16 %v451
  %v2301 = vunpack.c.h.b16 %v451
  %v2302 = vunpack.c.l.b16 %v452
  %v2303 = vunpack.c.l.b16 %v453
  %v2304 = vunpack.c.h.b16 %v453
  %v2305 = vunpack.c.l.b16 %v454
  %v2306 = vunpack.c.l.b16 %v455
  %v2307 = vunpack.c.h.b16 %v455
  %v2308 = vunpack.c.l.b16 %v456
  %v2309 = vunpack.c.l.b16 %v457
  %v2310 = vunpack.c.h.b16 %v457
  %v2311 = vunpack.c.l.b16 %v458
  %v2312 = vunpack.c.l.b16 %v459
  %v2313 = vunpack.c.h.b16 %v459
  %v2314 = vunpack.c.l.b16 %v460
  %v2315 = vunpack.c.l.b16 %v461
  %v2316 = vunpack.c.h.b16 %v461
  %v2317 = vunpack.c.l.b16 %v462
  %v2318 = vunpack.c.l.b16 %v463
  %v2319 = vunpack.c.h.b16 %v463
  %v2320 = vunpack.c.l.b16 %v464
  %v2321 = vunpack.c.l.b16 %v465
  %v2322 = vunpack.c.h.b16 %v465
  %v2323 = vunpack.c.l.b16 %v466
  %v2324 = vunpack.c.l.b16 %v467
  %v2325 = vunpack.c.h.b16 %v467
  %v2326 = vunpack.c.l.b16 %v468
  %v2327 = vunpack.c.l.b16 %v469
  %v2328 = vunpack.c.h.b16 %v469
  %v2329 = vunpack.c.l.b16 %v470
  %v2330 = vunpack.c.l.b16 %v471
  %v2331 = vunpack.c.h.b16 %v471
  %v2332 = vunpack.c.l.b16 %v472
  %v2333 = vunpack.c.l.b16 %v473
  %v2334 = vunpack.c.h.b16 %v473
  %v2335 = vunpack.c.l.b16 %v474
  %v2336 = vunpack.c.l.b16 %v475
  %v2337 = vunpack.c.h.b16 %v475
  %v2338 = vunpack.c.l.b16 %v476
  %v2339 = vunpack.c.l.b16 %v477
  %v2340 = vunpack.c.h.b16 %v477
  %v2341 = vunpack.c.l.b16 %v478
  %v2342 = vunpack.c.l.b16 %v479
  %v2343 = vunpack.c.h.b16 %v479
  %v2344 = vunpack.c.l.b16 %v480
  %v2345 = vunpack.c.l.b16 %v481
  %v2346 = vunpack.c.h.b16 %v481
  %v2347 = vunpack.c.l.b16 %v482
  %v2348 = vunpack.c.l.b16 %v483
  %v2349 = vunpack.c.h.b16 %v483
  %v2350 = vunpack.c.l.b16 %v484
  %v2351 = vunpack.c.l.b16 %v485
  %v2352 = vunpack.c.h.b16 %v485
  %v2353 = vunpack.c.l.b16 %v486
  %v2354 = vunpack.c.l.b16 %v487
  %v2355 = vunpack.c.h.b16 %v487
  %v2356 = vunpack.c.l.b16 %v488
  %v2357 = vunpack.c.l.b16 %v489
  %v2358 = vunpack.c.h.b16 %v489
  %v2359 = vunpack.c.l.b16 %v490
  %v2360 = vunpack.c.l.b16 %v491
  %v2361 = vunpack.c.h.b16 %v491
  %v2362 = vunpack.c.l.b16 %v492
  %v2363 = vunpack.c.l.b16 %v493
  %v2364 = vunpack.c.h.b16 %v493
  %v2365 = vunpack.c.l.b16 %v494
  %v2366 = vunpack.c.l.b16 %v495
  %v2367 = vunpack.c.h.b16 %v495
  %v2368 = vunpack.c.l.b16 %v496
  %v2369 = vunpack.c.l.b16 %v497
  %v2370 = vunpack.c.h.b16 %v497
  %v2371 = vunpack.c.l.b16 %v498
  %v2372 = vunpack.c.l.b16 %v499
  %v2373 = vunpack.c.h.b16 %v499
  %v2374 = vunpack.c.l.b16 %v500
  %v2375 = vunpack.c.l.b16 %v501
  %v2376 = vunpack.c.h.b16 %v501
  %v2377 = vunpack.c.l.b16 %v502
  %v2378 = vunpack.c.l.b16 %v503
  %v2379 = vunpack.c.h.b16 %v503
  %v2380 = vunpack.c.l.b16 %v504
  %v2381 = vunpack.c.l.b16 %v505
  %v2382 = vunpack.c.h.b16 %v505
  %v2383 = vunpack.c.l.b16 %v506
  %v2384 = vunpack.c.l.b16 %v507
  %v2385 = vunpack.c.h.b16 %v507
  %v2386 = vunpack.c.l.b16 %v508
  %v2387 = vunpack.c.l.b16 %v509
  %v2388 = vunpack.c.h.b16 %v509
  %v2389 = vunpack.c.l.b16 %v510
  %v2390 = vunpack.c.l.b16 %v511
  %v2391 = vunpack.c.h.b16 %v511
  %v2392 = vunpack.c.l.b16 %v512
  %v2393 = vunpack.c.l.b16 %v513
  %v2394 = vunpack.c.h.b16 %v513
  %v2395 = vunpack.c.l.b16 %v514
  %v2396 = vunpack.c.l.b16 %v515
  %v2397 = vunpack.c.h.b16 %v515
  %v2398 = vunpack.c.l.b16 %v516
  %v2399 = vunpack.c.l.b16 %v517
  %v2400 = vunpack.c.h.b16 %v517
  %v2401 = vunpack.c.l.b16 %v518
  %v2402 = vunpack.c.l.b16 %v519
  %v2403 = vunpack.c.h.b16 %v519
  %v2404 = vunpack.c.l.b16 %v520
  %v2405 = vunpack.c.l.b16 %v521
  %v2406 = vunpack.c.h.b16 %v521
  %v2407 = vunpack.c.l.b16 %v522
  %v2408 = vunpack.c.l.b16 %v523
  %v2409 = vunpack.c.h.b16 %v523
  %v2410 = vunpack.c.l.b16 %v524
  %v2411 = vunpack.c.l.b16 %v525
  %v2412 = vunpack.c.h.b16 %v525
  %v2413 = vunpack.c.l.b16 %v526
  %v2414 = vunpack.c.l.b16 %v527
  %v2415 = vunpack.c.h.b16 %v527
  %v2416 = vunpack.c.l.b16 %v528
  %v2417 = vunpack.c.l.b16 %v529
  %v2418 = vunpack.c.h.b16 %v529
  %v2419 = vunpack.c.l.b16 %v530
  %v2420 = vunpack.c.l.b16 %v531
  %v2421 = vunpack.c.h.b16 %v531
  %v2422 = vunpack.c.l.b16 %v532
  %v2423 = vunpack.c.l.b16 %v533
  %v2424 = vunpack.c.h.b16 %v533
  %v2425 = vunpack.c.l.b16 %v534
  %v2426 = vunpack.c.l.b16 %v535
  %v2427 = vunpack.c.h.b16 %v535
  %v2428 = vunpack.c.l.b16 %v536
  %v2429 = vunpack.c.l.b16 %v537
  %v2430 = vunpack.c.h.b16 %v537
  %v2431 = vunpack.c.l.b16 %v538
  %v2432 = vunpack.c.l.b16 %v539
  %v2433 = vunpack.c.h.b16 %v539
  %v2434 = vunpack.c.l.b16 %v540
  %v2435 = vunpack.c.l.b16 %v541
  %v2436 = vunpack.c.h.b16 %v541
  %v2437 = vunpack.c.l.b16 %v542
  %v2438 = vunpack.c.l.b16 %v543
  %v2439 = vunpack.c.h.b16 %v543
  %v2440 = vunpack.c.l.b16 %v544
  %v2441 = vunpack.c.l.b16 %v545
  %v2442 = vunpack.c.h.b16 %v545
  %v2443 = vunpack.c.l.b16 %v546
  %v2444 = vunpack.c.l.b16 %v547
  %v2445 = vunpack.c.h.b16 %v547
  %v2446 = vunpack.c.l.b16 %v548
  %v2447 = vunpack.c.l.b16 %v549
  %v2448 = vunpack.c.h.b16 %v549
  %v2449 = vunpack.c.l.b16 %v550
  %v2450 = vunpack.c.l.b16 %v551
  %v2451 = vunpack.c.h.b16 %v551
  %v2452 = vunpack.c.l.b16 %v552
  %v2453 = vunpack.c.l.b16 %v553
  %v2454 = vunpack.c.h.b16 %v553
  %v2455 = vunpack.c.l.b16 %v554
  %v2456 = vunpack.c.l.b16 %v555
  %v2457 = vunpack.c.h.b16 %v555
  %v2458 = vunpack.c.l.b16 %v556
  %v2459 = vunpack.c.l.b16 %v557
  %v2460 = vunpack.c.h.b16 %v557
  %v2461 = vunpack.c.l.b16 %v558
  %v2462 = vunpack.c.l.b16 %v559
  %v2463 = vunpack.c.h.b16 %v559
  %v2464 = vunpack.c.l.b16 %v560
  %v2465 = vunpack.c.l.b16 %v561
  %v2466 = vunpack.c.h.b16 %v561
  %v2467 = vunpack.c.l.b16 %v562
  %v2468 = vunpack.c.l.b16 %v563
  %v2469 = vunpack.c.h.b16 %v563
  %v2470 = vunpack.c.l.b16 %v564
  %v2471 = vunpack.c.l.b16 %v565
  %v2472 = vunpack.c.h.b16 %v565
  %v2473 = vunpack.c.l.b16 %v566
  %v2474 = vunpack.c.l.b16 %v567
  %v2475 = vunpack.c.h.b16 %v567
  %v2476 = vunpack.c.l.b16 %v568
  %v2477 = vunpack.c.l.b16 %v569
  %v2478 = vunpack.c.h.b16 %v569
  %v2479 = vunpack.c.l.b16 %v570
  %v2480 = vunpack.c.l.b16 %v571
  %v2481 = vunpack.c.h.b16 %v571
  %v2482 = vunpack.c.l.b16 %v572
  %v2483 = vunpack.c.l.b16 %v573
  %v2484 = vunpack.c.h.b16 %v573
  %v2485 = vunpack.c.l.b16 %v574
  %v2486 = vunpack.c.l.b16 %v575
  %v2487 = vunpack.c.h.b16 %v575
  %v2488 = vunpack.c.l.b16 %v576
  %v2489 = vunpack.c.l.b16 %v577
  %v2490 = vunpack.c.h.b16 %v577
  %v2491 = vunpack.c.l.b16 %v578
  %v2492 = vunpack.c.l.b16 %v579
  %v2493 = vunpack.c.h.b16 %v579
  %v2494 = vunpack.c.l.b16 %v580
  %v2495 = vunpack.c.l.b16 %v581
  %v2496 = vunpack.c.h.b16 %v581
  %v2497 = vunpack.c.l.b16 %v582
  %v2498 = vunpack.c.l.b16 %v583
  %v2499 = vunpack.c.h.b16 %v583
  %v2500 = vunpack.c.l.b16 %v584
  %v2501 = vunpack.c.l.b16 %v585
  %v2502 = vunpack.c.h.b16 %v585
  %v2503 = vunpack.c.l.b16 %v586
  %v2504 = vunpack.c.l.b16 %v587
  %v2505 = vunpack.c.h.b16 %v587
  %v2506 = vunpack.c.l.b16 %v588
  %v2507 = vunpack.c.l.b16 %v589
  %v2508 = vunpack.c.h.b16 %v589
  %v2509 = vunpack.c.l.b16 %v590
  %v2510 = vunpack.c.l.b16 %v591
  %v2511 = vunpack.c.h.b16 %v591
  %v2512 = vunpack.c.l.b16 %v592
  %v2513 = vunpack.c.l.b16 %v593
  %v2514 = vunpack.c.h.b16 %v593
  %v2515 = vunpack.c.l.b16 %v594
  %v2516 = vunpack.c.l.b16 %v595
  %v2517 = vunpack.c.h.b16 %v595
  %v2518 = vunpack.c.l.b16 %v596
  %v2519 = vunpack.c.l.b16 %v597
  %v2520 = vunpack.c.h.b16 %v597
  %v2521 = vunpack.c.l.b16 %v598
  %v2522 = vunpack.c.l.b16 %v599
  %v2523 = vunpack.c.h.b16 %v599
  %v2524 = vunpack.c.l.b16 %v600
  %v2525 = vunpack.c.l.b16 %v601
  %v2526 = vunpack.c.h.b16 %v601
  %v2527 = vunpack.c.l.b16 %v602
  %v2528 = vunpack.c.l.b16 %v603
  %v2529 = vunpack.c.h.b16 %v603
  %v2530 = vunpack.c.l.b16 %v604
  %v2531 = vunpack.c.l.b16 %v605
  %v2532 = vunpack.c.h.b16 %v605
  %v2533 = vunpack.c.l.b16 %v606
  %v2534 = vunpack.c.l.b16 %v607
  %v2535 = vunpack.c.h.b16 %v607
  %v2536 = vunpack.c.l.b16 %v608
  %v2537 = vunpack.c.l.b16 %v609
  %v2538 = vunpack.c.h.b16 %v609
  %v2539 = vunpack.c.l.b16 %v610
  %v2540 = vunpack.c.l.b16 %v611
  %v2541 = vunpack.c.h.b16 %v611
  %v2542 = vunpack.c.l.b16 %v612
  %v2543 = vunpack.c.l.b16 %v613
  %v2544 = vunpack.c.h.b16 %v613
  %v2545 = vunpack.c.l.b16 %v614
  %v2546 = vunpack.c.l.b16 %v615
  %v2547 = vunpack.c.h.b16 %v615
  %v2548 = vunpack.c.l.b16 %v616
  %v2549 = vunpack.c.l.b16 %v617
  %v2550 = vunpack.c.h.b16 %v617
  %v2551 = vunpack.c.l.b16 %v618
  %v2552 = vunpack.c.l.b16 %v619
  %v2553 = vunpack.c.h.b16 %v619
  %v2554 = vunpack.c.l.b16 %v620
  %v2555 = vunpack.c.l.b16 %v621
  %v2556 = vunpack.c.h.b16 %v621
  %v2557 = vunpack.c.l.b16 %v622
  %v2558 = vunpack.c.l.b16 %v623
  %v2559 = vunpack.c.h.b16 %v623
  %v2560 = vunpack.c.l.b16 %v624
  %v2561 = vunpack.c.l.b16 %v625
  %v2562 = vunpack.c.h.b16 %v625
  %v2563 = vunpack.c.l.b16 %v626
  %v2564 = vunpack.c.l.b16 %v627
  %v2565 = vunpack.c.h.b16 %v627
  %v2566 = vunpack.c.l.b16 %v628
  %v2567 = vunpack.c.l.b16 %v629
  %v2568 = vunpack.c.h.b16 %v629
  %v2569 = vunpack.c.l.b16 %v630
  %v2570 = vunpack.c.l.b16 %v631
  %v2571 = vunpack.c.h.b16 %v631
  %v2572 = vunpack.c.l.b16 %v632
  %v2573 = vunpack.c.l.b16 %v633
  %v2574 = vunpack.c.h.b16 %v633
  %v2575 = vunpack.c.l.b16 %v634
  %v2576 = vunpack.c.l.b16 %v635
  %v2577 = vunpack.c.h.b16 %v635
  %v2578 = vunpack.c.l.b16 %v636
  %v2579 = vunpack.c.l.b16 %v637
  %v2580 = vunpack.c.h.b16 %v637
  %v2581 = vunpack.c.l.b16 %v638
  %v2582 = vunpack.c.l.b16 %v639
  %v2583 = vunpack.c.h.b16 %v639
  %v2584 = vunpack.c.l.b16 %v640
  %v2585 = vunpack.c.l.b16 %v641
  %v2586 = vunpack.c.h.b16 %v641
  %v2587 = vunpack.c.l.b16 %v642
  %v2588 = vunpack.c.l.b16 %v643
  %v2589 = vunpack.c.h.b16 %v643
  %v2590 = vunpack.c.l.b16 %v644
  %v2591 = vunpack.c.l.b16 %v645
  %v2592 = vunpack.c.h.b16 %v645
  %v2593 = vunpack.c.l.b16 %v646
  %v2594 = vunpack.c.l.b16 %v647
  %v2595 = vunpack.c.h.b16 %v647
  %v2596 = vunpack.c.l.b16 %v648
  %v2597 = vunpack.c.l.b16 %v649
  %v2598 = vunpack.c.h.b16 %v649
  %v2599 = vunpack.c.l.b16 %v650
  %v2600 = vunpack.c.l.b16 %v651
  %v2601 = vunpack.c.h.b16 %v651
  %v2602 = vunpack.c.l.b16 %v652
  %v2603 = vunpack.c.l.b16 %v653
  %v2604 = vunpack.c.h.b16 %v653
  %v2605 = vunpack.c.l.b16 %v654
  %v2606 = vunpack.c.l.b16 %v655
  %v2607 = vunpack.c.h.b16 %v655
  %v2608 = vunpack.c.l.b16 %v656
  %v2609 = vunpack.c.l.b16 %v657
  %v2610 = vunpack.c.h.b16 %v657
  %v2611 = vunpack.c.l.b16 %v658
  %v2612 = vunpack.c.l.b16 %v659
  %v2613 = vunpack.c.h.b16 %v659
  %v2614 = vunpack.c.l.b16 %v660
  %v2615 = vunpack.c.l.b16 %v661
  %v2616 = vunpack.c.h.b16 %v661
  %v2617 = vunpack.c.l.b16 %v662
  %v2618 = vunpack.c.l.b16 %v663
  %v2619 = vunpack.c.h.b16 %v663
  %v2620 = vunpack.c.l.b16 %v664
  %v2621 = vunpack.c.l.b16 %v665
  %v2622 = vunpack.c.h.b16 %v665
  %v2623 = vunpack.c.l.b16 %v666
  %v2624 = vunpack.c.l.b16 %v667
  %v2625 = vunpack.c.h.b16 %v667
  %v2626 = vunpack.c.l.b16 %v668
  %v2627 = vunpack.c.l.b16 %v669
  %v2628 = vunpack.c.h.b16 %v669
  %v2629 = vunpack.c.l.b16 %v670
  %v2630 = vunpack.c.l.b16 %v671
  %v2631 = vunpack.c.h.b16 %v671
  %v2632 = vunpack.c.l.b16 %v672
  %v2633 = vunpack.c.l.b16 %v673
  %v2634 = vunpack.c.h.b16 %v673
  %v2635 = vunpack.c.l.b16 %v674
  %v2636 = vunpack.c.l.b16 %v675
  %v2637 = vunpack.c.h.b16 %v675
  %v2638 = vunpack.c.l.b16 %v676
  %v2639 = vunpack.c.l.b16 %v677
  %v2640 = vunpack.c.h.b16 %v677
  %v2641 = vunpack.c.l.b16 %v678
  %v2642 = vunpack.c.l.b16 %v679
  %v2643 = vunpack.c.h.b16 %v679
  %v2644 = vunpack.c.l.b16 %v680
  %v2645 = vunpack.c.l.b16 %v681
  %v2646 = vunpack.c.h.b16 %v681
  %v2647 = vunpack.c.l.b16 %v682
  %v2648 = vunpack.c.l.b16 %v683
  %v2649 = vunpack.c.h.b16 %v683
  %v2650 = vunpack.c.l.b16 %v684
  %v2651 = vunpack.c.l.b16 %v685
  %v2652 = vunpack.c.h.b16 %v685
  %v2653 = vunpack.c.l.b16 %v686
  %v2654 = vunpack.c.l.b16 %v687
  %v2655 = vunpack.c.h.b16 %v687
  %v2656 = vunpack.c.l.b16 %v688
  %v2657 = vunpack.c.l.b16 %v689
  %v2658 = vunpack.c.h.b16 %v689
  %v2659 = vunpack.c.l.b16 %v690
  %v2660 = vunpack.c.l.b16 %v691
  %v2661 = vunpack.c.h.b16 %v691
  %v2662 = vunpack.c.l.b16 %v692
  %v2663 = vunpack.c.l.b16 %v693
  %v2664 = vunpack.c.h.b16 %v693
  %v2665 = vunpack.c.l.b16 %v694
  %v2666 = vunpack.c.l.b16 %v695
  %v2667 = vunpack.c.h.b16 %v695
  %v2668 = vunpack.c.l.b16 %v696
  %v2669 = vunpack.c.l.b16 %v697
  %v2670 = vunpack.c.h.b16 %v697
  %v2671 = vunpack.c.l.b16 %v698
  %v2672 = vunpack.c.l.b16 %v699
  %v2673 = vunpack.c.h.b16 %v699
  %v2674 = vunpack.c.l.b16 %v700
  %v2675 = vunpack.c.l.b16 %v701
  %v2676 = vunpack.c.h.b16 %v701
  %v2677 = vunpack.c.l.b16 %v702
  %v2678 = vunpack.c.l.b16 %v703
  %v2679 = vunpack.c.h.b16 %v703
  %v2680 = vunpack.c.l.b16 %v704
  %v2681 = vunpack.c.l.b16 %v705
  %v2682 = vunpack.c.h.b16 %v705
  %v2683 = vunpack.c.l.b16 %v706
  %v2684 = vunpack.c.l.b16 %v707
  %v2685 = vunpack.c.h.b16 %v707
  %v2686 = vunpack.c.l.b16 %v708
  %v2687 = vunpack.c.l.b16 %v709
  %v2688 = vunpack.c.h.b16 %v709
  %v2689 = vunpack.c.l.b16 %v710
  %v2690 = vunpack.c.l.b16 %v711
  %v2691 = vunpack.c.h.b16 %v711
  %v2692 = vunpack.c.l.b16 %v712
  %v2693 = vunpack.c.l.b16 %v713
  %v2694 = vunpack.c.h.b16 %v713
  %v2695 = vunpack.c.l.b16 %v714
  %v2696 = vunpack.c.l.b16 %v715
  %v2697 = vunpack.c.h.b16 %v715
  %v2698 = vunpack.c.l.b16 %v716
  %v2699 = vunpack.c.l.b16 %v717
  %v2700 = vunpack.c.h.b16 %v717
  %v2701 = vunpack.c.l.b16 %v718
  %v2702 = vunpack.c.l.b16 %v719
  %v2703 = vunpack.c.h.b16 %v719
  %v2704 = vunpack.c.l.b16 %v720
  %v2705 = vunpack.c.l.b16 %v721
  %v2706 = vunpack.c.h.b16 %v721
  %v2707 = vunpack.c.l.b16 %v722
  %v2708 = vunpack.c.l.b16 %v723
  %v2709 = vunpack.c.h.b16 %v723
  %v2710 = vunpack.c.l.b16 %v724
  %v2711 = vunpack.c.l.b16 %v725
  %v2712 = vunpack.c.h.b16 %v725
  %v2713 = vunpack.c.l.b16 %v726
  %v2714 = vunpack.c.l.b16 %v727
  %v2715 = vunpack.c.h.b16 %v727
  %v2716 = vunpack.c.l.b16 %v728
  %v2717 = vunpack.c.l.b16 %v729
  %v2718 = vunpack.c.h.b16 %v729
  %v2719 = vunpack.c.l.b16 %v730
  %v2720 = vunpack.c.l.b16 %v731
  %v2721 = vunpack.c.h.b16 %v731
  %v2722 = vunpack.c.l.b16 %v732
  %v2723 = vunpack.c.l.b16 %v733
  %v2724 = vunpack.c.h.b16 %v733
  %v2725 = vunpack.c.l.b16 %v734
  %v2726 = vunpack.c.l.b16 %v735
  %v2727 = vunpack.c.h.b16 %v735
  %v2728 = vunpack.c.l.b16 %v736
  %v2729 = vunpack.c.l.b16 %v737
  %v2730 = vunpack.c.h.b16 %v737
  %v2731 = vunpack.c.l.b16 %v738
  %v2732 = vunpack.c.l.b16 %v739
  %v2733 = vunpack.c.h.b16 %v739
  %v2734 = vunpack.c.l.b16 %v740
  %v2735 = vunpack.c.l.b16 %v741
  %v2736 = vunpack.c.h.b16 %v741
  %v2737 = vunpack.c.l.b16 %v742
  %v2738 = vunpack.c.l.b16 %v743
  %v2739 = vunpack.c.h.b16 %v743
  %v2740 = vunpack.c.l.b16 %v744
  %v2741 = vunpack.c.l.b16 %v745
  %v2742 = vunpack.c.h.b16 %v745
  %v2743 = vunpack.c.l.b16 %v746
  %v2744 = vunpack.c.l.b16 %v747
  %v2745 = vunpack.c.h.b16 %v747
  %v2746 = vunpack.c.l.b16 %v748
  %v2747 = vunpack.c.l.b16 %v749
  %v2748 = vunpack.c.h.b16 %v749
  %v2749 = vunpack.c.l.b16 %v750
  %v2750 = vunpack.c.l.b16 %v751
  %v2751 = vunpack.c.h.b16 %v751
  %v2752 = vunpack.c.l.b16 %v752
  %v2753 = vunpack.c.l.b16 %v753
  %v2754 = vunpack.c.h.b16 %v753
  %v2755 = vunpack.c.l.b16 %v754
  %v2756 = vunpack.c.l.b16 %v755
  %v2757 = vunpack.c.h.b16 %v755
  %v2758 = vunpack.c.l.b16 %v756
  %v2759 = vunpack.c.l.b16 %v757
  %v2760 = vunpack.c.h.b16 %v757
  %v2761 = vunpack.c.l.b16 %v758
  %v2762 = vunpack.c.l.b16 %v759
  %v2763 = vunpack.c.h.b16 %v759
  %v2764 = vunpack.c.l.b16 %v760
  %v2765 = vunpack.c.l.b16 %v761
  %v2766 = vunpack.c.h.b16 %v761
  %v2767 = vunpack.c.l.b16 %v762
  %v2768 = vunpack.c.l.b16 %v763
  %v2769 = vunpack.c.h.b16 %v763
  %v2770 = vunpack.c.l.b16 %v764
  %v2771 = vunpack.c.l.b16 %v765
  %v2772 = vunpack.c.h.b16 %v765
  %v2773 = vunpack.c.l.b16 %v766
  %v2774 = vunpack.c.l.b16 %v767
  %v2775 = vunpack.c.h.b16 %v767
  %v2776 = vunpack.c.l.b16 %v768
  %v2777 = vunpack.c.l.b16 %v769
  %v2778 = vunpack.c.h.b16 %v769
  %v2779 = vunpack.c.l.b16 %v770
  %v2780 = vunpack.c.l.b16 %v771
  %v2781 = vunpack.c.h.b16 %v771
  %v2782 = vunpack.c.l.b16 %v772
  %v2783 = vunpack.c.l.b16 %v773
  %v2784 = vunpack.c.h.b16 %v773
  %v2785 = vunpack.c.l.b16 %v774
  %v2786 = vunpack.c.l.b16 %v775
  %v2787 = vunpack.c.h.b16 %v775
  %v2788 = vunpack.c.l.b16 %v776
  %v2789 = vunpack.c.l.b16 %v777
  %v2790 = vunpack.c.h.b16 %v777
  %v2791 = vunpack.c.l.b16 %v778
  %v2792 = vunpack.c.l.b16 %v779
  %v2793 = vunpack.c.h.b16 %v779
  %v2794 = vunpack.c.l.b16 %v780
  %v2795 = vunpack.c.l.b16 %v781
  %v2796 = vunpack.c.h.b16 %v781
  %v2797 = vunpack.c.l.b16 %v782
  %v2798 = vunpack.c.l.b16 %v783
  %v2799 = vunpack.c.h.b16 %v783
  %v2800 = vunpack.c.l.b16 %v784
  %v2801 = vunpack.c.l.b16 %v785
  %v2802 = vunpack.c.h.b16 %v785
  %v2803 = vunpack.c.l.b16 %v786
  %v2804 = vunpack.c.l.b16 %v787
  %v2805 = vunpack.c.h.b16 %v787
  %v2806 = vunpack.c.l.b16 %v788
  %v2807 = vunpack.c.l.b16 %v789
  %v2808 = vunpack.c.h.b16 %v789
  %v2809 = vunpack.c.l.b16 %v790
  %v2810 = vunpack.c.l.b16 %v791
  %v2811 = vunpack.c.h.b16 %v791
  %v2812 = vunpack.c.l.b16 %v792
  %v2813 = vunpack.c.l.b16 %v793
  %v2814 = vunpack.c.h.b16 %v793
  %v2815 = vunpack.c.l.b16 %v794
  %v2816 = vpack.c.b16 %v1667, %v1664
  %v2817 = vpack.c.b16 %v1668, %v1665
  %v2818 = vpack.c.b16 %v1669, %v1666
  %v2819 = vpack.c.b16 %v1673, %v1670
  %v2820 = vpack.c.b16 %v1674, %v1671
  %v2821 = vpack.c.b16 %v1675, %v1672
  %v2822 = vpack.c.b16 %v1679, %v1676
  %v2823 = vpack.c.b16 %v1680, %v1677
  %v2824 = vpack.c.b16 %v1681, %v1678
  %v2825 = vpack.c.b16 %v1685, %v1682
  %v2826 = vpack.c.b16 %v1686, %v1683
  %v2827 = vpack.c.b16 %v1687, %v1684
  %v2828 = vpack.c.b16 %v1691, %v1688
  %v2829 = vpack.c.b16 %v1692, %v1689
  %v2830 = vpack.c.b16 %v1693, %v1690
  %v2831 = vpack.c.b16 %v1697, %v1694
  %v2832 = vpack.c.b16 %v1698, %v1695
  %v2833 = vpack.c.b16 %v1699, %v1696
  %v2834 = vpack.c.b16 %v1703, %v1700
  %v2835 = vpack.c.b16 %v1704, %v1701
  %v2836 = vpack.c.b16 %v1705, %v1702
  %v2837 = vpack.c.b16 %v1709, %v1706
  %v2838 = vpack.c.b16 %v1710, %v1707
  %v2839 = vpack.c.b16 %v1711, %v1708
  %v2840 = vpack.c.b16 %v1715, %v1712
  %v2841 = vpack.c.b16 %v1716, %v1713
  %v2842 = vpack.c.b16 %v1717, %v1714
  %v2843 = vpack.c.b16 %v1721, %v1718
  %v2844 = vpack.c.b16 %v1722, %v1719
  %v2845 = vpack.c.b16 %v1723, %v1720
  %v2846 = vpack.c.b16 %v1727, %v1724
  %v2847 = vpack.c.b16 %v1728, %v1725
  %v2848 = vpack.c.b16 %v1729, %v1726
  %v2849 = vpack.c.b16 %v1733, %v1730
  %v2850 = vpack.c.b16 %v1734, %v1731
  %v2851 = vpack.c.b16 %v1735, %v1732
  %v2852 = vpack.c.b16 %v1739, %v1736
  %v2853 = vpack.c.b16 %v1740, %v1737
  %v2854 = vpack.c.b16 %v1741, %v1738
  %v2855 = vpack.c.b16 %v1745, %v1742
  %v2856 = vpack.c.b16 %v1746, %v1743
  %v2857 = vpack.c.b16 %v1747, %v1744
  %v2858 = vpack.c.b16 %v1751, %v1748
  %v2859 = vpack.c.b16 %v1752, %v1749
  %v2860 = vpack.c.b16 %v1753, %v1750
  %v2861 = vpack.c.b16 %v1757, %v1754
  %v2862 = vpack.c.b16 %v1758, %v1755
  %v2863 = vpack.c.b16 %v1759, %v1756
  %v2864 = vpack.c.b16 %v1763, %v1760
  %v2865 = vpack.c.b16 %v1764, %v1761
  %v2866 = vpack.c.b16 %v1765, %v1762
  %v2867 = vpack.c.b16 %v1769, %v1766
  %v2868 = vpack.c.b16 %v1770, %v1767
  %v2869 = vpack.c.b16 %v1771, %v1768
  %v2870 = vpack.c.b16 %v1775, %v1772
  %v2871 = vpack.c.b16 %v1776, %v1773
  %v2872 = vpack.c.b16 %v1777, %v1774
  %v2873 = vpack.c.b16 %v1781, %v1778
  %v2874 = vpack.c.b16 %v1782, %v1779
  %v2875 = vpack.c.b16 %v1783, %v1780
  %v2876 = vpack.c.b16 %v1787, %v1784
  %v2877 = vpack.c.b16 %v1788, %v1785
  %v2878 = vpack.c.b16 %v1789, %v1786
  %v2879 = vpack.c.b16 %v1793, %v1790
  %v2880 = vpack.c.b16 %v1794, %v1791
  %v2881 = vpack.c.b16 %v1795, %v1792
  %v2882 = vpack.c.b16 %v1799, %v1796
  %v2883 = vpack.c.b16 %v1800, %v1797
  %v2884 = vpack.c.b16 %v1801, %v1798
  %v2885 = vpack.c.b16 %v1805, %v1802
  %v2886 = vpack.c.b16 %v1806, %v1803
  %v2887 = vpack.c.b16 %v1807, %v1804
  %v2888 = vpack.c.b16 %v1811, %v1808
  %v2889 = vpack.c.b16 %v1812, %v1809
  %v2890 = vpack.c.b16 %v1813, %v1810
  %v2891 = vpack.c.b16 %v1817, %v1814
  %v2892 = vpack.c.b16 %v1818, %v1815
  %v2893 = vpack.c.b16 %v1819, %v1816
  %v2894 = vpack.c.b16 %v1823, %v1820
  %v2895 = vpack.c.b16 %v1824, %v1821
  %v2896 = vpack.c.b16 %v1825, %v1822
  %v2897 = vpack.c.b16 %v1829, %v1826
  %v2898 = vpack.c.b16 %v1830, %v1827
  %v2899 = vpack.c.b16 %v1831, %v1828
  %v2900 = vpack.c.b16 %v1835, %v1832
  %v2901 = vpack.c.b16 %v1836, %v1833
  %v2902 = vpack.c.b16 %v1837, %v1834
  %v2903 = vpack.c.b16 %v1841, %v1838
  %v2904 = vpack.c.b16 %v1842, %v1839
  %v2905 = vpack.c.b16 %v1843, %v1840
  %v2906 = vpack.c.b16 %v1847, %v1844
  %v2907 = vpack.c.b16 %v1848, %v1845
  %v2908 = vpack.c.b16 %v1849, %v1846
  %v2909 = vpack.c.b16 %v1853, %v1850
  %v2910 = vpack.c.b16 %v1854, %v1851
  %v2911 = vpack.c.b16 %v1855, %v1852
  %v2912 = vpack.c.b16 %v1859, %v1856
  %v2913 = vpack.c.b16 %v1860, %v1857
  %v2914 = vpack.c.b16 %v1861, %v1858
  %v2915 = vpack.c.b16 %v1865, %v1862
  %v2916 = vpack.c.b16 %v1866, %v1863
  %v2917 = vpack.c.b16 %v1867, %v1864
  %v2918 = vpack.c.b16 %v1871, %v1868
  %v2919 = vpack.c.b16 %v1872, %v1869
  %v2920 = vpack.c.b16 %v1873, %v1870
  %v2921 = vpack.c.b16 %v1877, %v1874
  %v2922 = vpack.c.b16 %v1878, %v1875
  %v2923 = vpack.c.b16 %v1879, %v1876
  %v2924 = vpack.c.b16 %v1883, %v1880
  %v2925 = vpack.c.b16 %v1884, %v1881
  %v2926 = vpack.c.b16 %v1885, %v1882
  %v2927 = vpack.c.b16 %v1889, %v1886
  %v2928 = vpack.c.b16 %v1890, %v1887
  %v2929 = vpack.c.b16 %v1891, %v1888
  %v2930 = vpack.c.b16 %v1895, %v1892
  %v2931 = vpack.c.b16 %v1896, %v1893
  %v2932 = vpack.c.b16 %v1897, %v1894
  %v2933 = vpack.c.b16 %v1901, %v1898
  %v2934 = vpack.c.b16 %v1902, %v1899
  %v2935 = vpack.c.b16 %v1903, %v1900
  %v2936 = vpack.c.b16 %v1907, %v1904
  %v2937 = vpack.c.b16 %v1908, %v1905
  %v2938 = vpack.c.b16 %v1909, %v1906
  %v2939 = vpack.c.b16 %v1913, %v1910
  %v2940 = vpack.c.b16 %v1914, %v1911
  %v2941 = vpack.c.b16 %v1915, %v1912
  %v2942 = vpack.c.b16 %v1919, %v1916
  %v2943 = vpack.c.b16 %v1920, %v1917
  %v2944 = vpack.c.b16 %v1921, %v1918
  %v2945 = vpack.c.b16 %v1925, %v1922
  %v2946 = vpack.c.b16 %v1926, %v1923
  %v2947 = vpack.c.b16 %v1927, %v1924
  %v2948 = vpack.c.b16 %v1931, %v1928
  %v2949 = vpack.c.b16 %v1932, %v1929
  %v2950 = vpack.c.b16 %v1933, %v1930
  %v2951 = vpack.c.b16 %v1937, %v1934
  %v2952 = vpack.c.b16 %v1938, %v1935
  %v2953 = vpack.c.b16 %v1939, %v1936
  %v2954 = vpack.c.b16 %v1943, %v1940
  %v2955 = vpack.c.b16 %v1944, %v1941
  %v2956 = vpack.c.b16 %v1945, %v1942
  %v2957 = vpack.c.b16 %v1949, %v1946
  %v2958 = vpack.c.b16 %v1950, %v1947
  %v2959 = vpack.c.b16 %v1951, %v1948
  %v2960 = vpack.c.b16 %v1955, %v1952
  %v2961 = vpack.c.b16 %v1956, %v1953
  %v2962 = vpack.c.b16 %v1957, %v1954
  %v2963 = vpack.c.b16 %v1961, %v1958
  %v2964 = vpack.c.b16 %v1962, %v1959
  %v2965 = vpack.c.b16 %v1963, %v1960
  %v2966 = vpack.c.b16 %v1967, %v1964
  %v2967 = vpack.c.b16 %v1968, %v1965
  %v2968 = vpack.c.b16 %v1969, %v1966
  %v2969 = vpack.c.b16 %v1973, %v1970
  %v2970 = vpack.c.b16 %v1974, %v1971
  %v2971 = vpack.c.b16 %v1975, %v1972
  %v2972 = vpack.c.b16 %v1979, %v1976
  %v2973 = vpack.c.b16 %v1980, %v1977
  %v2974 = vpack.c.b16 %v1981, %v1978
  %v2975 = vpack.c.b16 %v1985, %v1982
  %v2976 = vpack.c.b16 %v1986, %v1983
  %v2977 = vpack.c.b16 %v1987, %v1984
  %v2978 = vpack.c.b16 %v1991, %v1988
  %v2979 = vpack.c.b16 %v1992, %v1989
  %v2980 = vpack.c.b16 %v1993, %v1990
  %v2981 = vpack.c.b16 %v1997, %v1994
  %v2982 = vpack.c.b16 %v1998, %v1995
  %v2983 = vpack.c.b16 %v1999, %v1996
  %v2984 = vpack.c.b16 %v2003, %v2000
  %v2985 = vpack.c.b16 %v2004, %v2001
  %v2986 = vpack.c.b16 %v2005, %v2002
  %v2987 = vpack.c.b16 %v2009, %v2006
  %v2988 = vpack.c.b16 %v2010, %v2007
  %v2989 = vpack.c.b16 %v2011, %v2008
  %v2990 = vpack.c.b16 %v2015, %v2012
  %v2991 = vpack.c.b16 %v2016, %v2013
  %v2992 = vpack.c.b16 %v2017, %v2014
  %v2993 = vpack.c.b16 %v2021, %v2018
  %v2994 = vpack.c.b16 %v2022, %v2019
  %v2995 = vpack.c.b16 %v2023, %v2020
  %v2996 = vpack.c.b16 %v2027, %v2024
  %v2997 = vpack.c.b16 %v2028, %v2025
  %v2998 = vpack.c.b16 %v2029, %v2026
  %v2999 = vpack.c.b16 %v2033, %v2030
  %v3000 = vpack.c.b16 %v2034, %v2031
  %v3001 = vpack.c.b16 %v2035, %v2032
  %v3002 = vpack.c.b16 %v2039, %v2036
  %v3003 = vpack.c.b16 %v2040, %v2037
  %v3004 = vpack.c.b16 %v2041, %v2038
  %v3005 = vpack.c.b16 %v2045, %v2042
  %v3006 = vpack.c.b16 %v2046, %v2043
  %v3007 = vpack.c.b16 %v2047, %v2044
  %v3008 = vpack.c.b16 %v2051, %v2048
  %v3009 = vpack.c.b16 %v2052, %v2049
  %v3010 = vpack.c.b16 %v2053, %v2050
  %v3011 = vpack.c.b16 %v2057, %v2054
  %v3012 = vpack.c.b16 %v2058, %v2055
  %v3013 = vpack.c.b16 %v2059, %v2056
  %v3014 = vpack.c.b16 %v2063, %v2060
  %v3015 = vpack.c.b16 %v2064, %v2061
  %v3016 = vpack.c.b16 %v2065, %v2062
  %v3017 = vpack.c.b16 %v2069, %v2066
  %v3018 = vpack.c.b16 %v2070, %v2067
  %v3019 = vpack.c.b16 %v2071, %v2068
  %v3020 = vpack.c.b16 %v2075, %v2072
  %v3021 = vpack.c.b16 %v2076, %v2073
  %v3022 = vpack.c.b16 %v2077, %v2074
  %v3023 = vpack.c.b16 %v2081, %v2078
  %v3024 = vpack.c.b16 %v2082, %v2079
  %v3025 = vpack.c.b16 %v2083, %v2080
  %v3026 = vpack.c.b16 %v2087, %v2084
  %v3027 = vpack.c.b16 %v2088, %v2085
  %v3028 = vpack.c.b16 %v2089, %v2086
  %v3029 = vpack.c.b16 %v2093, %v2090
  %v3030 = vpack.c.b16 %v2094, %v2091
  %v3031 = vpack.c.b16 %v2095, %v2092
  %v3032 = vpack.c.b16 %v2099, %v2096
  %v3033 = vpack.c.b16 %v2100, %v2097
  %v3034 = vpack.c.b16 %v2101, %v2098
  %v3035 = vpack.c.b16 %v2105, %v2102
  %v3036 = vpack.c.b16 %v2106, %v2103
  %v3037 = vpack.c.b16 %v2107, %v2104
  %v3038 = vpack.c.b16 %v2111, %v2108
  %v3039 = vpack.c.b16 %v2112, %v2109
  %v3040 = vpack.c.b16 %v2113, %v2110
  %v3041 = vpack.c.b16 %v2117, %v2114
  %v3042 = vpack.c.b16 %v2118, %v2115
  %v3043 = vpack.c.b16 %v2119, %v2116
  %v3044 = vpack.c.b16 %v2123, %v2120
  %v3045 = vpack.c.b16 %v2124, %v2121
  %v3046 = vpack.c.b16 %v2125, %v2122
  %v3047 = vpack.c.b16 %v2129, %v2126
  %v3048 = vpack.c.b16 %v2130, %v2127
  %v3049 = vpack.c.b16 %v2131, %v2128
  %v3050 = vpack.c.b16 %v2135, %v2132
  %v3051 = vpack.c.b16 %v2136, %v2133
  %v3052 = vpack.c.b16 %v2137, %v2134
  %v3053 = vpack.c.b16 %v2141, %v2138
  %v3054 = vpack.c.b16 %v2142, %v2139
  %v3055 = vpack.c.b16 %v2143, %v2140
  %v3056 = vpack.c.b16 %v2147, %v2144
  %v3057 = vpack.c.b16 %v2148, %v2145
  %v3058 = vpack.c.b16 %v2149, %v2146
  %v3059 = vpack.c.b16 %v2153, %v2150
  %v3060 = vpack.c.b16 %v2154, %v2151
  %v3061 = vpack.c.b16 %v2155, %v2152
  %v3062 = vpack.c.b16 %v2159, %v2156
  %v3063 = vpack.c.b16 %v2160, %v2157
  %v3064 = vpack.c.b16 %v2161, %v2158
  %v3065 = vpack.c.b16 %v2165, %v2162
  %v3066 = vpack.c.b16 %v2166, %v2163
  %v3067 = vpack.c.b16 %v2167, %v2164
  %v3068 = vpack.c.b16 %v2171, %v2168
  %v3069 = vpack.c.b16 %v2172, %v2169
  %v3070 = vpack.c.b16 %v2173, %v2170
  %v3071 = vpack.c.b16 %v2177, %v2174
  %v3072 = vpack.c.b16 %v2178, %v2175
  %v3073 = vpack.c.b16 %v2179, %v2176
  %v3074 = vpack.c.b16 %v2183, %v2180
  %v3075 = vpack.c.b16 %v2184, %v2181
  %v3076 = vpack.c.b16 %v2185, %v2182
  %v3077 = vpack.c.b16 %v2189, %v2186
  %v3078 = vpack.c.b16 %v2190, %v2187
  %v3079 = vpack.c.b16 %v2191, %v2188
  %v3080 = vpack.c.b16 %v2195, %v2192
  %v3081 = vpack.c.b16 %v2196, %v2193
  %v3082 = vpack.c.b16 %v2197, %v2194
  %v3083 = vpack.c.b16 %v2201, %v2198
  %v3084 = vpack.c.b16 %v2202, %v2199
  %v3085 = vpack.c.b16 %v2203, %v2200
  %v3086 = vpack.c.b16 %v2207, %v2204
  %v3087 = vpack.c.b16 %v2208, %v2205
  %v3088 = vpack.c.b16 %v2209, %v2206
  %v3089 = vpack.c.b16 %v2213, %v2210
  %v3090 = vpack.c.b16 %v2214, %v2211
  %v3091 = vpack.c.b16 %v2215, %v2212
  %v3092 = vpack.c.b16 %v2219, %v2216
  %v3093 = vpack.c.b16 %v2220, %v2217
  %v3094 = vpack.c.b16 %v2221, %v2218
  %v3095 = vpack.c.b16 %v2225, %v2222
  %v3096 = vpack.c.b16 %v2226, %v2223
  %v3097 = vpack.c.b16 %v2227, %v2224
  %v3098 = vpack.c.b16 %v2231, %v2228
  %v3099 = vpack.c.b16 %v2232, %v2229
  %v3100 = vpack.c.b16 %v2233, %v2230
  %v3101 = vpack.c.b16 %v2237, %v2234
  %v3102 = vpack.c.b16 %v2238, %v2235
  %v3103 = vpack.c.b16 %v2239, %v2236
  %v3104 = vpack.c.b16 %v2243, %v2240
  %v3105 = vpack.c.b16 %v2244, %v2241
  %v3106 = vpack.c.b16 %v2245, %v2242
  %v3107 = vpack.c.b16 %v2249, %v2246
  %v3108 = vpack.c.b16 %v2250, %v2247
  %v3109 = vpack.c.b16 %v2251, %v2248
  %v3110 = vpack.c.b16 %v2255, %v2252
  %v3111 = vpack.c.b16 %v2256, %v2253
  %v3112 = vpack.c.b16 %v2257, %v2254
  %v3113 = vpack.c.b16 %v2261, %v2258
  %v3114 = vpack.c.b16 %v2262, %v2259
  %v3115 = vpack.c.b16 %v2263, %v2260
  %v3116 = vpack.c.b16 %v2267, %v2264
  %v3117 = vpack.c.b16 %v2268, %v2265
  %v3118 = vpack.c.b16 %v2269, %v2266
  %v3119 = vpack.c.b16 %v2273, %v2270
  %v3120 = vpack.c.b16 %v2274, %v2271
  %v3121 = vpack.c.b16 %v2275, %v2272
  %v3122 = vpack.c.b16 %v2279, %v2276
  %v3123 = vpack.c.b16 %v2280, %v2277
  %v3124 = vpack.c.b16 %v2281, %v2278
  %v3125 = vpack.c.b16 %v2285, %v2282
  %v3126 = vpack.c.b16 %v2286, %v2283
  %v3127 = vpack.c.b16 %v2287, %v2284
  %v3128 = vpack.c.b16 %v2291, %v2288
  %v3129 = vpack.c.b16 %v2292, %v2289
  %v3130 = vpack.c.b16 %v2293, %v2290
  %v3131 = vpack.c.b16 %v2297, %v2294
  %v3132 = vpack.c.b16 %v2298, %v2295
  %v3133 = vpack.c.b16 %v2299, %v2296
  %v3134 = vpack.c.b16 %v2303, %v2300
  %v3135 = vpack.c.b16 %v2304, %v2301
  %v3136 = vpack.c.b16 %v2305, %v2302
  %v3137 = vpack.c.b16 %v2309, %v2306
  %v3138 = vpack.c.b16 %v2310, %v2307
  %v3139 = vpack.c.b16 %v2311, %v2308
  %v3140 = vpack.c.b16 %v2315, %v2312
  %v3141 = vpack.c.b16 %v2316, %v2313
  %v3142 = vpack.c.b16 %v2317, %v2314
  %v3143 = vpack.c.b16 %v2321, %v2318
  %v3144 = vpack.c.b16 %v2322, %v2319
  %v3145 = vpack.c.b16 %v2323, %v2320
  %v3146 = vpack.c.b16 %v2327, %v2324
  %v3147 = vpack.c.b16 %v2328, %v2325
  %v3148 = vpack.c.b16 %v2329, %v2326
  %v3149 = vpack.c.b16 %v2333, %v2330
  %v3150 = vpack.c.b16 %v2334, %v2331
  %v3151 = vpack.c.b16 %v2335, %v2332
  %v3152 = vpack.c.b16 %v2339, %v2336
  %v3153 = vpack.c.b16 %v2340, %v2337
  %v3154 = vpack.c.b16 %v2341, %v2338
  %v3155 = vpack.c.b16 %v2345, %v2342
  %v3156 = vpack.c.b16 %v2346, %v2343
  %v3157 = vpack.c.b16 %v2347, %v2344
  %v3158 = vpack.c.b16 %v2351, %v2348
  %v3159 = vpack.c.b16 %v2352, %v2349
  %v3160 = vpack.c.b16 %v2353, %v2350
  %v3161 = vpack.c.b16 %v2357, %v2354
  %v3162 = vpack.c.b16 %v2358, %v2355
  %v3163 = vpack.c.b16 %v2359, %v2356
  %v3164 = vpack.c.b16 %v2363, %v2360
  %v3165 = vpack.c.b16 %v2364, %v2361
  %v3166 = vpack.c.b16 %v2365, %v2362
  %v3167 = vpack.c.b16 %v2369, %v2366
  %v3168 = vpack.c.b16 %v2370, %v2367
  %v3169 = vpack.c.b16 %v2371, %v2368
  %v3170 = vpack.c.b16 %v2375, %v2372
  %v3171 = vpack.c.b16 %v2376, %v2373
  %v3172 = vpack.c.b16 %v2377, %v2374
  %v3173 = vpack.c.b16 %v2381, %v2378
  %v3174 = vpack.c.b16 %v2382, %v2379
  %v3175 = vpack.c.b16 %v2383, %v2380
  %v3176 = vpack.c.b16 %v2387, %v2384
  %v3177 = vpack.c.b16 %v2388, %v2385
  %v3178 = vpack.c.b16 %v2389, %v2386
  %v3179 = vpack.c.b16 %v2393, %v2390
  %v3180 = vpack.c.b16 %v2394, %v2391
  %v3181 = vpack.c.b16 %v2395, %v2392
  %v3182 = vpack.c.b16 %v2399, %v2396
  %v3183 = vpack.c.b16 %v2400, %v2397
  %v3184 = vpack.c.b16 %v2401, %v2398
  %v3185 = vpack.c.b16 %v2405, %v2402
  %v3186 = vpack.c.b16 %v2406, %v2403
  %v3187 = vpack.c.b16 %v2407, %v2404
  %v3188 = vpack.c.b16 %v2411, %v2408
  %v3189 = vpack.c.b16 %v2412, %v2409
  %v3190 = vpack.c.b16 %v2413, %v2410
  %v3191 = vpack.c.b16 %v2417, %v2414
  %v3192 = vpack.c.b16 %v2418, %v2415
  %v3193 = vpack.c.b16 %v2419, %v2416
  %v3194 = vpack.c.b16 %v2423, %v2420
  %v3195 = vpack.c.b16 %v2424, %v2421
  %v3196 = vpack.c.b16 %v2425, %v2422
  %v3197 = vpack.c.b16 %v2429, %v2426
  %v3198 = vpack.c.b16 %v2430, %v2427
  %v3199 = vpack.c.b16 %v2431, %v2428
  %v3200 = vpack.c.b16 %v2435, %v2432
  %v3201 = vpack.c.b16 %v2436, %v2433
  %v3202 = vpack.c.b16 %v2437, %v2434
  %v3203 = vpack.c.b16 %v2441, %v2438
  %v3204 = vpack.c.b16 %v2442, %v2439
  %v3205 = vpack.c.b16 %v2443, %v2440
  %v3206 = vpack.c.b16 %v2447, %v2444
  %v3207 = vpack.c.b16 %v2448, %v2445
  %v3208 = vpack.c.b16 %v2449, %v2446
  %v3209 = vpack.c.b16 %v2453, %v2450
  %v3210 = vpack.c.b16 %v2454, %v2451
  %v3211 = vpack.c.b16 %v2455, %v2452
  %v3212 = vpack.c.b16 %v2459, %v2456
  %v3213 = vpack.c.b16 %v2460, %v2457
  %v3214 = vpack.c.b16 %v2461, %v2458
  %v3215 = vpack.c.b16 %v2465, %v2462
  %v3216 = vpack.c.b16 %v2466, %v2463
  %v3217 = vpack.c.b16 %v2467, %v2464
  %v3218 = vpack.c.b16 %v2471, %v2468
  %v3219 = vpack.c.b16 %v2472, %v2469
  %v3220 = vpack.c.b16 %v2473, %v2470
  %v3221 = vpack.c.b16 %v2477, %v2474
  %v3222 = vpack.c.b16 %v2478, %v2475
  %v3223 = vpack.c.b16 %v2479, %v2476
  %v3224 = vpack.c.b16 %v2483, %v2480
  %v3225 = vpack.c.b16 %v2484, %v2481
  %v3226 = vpack.c.b16 %v2485, %v2482
  %v3227 = vpack.c.b16 %v2489, %v2486
  %v3228 = vpack.c.b16 %v2490, %v2487
  %v3229 = vpack.c.b16 %v2491, %v2488
  %v3230 = vpack.c.b16 %v2495, %v2492
  %v3231 = vpack.c.b16 %v2496, %v2493
  %v3232 = vpack.c.b16 %v2497, %v2494
  %v3233 = vpack.c.b16 %v2501, %v2498
  %v3234 = vpack.c.b16 %v2502, %v2499
  %v3235 = vpack.c.b16 %v2503, %v2500
  %v3236 = vpack.c.b16 %v2507, %v2504
  %v3237 = vpack.c.b16 %v2508, %v2505
  %v3238 = vpack.c.b16 %v2509, %v2506
  %v3239 = vpack.c.b16 %v2513, %v2510
  %v3240 = vpack.c.b16 %v2514, %v2511
  %v3241 = vpack.c.b16 %v2515, %v2512
  %v3242 = vpack.c.b16 %v2519, %v2516
  %v3243 = vpack.c.b16 %v2520, %v2517
  %v3244 = vpack.c.b16 %v2521, %v2518
  %v3245 = vpack.c.b16 %v2525, %v2522
  %v3246 = vpack.c.b16 %v2526, %v2523
  %v3247 = vpack.c.b16 %v2527, %v2524
  %v3248 = vpack.c.b16 %v2531, %v2528
  %v3249 = vpack.c.b16 %v2532, %v2529
  %v3250 = vpack.c.b16 %v2533, %v2530
  %v3251 = vpack.c.b16 %v2537, %v2534
  %v3252 = vpack.c.b16 %v2538, %v2535
  %v3253 = vpack.c.b16 %v2539, %v2536
  %v3254 = vpack.c.b16 %v2543, %v2540
  %v3255 = vpack.c.b16 %v2544, %v2541
  %v3256 = vpack.c.b16 %v2545, %v2542
  %v3257 = vpack.c.b16 %v2549, %v2546
  %v3258 = vpack.c.b16 %v2550, %v2547
  %v3259 = vpack.c.b16 %v2551, %v2548
  %v3260 = vpack.c.b16 %v2555, %v2552
  %v3261 = vpack.c.b16 %v2556, %v2553
  %v3262 = vpack.c.b16 %v2557, %v2554
  %v3263 = vpack.c.b16 %v2561, %v2558
  %v3264 = vpack.c.b16 %v2562, %v2559
  %v3265 = vpack.c.b16 %v2563, %v2560
  %v3266 = vpack.c.b16 %v2567, %v2564
  %v3267 = vpack.c.b16 %v2568, %v2565
  %v3268 = vpack.c.b16 %v2569, %v2566
  %v3269 = vpack.c.b16 %v2573, %v2570
  %v3270 = vpack.c.b16 %v2574, %v2571
  %v3271 = vpack.c.b16 %v2575, %v2572
  %v3272 = vpack.c.b16 %v2579, %v2576
  %v3273 = vpack.c.b16 %v2580, %v2577
  %v3274 = vpack.c.b16 %v2581, %v2578
  %v3275 = vpack.c.b16 %v2585, %v2582
  %v3276 = vpack.c.b16 %v2586, %v2583
  %v3277 = vpack.c.b16 %v2587, %v2584
  %v3278 = vpack.c.b16 %v2591, %v2588
  %v3279 = vpack.c.b16 %v2592, %v2589
  %v3280 = vpack.c.b16 %v2593, %v2590
  %v3281 = vpack.c.b16 %v2597, %v2594
  %v3282 = vpack.c.b16 %v2598, %v2595
  %v3283 = vpack.c.b16 %v2599, %v2596
  %v3284 = vpack.c.b16 %v2603, %v2600
  %v3285 = vpack.c.b16 %v2604, %v2601
  %v3286 = vpack.c.b16 %v2605, %v2602
  %v3287 = vpack.c.b16 %v2609, %v2606
  %v3288 = vpack.c.b16 %v2610, %v2607
  %v3289 = vpack.c.b16 %v2611, %v2608
  %v3290 = vpack.c.b16 %v2615, %v2612
  %v3291 = vpack.c.b16 %v2616, %v2613
  %v3292 = vpack.c.b16 %v2617, %v2614
  %v3293 = vpack.c.b16 %v2621, %v2618
  %v3294 = vpack.c.b16 %v2622, %v2619
  %v3295 = vpack.c.b16 %v2623, %v2620
  %v3296 = vpack.c.b16 %v2627, %v2624
  %v3297 = vpack.c.b16 %v2628, %v2625
  %v3298 = vpack.c.b16 %v2629, %v2626
  %v3299 = vpack.c.b16 %v2633, %v2630
  %v3300 = vpack.c.b16 %v2634, %v2631
  %v3301 = vpack.c.b16 %v2635, %v2632
  %v3302 = vpack.c.b16 %v2639, %v2636
  %v3303 = vpack.c.b16 %v2640, %v2637
  %v3304 = vpack.c.b16 %v2641, %v2638
  %v3305 = vpack.c.b16 %v2645, %v2642
  %v3306 = vpack.c.b16 %v2646, %v2643
  %v3307 = vpack.c.b16 %v2647, %v2644
  %v3308 = vpack.c.b16 %v2651, %v2648
  %v3309 = vpack.c.b16 %v2652, %v2649
  %v3310 = vpack.c.b16 %v2653, %v2650
  %v3311 = vpack.c.b16 %v2657, %v2654
  %v3312 = vpack.c.b16 %v2658, %v2655
  %v3313 = vpack.c.b16 %v2659, %v2656
  %v3314 = vpack.c.b16 %v2663, %v2660
  %v3315 = vpack.c.b16 %v2664, %v2661
  %v3316 = vpack.c.b16 %v2665, %v2662
  %v3317 = vpack.c.b16 %v2669, %v2666
  %v3318 = vpack.c.b16 %v2670, %v2667
  %v3319 = vpack.c.b16 %v2671, %v2668
  %v3320 = vpack.c.b16 %v2675, %v2672
  %v3321 = vpack.c.b16 %v2676, %v2673
  %v3322 = vpack.c.b16 %v2677, %v2674
  %v3323 = vpack.c.b16 %v2681, %v2678
  %v3324 = vpack.c.b16 %v2682, %v2679
  %v3325 = vpack.c.b16 %v2683, %v2680
  %v3326 = vpack.c.b16 %v2687, %v2684
  %v3327 = vpack.c.b16 %v2688, %v2685
  %v3328 = vpack.c.b16 %v2689, %v2686
  %v3329 = vpack.c.b16 %v2693, %v2690
  %v3330 = vpack.c.b16 %v2694, %v2691
  %v3331 = vpack.c.b16 %v2695, %v2692
  %v3332 = vpack.c.b16 %v2699, %v2696
  %v3333 = vpack.c.b16 %v2700, %v2697
  %v3334 = vpack.c.b16 %v2701, %v2698
  %v3335 = vpack.c.b16 %v2705, %v2702
  %v3336 = vpack.c.b16 %v2706, %v2703
  %v3337 = vpack.c.b16 %v2707, %v2704
  %v3338 = vpack.c.b16 %v2711, %v2708
  %v3339 = vpack.c.b16 %v2712, %v2709
  %v3340 = vpack.c.b16 %v2713, %v2710
  %v3341 = vpack.c.b16 %v2717, %v2714
  %v3342 = vpack.c.b16 %v2718, %v2715
  %v3343 = vpack.c.b16 %v2719, %v2716
  %v3344 = vpack.c.b16 %v2723, %v2720
  %v3345 = vpack.c.b16 %v2724, %v2721
  %v3346 = vpack.c.b16 %v2725, %v2722
  %v3347 = vpack.c.b16 %v2729, %v2726
  %v3348 = vpack.c.b16 %v2730, %v2727
  %v3349 = vpack.c.b16 %v2731, %v2728
  %v3350 = vpack.c.b16 %v2735, %v2732
  %v3351 = vpack.c.b16 %v2736, %v2733
  %v3352 = vpack.c.b16 %v2737, %v2734
  %v3353 = vpack.c.b16 %v2741, %v2738
  %v3354 = vpack.c.b16 %v2742, %v2739
  %v3355 = vpack.c.b16 %v2743, %v2740
  %v3356 = vpack.c.b16 %v2747, %v2744
  %v3357 = vpack.c.b16 %v2748, %v2745
  %v3358 = vpack.c.b16 %v2749, %v2746
  %v3359 = vpack.c.b16 %v2753, %v2750
  %v3360 = vpack.c.b16 %v2754, %v2751
  %v3361 = vpack.c.b16 %v2755, %v2752
  %v3362 = vpack.c.b16 %v2759, %v2756
  %v3363 = vpack.c.b16 %v2760, %v2757
  %v3364 = vpack.c.b16 %v2761, %v2758
  %v3365 = vpack.c.b16 %v2765, %v2762
  %v3366 = vpack.c.b16 %v2766, %v2763
  %v3367 = vpack.c.b16 %v2767, %v2764
  %v3368 = vpack.c.b16 %v2771, %v2768
  %v3369 = vpack.c.b16 %v2772, %v2769
  %v3370 = vpack.c.b16 %v2773, %v2770
  %v3371 = vpack.c.b16 %v2777, %v2774
  %v3372 = vpack.c.b16 %v2778, %v2775
  %v3373 = vpack.c.b16 %v2779, %v2776
  %v3374 = vpack.c.b16 %v2783, %v2780
  %v3375 = vpack.c.b16 %v2784, %v2781
  %v3376 = vpack.c.b16 %v2785, %v2782
  %v3377 = vpack.c.b16 %v2789, %v2786
  %v3378 = vpack.c.b16 %v2790, %v2787
  %v3379 = vpack.c.b16 %v2791, %v2788
  %v3380 = vpack.c.b16 %v2795, %v2792
  %v3381 = vpack.c.b16 %v2796, %v2793
  %v3382 = vpack.c.b16 %v2797, %v2794
  %v3383 = vpack.c.b16 %v2801, %v2798
  %v3384 = vpack.c.b16 %v2802, %v2799
  %v3385 = vpack.c.b16 %v2803, %v2800
  %v3386 = vpack.c.b16 %v2807, %v2804
  %v3387 = vpack.c.b16 %v2808, %v2805
  %v3388 = vpack.c.b16 %v2809, %v2806
  %v3389 = vpack.c.b16 %v2813, %v2810
  %v3390 = vpack.c.b16 %v2814, %v2811
  %v3391 = vpack.c.b16 %v2815, %v2812
  %3968 = vmatprep.subr.bf16.mxu0 %v2817
  %3969 = vmatpush1.bf16.msra.mxu0 %v2816
  %3970 = vmatprep.subr.bf16.mxu0 %v2820
  %3971 = vmatpush1.bf16.msra.mxu0 %v2819
  %3972 = vmatprep.subr.bf16.mxu0 %v2823
  %3973 = vmatpush1.bf16.msra.mxu0 %v2822
  %3974 = vmatprep.subr.bf16.mxu0 %v2826
  %3975 = vmatpush1.bf16.msra.mxu0 %v2825
  %3976 = vmatprep.subr.bf16.mxu0 %v2829
  %3977 = vmatpush1.bf16.msra.mxu0 %v2828
  %3978 = vmatprep.subr.bf16.mxu0 %v2832
  %3979 = vmatpush1.bf16.msra.mxu0 %v2831
  %3980 = vmatprep.subr.bf16.mxu0 %v2835
  %3981 = vmatpush1.bf16.msra.mxu0 %v2834
  %3982 = vmatprep.subr.bf16.mxu0 %v2838
  %3983 = vmatpush1.bf16.msra.mxu0 %v2837
  %3984 = vmatprep.subr.bf16.mxu0 %v2841
  %3985 = vmatpush1.bf16.msra.mxu0 %v2840
  %3986 = vmatprep.subr.bf16.mxu0 %v2844
  %3987 = vmatpush1.bf16.msra.mxu0 %v2843
  %3988 = vmatprep.subr.bf16.mxu0 %v2847
  %3989 = vmatpush1.bf16.msra.mxu0 %v2846
  %3990 = vmatprep.subr.bf16.mxu0 %v2850
  %3991 = vmatpush1.bf16.msra.mxu0 %v2849
  %3992 = vmatprep.subr.bf16.mxu0 %v2853
  %3993 = vmatpush1.bf16.msra.mxu0 %v2852
  %3994 = vmatprep.subr.bf16.mxu0 %v2856
  %3995 = vmatpush1.bf16.msra.mxu0 %v2855
  %3996 = vmatprep.subr.bf16.mxu0 %v2859
  %3997 = vmatpush1.bf16.msra.mxu0 %v2858
  %3998 = vmatprep.subr.bf16.mxu0 %v2862
  %3999 = vmatpush1.bf16.msra.mxu0 %v2861
  %4000 = vmatprep.mubr.bf16.mxu0 %v849
  %4001 = vmatmul.mubr.bf16.gmra.mrb[0].mxu0 %v848
  %v4002 = vpop.f32.mrb[0].mxu0
  %v4003 = vadd.f32 %v800, %v4002
  %v4004 = vpop.f32.mrb[0].mxu0
  %v4005 = vadd.f32 %v804, %v4004
  %v4006 = vpop.f32.mrb[0].mxu0
  %v4007 = vpop.f32.mrb[0].mxu0
  %4008 = vdwg.mxu0
  %4009 = vmatprep.subr.bf16.mxu0 %v2865
  %4010 = vmatpush1.bf16.msra.mxu0 %v2864
  %4011 = vmatprep.subr.bf16.mxu0 %v2868
  %4012 = vmatpush1.bf16.msra.mxu0 %v2867
  %4013 = vmatprep.subr.bf16.mxu0 %v2871
  %4014 = vmatpush1.bf16.msra.mxu0 %v2870
  %4015 = vmatprep.subr.bf16.mxu0 %v2874
  %4016 = vmatpush1.bf16.msra.mxu0 %v2873
  %4017 = vmatprep.subr.bf16.mxu0 %v2877
  %4018 = vmatpush1.bf16.msra.mxu0 %v2876
  %4019 = vmatprep.subr.bf16.mxu0 %v2880
  %4020 = vmatpush1.bf16.msra.mxu0 %v2879
  %4021 = vmatprep.subr.bf16.mxu0 %v2883
  %4022 = vmatpush1.bf16.msra.mxu0 %v2882
  %4023 = vmatprep.subr.bf16.mxu0 %v2886
  %4024 = vmatpush1.bf16.msra.mxu0 %v2885
  %4025 = vmatprep.subr.bf16.mxu0 %v2889
  %4026 = vmatpush1.bf16.msra.mxu0 %v2888
  %4027 = vmatprep.subr.bf16.mxu0 %v2892
  %4028 = vmatpush1.bf16.msra.mxu0 %v2891
  %4029 = vmatprep.subr.bf16.mxu0 %v2895
  %4030 = vmatpush1.bf16.msra.mxu0 %v2894
  %4031 = vmatprep.subr.bf16.mxu0 %v2898
  %4032 = vmatpush1.bf16.msra.mxu0 %v2897
  %4033 = vmatprep.subr.bf16.mxu0 %v2901
  %4034 = vmatpush1.bf16.msra.mxu0 %v2900
  %4035 = vmatprep.subr.bf16.mxu0 %v2904
  %4036 = vmatpush1.bf16.msra.mxu0 %v2903
  %4037 = vmatprep.subr.bf16.mxu0 %v2907
  %4038 = vmatpush1.bf16.msra.mxu0 %v2906
  %4039 = vmatprep.subr.bf16.mxu0 %v2910
  %4040 = vmatpush1.bf16.msra.mxu0 %v2909
  %4041 = vmatprep.mubr.bf16.mxu0 %v851
  %4042 = vmatmul.mubr.bf16.gmra.mrb[0].mxu0 %v850
  %v4043 = vpop.f32.mrb[0].mxu0
  %v4044 = vadd.f32 %v4003, %v4043
  %v4045 = vpop.f32.mrb[0].mxu0
  %v4046 = vadd.f32 %v4005, %v4045
  %v4047 = vpop.f32.mrb[0].mxu0
  %v4048 = vpop.f32.mrb[0].mxu0
  %4049 = vdwg.mxu0
  %4050 = vmatprep.subr.bf16.mxu0 %v2913
  %4051 = vmatpush1.bf16.msra.mxu0 %v2912
  %4052 = vmatprep.subr.bf16.mxu0 %v2916
  %4053 = vmatpush1.bf16.msra.mxu0 %v2915
  %4054 = vmatprep.subr.bf16.mxu0 %v2919
  %4055 = vmatpush1.bf16.msra.mxu0 %v2918
  %4056 = vmatprep.subr.bf16.mxu0 %v2922
  %4057 = vmatpush1.bf16.msra.mxu0 %v2921
  %4058 = vmatprep.subr.bf16.mxu0 %v2925
  %4059 = vmatpush1.bf16.msra.mxu0 %v2924
  %4060 = vmatprep.subr.bf16.mxu0 %v2928
  %4061 = vmatpush1.bf16.msra.mxu0 %v2927
  %4062 = vmatprep.subr.bf16.mxu0 %v2931
  %4063 = vmatpush1.bf16.msra.mxu0 %v2930
  %4064 = vmatprep.subr.bf16.mxu0 %v2934
  %4065 = vmatpush1.bf16.msra.mxu0 %v2933
  %4066 = vmatprep.subr.bf16.mxu0 %v2937
  %4067 = vmatpush1.bf16.msra.mxu0 %v2936
  %4068 = vmatprep.subr.bf16.mxu0 %v2940
  %4069 = vmatpush1.bf16.msra.mxu0 %v2939
  %4070 = vmatprep.subr.bf16.mxu0 %v2943
  %4071 = vmatpush1.bf16.msra.mxu0 %v2942
  %4072 = vmatprep.subr.bf16.mxu0 %v2946
  %4073 = vmatpush1.bf16.msra.mxu0 %v2945
  %4074 = vmatprep.subr.bf16.mxu0 %v2949
  %4075 = vmatpush1.bf16.msra.mxu0 %v2948
  %4076 = vmatprep.subr.bf16.mxu0 %v2952
  %4077 = vmatpush1.bf16.msra.mxu0 %v2951
  %4078 = vmatprep.subr.bf16.mxu0 %v2955
  %4079 = vmatpush1.bf16.msra.mxu0 %v2954
  %4080 = vmatprep.subr.bf16.mxu0 %v2958
  %4081 = vmatpush1.bf16.msra.mxu0 %v2957
  %4082 = vmatprep.mubr.bf16.mxu0 %v853
  %4083 = vmatmul.mubr.bf16.gmra.mrb[0].mxu0 %v852
  %v4084 = vpop.f32.mrb[0].mxu0
  %v4085 = vadd.f32 %v4044, %v4084
  %v4086 = vpop.f32.mrb[0].mxu0
  %v4087 = vadd.f32 %v4046, %v4086
  %v4088 = vpop.f32.mrb[0].mxu0
  %v4089 = vpop.f32.mrb[0].mxu0
  %4090 = vdwg.mxu0
  %4091 = vmatprep.subr.bf16.mxu0 %v2961
  %4092 = vmatpush1.bf16.msra.mxu0 %v2960
  %4093 = vmatprep.subr.bf16.mxu0 %v2964
  %4094 = vmatpush1.bf16.msra.mxu0 %v2963
  %4095 = vmatprep.subr.bf16.mxu0 %v2967
  %4096 = vmatpush1.bf16.msra.mxu0 %v2966
  %4097 = vmatprep.subr.bf16.mxu0 %v2970
  %4098 = vmatpush1.bf16.msra.mxu0 %v2969
  %4099 = vmatprep.subr.bf16.mxu0 %v2973
  %4100 = vmatpush1.bf16.msra.mxu0 %v2972
  %4101 = vmatprep.subr.bf16.mxu0 %v2976
  %4102 = vmatpush1.bf16.msra.mxu0 %v2975
  %4103 = vmatprep.subr.bf16.mxu0 %v2979
  %4104 = vmatpush1.bf16.msra.mxu0 %v2978
  %4105 = vmatprep.subr.bf16.mxu0 %v2982
  %4106 = vmatpush1.bf16.msra.mxu0 %v2981
  %4107 = vmatprep.subr.bf16.mxu0 %v2985
  %4108 = vmatpush1.bf16.msra.mxu0 %v2984
  %4109 = vmatprep.subr.bf16.mxu0 %v2988
  %4110 = vmatpush1.bf16.msra.mxu0 %v2987
  %4111 = vmatprep.subr.bf16.mxu0 %v2991
  %4112 = vmatpush1.bf16.msra.mxu0 %v2990
  %4113 = vmatprep.subr.bf16.mxu0 %v2994
  %4114 = vmatpush1.bf16.msra.mxu0 %v2993
  %4115 = vmatprep.subr.bf16.mxu0 %v2997
  %4116 = vmatpush1.bf16.msra.mxu0 %v2996
  %4117 = vmatprep.subr.bf16.mxu0 %v3000
  %4118 = vmatpush1.bf16.msra.mxu0 %v2999
  %4119 = vmatprep.subr.bf16.mxu0 %v3003
  %4120 = vmatpush1.bf16.msra.mxu0 %v3002
  %4121 = vmatprep.subr.bf16.mxu0 %v3006
  %4122 = vmatpush1.bf16.msra.mxu0 %v3005
  %4123 = vmatprep.mubr.bf16.mxu0 %v855
  %4124 = vmatmul.mubr.bf16.gmra.mrb[0].mxu0 %v854
  %v4125 = vpop.f32.mrb[0].mxu0
  %v4126 = vadd.f32 %v4085, %v4125
  %v4127 = vpop.f32.mrb[0].mxu0
  %v4128 = vadd.f32 %v4087, %v4127
  %v4129 = vpop.f32.mrb[0].mxu0
  %v4130 = vpop.f32.mrb[0].mxu0
  %4131 = vdwg.mxu0
  %4132 = vmatprep.subr.bf16.mxu0 %v3009
  %4133 = vmatpush1.bf16.msra.mxu0 %v3008
  %4134 = vmatprep.subr.bf16.mxu0 %v3012
  %4135 = vmatpush1.bf16.msra.mxu0 %v3011
  %4136 = vmatprep.subr.bf16.mxu0 %v3015
  %4137 = vmatpush1.bf16.msra.mxu0 %v3014
  %4138 = vmatprep.subr.bf16.mxu0 %v3018
  %4139 = vmatpush1.bf16.msra.mxu0 %v3017
  %4140 = vmatprep.subr.bf16.mxu0 %v3021
  %4141 = vmatpush1.bf16.msra.mxu0 %v3020
  %4142 = vmatprep.subr.bf16.mxu0 %v3024
  %4143 = vmatpush1.bf16.msra.mxu0 %v3023
  %4144 = vmatprep.subr.bf16.mxu0 %v3027
  %4145 = vmatpush1.bf16.msra.mxu0 %v3026
  %4146 = vmatprep.subr.bf16.mxu0 %v3030
  %4147 = vmatpush1.bf16.msra.mxu0 %v3029
  %4148 = vmatprep.subr.bf16.mxu0 %v3033
  %4149 = vmatpush1.bf16.msra.mxu0 %v3032
  %4150 = vmatprep.subr.bf16.mxu0 %v3036
  %4151 = vmatpush1.bf16.msra.mxu0 %v3035
  %4152 = vmatprep.subr.bf16.mxu0 %v3039
  %4153 = vmatpush1.bf16.msra.mxu0 %v3038
  %4154 = vmatprep.subr.bf16.mxu0 %v3042
  %4155 = vmatpush1.bf16.msra.mxu0 %v3041
  %4156 = vmatprep.subr.bf16.mxu0 %v3045
  %4157 = vmatpush1.bf16.msra.mxu0 %v3044
  %4158 = vmatprep.subr.bf16.mxu0 %v3048
  %4159 = vmatpush1.bf16.msra.mxu0 %v3047
  %4160 = vmatprep.subr.bf16.mxu0 %v3051
  %4161 = vmatpush1.bf16.msra.mxu0 %v3050
  %4162 = vmatprep.subr.bf16.mxu0 %v3054
  %4163 = vmatpush1.bf16.msra.mxu0 %v3053
  %4164 = vmatprep.mubr.bf16.mxu0 %v857
  %4165 = vmatmul.mubr.bf16.gmra.mrb[0].mxu0 %v856
  %v4166 = vpop.f32.mrb[0].mxu0
  %v4167 = vadd.f32 %v4126, %v4166
  %v4168 = vpop.f32.mrb[0].mxu0
  %v4169 = vadd.f32 %v4128, %v4168
  %v4170 = vpop.f32.mrb[0].mxu0
  %v4171 = vpop.f32.mrb[0].mxu0
  %4172 = vdwg.mxu0
  %4173 = vmatprep.subr.bf16.mxu0 %v3057
  %4174 = vmatpush1.bf16.msra.mxu0 %v3056
  %4175 = vmatprep.subr.bf16.mxu0 %v3060
  %4176 = vmatpush1.bf16.msra.mxu0 %v3059
  %4177 = vmatprep.subr.bf16.mxu0 %v3063
  %4178 = vmatpush1.bf16.msra.mxu0 %v3062
  %4179 = vmatprep.subr.bf16.mxu0 %v3066
  %4180 = vmatpush1.bf16.msra.mxu0 %v3065
  %4181 = vmatprep.subr.bf16.mxu0 %v3069
  %4182 = vmatpush1.bf16.msra.mxu0 %v3068
  %4183 = vmatprep.subr.bf16.mxu0 %v3072
  %4184 = vmatpush1.bf16.msra.mxu0 %v3071
  %4185 = vmatprep.subr.bf16.mxu0 %v3075
  %4186 = vmatpush1.bf16.msra.mxu0 %v3074
  %4187 = vmatprep.subr.bf16.mxu0 %v3078
  %4188 = vmatpush1.bf16.msra.mxu0 %v3077
  %4189 = vmatprep.subr.bf16.mxu0 %v3081
  %4190 = vmatpush1.bf16.msra.mxu0 %v3080
  %4191 = vmatprep.subr.bf16.mxu0 %v3084
  %4192 = vmatpush1.bf16.msra.mxu0 %v3083
  %4193 = vmatprep.subr.bf16.mxu0 %v3087
  %4194 = vmatpush1.bf16.msra.mxu0 %v3086
  %4195 = vmatprep.subr.bf16.mxu0 %v3090
  %4196 = vmatpush1.bf16.msra.mxu0 %v3089
  %4197 = vmatprep.subr.bf16.mxu0 %v3093
  %4198 = vmatpush1.bf16.msra.mxu0 %v3092
  %4199 = vmatprep.subr.bf16.mxu0 %v3096
  %4200 = vmatpush1.bf16.msra.mxu0 %v3095
  %4201 = vmatprep.subr.bf16.mxu0 %v3099
  %4202 = vmatpush1.bf16.msra.mxu0 %v3098
  %4203 = vmatprep.subr.bf16.mxu0 %v3102
  %4204 = vmatpush1.bf16.msra.mxu0 %v3101
  %4205 = vmatprep.mubr.bf16.mxu0 %v859
  %4206 = vmatmul.mubr.bf16.gmra.mrb[0].mxu0 %v858
  %v4207 = vpop.f32.mrb[0].mxu0
  %v4208 = vadd.f32 %v4167, %v4207
  %v4209 = vpop.f32.mrb[0].mxu0
  %v4210 = vadd.f32 %v4169, %v4209
  %v4211 = vpop.f32.mrb[0].mxu0
  %v4212 = vpop.f32.mrb[0].mxu0
  %4213 = vdwg.mxu0
  %4214 = vmatprep.subr.bf16.mxu0 %v3105
  %4215 = vmatpush1.bf16.msra.mxu0 %v3104
  %4216 = vmatprep.subr.bf16.mxu0 %v3108
  %4217 = vmatpush1.bf16.msra.mxu0 %v3107
  %4218 = vmatprep.subr.bf16.mxu0 %v3111
  %4219 = vmatpush1.bf16.msra.mxu0 %v3110
  %4220 = vmatprep.subr.bf16.mxu0 %v3114
  %4221 = vmatpush1.bf16.msra.mxu0 %v3113
  %4222 = vmatprep.subr.bf16.mxu0 %v3117
  %4223 = vmatpush1.bf16.msra.mxu0 %v3116
  %4224 = vmatprep.subr.bf16.mxu0 %v3120
  %4225 = vmatpush1.bf16.msra.mxu0 %v3119
  %4226 = vmatprep.subr.bf16.mxu0 %v3123
  %4227 = vmatpush1.bf16.msra.mxu0 %v3122
  %4228 = vmatprep.subr.bf16.mxu0 %v3126
  %4229 = vmatpush1.bf16.msra.mxu0 %v3125
  %4230 = vmatprep.subr.bf16.mxu0 %v3129
  %4231 = vmatpush1.bf16.msra.mxu0 %v3128
  %4232 = vmatprep.subr.bf16.mxu0 %v3132
  %4233 = vmatpush1.bf16.msra.mxu0 %v3131
  %4234 = vmatprep.subr.bf16.mxu0 %v3135
  %4235 = vmatpush1.bf16.msra.mxu0 %v3134
  %4236 = vmatprep.subr.bf16.mxu0 %v3138
  %4237 = vmatpush1.bf16.msra.mxu0 %v3137
  %4238 = vmatprep.subr.bf16.mxu0 %v3141
  %4239 = vmatpush1.bf16.msra.mxu0 %v3140
  %4240 = vmatprep.subr.bf16.mxu0 %v3144
  %4241 = vmatpush1.bf16.msra.mxu0 %v3143
  %4242 = vmatprep.subr.bf16.mxu0 %v3147
  %4243 = vmatpush1.bf16.msra.mxu0 %v3146
  %4244 = vmatprep.subr.bf16.mxu0 %v3150
  %4245 = vmatpush1.bf16.msra.mxu0 %v3149
  %4246 = vmatprep.mubr.bf16.mxu0 %v861
  %4247 = vmatmul.mubr.bf16.gmra.mrb[0].mxu0 %v860
  %v4248 = vpop.f32.mrb[0].mxu0
  %v4249 = vadd.f32 %v4208, %v4248
  %v4250 = vpop.f32.mrb[0].mxu0
  %v4251 = vadd.f32 %v4210, %v4250
  %v4252 = vpop.f32.mrb[0].mxu0
  %v4253 = vpop.f32.mrb[0].mxu0
  %4254 = vdwg.mxu0
  %4255 = vmatprep.subr.bf16.mxu0 %v3153
  %4256 = vmatpush1.bf16.msra.mxu0 %v3152
  %4257 = vmatprep.subr.bf16.mxu0 %v3156
  %4258 = vmatpush1.bf16.msra.mxu0 %v3155
  %4259 = vmatprep.subr.bf16.mxu0 %v3159
  %4260 = vmatpush1.bf16.msra.mxu0 %v3158
  %4261 = vmatprep.subr.bf16.mxu0 %v3162
  %4262 = vmatpush1.bf16.msra.mxu0 %v3161
  %4263 = vmatprep.subr.bf16.mxu0 %v3165
  %4264 = vmatpush1.bf16.msra.mxu0 %v3164
  %4265 = vmatprep.subr.bf16.mxu0 %v3168
  %4266 = vmatpush1.bf16.msra.mxu0 %v3167
  %4267 = vmatprep.subr.bf16.mxu0 %v3171
  %4268 = vmatpush1.bf16.msra.mxu0 %v3170
  %4269 = vmatprep.subr.bf16.mxu0 %v3174
  %4270 = vmatpush1.bf16.msra.mxu0 %v3173
  %4271 = vmatprep.subr.bf16.mxu0 %v3177
  %4272 = vmatpush1.bf16.msra.mxu0 %v3176
  %4273 = vmatprep.subr.bf16.mxu0 %v3180
  %4274 = vmatpush1.bf16.msra.mxu0 %v3179
  %4275 = vmatprep.subr.bf16.mxu0 %v3183
  %4276 = vmatpush1.bf16.msra.mxu0 %v3182
  %4277 = vmatprep.subr.bf16.mxu0 %v3186
  %4278 = vmatpush1.bf16.msra.mxu0 %v3185
  %4279 = vmatprep.subr.bf16.mxu0 %v3189
  %4280 = vmatpush1.bf16.msra.mxu0 %v3188
  %4281 = vmatprep.subr.bf16.mxu0 %v3192
  %4282 = vmatpush1.bf16.msra.mxu0 %v3191
  %4283 = vmatprep.subr.bf16.mxu0 %v3195
  %4284 = vmatpush1.bf16.msra.mxu0 %v3194
  %4285 = vmatprep.subr.bf16.mxu0 %v3198
  %4286 = vmatpush1.bf16.msra.mxu0 %v3197
  %4287 = vmatprep.mubr.bf16.mxu0 %v863
  %4288 = vmatmul.mubr.bf16.gmra.mrb[0].mxu0 %v862
  %v4289 = vpop.f32.mrb[0].mxu0
  %v4290 = vadd.f32 %v4249, %v4289
  %v4291 = vpop.f32.mrb[0].mxu0
  %v4292 = vadd.f32 %v4251, %v4291
  %v4293 = vpop.f32.mrb[0].mxu0
  %v4294 = vpop.f32.mrb[0].mxu0
  %4295 = vdwg.mxu0
  %4296 = vmatprep.subr.bf16.mxu0 %v3201
  %4297 = vmatpush1.bf16.msra.mxu0 %v3200
  %4298 = vmatprep.subr.bf16.mxu0 %v3204
  %4299 = vmatpush1.bf16.msra.mxu0 %v3203
  %4300 = vmatprep.subr.bf16.mxu0 %v3207
  %4301 = vmatpush1.bf16.msra.mxu0 %v3206
  %4302 = vmatprep.subr.bf16.mxu0 %v3210
  %4303 = vmatpush1.bf16.msra.mxu0 %v3209
  %4304 = vmatprep.subr.bf16.mxu0 %v3213
  %4305 = vmatpush1.bf16.msra.mxu0 %v3212
  %4306 = vmatprep.subr.bf16.mxu0 %v3216
  %4307 = vmatpush1.bf16.msra.mxu0 %v3215
  %4308 = vmatprep.subr.bf16.mxu0 %v3219
  %4309 = vmatpush1.bf16.msra.mxu0 %v3218
  %4310 = vmatprep.subr.bf16.mxu0 %v3222
  %4311 = vmatpush1.bf16.msra.mxu0 %v3221
  %4312 = vmatprep.subr.bf16.mxu0 %v3225
  %4313 = vmatpush1.bf16.msra.mxu0 %v3224
  %4314 = vmatprep.subr.bf16.mxu0 %v3228
  %4315 = vmatpush1.bf16.msra.mxu0 %v3227
  %4316 = vmatprep.subr.bf16.mxu0 %v3231
  %4317 = vmatpush1.bf16.msra.mxu0 %v3230
  %4318 = vmatprep.subr.bf16.mxu0 %v3234
  %4319 = vmatpush1.bf16.msra.mxu0 %v3233
  %4320 = vmatprep.subr.bf16.mxu0 %v3237
  %4321 = vmatpush1.bf16.msra.mxu0 %v3236
  %4322 = vmatprep.subr.bf16.mxu0 %v3240
  %4323 = vmatpush1.bf16.msra.mxu0 %v3239
  %4324 = vmatprep.subr.bf16.mxu0 %v3243
  %4325 = vmatpush1.bf16.msra.mxu0 %v3242
  %4326 = vmatprep.subr.bf16.mxu0 %v3246
  %4327 = vmatpush1.bf16.msra.mxu0 %v3245
  %4328 = vmatprep.mubr.bf16.mxu0 %v865
  %4329 = vmatmul.mubr.bf16.gmra.mrb[0].mxu0 %v864
  %v4330 = vpop.f32.mrb[0].mxu0
  %v4331 = vadd.f32 %v4290, %v4330
  %v4332 = vpop.f32.mrb[0].mxu0
  %v4333 = vadd.f32 %v4292, %v4332
  %v4334 = vpop.f32.mrb[0].mxu0
  %v4335 = vpop.f32.mrb[0].mxu0
  %4336 = vdwg.mxu0
  %4337 = vmatprep.subr.bf16.mxu0 %v3249
  %4338 = vmatpush1.bf16.msra.mxu0 %v3248
  %4339 = vmatprep.subr.bf16.mxu0 %v3252
  %4340 = vmatpush1.bf16.msra.mxu0 %v3251
  %4341 = vmatprep.subr.bf16.mxu0 %v3255
  %4342 = vmatpush1.bf16.msra.mxu0 %v3254
  %4343 = vmatprep.subr.bf16.mxu0 %v3258
  %4344 = vmatpush1.bf16.msra.mxu0 %v3257
  %4345 = vmatprep.subr.bf16.mxu0 %v3261
  %4346 = vmatpush1.bf16.msra.mxu0 %v3260
  %4347 = vmatprep.subr.bf16.mxu0 %v3264
  %4348 = vmatpush1.bf16.msra.mxu0 %v3263
  %4349 = vmatprep.subr.bf16.mxu0 %v3267
  %4350 = vmatpush1.bf16.msra.mxu0 %v3266
  %4351 = vmatprep.subr.bf16.mxu0 %v3270
  %4352 = vmatpush1.bf16.msra.mxu0 %v3269
  %4353 = vmatprep.subr.bf16.mxu0 %v3273
  %4354 = vmatpush1.bf16.msra.mxu0 %v3272
  %4355 = vmatprep.subr.bf16.mxu0 %v3276
  %4356 = vmatpush1.bf16.msra.mxu0 %v3275
  %4357 = vmatprep.subr.bf16.mxu0 %v3279
  %4358 = vmatpush1.bf16.msra.mxu0 %v3278
  %4359 = vmatprep.subr.bf16.mxu0 %v3282
  %4360 = vmatpush1.bf16.msra.mxu0 %v3281
  %4361 = vmatprep.subr.bf16.mxu0 %v3285
  %4362 = vmatpush1.bf16.msra.mxu0 %v3284
  %4363 = vmatprep.subr.bf16.mxu0 %v3288
  %4364 = vmatpush1.bf16.msra.mxu0 %v3287
  %4365 = vmatprep.subr.bf16.mxu0 %v3291
  %4366 = vmatpush1.bf16.msra.mxu0 %v3290
  %4367 = vmatprep.subr.bf16.mxu0 %v3294
  %4368 = vmatpush1.bf16.msra.mxu0 %v3293
  %4369 = vmatprep.mubr.bf16.mxu0 %v867
  %4370 = vmatmul.mubr.bf16.gmra.mrb[0].mxu0 %v866
  %v4371 = vpop.f32.mrb[0].mxu0
  %v4372 = vadd.f32 %v4331, %v4371
  %v4373 = vpop.f32.mrb[0].mxu0
  %v4374 = vadd.f32 %v4333, %v4373
  %v4375 = vpop.f32.mrb[0].mxu0
  %v4376 = vpop.f32.mrb[0].mxu0
  %4377 = vdwg.mxu0
  %4378 = vmatprep.subr.bf16.mxu0 %v3297
  %4379 = vmatpush1.bf16.msra.mxu0 %v3296
  %4380 = vmatprep.subr.bf16.mxu0 %v3300
  %4381 = vmatpush1.bf16.msra.mxu0 %v3299
  %4382 = vmatprep.subr.bf16.mxu0 %v3303
  %4383 = vmatpush1.bf16.msra.mxu0 %v3302
  %4384 = vmatprep.subr.bf16.mxu0 %v3306
  %4385 = vmatpush1.bf16.msra.mxu0 %v3305
  %4386 = vmatprep.subr.bf16.mxu0 %v3309
  %4387 = vmatpush1.bf16.msra.mxu0 %v3308
  %4388 = vmatprep.subr.bf16.mxu0 %v3312
  %4389 = vmatpush1.bf16.msra.mxu0 %v3311
  %4390 = vmatprep.subr.bf16.mxu0 %v3315
  %4391 = vmatpush1.bf16.msra.mxu0 %v3314
  %4392 = vmatprep.subr.bf16.mxu0 %v3318
  %4393 = vmatpush1.bf16.msra.mxu0 %v3317
  %4394 = vmatprep.subr.bf16.mxu0 %v3321
  %4395 = vmatpush1.bf16.msra.mxu0 %v3320
  %4396 = vmatprep.subr.bf16.mxu0 %v3324
  %4397 = vmatpush1.bf16.msra.mxu0 %v3323
  %4398 = vmatprep.subr.bf16.mxu0 %v3327
  %4399 = vmatpush1.bf16.msra.mxu0 %v3326
  %4400 = vmatprep.subr.bf16.mxu0 %v3330
  %4401 = vmatpush1.bf16.msra.mxu0 %v3329
  %4402 = vmatprep.subr.bf16.mxu0 %v3333
  %4403 = vmatpush1.bf16.msra.mxu0 %v3332
  %4404 = vmatprep.subr.bf16.mxu0 %v3336
  %4405 = vmatpush1.bf16.msra.mxu0 %v3335
  %4406 = vmatprep.subr.bf16.mxu0 %v3339
  %4407 = vmatpush1.bf16.msra.mxu0 %v3338
  %4408 = vmatprep.subr.bf16.mxu0 %v3342
  %4409 = vmatpush1.bf16.msra.mxu0 %v3341
  %4410 = vmatprep.mubr.bf16.mxu0 %v869
  %4411 = vmatmul.mubr.bf16.gmra.mrb[0].mxu0 %v868
  %v4412 = vpop.f32.mrb[0].mxu0
  %v4413 = vadd.f32 %v4372, %v4412
  %v4414 = vpop.f32.mrb[0].mxu0
  %v4415 = vadd.f32 %v4374, %v4414
  %v4416 = vpop.f32.mrb[0].mxu0
  %v4417 = vpop.f32.mrb[0].mxu0
  %4418 = vdwg.mxu0
  %4419 = vmatprep.subr.bf16.mxu0 %v3345
  %4420 = vmatpush1.bf16.msra.mxu0 %v3344
  %4421 = vmatprep.subr.bf16.mxu0 %v3348
  %4422 = vmatpush1.bf16.msra.mxu0 %v3347
  %4423 = vmatprep.subr.bf16.mxu0 %v3351
  %4424 = vmatpush1.bf16.msra.mxu0 %v3350
  %4425 = vmatprep.subr.bf16.mxu0 %v3354
  %4426 = vmatpush1.bf16.msra.mxu0 %v3353
  %4427 = vmatprep.subr.bf16.mxu0 %v3357
  %4428 = vmatpush1.bf16.msra.mxu0 %v3356
  %4429 = vmatprep.subr.bf16.mxu0 %v3360
  %4430 = vmatpush1.bf16.msra.mxu0 %v3359
  %4431 = vmatprep.subr.bf16.mxu0 %v3363
  %4432 = vmatpush1.bf16.msra.mxu0 %v3362
  %4433 = vmatprep.subr.bf16.mxu0 %v3366
  %4434 = vmatpush1.bf16.msra.mxu0 %v3365
  %4435 = vmatprep.subr.bf16.mxu0 %v3369
  %4436 = vmatpush1.bf16.msra.mxu0 %v3368
  %4437 = vmatprep.subr.bf16.mxu0 %v3372
  %4438 = vmatpush1.bf16.msra.mxu0 %v3371
  %4439 = vmatprep.subr.bf16.mxu0 %v3375
  %4440 = vmatpush1.bf16.msra.mxu0 %v3374
  %4441 = vmatprep.subr.bf16.mxu0 %v3378
  %4442 = vmatpush1.bf16.msra.mxu0 %v3377
  %4443 = vmatprep.subr.bf16.mxu0 %v3381
  %4444 = vmatpush1.bf16.msra.mxu0 %v3380
  %4445 = vmatprep.subr.bf16.mxu0 %v3384
  %4446 = vmatpush1.bf16.msra.mxu0 %v3383
  %4447 = vmatprep.subr.bf16.mxu0 %v3387
  %4448 = vmatpush1.bf16.msra.mxu0 %v3386
  %4449 = vmatprep.subr.bf16.mxu0 %v3390
  %4450 = vmatpush1.bf16.msra.mxu0 %v3389
  %4451 = vmatprep.mubr.bf16.mxu0 %v871
  %4452 = vmatmul.mubr.bf16.gmra.mrb[0].mxu0 %v870
  %v4453 = vpop.f32.mrb[0].mxu0
  %v4454 = vadd.f32 %v4413, %v4453
  %v4455 = vpop.f32.mrb[0].mxu0
  %v4456 = vadd.f32 %v4415, %v4455
  %v4457 = vpop.f32.mrb[0].mxu0
  %v4458 = vpop.f32.mrb[0].mxu0
  %4459 = vdwg.mxu0
  %4460 = vmatprep.subr.bf16.mxu0 0
  %4461 = vmatpush1.bf16.msra.mxu0 %v2818
  %4462 = vmatprep.subr.bf16.mxu0 0
  %4463 = vmatpush1.bf16.msra.mxu0 %v2821
  %4464 = vmatprep.subr.bf16.mxu0 0
  %4465 = vmatpush1.bf16.msra.mxu0 %v2824
  %4466 = vmatprep.subr.bf16.mxu0 0
  %4467 = vmatpush1.bf16.msra.mxu0 %v2827
  %4468 = vmatprep.subr.bf16.mxu0 0
  %4469 = vmatpush1.bf16.msra.mxu0 %v2830
  %4470 = vmatprep.subr.bf16.mxu0 0
  %4471 = vmatpush1.bf16.msra.mxu0 %v2833
  %4472 = vmatprep.subr.bf16.mxu0 0
  %4473 = vmatpush1.bf16.msra.mxu0 %v2836
  %4474 = vmatprep.subr.bf16.mxu0 0
  %4475 = vmatpush1.bf16.msra.mxu0 %v2839
  %4476 = vmatprep.subr.bf16.mxu0 0
  %4477 = vmatpush1.bf16.msra.mxu0 %v2842
  %4478 = vmatprep.subr.bf16.mxu0 0
  %4479 = vmatpush1.bf16.msra.mxu0 %v2845
  %4480 = vmatprep.subr.bf16.mxu0 0
  %4481 = vmatpush1.bf16.msra.mxu0 %v2848
  %4482 = vmatprep.subr.bf16.mxu0 0
  %4483 = vmatpush1.bf16.msra.mxu0 %v2851
  %4484 = vmatprep.subr.bf16.mxu0 0
  %4485 = vmatpush1.bf16.msra.mxu0 %v2854
  %4486 = vmatprep.subr.bf16.mxu0 0
  %4487 = vmatpush1.bf16.msra.mxu0 %v2857
  %4488 = vmatprep.subr.bf16.mxu0 0
  %4489 = vmatpush1.bf16.msra.mxu0 %v2860
  %4490 = vmatprep.subr.bf16.mxu0 0
  %4491 = vmatpush1.bf16.msra.mxu0 %v2863
  %4492 = vmatprep.mubr.bf16.mxu0 %v849
  %4493 = vmatmul.mubr.bf16.gmra.mrb[0].mxu0 %v848
  %v4494 = vpop.f32.mrb[0].mxu0
  %v4495 = vadd.f32 %v808, %v4494
  %v4496 = vpop.f32.mrb[0].mxu0
  %v4497 = vpop.f32.mrb[0].mxu0
  %v4498 = vpop.f32.mrb[0].mxu0
  %4499 = vdwg.mxu0
  %4500 = vmatprep.subr.bf16.mxu0 0
  %4501 = vmatpush1.bf16.msra.mxu0 %v2866
  %4502 = vmatprep.subr.bf16.mxu0 0
  %4503 = vmatpush1.bf16.msra.mxu0 %v2869
  %4504 = vmatprep.subr.bf16.mxu0 0
  %4505 = vmatpush1.bf16.msra.mxu0 %v2872
  %4506 = vmatprep.subr.bf16.mxu0 0
  %4507 = vmatpush1.bf16.msra.mxu0 %v2875
  %4508 = vmatprep.subr.bf16.mxu0 0
  %4509 = vmatpush1.bf16.msra.mxu0 %v2878
  %4510 = vmatprep.subr.bf16.mxu0 0
  %4511 = vmatpush1.bf16.msra.mxu0 %v2881
  %4512 = vmatprep.subr.bf16.mxu0 0
  %4513 = vmatpush1.bf16.msra.mxu0 %v2884
  %4514 = vmatprep.subr.bf16.mxu0 0
  %4515 = vmatpush1.bf16.msra.mxu0 %v2887
  %4516 = vmatprep.subr.bf16.mxu0 0
  %4517 = vmatpush1.bf16.msra.mxu0 %v2890
  %4518 = vmatprep.subr.bf16.mxu0 0
  %4519 = vmatpush1.bf16.msra.mxu0 %v2893
  %4520 = vmatprep.subr.bf16.mxu0 0
  %4521 = vmatpush1.bf16.msra.mxu0 %v2896
  %4522 = vmatprep.subr.bf16.mxu0 0
  %4523 = vmatpush1.bf16.msra.mxu0 %v2899
  %4524 = vmatprep.subr.bf16.mxu0 0
  %4525 = vmatpush1.bf16.msra.mxu0 %v2902
  %4526 = vmatprep.subr.bf16.mxu0 0
  %4527 = vmatpush1.bf16.msra.mxu0 %v2905
  %4528 = vmatprep.subr.bf16.mxu0 0
  %4529 = vmatpush1.bf16.msra.mxu0 %v2908
  %4530 = vmatprep.subr.bf16.mxu0 0
  %4531 = vmatpush1.bf16.msra.mxu0 %v2911
  %4532 = vmatprep.mubr.bf16.mxu0 %v851
  %4533 = vmatmul.mubr.bf16.gmra.mrb[0].mxu0 %v850
  %v4534 = vpop.f32.mrb[0].mxu0
  %v4535 = vadd.f32 %v4495, %v4534
  %v4536 = vpop.f32.mrb[0].mxu0
  %v4537 = vpop.f32.mrb[0].mxu0
  %v4538 = vpop.f32.mrb[0].mxu0
  %4539 = vdwg.mxu0
  %4540 = vmatprep.subr.bf16.mxu0 0
  %4541 = vmatpush1.bf16.msra.mxu0 %v2914
  %4542 = vmatprep.subr.bf16.mxu0 0
  %4543 = vmatpush1.bf16.msra.mxu0 %v2917
  %4544 = vmatprep.subr.bf16.mxu0 0
  %4545 = vmatpush1.bf16.msra.mxu0 %v2920
  %4546 = vmatprep.subr.bf16.mxu0 0
  %4547 = vmatpush1.bf16.msra.mxu0 %v2923
  %4548 = vmatprep.subr.bf16.mxu0 0
  %4549 = vmatpush1.bf16.msra.mxu0 %v2926
  %4550 = vmatprep.subr.bf16.mxu0 0
  %4551 = vmatpush1.bf16.msra.mxu0 %v2929
  %4552 = vmatprep.subr.bf16.mxu0 0
  %4553 = vmatpush1.bf16.msra.mxu0 %v2932
  %4554 = vmatprep.subr.bf16.mxu0 0
  %4555 = vmatpush1.bf16.msra.mxu0 %v2935
  %4556 = vmatprep.subr.bf16.mxu0 0
  %4557 = vmatpush1.bf16.msra.mxu0 %v2938
  %4558 = vmatprep.subr.bf16.mxu0 0
  %4559 = vmatpush1.bf16.msra.mxu0 %v2941
  %4560 = vmatprep.subr.bf16.mxu0 0
  %4561 = vmatpush1.bf16.msra.mxu0 %v2944
  %4562 = vmatprep.subr.bf16.mxu0 0
  %4563 = vmatpush1.bf16.msra.mxu0 %v2947
  %4564 = vmatprep.subr.bf16.mxu0 0
  %4565 = vmatpush1.bf16.msra.mxu0 %v2950
  %4566 = vmatprep.subr.bf16.mxu0 0
  %4567 = vmatpush1.bf16.msra.mxu0 %v2953
  %4568 = vmatprep.subr.bf16.mxu0 0
  %4569 = vmatpush1.bf16.msra.mxu0 %v2956
  %4570 = vmatprep.subr.bf16.mxu0 0
  %4571 = vmatpush1.bf16.msra.mxu0 %v2959
  %4572 = vmatprep.mubr.bf16.mxu0 %v853
  %4573 = vmatmul.mubr.bf16.gmra.mrb[0].mxu0 %v852
  %v4574 = vpop.f32.mrb[0].mxu0
  %v4575 = vadd.f32 %v4535, %v4574
  %v4576 = vpop.f32.mrb[0].mxu0
  %v4577 = vpop.f32.mrb[0].mxu0
  %v4578 = vpop.f32.mrb[0].mxu0
  %4579 = vdwg.mxu0
  %4580 = vmatprep.subr.bf16.mxu0 0
  %4581 = vmatpush1.bf16.msra.mxu0 %v2962
  %4582 = vmatprep.subr.bf16.mxu0 0
  %4583 = vmatpush1.bf16.msra.mxu0 %v2965
  %4584 = vmatprep.subr.bf16.mxu0 0
  %4585 = vmatpush1.bf16.msra.mxu0 %v2968
  %4586 = vmatprep.subr.bf16.mxu0 0
  %4587 = vmatpush1.bf16.msra.mxu0 %v2971
  %4588 = vmatprep.subr.bf16.mxu0 0
  %4589 = vmatpush1.bf16.msra.mxu0 %v2974
  %4590 = vmatprep.subr.bf16.mxu0 0
  %4591 = vmatpush1.bf16.msra.mxu0 %v2977
  %4592 = vmatprep.subr.bf16.mxu0 0
  %4593 = vmatpush1.bf16.msra.mxu0 %v2980
  %4594 = vmatprep.subr.bf16.mxu0 0
  %4595 = vmatpush1.bf16.msra.mxu0 %v2983
  %4596 = vmatprep.subr.bf16.mxu0 0
  %4597 = vmatpush1.bf16.msra.mxu0 %v2986
  %4598 = vmatprep.subr.bf16.mxu0 0
  %4599 = vmatpush1.bf16.msra.mxu0 %v2989
  %4600 = vmatprep.subr.bf16.mxu0 0
  %4601 = vmatpush1.bf16.msra.mxu0 %v2992
  %4602 = vmatprep.subr.bf16.mxu0 0
  %4603 = vmatpush1.bf16.msra.mxu0 %v2995
  %4604 = vmatprep.subr.bf16.mxu0 0
  %4605 = vmatpush1.bf16.msra.mxu0 %v2998
  %4606 = vmatprep.subr.bf16.mxu0 0
  %4607 = vmatpush1.bf16.msra.mxu0 %v3001
  %4608 = vmatprep.subr.bf16.mxu0 0
  %4609 = vmatpush1.bf16.msra.mxu0 %v3004
  %4610 = vmatprep.subr.bf16.mxu0 0
  %4611 = vmatpush1.bf16.msra.mxu0 %v3007
  %4612 = vmatprep.mubr.bf16.mxu0 %v855
  %4613 = vmatmul.mubr.bf16.gmra.mrb[0].mxu0 %v854
  %v4614 = vpop.f32.mrb[0].mxu0
  %v4615 = vadd.f32 %v4575, %v4614
  %v4616 = vpop.f32.mrb[0].mxu0
  %v4617 = vpop.f32.mrb[0].mxu0
  %v4618 = vpop.f32.mrb[0].mxu0
  %4619 = vdwg.mxu0
  %4620 = vmatprep.subr.bf16.mxu0 0
  %4621 = vmatpush1.bf16.msra.mxu0 %v3010
  %4622 = vmatprep.subr.bf16.mxu0 0
  %4623 = vmatpush1.bf16.msra.mxu0 %v3013
  %4624 = vmatprep.subr.bf16.mxu0 0
  %4625 = vmatpush1.bf16.msra.mxu0 %v3016
  %4626 = vmatprep.subr.bf16.mxu0 0
  %4627 = vmatpush1.bf16.msra.mxu0 %v3019
  %4628 = vmatprep.subr.bf16.mxu0 0
  %4629 = vmatpush1.bf16.msra.mxu0 %v3022
  %4630 = vmatprep.subr.bf16.mxu0 0
  %4631 = vmatpush1.bf16.msra.mxu0 %v3025
  %4632 = vmatprep.subr.bf16.mxu0 0
  %4633 = vmatpush1.bf16.msra.mxu0 %v3028
  %4634 = vmatprep.subr.bf16.mxu0 0
  %4635 = vmatpush1.bf16.msra.mxu0 %v3031
  %4636 = vmatprep.subr.bf16.mxu0 0
  %4637 = vmatpush1.bf16.msra.mxu0 %v3034
  %4638 = vmatprep.subr.bf16.mxu0 0
  %4639 = vmatpush1.bf16.msra.mxu0 %v3037
  %4640 = vmatprep.subr.bf16.mxu0 0
  %4641 = vmatpush1.bf16.msra.mxu0 %v3040
  %4642 = vmatprep.subr.bf16.mxu0 0
  %4643 = vmatpush1.bf16.msra.mxu0 %v3043
  %4644 = vmatprep.subr.bf16.mxu0 0
  %4645 = vmatpush1.bf16.msra.mxu0 %v3046
  %4646 = vmatprep.subr.bf16.mxu0 0
  %4647 = vmatpush1.bf16.msra.mxu0 %v3049
  %4648 = vmatprep.subr.bf16.mxu0 0
  %4649 = vmatpush1.bf16.msra.mxu0 %v3052
  %4650 = vmatprep.subr.bf16.mxu0 0
  %4651 = vmatpush1.bf16.msra.mxu0 %v3055
  %4652 = vmatprep.mubr.bf16.mxu0 %v857
  %4653 = vmatmul.mubr.bf16.gmra.mrb[0].mxu0 %v856
  %v4654 = vpop.f32.mrb[0].mxu0
  %v4655 = vadd.f32 %v4615, %v4654
  %v4656 = vpop.f32.mrb[0].mxu0
  %v4657 = vpop.f32.mrb[0].mxu0
  %v4658 = vpop.f32.mrb[0].mxu0
  %4659 = vdwg.mxu0
  %4660 = vmatprep.subr.bf16.mxu0 0
  %4661 = vmatpush1.bf16.msra.mxu0 %v3058
  %4662 = vmatprep.subr.bf16.mxu0 0
  %4663 = vmatpush1.bf16.msra.mxu0 %v3061
  %4664 = vmatprep.subr.bf16.mxu0 0
  %4665 = vmatpush1.bf16.msra.mxu0 %v3064
  %4666 = vmatprep.subr.bf16.mxu0 0
  %4667 = vmatpush1.bf16.msra.mxu0 %v3067
  %4668 = vmatprep.subr.bf16.mxu0 0
  %4669 = vmatpush1.bf16.msra.mxu0 %v3070
  %4670 = vmatprep.subr.bf16.mxu0 0
  %4671 = vmatpush1.bf16.msra.mxu0 %v3073
  %4672 = vmatprep.subr.bf16.mxu0 0
  %4673 = vmatpush1.bf16.msra.mxu0 %v3076
  %4674 = vmatprep.subr.bf16.mxu0 0
  %4675 = vmatpush1.bf16.msra.mxu0 %v3079
  %4676 = vmatprep.subr.bf16.mxu0 0
  %4677 = vmatpush1.bf16.msra.mxu0 %v3082
  %4678 = vmatprep.subr.bf16.mxu0 0
  %4679 = vmatpush1.bf16.msra.mxu0 %v3085
  %4680 = vmatprep.subr.bf16.mxu0 0
  %4681 = vmatpush1.bf16.msra.mxu0 %v3088
  %4682 = vmatprep.subr.bf16.mxu0 0
  %4683 = vmatpush1.bf16.msra.mxu0 %v3091
  %4684 = vmatprep.subr.bf16.mxu0 0
  %4685 = vmatpush1.bf16.msra.mxu0 %v3094
  %4686 = vmatprep.subr.bf16.mxu0 0
  %4687 = vmatpush1.bf16.msra.mxu0 %v3097
  %4688 = vmatprep.subr.bf16.mxu0 0
  %4689 = vmatpush1.bf16.msra.mxu0 %v3100
  %4690 = vmatprep.subr.bf16.mxu0 0
  %4691 = vmatpush1.bf16.msra.mxu0 %v3103
  %4692 = vmatprep.mubr.bf16.mxu0 %v859
  %4693 = vmatmul.mubr.bf16.gmra.mrb[0].mxu0 %v858
  %v4694 = vpop.f32.mrb[0].mxu0
  %v4695 = vadd.f32 %v4655, %v4694
  %v4696 = vpop.f32.mrb[0].mxu0
  %v4697 = vpop.f32.mrb[0].mxu0
  %v4698 = vpop.f32.mrb[0].mxu0
  %4699 = vdwg.mxu0
  %4700 = vmatprep.subr.bf16.mxu0 0
  %4701 = vmatpush1.bf16.msra.mxu0 %v3106
  %4702 = vmatprep.subr.bf16.mxu0 0
  %4703 = vmatpush1.bf16.msra.mxu0 %v3109
  %4704 = vmatprep.subr.bf16.mxu0 0
  %4705 = vmatpush1.bf16.msra.mxu0 %v3112
  %4706 = vmatprep.subr.bf16.mxu0 0
  %4707 = vmatpush1.bf16.msra.mxu0 %v3115
  %4708 = vmatprep.subr.bf16.mxu0 0
  %4709 = vmatpush1.bf16.msra.mxu0 %v3118
  %4710 = vmatprep.subr.bf16.mxu0 0
  %4711 = vmatpush1.bf16.msra.mxu0 %v3121
  %4712 = vmatprep.subr.bf16.mxu0 0
  %4713 = vmatpush1.bf16.msra.mxu0 %v3124
  %4714 = vmatprep.subr.bf16.mxu0 0
  %4715 = vmatpush1.bf16.msra.mxu0 %v3127
  %4716 = vmatprep.subr.bf16.mxu0 0
  %4717 = vmatpush1.bf16.msra.mxu0 %v3130
  %4718 = vmatprep.subr.bf16.mxu0 0
  %4719 = vmatpush1.bf16.msra.mxu0 %v3133
  %4720 = vmatprep.subr.bf16.mxu0 0
  %4721 = vmatpush1.bf16.msra.mxu0 %v3136
  %4722 = vmatprep.subr.bf16.mxu0 0
  %4723 = vmatpush1.bf16.msra.mxu0 %v3139
  %4724 = vmatprep.subr.bf16.mxu0 0
  %4725 = vmatpush1.bf16.msra.mxu0 %v3142
  %4726 = vmatprep.subr.bf16.mxu0 0
  %4727 = vmatpush1.bf16.msra.mxu0 %v3145
  %4728 = vmatprep.subr.bf16.mxu0 0
  %4729 = vmatpush1.bf16.msra.mxu0 %v3148
  %4730 = vmatprep.subr.bf16.mxu0 0
  %4731 = vmatpush1.bf16.msra.mxu0 %v3151
  %4732 = vmatprep.mubr.bf16.mxu0 %v861
  %4733 = vmatmul.mubr.bf16.gmra.mrb[0].mxu0 %v860
  %v4734 = vpop.f32.mrb[0].mxu0
  %v4735 = vadd.f32 %v4695, %v4734
  %v4736 = vpop.f32.mrb[0].mxu0
  %v4737 = vpop.f32.mrb[0].mxu0
  %v4738 = vpop.f32.mrb[0].mxu0
  %4739 = vdwg.mxu0
  %4740 = vmatprep.subr.bf16.mxu0 0
  %4741 = vmatpush1.bf16.msra.mxu0 %v3154
  %4742 = vmatprep.subr.bf16.mxu0 0
  %4743 = vmatpush1.bf16.msra.mxu0 %v3157
  %4744 = vmatprep.subr.bf16.mxu0 0
  %4745 = vmatpush1.bf16.msra.mxu0 %v3160
  %4746 = vmatprep.subr.bf16.mxu0 0
  %4747 = vmatpush1.bf16.msra.mxu0 %v3163
  %4748 = vmatprep.subr.bf16.mxu0 0
  %4749 = vmatpush1.bf16.msra.mxu0 %v3166
  %4750 = vmatprep.subr.bf16.mxu0 0
  %4751 = vmatpush1.bf16.msra.mxu0 %v3169
  %4752 = vmatprep.subr.bf16.mxu0 0
  %4753 = vmatpush1.bf16.msra.mxu0 %v3172
  %4754 = vmatprep.subr.bf16.mxu0 0
  %4755 = vmatpush1.bf16.msra.mxu0 %v3175
  %4756 = vmatprep.subr.bf16.mxu0 0
  %4757 = vmatpush1.bf16.msra.mxu0 %v3178
  %4758 = vmatprep.subr.bf16.mxu0 0
  %4759 = vmatpush1.bf16.msra.mxu0 %v3181
  %4760 = vmatprep.subr.bf16.mxu0 0
  %4761 = vmatpush1.bf16.msra.mxu0 %v3184
  %4762 = vmatprep.subr.bf16.mxu0 0
  %4763 = vmatpush1.bf16.msra.mxu0 %v3187
  %4764 = vmatprep.subr.bf16.mxu0 0
  %4765 = vmatpush1.bf16.msra.mxu0 %v3190
  %4766 = vmatprep.subr.bf16.mxu0 0
  %4767 = vmatpush1.bf16.msra.mxu0 %v3193
  %4768 = vmatprep.subr.bf16.mxu0 0
  %4769 = vmatpush1.bf16.msra.mxu0 %v3196
  %4770 = vmatprep.subr.bf16.mxu0 0
  %4771 = vmatpush1.bf16.msra.mxu0 %v3199
  %4772 = vmatprep.mubr.bf16.mxu0 %v863
  %4773 = vmatmul.mubr.bf16.gmra.mrb[0].mxu0 %v862
  %v4774 = vpop.f32.mrb[0].mxu0
  %v4775 = vadd.f32 %v4735, %v4774
  %v4776 = vpop.f32.mrb[0].mxu0
  %v4777 = vpop.f32.mrb[0].mxu0
  %v4778 = vpop.f32.mrb[0].mxu0
  %4779 = vdwg.mxu0
  %4780 = vmatprep.subr.bf16.mxu0 0
  %4781 = vmatpush1.bf16.msra.mxu0 %v3202
  %4782 = vmatprep.subr.bf16.mxu0 0
  %4783 = vmatpush1.bf16.msra.mxu0 %v3205
  %4784 = vmatprep.subr.bf16.mxu0 0
  %4785 = vmatpush1.bf16.msra.mxu0 %v3208
  %4786 = vmatprep.subr.bf16.mxu0 0
  %4787 = vmatpush1.bf16.msra.mxu0 %v3211
  %4788 = vmatprep.subr.bf16.mxu0 0
  %4789 = vmatpush1.bf16.msra.mxu0 %v3214
  %4790 = vmatprep.subr.bf16.mxu0 0
  %4791 = vmatpush1.bf16.msra.mxu0 %v3217
  %4792 = vmatprep.subr.bf16.mxu0 0
  %4793 = vmatpush1.bf16.msra.mxu0 %v3220
  %4794 = vmatprep.subr.bf16.mxu0 0
  %4795 = vmatpush1.bf16.msra.mxu0 %v3223
  %4796 = vmatprep.subr.bf16.mxu0 0
  %4797 = vmatpush1.bf16.msra.mxu0 %v3226
  %4798 = vmatprep.subr.bf16.mxu0 0
  %4799 = vmatpush1.bf16.msra.mxu0 %v3229
  %4800 = vmatprep.subr.bf16.mxu0 0
  %4801 = vmatpush1.bf16.msra.mxu0 %v3232
  %4802 = vmatprep.subr.bf16.mxu0 0
  %4803 = vmatpush1.bf16.msra.mxu0 %v3235
  %4804 = vmatprep.subr.bf16.mxu0 0
  %4805 = vmatpush1.bf16.msra.mxu0 %v3238
  %4806 = vmatprep.subr.bf16.mxu0 0
  %4807 = vmatpush1.bf16.msra.mxu0 %v3241
  %4808 = vmatprep.subr.bf16.mxu0 0
  %4809 = vmatpush1.bf16.msra.mxu0 %v3244
  %4810 = vmatprep.subr.bf16.mxu0 0
  %4811 = vmatpush1.bf16.msra.mxu0 %v3247
  %4812 = vmatprep.mubr.bf16.mxu0 %v865
  %4813 = vmatmul.mubr.bf16.gmra.mrb[0].mxu0 %v864
  %v4814 = vpop.f32.mrb[0].mxu0
  %v4815 = vadd.f32 %v4775, %v4814
  %v4816 = vpop.f32.mrb[0].mxu0
  %v4817 = vpop.f32.mrb[0].mxu0
  %v4818 = vpop.f32.mrb[0].mxu0
  %4819 = vdwg.mxu0
  %4820 = vmatprep.subr.bf16.mxu0 0
  %4821 = vmatpush1.bf16.msra.mxu0 %v3250
  %4822 = vmatprep.subr.bf16.mxu0 0
  %4823 = vmatpush1.bf16.msra.mxu0 %v3253
  %4824 = vmatprep.subr.bf16.mxu0 0
  %4825 = vmatpush1.bf16.msra.mxu0 %v3256
  %4826 = vmatprep.subr.bf16.mxu0 0
  %4827 = vmatpush1.bf16.msra.mxu0 %v3259
  %4828 = vmatprep.subr.bf16.mxu0 0
  %4829 = vmatpush1.bf16.msra.mxu0 %v3262
  %4830 = vmatprep.subr.bf16.mxu0 0
  %4831 = vmatpush1.bf16.msra.mxu0 %v3265
  %4832 = vmatprep.subr.bf16.mxu0 0
  %4833 = vmatpush1.bf16.msra.mxu0 %v3268
  %4834 = vmatprep.subr.bf16.mxu0 0
  %4835 = vmatpush1.bf16.msra.mxu0 %v3271
  %4836 = vmatprep.subr.bf16.mxu0 0
  %4837 = vmatpush1.bf16.msra.mxu0 %v3274
  %4838 = vmatprep.subr.bf16.mxu0 0
  %4839 = vmatpush1.bf16.msra.mxu0 %v3277
  %4840 = vmatprep.subr.bf16.mxu0 0
  %4841 = vmatpush1.bf16.msra.mxu0 %v3280
  %4842 = vmatprep.subr.bf16.mxu0 0
  %4843 = vmatpush1.bf16.msra.mxu0 %v3283
  %4844 = vmatprep.subr.bf16.mxu0 0
  %4845 = vmatpush1.bf16.msra.mxu0 %v3286
  %4846 = vmatprep.subr.bf16.mxu0 0
  %4847 = vmatpush1.bf16.msra.mxu0 %v3289
  %4848 = vmatprep.subr.bf16.mxu0 0
  %4849 = vmatpush1.bf16.msra.mxu0 %v3292
  %4850 = vmatprep.subr.bf16.mxu0 0
  %4851 = vmatpush1.bf16.msra.mxu0 %v3295
  %4852 = vmatprep.mubr.bf16.mxu0 %v867
  %4853 = vmatmul.mubr.bf16.gmra.mrb[0].mxu0 %v866
  %v4854 = vpop.f32.mrb[0].mxu0
  %v4855 = vadd.f32 %v4815, %v4854
  %v4856 = vpop.f32.mrb[0].mxu0
  %v4857 = vpop.f32.mrb[0].mxu0
  %v4858 = vpop.f32.mrb[0].mxu0
  %4859 = vdwg.mxu0
  %4860 = vmatprep.subr.bf16.mxu0 0
  %4861 = vmatpush1.bf16.msra.mxu0 %v3298
  %4862 = vmatprep.subr.bf16.mxu0 0
  %4863 = vmatpush1.bf16.msra.mxu0 %v3301
  %4864 = vmatprep.subr.bf16.mxu0 0
  %4865 = vmatpush1.bf16.msra.mxu0 %v3304
  %4866 = vmatprep.subr.bf16.mxu0 0
  %4867 = vmatpush1.bf16.msra.mxu0 %v3307
  %4868 = vmatprep.subr.bf16.mxu0 0
  %4869 = vmatpush1.bf16.msra.mxu0 %v3310
  %4870 = vmatprep.subr.bf16.mxu0 0
  %4871 = vmatpush1.bf16.msra.mxu0 %v3313
  %4872 = vmatprep.subr.bf16.mxu0 0
  %4873 = vmatpush1.bf16.msra.mxu0 %v3316
  %4874 = vmatprep.subr.bf16.mxu0 0
  %4875 = vmatpush1.bf16.msra.mxu0 %v3319
  %4876 = vmatprep.subr.bf16.mxu0 0
  %4877 = vmatpush1.bf16.msra.mxu0 %v3322
  %4878 = vmatprep.subr.bf16.mxu0 0
  %4879 = vmatpush1.bf16.msra.mxu0 %v3325
  %4880 = vmatprep.subr.bf16.mxu0 0
  %4881 = vmatpush1.bf16.msra.mxu0 %v3328
  %4882 = vmatprep.subr.bf16.mxu0 0
  %4883 = vmatpush1.bf16.msra.mxu0 %v3331
  %4884 = vmatprep.subr.bf16.mxu0 0
  %4885 = vmatpush1.bf16.msra.mxu0 %v3334
  %4886 = vmatprep.subr.bf16.mxu0 0
  %4887 = vmatpush1.bf16.msra.mxu0 %v3337
  %4888 = vmatprep.subr.bf16.mxu0 0
  %4889 = vmatpush1.bf16.msra.mxu0 %v3340
  %4890 = vmatprep.subr.bf16.mxu0 0
  %4891 = vmatpush1.bf16.msra.mxu0 %v3343
  %4892 = vmatprep.mubr.bf16.mxu0 %v869
  %4893 = vmatmul.mubr.bf16.gmra.mrb[0].mxu0 %v868
  %v4894 = vpop.f32.mrb[0].mxu0
  %v4895 = vadd.f32 %v4855, %v4894
  %v4896 = vpop.f32.mrb[0].mxu0
  %v4897 = vpop.f32.mrb[0].mxu0
  %v4898 = vpop.f32.mrb[0].mxu0
  %4899 = vdwg.mxu0
  %4900 = vmatprep.subr.bf16.mxu0 0
  %4901 = vmatpush1.bf16.msra.mxu0 %v3346
  %4902 = vmatprep.subr.bf16.mxu0 0
  %4903 = vmatpush1.bf16.msra.mxu0 %v3349
  %4904 = vmatprep.subr.bf16.mxu0 0
  %4905 = vmatpush1.bf16.msra.mxu0 %v3352
  %4906 = vmatprep.subr.bf16.mxu0 0
  %4907 = vmatpush1.bf16.msra.mxu0 %v3355
  %4908 = vmatprep.subr.bf16.mxu0 0
  %4909 = vmatpush1.bf16.msra.mxu0 %v3358
  %4910 = vmatprep.subr.bf16.mxu0 0
  %4911 = vmatpush1.bf16.msra.mxu0 %v3361
  %4912 = vmatprep.subr.bf16.mxu0 0
  %4913 = vmatpush1.bf16.msra.mxu0 %v3364
  %4914 = vmatprep.subr.bf16.mxu0 0
  %4915 = vmatpush1.bf16.msra.mxu0 %v3367
  %4916 = vmatprep.subr.bf16.mxu0 0
  %4917 = vmatpush1.bf16.msra.mxu0 %v3370
  %4918 = vmatprep.subr.bf16.mxu0 0
  %4919 = vmatpush1.bf16.msra.mxu0 %v3373
  %4920 = vmatprep.subr.bf16.mxu0 0
  %4921 = vmatpush1.bf16.msra.mxu0 %v3376
  %4922 = vmatprep.subr.bf16.mxu0 0
  %4923 = vmatpush1.bf16.msra.mxu0 %v3379
  %4924 = vmatprep.subr.bf16.mxu0 0
  %4925 = vmatpush1.bf16.msra.mxu0 %v3382
  %4926 = vmatprep.subr.bf16.mxu0 0
  %4927 = vmatpush1.bf16.msra.mxu0 %v3385
  %4928 = vmatprep.subr.bf16.mxu0 0
  %4929 = vmatpush1.bf16.msra.mxu0 %v3388
  %4930 = vmatprep.subr.bf16.mxu0 0
  %4931 = vmatpush1.bf16.msra.mxu0 %v3391
  %4932 = vmatprep.mubr.bf16.mxu0 %v871
  %4933 = vmatmul.mubr.bf16.gmra.mrb[0].mxu0 %v870
  %v4934 = vpop.f32.mrb[0].mxu0
  %v4935 = vadd.f32 %v4895, %v4934
  %v4936 = vpop.f32.mrb[0].mxu0
  %v4937 = vpop.f32.mrb[0].mxu0
  %v4938 = vpop.f32.mrb[0].mxu0
  %4939 = vdwg.mxu0
  %4940 = vst [vmem:[%s3] sm:$0xff] %v4454
  %4941 = vst [vmem:[%s3 + $0x8] sm:$0xff] %v4456
  %4942 = vst [vmem:[%s3 + $0x10] sm:$0xff] %v4935
  // Predicated region
  $region14: #{vit_mt_forward.8} parent=0 // pred_check
    _
  $region15: #{vit_mt_forward.8} parent=0 // pred_check_branch
    %4944 = sbr.rel (0) target = $region17
  $region16: #{vit_mt_forward.8} parent=0 // pred_region
    _
  $region17: #{vit_mt_forward.8} parent=0 // pred_fallthru
    _
  // Predicated region
  $region18: #{vit_mt_forward.8} parent=0 // pred_check
    _
  $region19: #{vit_mt_forward.8} parent=0 // pred_check_branch
    %4946 = sbr.rel (0) target = $region21
  $region20: #{vit_mt_forward.8} parent=0 // pred_region
    _
  $region21: #{vit_mt_forward.8} parent=0 // pred_fallthru
    _

// kernel: vit_mt_forward.15
$region0: #{vit_mt_forward.15}
  #allocation0 [shape = 'u32[]', space=smem, size = 0x4, offset = 0x4, fixed_abs, tag = 'smem constant byte address 0x4 - core index']
  #allocation1 [shape = 'u32[144,128]{1,0:T(1,128)}', space=vmem, size = 0x12000, scoped, tag = 'internal scratch']
  %s0 = inlined_call_operand.vmem [shape: f32[2,384], index: 0, kind: input, shape index: {}]
  %s1 = inlined_call_operand.vmem [shape: f32[1,384], index: 1, kind: input, shape index: {}]
  %s2 = inlined_call_operand.vmem [shape: f32[1,384], index: 2, kind: input, shape index: {}]
  %s3 = inlined_call_operand.vmem [shape: bf16[384,128], index: 3, kind: input, shape index: {}]
  %s4 = inlined_call_operand.vmem [shape: f32[1,128], index: 4, kind: input, shape index: {}]
  %s5 = inlined_call_operand.hbm [shape: f32[2,384], index: 5, kind: output, shape index: {0}]
  %s6 = inlined_call_operand.hbm [shape: f32[2,128], index: 6, kind: output, shape index: {1}]
  %7 = xla_tuple %s5, %s6
  %s8 = sld [smem:[#allocation0]]
  $region38: #{vit_mt_forward.15} parent=0
    _
  %s10 = ssub.s32 1, %s8
  %s11 = scalar_select 0, %s10, %s8
  $region1: #{vit_mt_forward.15} parent=0
    #allocation2 [shape = 'u8[3072]{0}', space=vmem, size = 0xc00, scoped, tag = 'output window, operand 0, single buffered']
    #allocation3 [shape = 's32[1]{0}', space=sflag, size = 0x4, scoped, tag = 'scoped memory for vit_mt_forward.15']
    #allocation4 [shape = 'u8[1024]{0}', space=vmem, size = 0x400, scoped, tag = 'output window, operand 1, single buffered']
    #allocation5 [shape = 's32[1]{0}', space=sflag, size = 0x4, scoped, tag = 'scoped memory for vit_mt_forward.15']
    %12 = vsyncpa [#allocation3], 0
    %13 = vsyncpa [#allocation5], 0
    // Predicated region
    $region2: #{vit_mt_forward.15} parent=1 // pred_check
      _
    $region3: #{vit_mt_forward.15} parent=1 // pred_check_branch
      %15 = sbr.rel (0) target = $region5
    $region4: #{vit_mt_forward.15} parent=1 // pred_region
      _
    $region5: #{vit_mt_forward.15} parent=1 // pred_fallthru
      _
    // Predicated region
    $region6: #{vit_mt_forward.15} parent=1 // pred_check
      _
    $region7: #{vit_mt_forward.15} parent=1 // pred_check_branch
      %17 = sbr.rel (0) target = $region9
    $region8: #{vit_mt_forward.15} parent=1 // pred_region
      _
    $region9: #{vit_mt_forward.15} parent=1 // pred_fallthru
      _
    // Predicated region
    $region10: #{vit_mt_forward.15} parent=1 // pred_check
      _
    $region11: #{vit_mt_forward.15} parent=1 // pred_check_branch
      %19 = sbr.rel (0) target = $region13
    $region12: #{vit_mt_forward.15} parent=1 // pred_region
      _
    $region13: #{vit_mt_forward.15} parent=1 // pred_fallthru
      _
    // Predicated region
    $region14: #{vit_mt_forward.15} parent=1 // pred_check
      _
    $region15: #{vit_mt_forward.15} parent=1 // pred_check_branch
      %21 = sbr.rel (0) target = $region17
    $region16: #{vit_mt_forward.15} parent=1 // pred_region
      _
    $region17: #{vit_mt_forward.15} parent=1 // pred_fallthru
      _
    // Predicated region
    $region18: #{vit_mt_forward.15} parent=1 // pred_check
      _
    $region19: #{vit_mt_forward.15} parent=1 // pred_check_branch
      %23 = sbr.rel (0) target = $region21
    $region20: #{vit_mt_forward.15} parent=1 // pred_region
      _
    $region21: #{vit_mt_forward.15} parent=1 // pred_fallthru
      _
    %v25 = vld [vmem:[%s0] sm:$0x3f]
    %v26 = vld [vmem:[%s1] sm:$0x7]
    %v27 = vld [vmem:[%s2] sm:$0x7]
    %v29 = vcombine.high %v25, %v25
    %v31 = vunpack.c.l.s4 1983009808
    %v32 = vunpack.c.0.s8 %v31
    %v33 = vlaneseq
    %v34 = vshrl.u32 %v33, 7
    %v35 = vsub.s32 %v32, %v34
    %v36 = vrot.slane %v25, %v35
    %v38 = vunpack.c.l.s4 1983009808
    %v39 = vunpack.c.0.s8 %v38
    %v40 = vlaneseq
    %v41 = vshrl.u32 %v40, 7
    %v42 = vsub.s32 %v39, %v41
    %v43 = vrot.slane %v29, %v42
    %v44 = vcombine.high %v36, %v36
    %vm48 = vcmask 1041408
    %v49 = vsel %vm48, %v36, 0.0
    %v50 = vsel %vm48, %v44, 0.0
    %v51 = vadd.f32 %v49, %v50
    %v52 = vsel %vm48, %v43, 0.0
    %v53 = vadd.f32 %v51, %v52
    %54 = vadd.xlane.f32.xlu0 %v53
    %v55 = vpop.xlane.xlu0 %54
    %v56 = vrcp.pop 384.0
    %v57 = vmul.f32 %v55, %v56
    %v60 = vunpack.c.l.s4 269488144
    %v61 = vunpack.c.0.s8 %v60
    %v62 = vlaneseq
    %v63 = vshrl.u32 %v62, 7
    %v64 = vsub.s32 %v61, %v63
    %v65 = vrot.slane %v57, %v64
    %v67 = vsub.f32 %v25, %v65
    %v68 = vmul.f32 %v67, %v67
    %v70 = vcombine.high %v68, %v68
    %v72 = vunpack.c.l.s4 1983009808
    %v73 = vunpack.c.0.s8 %v72
    %v74 = vlaneseq
    %v75 = vshrl.u32 %v74, 7
    %v76 = vsub.s32 %v73, %v75
    %v77 = vrot.slane %v68, %v76
    %v79 = vunpack.c.l.s4 1983009808
    %v80 = vunpack.c.0.s8 %v79
    %v81 = vlaneseq
    %v82 = vshrl.u32 %v81, 7
    %v83 = vsub.s32 %v80, %v82
    %v84 = vrot.slane %v70, %v83
    %v85 = vcombine.high %v77, %v77
    %v89 = vsel %vm48, %v77, 0.0
    %v90 = vsel %vm48, %v85, 0.0
    %v91 = vadd.f32 %v89, %v90
    %v92 = vsel %vm48, %v84, 0.0
    %v93 = vadd.f32 %v91, %v92
    %94 = vadd.xlane.f32.xlu0 %v93
    %v95 = vpop.xlane.xlu0 %94
    %v96 = vmul.f32 %v95, %v56
    %v97 = vadd.f32 %v96, 1e-06
    %v98 = vrsqrt.pop %v97
    %v101 = vunpack.c.l.s4 269488144
    %v102 = vunpack.c.0.s8 %v101
    %v103 = vlaneseq
    %v104 = vshrl.u32 %v103, 7
    %v105 = vsub.s32 %v102, %v104
    %v106 = vrot.slane %v98, %v105
    %v108 = vmul.f32 %v67, %v106
    %v110 = vlaneseq
    %v111 = vshrl.u32 %v110, 7
    %v112 = vsub.s32 0, %v111
    %v113 = vrot.slane %v26, %v112
    %v114 = vlaneseq
    %v115 = vshrl.u32 %v114, 7
    %v116 = vsub.s32 1, %v115
    %v117 = vrot.slane %v26, %v116
    %v118 = vlaneseq
    %v119 = vshrl.u32 %v118, 7
    %v120 = vsub.s32 2, %v119
    %v121 = vrot.slane %v26, %v120
    %v122 = vcombine.low %v113, %v117
    %v124 = vunpack.c.l.s4 1983009808
    %v125 = vunpack.c.0.s8 %v124
    %v126 = vlaneseq
    %v127 = vshrl.u32 %v126, 7
    %v128 = vsub.s32 %v125, %v127
    %v129 = vrot.slane %v122, %v128
    %v131 = vunpack.c.l.s4 1983009808
    %v132 = vunpack.c.0.s8 %v131
    %v133 = vlaneseq
    %v134 = vshrl.u32 %v133, 7
    %v135 = vsub.s32 %v132, %v134
    %v136 = vrot.slane %v121, %v135
    %v137 = vcombine.low %v129, %v136
    %v139 = vmul.f32 %v108, %v137
    %v141 = vlaneseq
    %v142 = vshrl.u32 %v141, 7
    %v143 = vsub.s32 0, %v142
    %v144 = vrot.slane %v27, %v143
    %v145 = vlaneseq
    %v146 = vshrl.u32 %v145, 7
    %v147 = vsub.s32 1, %v146
    %v148 = vrot.slane %v27, %v147
    %v149 = vlaneseq
    %v150 = vshrl.u32 %v149, 7
    %v151 = vsub.s32 2, %v150
    %v152 = vrot.slane %v27, %v151
    %v153 = vcombine.low %v144, %v148
    %v155 = vunpack.c.l.s4 1983009808
    %v156 = vunpack.c.0.s8 %v155
    %v157 = vlaneseq
    %v158 = vshrl.u32 %v157, 7
    %v159 = vsub.s32 %v156, %v158
    %v160 = vrot.slane %v153, %v159
    %v162 = vunpack.c.l.s4 1983009808
    %v163 = vunpack.c.0.s8 %v162
    %v164 = vlaneseq
    %v165 = vshrl.u32 %v164, 7
    %v166 = vsub.s32 %v163, %v165
    %v167 = vrot.slane %v152, %v166
    %v168 = vcombine.low %v160, %v167
    %v170 = vadd.f32 %v139, %v168
    %171 = vst [vmem:[#allocation2] sm:$0x3f] %v170
    %v173 = vcombine.high %v170, %v170
    %v175 = vunpack.c.l.s4 1983009808
    %v176 = vunpack.c.0.s8 %v175
    %v177 = vlaneseq
    %v178 = vshrl.u32 %v177, 7
    %v179 = vsub.s32 %v176, %v178
    %v180 = vrot.slane %v170, %v179
    %v182 = vunpack.c.l.s4 1983009808
    %v183 = vunpack.c.0.s8 %v182
    %v184 = vlaneseq
    %v185 = vshrl.u32 %v184, 7
    %v186 = vsub.s32 %v183, %v185
    %v187 = vrot.slane %v173, %v186
    %v188 = vcombine.high %v180, %v180
    %v192 = vpack.c.bf16 %v180, %v180
    %v193 = vpack.c.bf16 %v188, %v188
    %v194 = vpack.c.bf16 %v187, %v187
    %v195 = vld [vmem:[%s3] sm:$0xf]
    %v196 = vld [vmem:[%s3 + $0x4] sm:$0xf]
    %v197 = vld [vmem:[%s3 + $0x8] sm:$0xf]
    %v198 = vld [vmem:[%s3 + $0xc] sm:$0xf]
    %v199 = vld [vmem:[%s3 + $0x10] sm:$0xf]
    %v200 = vld [vmem:[%s3 + $0x14] sm:$0xf]
    %v201 = vld [vmem:[%s3 + $0x18] sm:$0xf]
    %v202 = vld [vmem:[%s3 + $0x1c] sm:$0xf]
    %v203 = vld [vmem:[%s3 + $0x20] sm:$0xf]
    %v204 = vld [vmem:[%s3 + $0x24] sm:$0xf]
    %v205 = vld [vmem:[%s3 + $0x28] sm:$0xf]
    %v206 = vld [vmem:[%s3 + $0x2c] sm:$0xf]
    %v207 = vld [vmem:[%s3 + $0x30] sm:$0xf]
    %v208 = vld [vmem:[%s3 + $0x34] sm:$0xf]
    %v209 = vld [vmem:[%s3 + $0x38] sm:$0xf]
    %v210 = vld [vmem:[%s3 + $0x3c] sm:$0xf]
    %v211 = vld [vmem:[%s3 + $0x40] sm:$0xf]
    %v212 = vld [vmem:[%s3 + $0x44] sm:$0xf]
    %v213 = vld [vmem:[%s3 + $0x48] sm:$0xf]
    %v214 = vld [vmem:[%s3 + $0x4c] sm:$0xf]
    %v215 = vld [vmem:[%s3 + $0x50] sm:$0xf]
    %v216 = vld [vmem:[%s3 + $0x54] sm:$0xf]
    %v217 = vld [vmem:[%s3 + $0x58] sm:$0xf]
    %v218 = vld [vmem:[%s3 + $0x5c] sm:$0xf]
    %v219 = vld [vmem:[%s3 + $0x60] sm:$0xf]
    %v220 = vld [vmem:[%s3 + $0x64] sm:$0xf]
    %v221 = vld [vmem:[%s3 + $0x68] sm:$0xf]
    %v222 = vld [vmem:[%s3 + $0x6c] sm:$0xf]
    %v223 = vld [vmem:[%s3 + $0x70] sm:$0xf]
    %v224 = vld [vmem:[%s3 + $0x74] sm:$0xf]
    %v225 = vld [vmem:[%s3 + $0x78] sm:$0xf]
    %v226 = vld [vmem:[%s3 + $0x7c] sm:$0xf]
    %v227 = vld [vmem:[%s3 + $0x80] sm:$0xf]
    %v228 = vld [vmem:[%s3 + $0x84] sm:$0xf]
    %v229 = vld [vmem:[%s3 + $0x88] sm:$0xf]
    %v230 = vld [vmem:[%s3 + $0x8c] sm:$0xf]
    %v231 = vld [vmem:[%s3 + $0x90] sm:$0xf]
    %v232 = vld [vmem:[%s3 + $0x94] sm:$0xf]
    %v233 = vld [vmem:[%s3 + $0x98] sm:$0xf]
    %v234 = vld [vmem:[%s3 + $0x9c] sm:$0xf]
    %v235 = vld [vmem:[%s3 + $0xa0] sm:$0xf]
    %v236 = vld [vmem:[%s3 + $0xa4] sm:$0xf]
    %v237 = vld [vmem:[%s3 + $0xa8] sm:$0xf]
    %v238 = vld [vmem:[%s3 + $0xac] sm:$0xf]
    %v239 = vld [vmem:[%s3 + $0xb0] sm:$0xf]
    %v240 = vld [vmem:[%s3 + $0xb4] sm:$0xf]
    %v241 = vld [vmem:[%s3 + $0xb8] sm:$0xf]
    %v242 = vld [vmem:[%s3 + $0xbc] sm:$0xf]
    %v243 = vld [vmem:[%s4] sm:$0x1]
    %v245 = vlaneseq
    %v246 = vshrl.u32 %v245, 7
    %v247 = vsub.s32 0, %v246
    %v248 = vrot.slane %v243, %v247
    %v298 = vunpack.c.l.b16 %v195
    %v299 = vunpack.c.l.b16 %v196
    %v300 = vunpack.c.l.b16 %v197
    %v301 = vunpack.c.l.b16 %v198
    %v302 = vunpack.c.l.b16 %v199
    %v303 = vunpack.c.l.b16 %v200
    %v304 = vunpack.c.l.b16 %v201
    %v305 = vunpack.c.l.b16 %v202
    %v306 = vunpack.c.l.b16 %v203
    %v307 = vunpack.c.l.b16 %v204
    %v308 = vunpack.c.l.b16 %v205
    %v309 = vunpack.c.l.b16 %v206
    %v310 = vunpack.c.l.b16 %v207
    %v311 = vunpack.c.l.b16 %v208
    %v312 = vunpack.c.l.b16 %v209
    %v313 = vunpack.c.l.b16 %v210
    %v314 = vunpack.c.l.b16 %v211
    %v315 = vunpack.c.l.b16 %v212
    %v316 = vunpack.c.l.b16 %v213
    %v317 = vunpack.c.l.b16 %v214
    %v318 = vunpack.c.l.b16 %v215
    %v319 = vunpack.c.l.b16 %v216
    %v320 = vunpack.c.l.b16 %v217
    %v321 = vunpack.c.l.b16 %v218
    %v322 = vunpack.c.l.b16 %v219
    %v323 = vunpack.c.l.b16 %v220
    %v324 = vunpack.c.l.b16 %v221
    %v325 = vunpack.c.l.b16 %v222
    %v326 = vunpack.c.l.b16 %v223
    %v327 = vunpack.c.l.b16 %v224
    %v328 = vunpack.c.l.b16 %v225
    %v329 = vunpack.c.l.b16 %v226
    %v330 = vunpack.c.l.b16 %v227
    %v331 = vunpack.c.l.b16 %v228
    %v332 = vunpack.c.l.b16 %v229
    %v333 = vunpack.c.l.b16 %v230
    %v334 = vunpack.c.l.b16 %v231
    %v335 = vunpack.c.l.b16 %v232
    %v336 = vunpack.c.l.b16 %v233
    %v337 = vunpack.c.l.b16 %v234
    %v338 = vunpack.c.l.b16 %v235
    %v339 = vunpack.c.l.b16 %v236
    %v340 = vunpack.c.l.b16 %v237
    %v341 = vunpack.c.l.b16 %v238
    %v342 = vunpack.c.l.b16 %v239
    %v343 = vunpack.c.l.b16 %v240
    %v344 = vunpack.c.l.b16 %v241
    %v345 = vunpack.c.l.b16 %v242
    %v346 = vpack.c.b16 %v299, %v298
    %v347 = vpack.c.b16 %v301, %v300
    %v348 = vpack.c.b16 %v303, %v302
    %v349 = vpack.c.b16 %v305, %v304
    %v350 = vpack.c.b16 %v307, %v306
    %v351 = vpack.c.b16 %v309, %v308
    %v352 = vpack.c.b16 %v311, %v310
    %v353 = vpack.c.b16 %v313, %v312
    %v354 = vpack.c.b16 %v315, %v314
    %v355 = vpack.c.b16 %v317, %v316
    %v356 = vpack.c.b16 %v319, %v318
    %v357 = vpack.c.b16 %v321, %v320
    %v358 = vpack.c.b16 %v323, %v322
    %v359 = vpack.c.b16 %v325, %v324
    %v360 = vpack.c.b16 %v327, %v326
    %v361 = vpack.c.b16 %v329, %v328
    %v362 = vpack.c.b16 %v331, %v330
    %v363 = vpack.c.b16 %v333, %v332
    %v364 = vpack.c.b16 %v335, %v334
    %v365 = vpack.c.b16 %v337, %v336
    %v366 = vpack.c.b16 %v339, %v338
    %v367 = vpack.c.b16 %v341, %v340
    %v368 = vpack.c.b16 %v343, %v342
    %v369 = vpack.c.b16 %v345, %v344
    %394 = vmatprep.subr.bf16.mxu0 0
    %395 = vmatpush1.bf16.msra.mxu0 %v346
    %396 = vmatprep.subr.bf16.mxu0 0
    %397 = vmatpush1.bf16.msra.mxu0 %v347
    %398 = vmatprep.subr.bf16.mxu0 0
    %399 = vmatpush1.bf16.msra.mxu0 %v348
    %400 = vmatprep.subr.bf16.mxu0 0
    %401 = vmatpush1.bf16.msra.mxu0 %v349
    %402 = vmatprep.subr.bf16.mxu0 0
    %403 = vmatpush1.bf16.msra.mxu0 %v350
    %404 = vmatprep.subr.bf16.mxu0 0
    %405 = vmatpush1.bf16.msra.mxu0 %v351
    %406 = vmatprep.subr.bf16.mxu0 0
    %407 = vmatpush1.bf16.msra.mxu0 %v352
    %408 = vmatprep.subr.bf16.mxu0 0
    %409 = vmatpush1.bf16.msra.mxu0 %v353
    %410 = vmatprep.subr.bf16.mxu0 0
    %411 = vmatpush1.bf16.msra.mxu0 %v354
    %412 = vmatprep.subr.bf16.mxu0 0
    %413 = vmatpush1.bf16.msra.mxu0 %v355
    %414 = vmatprep.subr.bf16.mxu0 0
    %415 = vmatpush1.bf16.msra.mxu0 %v356
    %416 = vmatprep.subr.bf16.mxu0 0
    %417 = vmatpush1.bf16.msra.mxu0 %v357
    %418 = vmatprep.subr.bf16.mxu0 0
    %419 = vmatpush1.bf16.msra.mxu0 %v358
    %420 = vmatprep.subr.bf16.mxu0 0
    %421 = vmatpush1.bf16.msra.mxu0 %v359
    %422 = vmatprep.subr.bf16.mxu0 0
    %423 = vmatpush1.bf16.msra.mxu0 %v360
    %424 = vmatprep.subr.bf16.mxu0 0
    %425 = vmatpush1.bf16.msra.mxu0 %v361
    %426 = vmatprep.mubr.bf16.mxu0 %v193
    %427 = vmatmul.mubr.bf16.gmra.mrb[0].mxu0 %v192
    %v428 = vpop.f32.mrb[0].mxu0
    %v429 = vadd.f32 %v248, %v428
    %v430 = vpop.f32.mrb[0].mxu0
    %v431 = vpop.f32.mrb[0].mxu0
    %v432 = vpop.f32.mrb[0].mxu0
    %433 = vdwg.mxu0
    %434 = vmatprep.subr.bf16.mxu0 0
    %435 = vmatpush1.bf16.msra.mxu0 %v362
    %436 = vmatprep.subr.bf16.mxu0 0
    %437 = vmatpush1.bf16.msra.mxu0 %v363
    %438 = vmatprep.subr.bf16.mxu0 0
    %439 = vmatpush1.bf16.msra.mxu0 %v364
    %440 = vmatprep.subr.bf16.mxu0 0
    %441 = vmatpush1.bf16.msra.mxu0 %v365
    %442 = vmatprep.subr.bf16.mxu0 0
    %443 = vmatpush1.bf16.msra.mxu0 %v366
    %444 = vmatprep.subr.bf16.mxu0 0
    %445 = vmatpush1.bf16.msra.mxu0 %v367
    %446 = vmatprep.subr.bf16.mxu0 0
    %447 = vmatpush1.bf16.msra.mxu0 %v368
    %448 = vmatprep.subr.bf16.mxu0 0
    %449 = vmatpush1.bf16.msra.mxu0 %v369
    %450 = vmatprep.subr.bf16.mxu0 0
    %451 = vmatpush1.bf16.msra.mxu0 0
    %452 = vmatprep.subr.bf16.mxu0 0
    %453 = vmatpush1.bf16.msra.mxu0 0
    %454 = vmatprep.subr.bf16.mxu0 0
    %455 = vmatpush1.bf16.msra.mxu0 0
    %456 = vmatprep.subr.bf16.mxu0 0
    %457 = vmatpush1.bf16.msra.mxu0 0
    %458 = vmatprep.subr.bf16.mxu0 0
    %459 = vmatpush1.bf16.msra.mxu0 0
    %460 = vmatprep.subr.bf16.mxu0 0
    %461 = vmatpush1.bf16.msra.mxu0 0
    %462 = vmatprep.subr.bf16.mxu0 0
    %463 = vmatpush1.bf16.msra.mxu0 0
    %464 = vmatprep.subr.bf16.mxu0 0
    %465 = vmatpush1.bf16.msra.mxu0 0
    %466 = vmatprep.mubr.bf16.mxu0 0
    %467 = vmatmul.mubr.bf16.gmra.mrb[0].mxu0 %v194
    %v468 = vpop.f32.mrb[0].mxu0
    %v469 = vadd.f32 %v429, %v468
    %v470 = vpop.f32.mrb[0].mxu0
    %v471 = vpop.f32.mrb[0].mxu0
    %v472 = vpop.f32.mrb[0].mxu0
    %473 = vdwg.mxu0
    %474 = vst [vmem:[#allocation4] sm:$0x3] %v469
    // Predicated region
    $region22: #{vit_mt_forward.15} parent=1 // pred_check
      _
    $region23: #{vit_mt_forward.15} parent=1 // pred_check_branch
      %476 = sbr.rel (0) target = $region25
    $region24: #{vit_mt_forward.15} parent=1 // pred_region
      %s478 = ssub.s32 96, 96
      %479 = vsyncadd [#allocation3], %s478
      %s481 = sshll.u32 [#allocation2], 4
      %s482 = int_to_ptr.vmem [resolvable:$true] %s481
      %484 = dma.vmem_to_hbm [thread:$0]  %s482, 96, %s5, [#allocation3]
    $region25: #{vit_mt_forward.15} parent=1 // pred_fallthru
      _
    // Predicated region
    $region26: #{vit_mt_forward.15} parent=1 // pred_check
      _
    $region27: #{vit_mt_forward.15} parent=1 // pred_check_branch
      %486 = sbr.rel (0) target = $region29
    $region28: #{vit_mt_forward.15} parent=1 // pred_region
      %s488 = ssub.s32 32, 32
      %489 = vsyncadd [#allocation5], %s488
      %s491 = sshll.u32 [#allocation4], 4
      %s492 = int_to_ptr.vmem [resolvable:$true] %s491
      %494 = dma.vmem_to_hbm [thread:$0]  %s492, 32, %s6, [#allocation5]
    $region29: #{vit_mt_forward.15} parent=1 // pred_fallthru
      _
    // Predicated region
    $region30: #{vit_mt_forward.15} parent=1 // pred_check
      _
    $region31: #{vit_mt_forward.15} parent=1 // pred_check_branch
      %496 = sbr.rel (0) target = $region33
    $region32: #{vit_mt_forward.15} parent=1 // pred_region
      %497 = dma.done [#allocation3], 96
    $region33: #{vit_mt_forward.15} parent=1 // pred_fallthru
      _
    // Predicated region
    $region34: #{vit_mt_forward.15} parent=1 // pred_check
      _
    $region35: #{vit_mt_forward.15} parent=1 // pred_check_branch
      %499 = sbr.rel (0) target = $region37
    $region36: #{vit_mt_forward.15} parent=1 // pred_region
      %500 = dma.done [#allocation5], 32
    $region37: #{vit_mt_forward.15} parent=1 // pred_fallthru
      _
    %501 = vsyncpa [#allocation3], 1
    %502 = vsyncpa [#allocation5], 1

// kernel: vit_mt_forward.11
$region0: #{vit_mt_forward.11}
  #allocation0 [shape = 'u32[]', space=smem, size = 0x4, offset = 0x4, fixed_abs, tag = 'smem constant byte address 0x4 - core index']
  #allocation1 [shape = 'u32[144,128]{1,0:T(1,128)}', space=vmem, size = 0x12000, scoped, tag = 'internal scratch']
  %s0 = inlined_call_operand.vmem [shape: f32[10,384], index: 0, kind: input, shape index: {}]
  %s1 = inlined_call_operand.vmem [shape: f32[1,384], index: 1, kind: input, shape index: {}]
  %s2 = inlined_call_operand.vmem [shape: f32[1,384], index: 2, kind: input, shape index: {}, may-alias: {2,6}]
  %s3 = inlined_call_operand.vmem [shape: bf16[384,1536], index: 3, kind: input, shape index: {}]
  %s4 = inlined_call_operand.vmem [shape: f32[1,1536], index: 4, kind: input, shape index: {}]
  %s5 = inlined_call_operand.vmem [shape: bf16[1536,384], index: 5, kind: input, shape index: {}]
  %s6 = inlined_call_operand.vmem [shape: f32[1,384], index: 6, kind: input, shape index: {}, may-alias: {2,6}]
  %s7 = inlined_call_operand.vmem [shape: f32[10,384], index: 7, kind: output, shape index: {}]
  %s8 = sld [smem:[#allocation0]]
  $region38: #{vit_mt_forward.11} parent=0
    _
  %s10 = ssub.s32 1, %s8
  %s11 = scalar_select 0, %s10, %s8
  // Predicated region
  $region2: #{vit_mt_forward.11} parent=0 // pred_check
    _
  $region3: #{vit_mt_forward.11} parent=0 // pred_check_branch
    %13 = sbr.rel (0) target = $region5
  $region4: #{vit_mt_forward.11} parent=0 // pred_region
    _
  $region5: #{vit_mt_forward.11} parent=0 // pred_fallthru
    _
  // Predicated region
  $region6: #{vit_mt_forward.11} parent=0 // pred_check
    _
  $region7: #{vit_mt_forward.11} parent=0 // pred_check_branch
    %15 = sbr.rel (0) target = $region9
  $region8: #{vit_mt_forward.11} parent=0 // pred_region
    _
  $region9: #{vit_mt_forward.11} parent=0 // pred_fallthru
    _
  // Predicated region
  $region10: #{vit_mt_forward.11} parent=0 // pred_check
    _
  $region11: #{vit_mt_forward.11} parent=0 // pred_check_branch
    %17 = sbr.rel (0) target = $region13
  $region12: #{vit_mt_forward.11} parent=0 // pred_region
    _
  $region13: #{vit_mt_forward.11} parent=0 // pred_fallthru
    _
  // Predicated region
  $region14: #{vit_mt_forward.11} parent=0 // pred_check
    _
  $region15: #{vit_mt_forward.11} parent=0 // pred_check_branch
    %19 = sbr.rel (0) target = $region17
  $region16: #{vit_mt_forward.11} parent=0 // pred_region
    _
  $region17: #{vit_mt_forward.11} parent=0 // pred_fallthru
    _
  // Predicated region
  $region18: #{vit_mt_forward.11} parent=0 // pred_check
    _
  $region19: #{vit_mt_forward.11} parent=0 // pred_check_branch
    %21 = sbr.rel (0) target = $region21
  $region20: #{vit_mt_forward.11} parent=0 // pred_region
    _
  $region21: #{vit_mt_forward.11} parent=0 // pred_fallthru
    _
  // Predicated region
  $region22: #{vit_mt_forward.11} parent=0 // pred_check
    _
  $region23: #{vit_mt_forward.11} parent=0 // pred_check_branch
    %23 = sbr.rel (0) target = $region25
  $region24: #{vit_mt_forward.11} parent=0 // pred_region
    _
  $region25: #{vit_mt_forward.11} parent=0 // pred_fallthru
    _
  // Predicated region
  $region26: #{vit_mt_forward.11} parent=0 // pred_check
    _
  $region27: #{vit_mt_forward.11} parent=0 // pred_check_branch
    %25 = sbr.rel (0) target = $region29
  $region28: #{vit_mt_forward.11} parent=0 // pred_region
    _
  $region29: #{vit_mt_forward.11} parent=0 // pred_fallthru
    _
  %v27 = vld [vmem:[%s0] sm:$0xff]
  %v28 = vld [vmem:[%s0 + $0x8] sm:$0xff]
  %v29 = vld [vmem:[%s0 + $0x10] sm:$0xff]
  %v30 = vld [vmem:[%s0 + $0x18] sm:$0x3]
  %v31 = vld [vmem:[%s0 + $0x20] sm:$0x3]
  %v32 = vld [vmem:[%s0 + $0x28] sm:$0x3]
  %v33 = vld [vmem:[%s1] sm:$0x7]
  %v34 = vld [vmem:[%s2] sm:$0x7]
  %v35 = vadd.f32 %v27, %v28
  %v36 = vadd.f32 %v35, %v29
  %37 = vadd.xlane.f32.xlu0 %v36
  %v38 = vpop.xlane.xlu0 %37
  %vm39 = vcmask 1041408
  %v40 = vsel %vm39, %v30, 0.0
  %v41 = vsel %vm39, %v31, 0.0
  %v42 = vadd.f32 %v40, %v41
  %v43 = vsel %vm39, %v32, 0.0
  %v44 = vadd.f32 %v42, %v43
  %45 = vadd.xlane.f32.xlu0 %v44
  %v46 = vpop.xlane.xlu0 %45
  %v47 = vrcp.pop 384.0
  %v48 = vmul.f32 %v38, %v47
  %v49 = vmul.f32 %v46, %v47
  %v50 = vsub.f32 %v27, %v48
  %v51 = vsub.f32 %v28, %v48
  %v52 = vsub.f32 %v29, %v48
  %v53 = vsub.f32 %v30, %v49
  %v54 = vsub.f32 %v31, %v49
  %v55 = vsub.f32 %v32, %v49
  %v56 = vmul.f32 %v50, %v50
  %v57 = vmul.f32 %v51, %v51
  %v58 = vmul.f32 %v52, %v52
  %v59 = vmul.f32 %v53, %v53
  %v60 = vmul.f32 %v54, %v54
  %v61 = vmul.f32 %v55, %v55
  %v62 = vadd.f32 %v56, %v57
  %v63 = vadd.f32 %v62, %v58
  %64 = vadd.xlane.f32.xlu0 %v63
  %v65 = vpop.xlane.xlu0 %64
  %v66 = vsel %vm39, %v59, 0.0
  %v67 = vsel %vm39, %v60, 0.0
  %v68 = vadd.f32 %v66, %v67
  %v69 = vsel %vm39, %v61, 0.0
  %v70 = vadd.f32 %v68, %v69
  %71 = vadd.xlane.f32.xlu0 %v70
  %v72 = vpop.xlane.xlu0 %71
  %v73 = vmul.f32 %v65, %v47
  %v74 = vmul.f32 %v72, %v47
  %v75 = vadd.f32 %v73, 1e-06
  %v76 = vadd.f32 %v74, 1e-06
  %v77 = vrsqrt.pop %v75
  %v78 = vrsqrt.pop %v76
  %v79 = vmul.f32 %v50, %v77
  %v80 = vmul.f32 %v51, %v77
  %v81 = vmul.f32 %v52, %v77
  %v82 = vmul.f32 %v53, %v78
  %v83 = vmul.f32 %v54, %v78
  %v84 = vmul.f32 %v55, %v78
  %v86 = vlaneseq
  %v87 = vshrl.u32 %v86, 7
  %v88 = vsub.s32 0, %v87
  %v89 = vrot.slane %v33, %v88
  %v90 = vlaneseq
  %v91 = vshrl.u32 %v90, 7
  %v92 = vsub.s32 1, %v91
  %v93 = vrot.slane %v33, %v92
  %v94 = vlaneseq
  %v95 = vshrl.u32 %v94, 7
  %v96 = vsub.s32 2, %v95
  %v97 = vrot.slane %v33, %v96
  %v101 = vmul.f32 %v79, %v89
  %v102 = vmul.f32 %v80, %v93
  %v103 = vmul.f32 %v81, %v97
  %v104 = vmul.f32 %v82, %v89
  %v105 = vmul.f32 %v83, %v93
  %v106 = vmul.f32 %v84, %v97
  %v108 = vlaneseq
  %v109 = vshrl.u32 %v108, 7
  %v110 = vsub.s32 0, %v109
  %v111 = vrot.slane %v34, %v110
  %v112 = vlaneseq
  %v113 = vshrl.u32 %v112, 7
  %v114 = vsub.s32 1, %v113
  %v115 = vrot.slane %v34, %v114
  %v116 = vlaneseq
  %v117 = vshrl.u32 %v116, 7
  %v118 = vsub.s32 2, %v117
  %v119 = vrot.slane %v34, %v118
  %v123 = vadd.f32 %v101, %v111
  %v124 = vadd.f32 %v102, %v115
  %v125 = vadd.f32 %v103, %v119
  %v126 = vadd.f32 %v104, %v111
  %v127 = vadd.f32 %v105, %v115
  %v128 = vadd.f32 %v106, %v119
  %v129 = vpack.c.bf16 %v126, %v123
  %v130 = vpack.c.bf16 %v127, %v124
  %v131 = vpack.c.bf16 %v128, %v125
  %v132 = vld [vmem:[%s3] sm:$0xff]
  %v133 = vld [vmem:[%s3 + $0x8] sm:$0xff]
  %v134 = vld [vmem:[%s3 + $0x10] sm:$0xff]
  %v135 = vld [vmem:[%s3 + $0x18] sm:$0xff]
  %v136 = vld [vmem:[%s3 + $0x20] sm:$0xff]
  %v137 = vld [vmem:[%s3 + $0x28] sm:$0xff]
  %v138 = vld [vmem:[%s3 + $0x30] sm:$0xff]
  %v139 = vld [vmem:[%s3 + $0x38] sm:$0xff]
  %v140 = vld [vmem:[%s3 + $0x40] sm:$0xff]
  %v141 = vld [vmem:[%s3 + $0x48] sm:$0xff]
  %v142 = vld [vmem:[%s3 + $0x50] sm:$0xff]
  %v143 = vld [vmem:[%s3 + $0x58] sm:$0xff]
  %v144 = vld [vmem:[%s3 + $0x60] sm:$0xff]
  %v145 = vld [vmem:[%s3 + $0x68] sm:$0xff]
  %v146 = vld [vmem:[%s3 + $0x70] sm:$0xff]
  %v147 = vld [vmem:[%s3 + $0x78] sm:$0xff]
  %v148 = vld [vmem:[%s3 + $0x80] sm:$0xff]
  %v149 = vld [vmem:[%s3 + $0x88] sm:$0xff]
  %v150 = vld [vmem:[%s3 + $0x90] sm:$0xff]
  %v151 = vld [vmem:[%s3 + $0x98] sm:$0xff]
  %v152 = vld [vmem:[%s3 + $0xa0] sm:$0xff]
  %v153 = vld [vmem:[%s3 + $0xa8] sm:$0xff]
  %v154 = vld [vmem:[%s3 + $0xb0] sm:$0xff]
  %v155 = vld [vmem:[%s3 + $0xb8] sm:$0xff]
  %v156 = vld [vmem:[%s3 + $0xc0] sm:$0xff]
  %v157 = vld [vmem:[%s3 + $0xc8] sm:$0xff]
  %v158 = vld [vmem:[%s3 + $0xd0] sm:$0xff]
  %v159 = vld [vmem:[%s3 + $0xd8] sm:$0xff]
  %v160 = vld [vmem:[%s3 + $0xe0] sm:$0xff]
  %v161 = vld [vmem:[%s3 + $0xe8] sm:$0xff]
  %v162 = vld [vmem:[%s3 + $0xf0] sm:$0xff]
  %v163 = vld [vmem:[%s3 + $0xf8] sm:$0xff]
  %v164 = vld [vmem:[%s3 + $0x100] sm:$0xff]
  %v165 = vld [vmem:[%s3 + $0x108] sm:$0xff]
  %v166 = vld [vmem:[%s3 + $0x110] sm:$0xff]
  %v167 = vld [vmem:[%s3 + $0x118] sm:$0xff]
  %v168 = vld [vmem:[%s3 + $0x120] sm:$0xff]
  %v169 = vld [vmem:[%s3 + $0x128] sm:$0xff]
  %v170 = vld [vmem:[%s3 + $0x130] sm:$0xff]
  %v171 = vld [vmem:[%s3 + $0x138] sm:$0xff]
  %v172 = vld [vmem:[%s3 + $0x140] sm:$0xff]
  %v173 = vld [vmem:[%s3 + $0x148] sm:$0xff]
  %v174 = vld [vmem:[%s3 + $0x150] sm:$0xff]
  %v175 = vld [vmem:[%s3 + $0x158] sm:$0xff]
  %v176 = vld [vmem:[%s3 + $0x160] sm:$0xff]
  %v177 = vld [vmem:[%s3 + $0x168] sm:$0xff]
  %v178 = vld [vmem:[%s3 + $0x170] sm:$0xff]
  %v179 = vld [vmem:[%s3 + $0x178] sm:$0xff]
  %v180 = vld [vmem:[%s3 + $0x180] sm:$0xff]
  %v181 = vld [vmem:[%s3 + $0x188] sm:$0xff]
  %v182 = vld [vmem:[%s3 + $0x190] sm:$0xff]
  %v183 = vld [vmem:[%s3 + $0x198] sm:$0xff]
  %v184 = vld [vmem:[%s3 + $0x1a0] sm:$0xff]
  %v185 = vld [vmem:[%s3 + $0x1a8] sm:$0xff]
  %v186 = vld [vmem:[%s3 + $0x1b0] sm:$0xff]
  %v187 = vld [vmem:[%s3 + $0x1b8] sm:$0xff]
  %v188 = vld [vmem:[%s3 + $0x1c0] sm:$0xff]
  %v189 = vld [vmem:[%s3 + $0x1c8] sm:$0xff]
  %v190 = vld [vmem:[%s3 + $0x1d0] sm:$0xff]
  %v191 = vld [vmem:[%s3 + $0x1d8] sm:$0xff]
  %v192 = vld [vmem:[%s3 + $0x1e0] sm:$0xff]
  %v193 = vld [vmem:[%s3 + $0x1e8] sm:$0xff]
  %v194 = vld [vmem:[%s3 + $0x1f0] sm:$0xff]
  %v195 = vld [vmem:[%s3 + $0x1f8] sm:$0xff]
  %v196 = vld [vmem:[%s3 + $0x200] sm:$0xff]
  %v197 = vld [vmem:[%s3 + $0x208] sm:$0xff]
  %v198 = vld [vmem:[%s3 + $0x210] sm:$0xff]
  %v199 = vld [vmem:[%s3 + $0x218] sm:$0xff]
  %v200 = vld [vmem:[%s3 + $0x220] sm:$0xff]
  %v201 = vld [vmem:[%s3 + $0x228] sm:$0xff]
  %v202 = vld [vmem:[%s3 + $0x230] sm:$0xff]
  %v203 = vld [vmem:[%s3 + $0x238] sm:$0xff]
  %v204 = vld [vmem:[%s3 + $0x240] sm:$0xff]
  %v205 = vld [vmem:[%s3 + $0x248] sm:$0xff]
  %v206 = vld [vmem:[%s3 + $0x250] sm:$0xff]
  %v207 = vld [vmem:[%s3 + $0x258] sm:$0xff]
  %v208 = vld [vmem:[%s3 + $0x260] sm:$0xff]
  %v209 = vld [vmem:[%s3 + $0x268] sm:$0xff]
  %v210 = vld [vmem:[%s3 + $0x270] sm:$0xff]
  %v211 = vld [vmem:[%s3 + $0x278] sm:$0xff]
  %v212 = vld [vmem:[%s3 + $0x280] sm:$0xff]
  %v213 = vld [vmem:[%s3 + $0x288] sm:$0xff]
  %v214 = vld [vmem:[%s3 + $0x290] sm:$0xff]
  %v215 = vld [vmem:[%s3 + $0x298] sm:$0xff]
  %v216 = vld [vmem:[%s3 + $0x2a0] sm:$0xff]
  %v217 = vld [vmem:[%s3 + $0x2a8] sm:$0xff]
  %v218 = vld [vmem:[%s3 + $0x2b0] sm:$0xff]
  %v219 = vld [vmem:[%s3 + $0x2b8] sm:$0xff]
  %v220 = vld [vmem:[%s3 + $0x2c0] sm:$0xff]
  %v221 = vld [vmem:[%s3 + $0x2c8] sm:$0xff]
  %v222 = vld [vmem:[%s3 + $0x2d0] sm:$0xff]
  %v223 = vld [vmem:[%s3 + $0x2d8] sm:$0xff]
  %v224 = vld [vmem:[%s3 + $0x2e0] sm:$0xff]
  %v225 = vld [vmem:[%s3 + $0x2e8] sm:$0xff]
  %v226 = vld [vmem:[%s3 + $0x2f0] sm:$0xff]
  %v227 = vld [vmem:[%s3 + $0x2f8] sm:$0xff]
  %v228 = vld [vmem:[%s3 + $0x300] sm:$0xff]
  %v229 = vld [vmem:[%s3 + $0x308] sm:$0xff]
  %v230 = vld [vmem:[%s3 + $0x310] sm:$0xff]
  %v231 = vld [vmem:[%s3 + $0x318] sm:$0xff]
  %v232 = vld [vmem:[%s3 + $0x320] sm:$0xff]
  %v233 = vld [vmem:[%s3 + $0x328] sm:$0xff]
  %v234 = vld [vmem:[%s3 + $0x330] sm:$0xff]
  %v235 = vld [vmem:[%s3 + $0x338] sm:$0xff]
  %v236 = vld [vmem:[%s3 + $0x340] sm:$0xff]
  %v237 = vld [vmem:[%s3 + $0x348] sm:$0xff]
  %v238 = vld [vmem:[%s3 + $0x350] sm:$0xff]
  %v239 = vld [vmem:[%s3 + $0x358] sm:$0xff]
  %v240 = vld [vmem:[%s3 + $0x360] sm:$0xff]
  %v241 = vld [vmem:[%s3 + $0x368] sm:$0xff]
  %v242 = vld [vmem:[%s3 + $0x370] sm:$0xff]
  %v243 = vld [vmem:[%s3 + $0x378] sm:$0xff]
  %v244 = vld [vmem:[%s3 + $0x380] sm:$0xff]
  %v245 = vld [vmem:[%s3 + $0x388] sm:$0xff]
  %v246 = vld [vmem:[%s3 + $0x390] sm:$0xff]
  %v247 = vld [vmem:[%s3 + $0x398] sm:$0xff]
  %v248 = vld [vmem:[%s3 + $0x3a0] sm:$0xff]
  %v249 = vld [vmem:[%s3 + $0x3a8] sm:$0xff]
  %v250 = vld [vmem:[%s3 + $0x3b0] sm:$0xff]
  %v251 = vld [vmem:[%s3 + $0x3b8] sm:$0xff]
  %v252 = vld [vmem:[%s3 + $0x3c0] sm:$0xff]
  %v253 = vld [vmem:[%s3 + $0x3c8] sm:$0xff]
  %v254 = vld [vmem:[%s3 + $0x3d0] sm:$0xff]
  %v255 = vld [vmem:[%s3 + $0x3d8] sm:$0xff]
  %v256 = vld [vmem:[%s3 + $0x3e0] sm:$0xff]
  %v257 = vld [vmem:[%s3 + $0x3e8] sm:$0xff]
  %v258 = vld [vmem:[%s3 + $0x3f0] sm:$0xff]
  %v259 = vld [vmem:[%s3 + $0x3f8] sm:$0xff]
  %v260 = vld [vmem:[%s3 + $0x400] sm:$0xff]
  %v261 = vld [vmem:[%s3 + $0x408] sm:$0xff]
  %v262 = vld [vmem:[%s3 + $0x410] sm:$0xff]
  %v263 = vld [vmem:[%s3 + $0x418] sm:$0xff]
  %v264 = vld [vmem:[%s3 + $0x420] sm:$0xff]
  %v265 = vld [vmem:[%s3 + $0x428] sm:$0xff]
  %v266 = vld [vmem:[%s3 + $0x430] sm:$0xff]
  %v267 = vld [vmem:[%s3 + $0x438] sm:$0xff]
  %v268 = vld [vmem:[%s3 + $0x440] sm:$0xff]
  %v269 = vld [vmem:[%s3 + $0x448] sm:$0xff]
  %v270 = vld [vmem:[%s3 + $0x450] sm:$0xff]
  %v271 = vld [vmem:[%s3 + $0x458] sm:$0xff]
  %v272 = vld [vmem:[%s3 + $0x460] sm:$0xff]
  %v273 = vld [vmem:[%s3 + $0x468] sm:$0xff]
  %v274 = vld [vmem:[%s3 + $0x470] sm:$0xff]
  %v275 = vld [vmem:[%s3 + $0x478] sm:$0xff]
  %v276 = vld [vmem:[%s3 + $0x480] sm:$0xff]
  %v277 = vld [vmem:[%s3 + $0x488] sm:$0xff]
  %v278 = vld [vmem:[%s3 + $0x490] sm:$0xff]
  %v279 = vld [vmem:[%s3 + $0x498] sm:$0xff]
  %v280 = vld [vmem:[%s3 + $0x4a0] sm:$0xff]
  %v281 = vld [vmem:[%s3 + $0x4a8] sm:$0xff]
  %v282 = vld [vmem:[%s3 + $0x4b0] sm:$0xff]
  %v283 = vld [vmem:[%s3 + $0x4b8] sm:$0xff]
  %v284 = vld [vmem:[%s3 + $0x4c0] sm:$0xff]
  %v285 = vld [vmem:[%s3 + $0x4c8] sm:$0xff]
  %v286 = vld [vmem:[%s3 + $0x4d0] sm:$0xff]
  %v287 = vld [vmem:[%s3 + $0x4d8] sm:$0xff]
  %v288 = vld [vmem:[%s3 + $0x4e0] sm:$0xff]
  %v289 = vld [vmem:[%s3 + $0x4e8] sm:$0xff]
  %v290 = vld [vmem:[%s3 + $0x4f0] sm:$0xff]
  %v291 = vld [vmem:[%s3 + $0x4f8] sm:$0xff]
  %v292 = vld [vmem:[%s3 + $0x500] sm:$0xff]
  %v293 = vld [vmem:[%s3 + $0x508] sm:$0xff]
  %v294 = vld [vmem:[%s3 + $0x510] sm:$0xff]
  %v295 = vld [vmem:[%s3 + $0x518] sm:$0xff]
  %v296 = vld [vmem:[%s3 + $0x520] sm:$0xff]
  %v297 = vld [vmem:[%s3 + $0x528] sm:$0xff]
  %v298 = vld [vmem:[%s3 + $0x530] sm:$0xff]
  %v299 = vld [vmem:[%s3 + $0x538] sm:$0xff]
  %v300 = vld [vmem:[%s3 + $0x540] sm:$0xff]
  %v301 = vld [vmem:[%s3 + $0x548] sm:$0xff]
  %v302 = vld [vmem:[%s3 + $0x550] sm:$0xff]
  %v303 = vld [vmem:[%s3 + $0x558] sm:$0xff]
  %v304 = vld [vmem:[%s3 + $0x560] sm:$0xff]
  %v305 = vld [vmem:[%s3 + $0x568] sm:$0xff]
  %v306 = vld [vmem:[%s3 + $0x570] sm:$0xff]
  %v307 = vld [vmem:[%s3 + $0x578] sm:$0xff]
  %v308 = vld [vmem:[%s3 + $0x580] sm:$0xff]
  %v309 = vld [vmem:[%s3 + $0x588] sm:$0xff]
  %v310 = vld [vmem:[%s3 + $0x590] sm:$0xff]
  %v311 = vld [vmem:[%s3 + $0x598] sm:$0xff]
  %v312 = vld [vmem:[%s3 + $0x5a0] sm:$0xff]
  %v313 = vld [vmem:[%s3 + $0x5a8] sm:$0xff]
  %v314 = vld [vmem:[%s3 + $0x5b0] sm:$0xff]
  %v315 = vld [vmem:[%s3 + $0x5b8] sm:$0xff]
  %v316 = vld [vmem:[%s3 + $0x5c0] sm:$0xff]
  %v317 = vld [vmem:[%s3 + $0x5c8] sm:$0xff]
  %v318 = vld [vmem:[%s3 + $0x5d0] sm:$0xff]
  %v319 = vld [vmem:[%s3 + $0x5d8] sm:$0xff]
  %v320 = vld [vmem:[%s3 + $0x5e0] sm:$0xff]
  %v321 = vld [vmem:[%s3 + $0x5e8] sm:$0xff]
  %v322 = vld [vmem:[%s3 + $0x5f0] sm:$0xff]
  %v323 = vld [vmem:[%s3 + $0x5f8] sm:$0xff]
  %v324 = vld [vmem:[%s3 + $0x600] sm:$0xff]
  %v325 = vld [vmem:[%s3 + $0x608] sm:$0xff]
  %v326 = vld [vmem:[%s3 + $0x610] sm:$0xff]
  %v327 = vld [vmem:[%s3 + $0x618] sm:$0xff]
  %v328 = vld [vmem:[%s3 + $0x620] sm:$0xff]
  %v329 = vld [vmem:[%s3 + $0x628] sm:$0xff]
  %v330 = vld [vmem:[%s3 + $0x630] sm:$0xff]
  %v331 = vld [vmem:[%s3 + $0x638] sm:$0xff]
  %v332 = vld [vmem:[%s3 + $0x640] sm:$0xff]
  %v333 = vld [vmem:[%s3 + $0x648] sm:$0xff]
  %v334 = vld [vmem:[%s3 + $0x650] sm:$0xff]
  %v335 = vld [vmem:[%s3 + $0x658] sm:$0xff]
  %v336 = vld [vmem:[%s3 + $0x660] sm:$0xff]
  %v337 = vld [vmem:[%s3 + $0x668] sm:$0xff]
  %v338 = vld [vmem:[%s3 + $0x670] sm:$0xff]
  %v339 = vld [vmem:[%s3 + $0x678] sm:$0xff]
  %v340 = vld [vmem:[%s3 + $0x680] sm:$0xff]
  %v341 = vld [vmem:[%s3 + $0x688] sm:$0xff]
  %v342 = vld [vmem:[%s3 + $0x690] sm:$0xff]
  %v343 = vld [vmem:[%s3 + $0x698] sm:$0xff]
  %v344 = vld [vmem:[%s3 + $0x6a0] sm:$0xff]
  %v345 = vld [vmem:[%s3 + $0x6a8] sm:$0xff]
  %v346 = vld [vmem:[%s3 + $0x6b0] sm:$0xff]
  %v347 = vld [vmem:[%s3 + $0x6b8] sm:$0xff]
  %v348 = vld [vmem:[%s3 + $0x6c0] sm:$0xff]
  %v349 = vld [vmem:[%s3 + $0x6c8] sm:$0xff]
  %v350 = vld [vmem:[%s3 + $0x6d0] sm:$0xff]
  %v351 = vld [vmem:[%s3 + $0x6d8] sm:$0xff]
  %v352 = vld [vmem:[%s3 + $0x6e0] sm:$0xff]
  %v353 = vld [vmem:[%s3 + $0x6e8] sm:$0xff]
  %v354 = vld [vmem:[%s3 + $0x6f0] sm:$0xff]
  %v355 = vld [vmem:[%s3 + $0x6f8] sm:$0xff]
  %v356 = vld [vmem:[%s3 + $0x700] sm:$0xff]
  %v357 = vld [vmem:[%s3 + $0x708] sm:$0xff]
  %v358 = vld [vmem:[%s3 + $0x710] sm:$0xff]
  %v359 = vld [vmem:[%s3 + $0x718] sm:$0xff]
  %v360 = vld [vmem:[%s3 + $0x720] sm:$0xff]
  %v361 = vld [vmem:[%s3 + $0x728] sm:$0xff]
  %v362 = vld [vmem:[%s3 + $0x730] sm:$0xff]
  %v363 = vld [vmem:[%s3 + $0x738] sm:$0xff]
  %v364 = vld [vmem:[%s3 + $0x740] sm:$0xff]
  %v365 = vld [vmem:[%s3 + $0x748] sm:$0xff]
  %v366 = vld [vmem:[%s3 + $0x750] sm:$0xff]
  %v367 = vld [vmem:[%s3 + $0x758] sm:$0xff]
  %v368 = vld [vmem:[%s3 + $0x760] sm:$0xff]
  %v369 = vld [vmem:[%s3 + $0x768] sm:$0xff]
  %v370 = vld [vmem:[%s3 + $0x770] sm:$0xff]
  %v371 = vld [vmem:[%s3 + $0x778] sm:$0xff]
  %v372 = vld [vmem:[%s3 + $0x780] sm:$0xff]
  %v373 = vld [vmem:[%s3 + $0x788] sm:$0xff]
  %v374 = vld [vmem:[%s3 + $0x790] sm:$0xff]
  %v375 = vld [vmem:[%s3 + $0x798] sm:$0xff]
  %v376 = vld [vmem:[%s3 + $0x7a0] sm:$0xff]
  %v377 = vld [vmem:[%s3 + $0x7a8] sm:$0xff]
  %v378 = vld [vmem:[%s3 + $0x7b0] sm:$0xff]
  %v379 = vld [vmem:[%s3 + $0x7b8] sm:$0xff]
  %v380 = vld [vmem:[%s3 + $0x7c0] sm:$0xff]
  %v381 = vld [vmem:[%s3 + $0x7c8] sm:$0xff]
  %v382 = vld [vmem:[%s3 + $0x7d0] sm:$0xff]
  %v383 = vld [vmem:[%s3 + $0x7d8] sm:$0xff]
  %v384 = vld [vmem:[%s3 + $0x7e0] sm:$0xff]
  %v385 = vld [vmem:[%s3 + $0x7e8] sm:$0xff]
  %v386 = vld [vmem:[%s3 + $0x7f0] sm:$0xff]
  %v387 = vld [vmem:[%s3 + $0x7f8] sm:$0xff]
  %v388 = vld [vmem:[%s3 + $0x800] sm:$0xff]
  %v389 = vld [vmem:[%s3 + $0x808] sm:$0xff]
  %v390 = vld [vmem:[%s3 + $0x810] sm:$0xff]
  %v391 = vld [vmem:[%s3 + $0x818] sm:$0xff]
  %v392 = vld [vmem:[%s3 + $0x820] sm:$0xff]
  %v393 = vld [vmem:[%s3 + $0x828] sm:$0xff]
  %v394 = vld [vmem:[%s3 + $0x830] sm:$0xff]
  %v395 = vld [vmem:[%s3 + $0x838] sm:$0xff]
  %v396 = vld [vmem:[%s3 + $0x840] sm:$0xff]
  %v397 = vld [vmem:[%s3 + $0x848] sm:$0xff]
  %v398 = vld [vmem:[%s3 + $0x850] sm:$0xff]
  %v399 = vld [vmem:[%s3 + $0x858] sm:$0xff]
  %v400 = vld [vmem:[%s3 + $0x860] sm:$0xff]
  %v401 = vld [vmem:[%s3 + $0x868] sm:$0xff]
  %v402 = vld [vmem:[%s3 + $0x870] sm:$0xff]
  %v403 = vld [vmem:[%s3 + $0x878] sm:$0xff]
  %v404 = vld [vmem:[%s3 + $0x880] sm:$0xff]
  %v405 = vld [vmem:[%s3 + $0x888] sm:$0xff]
  %v406 = vld [vmem:[%s3 + $0x890] sm:$0xff]
  %v407 = vld [vmem:[%s3 + $0x898] sm:$0xff]
  %v408 = vld [vmem:[%s3 + $0x8a0] sm:$0xff]
  %v409 = vld [vmem:[%s3 + $0x8a8] sm:$0xff]
  %v410 = vld [vmem:[%s3 + $0x8b0] sm:$0xff]
  %v411 = vld [vmem:[%s3 + $0x8b8] sm:$0xff]
  %v412 = vld [vmem:[%s3 + $0x8c0] sm:$0xff]
  %v413 = vld [vmem:[%s3 + $0x8c8] sm:$0xff]
  %v414 = vld [vmem:[%s3 + $0x8d0] sm:$0xff]
  %v415 = vld [vmem:[%s3 + $0x8d8] sm:$0xff]
  %v416 = vld [vmem:[%s3 + $0x8e0] sm:$0xff]
  %v417 = vld [vmem:[%s3 + $0x8e8] sm:$0xff]
  %v418 = vld [vmem:[%s3 + $0x8f0] sm:$0xff]
  %v419 = vld [vmem:[%s3 + $0x8f8] sm:$0xff]
  %v420 = vld [vmem:[%s4] sm:$0xff]
  %v421 = vld [vmem:[%s4 + $0x8] sm:$0xf]
  %v424 = vlaneseq
  %v425 = vshrl.u32 %v424, 7
  %v426 = vsub.s32 0, %v425
  %v427 = vrot.slane %v420, %v426
  %v428 = vlaneseq
  %v429 = vshrl.u32 %v428, 7
  %v430 = vsub.s32 1, %v429
  %v431 = vrot.slane %v420, %v430
  %v432 = vlaneseq
  %v433 = vshrl.u32 %v432, 7
  %v434 = vsub.s32 2, %v433
  %v435 = vrot.slane %v420, %v434
  %v436 = vlaneseq
  %v437 = vshrl.u32 %v436, 7
  %v438 = vsub.s32 3, %v437
  %v439 = vrot.slane %v420, %v438
  %v440 = vlaneseq
  %v441 = vshrl.u32 %v440, 7
  %v442 = vsub.s32 4, %v441
  %v443 = vrot.slane %v420, %v442
  %v444 = vlaneseq
  %v445 = vshrl.u32 %v444, 7
  %v446 = vsub.s32 5, %v445
  %v447 = vrot.slane %v420, %v446
  %v448 = vlaneseq
  %v449 = vshrl.u32 %v448, 7
  %v450 = vsub.s32 6, %v449
  %v451 = vrot.slane %v420, %v450
  %v452 = vlaneseq
  %v453 = vshrl.u32 %v452, 7
  %v454 = vsub.s32 7, %v453
  %v455 = vrot.slane %v420, %v454
  %v456 = vlaneseq
  %v457 = vshrl.u32 %v456, 7
  %v458 = vsub.s32 0, %v457
  %v459 = vrot.slane %v421, %v458
  %v460 = vlaneseq
  %v461 = vshrl.u32 %v460, 7
  %v462 = vsub.s32 1, %v461
  %v463 = vrot.slane %v421, %v462
  %v464 = vlaneseq
  %v465 = vshrl.u32 %v464, 7
  %v466 = vsub.s32 2, %v465
  %v467 = vrot.slane %v421, %v466
  %v468 = vlaneseq
  %v469 = vshrl.u32 %v468, 7
  %v470 = vsub.s32 3, %v469
  %v471 = vrot.slane %v421, %v470
  %v772 = vunpack.c.l.b16 %v132
  %v773 = vunpack.c.h.b16 %v132
  %v774 = vunpack.c.l.b16 %v133
  %v775 = vunpack.c.h.b16 %v133
  %v776 = vunpack.c.l.b16 %v134
  %v777 = vunpack.c.h.b16 %v134
  %v778 = vunpack.c.l.b16 %v135
  %v779 = vunpack.c.h.b16 %v135
  %v780 = vunpack.c.l.b16 %v136
  %v781 = vunpack.c.h.b16 %v136
  %v782 = vunpack.c.l.b16 %v137
  %v783 = vunpack.c.h.b16 %v137
  %v784 = vunpack.c.l.b16 %v138
  %v785 = vunpack.c.h.b16 %v138
  %v786 = vunpack.c.l.b16 %v139
  %v787 = vunpack.c.h.b16 %v139
  %v788 = vunpack.c.l.b16 %v140
  %v789 = vunpack.c.h.b16 %v140
  %v790 = vunpack.c.l.b16 %v141
  %v791 = vunpack.c.h.b16 %v141
  %v792 = vunpack.c.l.b16 %v142
  %v793 = vunpack.c.h.b16 %v142
  %v794 = vunpack.c.l.b16 %v143
  %v795 = vunpack.c.h.b16 %v143
  %v796 = vunpack.c.l.b16 %v144
  %v797 = vunpack.c.h.b16 %v144
  %v798 = vunpack.c.l.b16 %v145
  %v799 = vunpack.c.h.b16 %v145
  %v800 = vunpack.c.l.b16 %v146
  %v801 = vunpack.c.h.b16 %v146
  %v802 = vunpack.c.l.b16 %v147
  %v803 = vunpack.c.h.b16 %v147
  %v804 = vunpack.c.l.b16 %v148
  %v805 = vunpack.c.h.b16 %v148
  %v806 = vunpack.c.l.b16 %v149
  %v807 = vunpack.c.h.b16 %v149
  %v808 = vunpack.c.l.b16 %v150
  %v809 = vunpack.c.h.b16 %v150
  %v810 = vunpack.c.l.b16 %v151
  %v811 = vunpack.c.h.b16 %v151
  %v812 = vunpack.c.l.b16 %v152
  %v813 = vunpack.c.h.b16 %v152
  %v814 = vunpack.c.l.b16 %v153
  %v815 = vunpack.c.h.b16 %v153
  %v816 = vunpack.c.l.b16 %v154
  %v817 = vunpack.c.h.b16 %v154
  %v818 = vunpack.c.l.b16 %v155
  %v819 = vunpack.c.h.b16 %v155
  %v820 = vunpack.c.l.b16 %v156
  %v821 = vunpack.c.h.b16 %v156
  %v822 = vunpack.c.l.b16 %v157
  %v823 = vunpack.c.h.b16 %v157
  %v824 = vunpack.c.l.b16 %v158
  %v825 = vunpack.c.h.b16 %v158
  %v826 = vunpack.c.l.b16 %v159
  %v827 = vunpack.c.h.b16 %v159
  %v828 = vunpack.c.l.b16 %v160
  %v829 = vunpack.c.h.b16 %v160
  %v830 = vunpack.c.l.b16 %v161
  %v831 = vunpack.c.h.b16 %v161
  %v832 = vunpack.c.l.b16 %v162
  %v833 = vunpack.c.h.b16 %v162
  %v834 = vunpack.c.l.b16 %v163
  %v835 = vunpack.c.h.b16 %v163
  %v836 = vunpack.c.l.b16 %v164
  %v837 = vunpack.c.h.b16 %v164
  %v838 = vunpack.c.l.b16 %v165
  %v839 = vunpack.c.h.b16 %v165
  %v840 = vunpack.c.l.b16 %v166
  %v841 = vunpack.c.h.b16 %v166
  %v842 = vunpack.c.l.b16 %v167
  %v843 = vunpack.c.h.b16 %v167
  %v844 = vunpack.c.l.b16 %v168
  %v845 = vunpack.c.h.b16 %v168
  %v846 = vunpack.c.l.b16 %v169
  %v847 = vunpack.c.h.b16 %v169
  %v848 = vunpack.c.l.b16 %v170
  %v849 = vunpack.c.h.b16 %v170
  %v850 = vunpack.c.l.b16 %v171
  %v851 = vunpack.c.h.b16 %v171
  %v852 = vunpack.c.l.b16 %v172
  %v853 = vunpack.c.h.b16 %v172
  %v854 = vunpack.c.l.b16 %v173
  %v855 = vunpack.c.h.b16 %v173
  %v856 = vunpack.c.l.b16 %v174
  %v857 = vunpack.c.h.b16 %v174
  %v858 = vunpack.c.l.b16 %v175
  %v859 = vunpack.c.h.b16 %v175
  %v860 = vunpack.c.l.b16 %v176
  %v861 = vunpack.c.h.b16 %v176
  %v862 = vunpack.c.l.b16 %v177
  %v863 = vunpack.c.h.b16 %v177
  %v864 = vunpack.c.l.b16 %v178
  %v865 = vunpack.c.h.b16 %v178
  %v866 = vunpack.c.l.b16 %v179
  %v867 = vunpack.c.h.b16 %v179
  %v868 = vunpack.c.l.b16 %v180
  %v869 = vunpack.c.h.b16 %v180
  %v870 = vunpack.c.l.b16 %v181
  %v871 = vunpack.c.h.b16 %v181
  %v872 = vunpack.c.l.b16 %v182
  %v873 = vunpack.c.h.b16 %v182
  %v874 = vunpack.c.l.b16 %v183
  %v875 = vunpack.c.h.b16 %v183
  %v876 = vunpack.c.l.b16 %v184
  %v877 = vunpack.c.h.b16 %v184
  %v878 = vunpack.c.l.b16 %v185
  %v879 = vunpack.c.h.b16 %v185
  %v880 = vunpack.c.l.b16 %v186
  %v881 = vunpack.c.h.b16 %v186
  %v882 = vunpack.c.l.b16 %v187
  %v883 = vunpack.c.h.b16 %v187
  %v884 = vunpack.c.l.b16 %v188
  %v885 = vunpack.c.h.b16 %v188
  %v886 = vunpack.c.l.b16 %v189
  %v887 = vunpack.c.h.b16 %v189
  %v888 = vunpack.c.l.b16 %v190
  %v889 = vunpack.c.h.b16 %v190
  %v890 = vunpack.c.l.b16 %v191
  %v891 = vunpack.c.h.b16 %v191
  %v892 = vunpack.c.l.b16 %v192
  %v893 = vunpack.c.h.b16 %v192
  %v894 = vunpack.c.l.b16 %v193
  %v895 = vunpack.c.h.b16 %v193
  %v896 = vunpack.c.l.b16 %v194
  %v897 = vunpack.c.h.b16 %v194
  %v898 = vunpack.c.l.b16 %v195
  %v899 = vunpack.c.h.b16 %v195
  %v900 = vunpack.c.l.b16 %v196
  %v901 = vunpack.c.h.b16 %v196
  %v902 = vunpack.c.l.b16 %v197
  %v903 = vunpack.c.h.b16 %v197
  %v904 = vunpack.c.l.b16 %v198
  %v905 = vunpack.c.h.b16 %v198
  %v906 = vunpack.c.l.b16 %v199
  %v907 = vunpack.c.h.b16 %v199
  %v908 = vunpack.c.l.b16 %v200
  %v909 = vunpack.c.h.b16 %v200
  %v910 = vunpack.c.l.b16 %v201
  %v911 = vunpack.c.h.b16 %v201
  %v912 = vunpack.c.l.b16 %v202
  %v913 = vunpack.c.h.b16 %v202
  %v914 = vunpack.c.l.b16 %v203
  %v915 = vunpack.c.h.b16 %v203
  %v916 = vunpack.c.l.b16 %v204
  %v917 = vunpack.c.h.b16 %v204
  %v918 = vunpack.c.l.b16 %v205
  %v919 = vunpack.c.h.b16 %v205
  %v920 = vunpack.c.l.b16 %v206
  %v921 = vunpack.c.h.b16 %v206
  %v922 = vunpack.c.l.b16 %v207
  %v923 = vunpack.c.h.b16 %v207
  %v924 = vunpack.c.l.b16 %v208
  %v925 = vunpack.c.h.b16 %v208
  %v926 = vunpack.c.l.b16 %v209
  %v927 = vunpack.c.h.b16 %v209
  %v928 = vunpack.c.l.b16 %v210
  %v929 = vunpack.c.h.b16 %v210
  %v930 = vunpack.c.l.b16 %v211
  %v931 = vunpack.c.h.b16 %v211
  %v932 = vunpack.c.l.b16 %v212
  %v933 = vunpack.c.h.b16 %v212
  %v934 = vunpack.c.l.b16 %v213
  %v935 = vunpack.c.h.b16 %v213
  %v936 = vunpack.c.l.b16 %v214
  %v937 = vunpack.c.h.b16 %v214
  %v938 = vunpack.c.l.b16 %v215
  %v939 = vunpack.c.h.b16 %v215
  %v940 = vunpack.c.l.b16 %v216
  %v941 = vunpack.c.h.b16 %v216
  %v942 = vunpack.c.l.b16 %v217
  %v943 = vunpack.c.h.b16 %v217
  %v944 = vunpack.c.l.b16 %v218
  %v945 = vunpack.c.h.b16 %v218
  %v946 = vunpack.c.l.b16 %v219
  %v947 = vunpack.c.h.b16 %v219
  %v948 = vunpack.c.l.b16 %v220
  %v949 = vunpack.c.h.b16 %v220
  %v950 = vunpack.c.l.b16 %v221
  %v951 = vunpack.c.h.b16 %v221
  %v952 = vunpack.c.l.b16 %v222
  %v953 = vunpack.c.h.b16 %v222
  %v954 = vunpack.c.l.b16 %v223
  %v955 = vunpack.c.h.b16 %v223
  %v956 = vunpack.c.l.b16 %v224
  %v957 = vunpack.c.h.b16 %v224
  %v958 = vunpack.c.l.b16 %v225
  %v959 = vunpack.c.h.b16 %v225
  %v960 = vunpack.c.l.b16 %v226
  %v961 = vunpack.c.h.b16 %v226
  %v962 = vunpack.c.l.b16 %v227
  %v963 = vunpack.c.h.b16 %v227
  %v964 = vunpack.c.l.b16 %v228
  %v965 = vunpack.c.h.b16 %v228
  %v966 = vunpack.c.l.b16 %v229
  %v967 = vunpack.c.h.b16 %v229
  %v968 = vunpack.c.l.b16 %v230
  %v969 = vunpack.c.h.b16 %v230
  %v970 = vunpack.c.l.b16 %v231
  %v971 = vunpack.c.h.b16 %v231
  %v972 = vunpack.c.l.b16 %v232
  %v973 = vunpack.c.h.b16 %v232
  %v974 = vunpack.c.l.b16 %v233
  %v975 = vunpack.c.h.b16 %v233
  %v976 = vunpack.c.l.b16 %v234
  %v977 = vunpack.c.h.b16 %v234
  %v978 = vunpack.c.l.b16 %v235
  %v979 = vunpack.c.h.b16 %v235
  %v980 = vunpack.c.l.b16 %v236
  %v981 = vunpack.c.h.b16 %v236
  %v982 = vunpack.c.l.b16 %v237
  %v983 = vunpack.c.h.b16 %v237
  %v984 = vunpack.c.l.b16 %v238
  %v985 = vunpack.c.h.b16 %v238
  %v986 = vunpack.c.l.b16 %v239
  %v987 = vunpack.c.h.b16 %v239
  %v988 = vunpack.c.l.b16 %v240
  %v989 = vunpack.c.h.b16 %v240
  %v990 = vunpack.c.l.b16 %v241
  %v991 = vunpack.c.h.b16 %v241
  %v992 = vunpack.c.l.b16 %v242
  %v993 = vunpack.c.h.b16 %v242
  %v994 = vunpack.c.l.b16 %v243
  %v995 = vunpack.c.h.b16 %v243
  %v996 = vunpack.c.l.b16 %v244
  %v997 = vunpack.c.h.b16 %v244
  %v998 = vunpack.c.l.b16 %v245
  %v999 = vunpack.c.h.b16 %v245
  %v1000 = vunpack.c.l.b16 %v246
  %v1001 = vunpack.c.h.b16 %v246
  %v1002 = vunpack.c.l.b16 %v247
  %v1003 = vunpack.c.h.b16 %v247
  %v1004 = vunpack.c.l.b16 %v248
  %v1005 = vunpack.c.h.b16 %v248
  %v1006 = vunpack.c.l.b16 %v249
  %v1007 = vunpack.c.h.b16 %v249
  %v1008 = vunpack.c.l.b16 %v250
  %v1009 = vunpack.c.h.b16 %v250
  %v1010 = vunpack.c.l.b16 %v251
  %v1011 = vunpack.c.h.b16 %v251
  %v1012 = vunpack.c.l.b16 %v252
  %v1013 = vunpack.c.h.b16 %v252
  %v1014 = vunpack.c.l.b16 %v253
  %v1015 = vunpack.c.h.b16 %v253
  %v1016 = vunpack.c.l.b16 %v254
  %v1017 = vunpack.c.h.b16 %v254
  %v1018 = vunpack.c.l.b16 %v255
  %v1019 = vunpack.c.h.b16 %v255
  %v1020 = vunpack.c.l.b16 %v256
  %v1021 = vunpack.c.h.b16 %v256
  %v1022 = vunpack.c.l.b16 %v257
  %v1023 = vunpack.c.h.b16 %v257
  %v1024 = vunpack.c.l.b16 %v258
  %v1025 = vunpack.c.h.b16 %v258
  %v1026 = vunpack.c.l.b16 %v259
  %v1027 = vunpack.c.h.b16 %v259
  %v1028 = vunpack.c.l.b16 %v260
  %v1029 = vunpack.c.h.b16 %v260
  %v1030 = vunpack.c.l.b16 %v261
  %v1031 = vunpack.c.h.b16 %v261
  %v1032 = vunpack.c.l.b16 %v262
  %v1033 = vunpack.c.h.b16 %v262
  %v1034 = vunpack.c.l.b16 %v263
  %v1035 = vunpack.c.h.b16 %v263
  %v1036 = vunpack.c.l.b16 %v264
  %v1037 = vunpack.c.h.b16 %v264
  %v1038 = vunpack.c.l.b16 %v265
  %v1039 = vunpack.c.h.b16 %v265
  %v1040 = vunpack.c.l.b16 %v266
  %v1041 = vunpack.c.h.b16 %v266
  %v1042 = vunpack.c.l.b16 %v267
  %v1043 = vunpack.c.h.b16 %v267
  %v1044 = vunpack.c.l.b16 %v268
  %v1045 = vunpack.c.h.b16 %v268
  %v1046 = vunpack.c.l.b16 %v269
  %v1047 = vunpack.c.h.b16 %v269
  %v1048 = vunpack.c.l.b16 %v270
  %v1049 = vunpack.c.h.b16 %v270
  %v1050 = vunpack.c.l.b16 %v271
  %v1051 = vunpack.c.h.b16 %v271
  %v1052 = vunpack.c.l.b16 %v272
  %v1053 = vunpack.c.h.b16 %v272
  %v1054 = vunpack.c.l.b16 %v273
  %v1055 = vunpack.c.h.b16 %v273
  %v1056 = vunpack.c.l.b16 %v274
  %v1057 = vunpack.c.h.b16 %v274
  %v1058 = vunpack.c.l.b16 %v275
  %v1059 = vunpack.c.h.b16 %v275
  %v1060 = vunpack.c.l.b16 %v276
  %v1061 = vunpack.c.h.b16 %v276
  %v1062 = vunpack.c.l.b16 %v277
  %v1063 = vunpack.c.h.b16 %v277
  %v1064 = vunpack.c.l.b16 %v278
  %v1065 = vunpack.c.h.b16 %v278
  %v1066 = vunpack.c.l.b16 %v279
  %v1067 = vunpack.c.h.b16 %v279
  %v1068 = vunpack.c.l.b16 %v280
  %v1069 = vunpack.c.h.b16 %v280
  %v1070 = vunpack.c.l.b16 %v281
  %v1071 = vunpack.c.h.b16 %v281
  %v1072 = vunpack.c.l.b16 %v282
  %v1073 = vunpack.c.h.b16 %v282
  %v1074 = vunpack.c.l.b16 %v283
  %v1075 = vunpack.c.h.b16 %v283
  %v1076 = vunpack.c.l.b16 %v284
  %v1077 = vunpack.c.h.b16 %v284
  %v1078 = vunpack.c.l.b16 %v285
  %v1079 = vunpack.c.h.b16 %v285
  %v1080 = vunpack.c.l.b16 %v286
  %v1081 = vunpack.c.h.b16 %v286
  %v1082 = vunpack.c.l.b16 %v287
  %v1083 = vunpack.c.h.b16 %v287
  %v1084 = vunpack.c.l.b16 %v288
  %v1085 = vunpack.c.h.b16 %v288
  %v1086 = vunpack.c.l.b16 %v289
  %v1087 = vunpack.c.h.b16 %v289
  %v1088 = vunpack.c.l.b16 %v290
  %v1089 = vunpack.c.h.b16 %v290
  %v1090 = vunpack.c.l.b16 %v291
  %v1091 = vunpack.c.h.b16 %v291
  %v1092 = vunpack.c.l.b16 %v292
  %v1093 = vunpack.c.h.b16 %v292
  %v1094 = vunpack.c.l.b16 %v293
  %v1095 = vunpack.c.h.b16 %v293
  %v1096 = vunpack.c.l.b16 %v294
  %v1097 = vunpack.c.h.b16 %v294
  %v1098 = vunpack.c.l.b16 %v295
  %v1099 = vunpack.c.h.b16 %v295
  %v1100 = vunpack.c.l.b16 %v296
  %v1101 = vunpack.c.h.b16 %v296
  %v1102 = vunpack.c.l.b16 %v297
  %v1103 = vunpack.c.h.b16 %v297
  %v1104 = vunpack.c.l.b16 %v298
  %v1105 = vunpack.c.h.b16 %v298
  %v1106 = vunpack.c.l.b16 %v299
  %v1107 = vunpack.c.h.b16 %v299
  %v1108 = vunpack.c.l.b16 %v300
  %v1109 = vunpack.c.h.b16 %v300
  %v1110 = vunpack.c.l.b16 %v301
  %v1111 = vunpack.c.h.b16 %v301
  %v1112 = vunpack.c.l.b16 %v302
  %v1113 = vunpack.c.h.b16 %v302
  %v1114 = vunpack.c.l.b16 %v303
  %v1115 = vunpack.c.h.b16 %v303
  %v1116 = vunpack.c.l.b16 %v304
  %v1117 = vunpack.c.h.b16 %v304
  %v1118 = vunpack.c.l.b16 %v305
  %v1119 = vunpack.c.h.b16 %v305
  %v1120 = vunpack.c.l.b16 %v306
  %v1121 = vunpack.c.h.b16 %v306
  %v1122 = vunpack.c.l.b16 %v307
  %v1123 = vunpack.c.h.b16 %v307
  %v1124 = vunpack.c.l.b16 %v308
  %v1125 = vunpack.c.h.b16 %v308
  %v1126 = vunpack.c.l.b16 %v309
  %v1127 = vunpack.c.h.b16 %v309
  %v1128 = vunpack.c.l.b16 %v310
  %v1129 = vunpack.c.h.b16 %v310
  %v1130 = vunpack.c.l.b16 %v311
  %v1131 = vunpack.c.h.b16 %v311
  %v1132 = vunpack.c.l.b16 %v312
  %v1133 = vunpack.c.h.b16 %v312
  %v1134 = vunpack.c.l.b16 %v313
  %v1135 = vunpack.c.h.b16 %v313
  %v1136 = vunpack.c.l.b16 %v314
  %v1137 = vunpack.c.h.b16 %v314
  %v1138 = vunpack.c.l.b16 %v315
  %v1139 = vunpack.c.h.b16 %v315
  %v1140 = vunpack.c.l.b16 %v316
  %v1141 = vunpack.c.h.b16 %v316
  %v1142 = vunpack.c.l.b16 %v317
  %v1143 = vunpack.c.h.b16 %v317
  %v1144 = vunpack.c.l.b16 %v318
  %v1145 = vunpack.c.h.b16 %v318
  %v1146 = vunpack.c.l.b16 %v319
  %v1147 = vunpack.c.h.b16 %v319
  %v1148 = vunpack.c.l.b16 %v320
  %v1149 = vunpack.c.h.b16 %v320
  %v1150 = vunpack.c.l.b16 %v321
  %v1151 = vunpack.c.h.b16 %v321
  %v1152 = vunpack.c.l.b16 %v322
  %v1153 = vunpack.c.h.b16 %v322
  %v1154 = vunpack.c.l.b16 %v323
  %v1155 = vunpack.c.h.b16 %v323
  %v1156 = vunpack.c.l.b16 %v324
  %v1157 = vunpack.c.h.b16 %v324
  %v1158 = vunpack.c.l.b16 %v325
  %v1159 = vunpack.c.h.b16 %v325
  %v1160 = vunpack.c.l.b16 %v326
  %v1161 = vunpack.c.h.b16 %v326
  %v1162 = vunpack.c.l.b16 %v327
  %v1163 = vunpack.c.h.b16 %v327
  %v1164 = vunpack.c.l.b16 %v328
  %v1165 = vunpack.c.h.b16 %v328
  %v1166 = vunpack.c.l.b16 %v329
  %v1167 = vunpack.c.h.b16 %v329
  %v1168 = vunpack.c.l.b16 %v330
  %v1169 = vunpack.c.h.b16 %v330
  %v1170 = vunpack.c.l.b16 %v331
  %v1171 = vunpack.c.h.b16 %v331
  %v1172 = vunpack.c.l.b16 %v332
  %v1173 = vunpack.c.h.b16 %v332
  %v1174 = vunpack.c.l.b16 %v333
  %v1175 = vunpack.c.h.b16 %v333
  %v1176 = vunpack.c.l.b16 %v334
  %v1177 = vunpack.c.h.b16 %v334
  %v1178 = vunpack.c.l.b16 %v335
  %v1179 = vunpack.c.h.b16 %v335
  %v1180 = vunpack.c.l.b16 %v336
  %v1181 = vunpack.c.h.b16 %v336
  %v1182 = vunpack.c.l.b16 %v337
  %v1183 = vunpack.c.h.b16 %v337
  %v1184 = vunpack.c.l.b16 %v338
  %v1185 = vunpack.c.h.b16 %v338
  %v1186 = vunpack.c.l.b16 %v339
  %v1187 = vunpack.c.h.b16 %v339
  %v1188 = vunpack.c.l.b16 %v340
  %v1189 = vunpack.c.h.b16 %v340
  %v1190 = vunpack.c.l.b16 %v341
  %v1191 = vunpack.c.h.b16 %v341
  %v1192 = vunpack.c.l.b16 %v342
  %v1193 = vunpack.c.h.b16 %v342
  %v1194 = vunpack.c.l.b16 %v343
  %v1195 = vunpack.c.h.b16 %v343
  %v1196 = vunpack.c.l.b16 %v344
  %v1197 = vunpack.c.h.b16 %v344
  %v1198 = vunpack.c.l.b16 %v345
  %v1199 = vunpack.c.h.b16 %v345
  %v1200 = vunpack.c.l.b16 %v346
  %v1201 = vunpack.c.h.b16 %v346
  %v1202 = vunpack.c.l.b16 %v347
  %v1203 = vunpack.c.h.b16 %v347
  %v1204 = vunpack.c.l.b16 %v348
  %v1205 = vunpack.c.h.b16 %v348
  %v1206 = vunpack.c.l.b16 %v349
  %v1207 = vunpack.c.h.b16 %v349
  %v1208 = vunpack.c.l.b16 %v350
  %v1209 = vunpack.c.h.b16 %v350
  %v1210 = vunpack.c.l.b16 %v351
  %v1211 = vunpack.c.h.b16 %v351
  %v1212 = vunpack.c.l.b16 %v352
  %v1213 = vunpack.c.h.b16 %v352
  %v1214 = vunpack.c.l.b16 %v353
  %v1215 = vunpack.c.h.b16 %v353
  %v1216 = vunpack.c.l.b16 %v354
  %v1217 = vunpack.c.h.b16 %v354
  %v1218 = vunpack.c.l.b16 %v355
  %v1219 = vunpack.c.h.b16 %v355
  %v1220 = vunpack.c.l.b16 %v356
  %v1221 = vunpack.c.h.b16 %v356
  %v1222 = vunpack.c.l.b16 %v357
  %v1223 = vunpack.c.h.b16 %v357
  %v1224 = vunpack.c.l.b16 %v358
  %v1225 = vunpack.c.h.b16 %v358
  %v1226 = vunpack.c.l.b16 %v359
  %v1227 = vunpack.c.h.b16 %v359
  %v1228 = vunpack.c.l.b16 %v360
  %v1229 = vunpack.c.h.b16 %v360
  %v1230 = vunpack.c.l.b16 %v361
  %v1231 = vunpack.c.h.b16 %v361
  %v1232 = vunpack.c.l.b16 %v362
  %v1233 = vunpack.c.h.b16 %v362
  %v1234 = vunpack.c.l.b16 %v363
  %v1235 = vunpack.c.h.b16 %v363
  %v1236 = vunpack.c.l.b16 %v364
  %v1237 = vunpack.c.h.b16 %v364
  %v1238 = vunpack.c.l.b16 %v365
  %v1239 = vunpack.c.h.b16 %v365
  %v1240 = vunpack.c.l.b16 %v366
  %v1241 = vunpack.c.h.b16 %v366
  %v1242 = vunpack.c.l.b16 %v367
  %v1243 = vunpack.c.h.b16 %v367
  %v1244 = vunpack.c.l.b16 %v368
  %v1245 = vunpack.c.h.b16 %v368
  %v1246 = vunpack.c.l.b16 %v369
  %v1247 = vunpack.c.h.b16 %v369
  %v1248 = vunpack.c.l.b16 %v370
  %v1249 = vunpack.c.h.b16 %v370
  %v1250 = vunpack.c.l.b16 %v371
  %v1251 = vunpack.c.h.b16 %v371
  %v1252 = vunpack.c.l.b16 %v372
  %v1253 = vunpack.c.h.b16 %v372
  %v1254 = vunpack.c.l.b16 %v373
  %v1255 = vunpack.c.h.b16 %v373
  %v1256 = vunpack.c.l.b16 %v374
  %v1257 = vunpack.c.h.b16 %v374
  %v1258 = vunpack.c.l.b16 %v375
  %v1259 = vunpack.c.h.b16 %v375
  %v1260 = vunpack.c.l.b16 %v376
  %v1261 = vunpack.c.h.b16 %v376
  %v1262 = vunpack.c.l.b16 %v377
  %v1263 = vunpack.c.h.b16 %v377
  %v1264 = vunpack.c.l.b16 %v378
  %v1265 = vunpack.c.h.b16 %v378
  %v1266 = vunpack.c.l.b16 %v379
  %v1267 = vunpack.c.h.b16 %v379
  %v1268 = vunpack.c.l.b16 %v380
  %v1269 = vunpack.c.h.b16 %v380
  %v1270 = vunpack.c.l.b16 %v381
  %v1271 = vunpack.c.h.b16 %v381
  %v1272 = vunpack.c.l.b16 %v382
  %v1273 = vunpack.c.h.b16 %v382
  %v1274 = vunpack.c.l.b16 %v383
  %v1275 = vunpack.c.h.b16 %v383
  %v1276 = vunpack.c.l.b16 %v384
  %v1277 = vunpack.c.h.b16 %v384
  %v1278 = vunpack.c.l.b16 %v385
  %v1279 = vunpack.c.h.b16 %v385
  %v1280 = vunpack.c.l.b16 %v386
  %v1281 = vunpack.c.h.b16 %v386
  %v1282 = vunpack.c.l.b16 %v387
  %v1283 = vunpack.c.h.b16 %v387
  %v1284 = vunpack.c.l.b16 %v388
  %v1285 = vunpack.c.h.b16 %v388
  %v1286 = vunpack.c.l.b16 %v389
  %v1287 = vunpack.c.h.b16 %v389
  %v1288 = vunpack.c.l.b16 %v390
  %v1289 = vunpack.c.h.b16 %v390
  %v1290 = vunpack.c.l.b16 %v391
  %v1291 = vunpack.c.h.b16 %v391
  %v1292 = vunpack.c.l.b16 %v392
  %v1293 = vunpack.c.h.b16 %v392
  %v1294 = vunpack.c.l.b16 %v393
  %v1295 = vunpack.c.h.b16 %v393
  %v1296 = vunpack.c.l.b16 %v394
  %v1297 = vunpack.c.h.b16 %v394
  %v1298 = vunpack.c.l.b16 %v395
  %v1299 = vunpack.c.h.b16 %v395
  %v1300 = vunpack.c.l.b16 %v396
  %v1301 = vunpack.c.h.b16 %v396
  %v1302 = vunpack.c.l.b16 %v397
  %v1303 = vunpack.c.h.b16 %v397
  %v1304 = vunpack.c.l.b16 %v398
  %v1305 = vunpack.c.h.b16 %v398
  %v1306 = vunpack.c.l.b16 %v399
  %v1307 = vunpack.c.h.b16 %v399
  %v1308 = vunpack.c.l.b16 %v400
  %v1309 = vunpack.c.h.b16 %v400
  %v1310 = vunpack.c.l.b16 %v401
  %v1311 = vunpack.c.h.b16 %v401
  %v1312 = vunpack.c.l.b16 %v402
  %v1313 = vunpack.c.h.b16 %v402
  %v1314 = vunpack.c.l.b16 %v403
  %v1315 = vunpack.c.h.b16 %v403
  %v1316 = vunpack.c.l.b16 %v404
  %v1317 = vunpack.c.h.b16 %v404
  %v1318 = vunpack.c.l.b16 %v405
  %v1319 = vunpack.c.h.b16 %v405
  %v1320 = vunpack.c.l.b16 %v406
  %v1321 = vunpack.c.h.b16 %v406
  %v1322 = vunpack.c.l.b16 %v407
  %v1323 = vunpack.c.h.b16 %v407
  %v1324 = vunpack.c.l.b16 %v408
  %v1325 = vunpack.c.h.b16 %v408
  %v1326 = vunpack.c.l.b16 %v409
  %v1327 = vunpack.c.h.b16 %v409
  %v1328 = vunpack.c.l.b16 %v410
  %v1329 = vunpack.c.h.b16 %v410
  %v1330 = vunpack.c.l.b16 %v411
  %v1331 = vunpack.c.h.b16 %v411
  %v1332 = vunpack.c.l.b16 %v412
  %v1333 = vunpack.c.h.b16 %v412
  %v1334 = vunpack.c.l.b16 %v413
  %v1335 = vunpack.c.h.b16 %v413
  %v1336 = vunpack.c.l.b16 %v414
  %v1337 = vunpack.c.h.b16 %v414
  %v1338 = vunpack.c.l.b16 %v415
  %v1339 = vunpack.c.h.b16 %v415
  %v1340 = vunpack.c.l.b16 %v416
  %v1341 = vunpack.c.h.b16 %v416
  %v1342 = vunpack.c.l.b16 %v417
  %v1343 = vunpack.c.h.b16 %v417
  %v1344 = vunpack.c.l.b16 %v418
  %v1345 = vunpack.c.h.b16 %v418
  %v1346 = vunpack.c.l.b16 %v419
  %v1347 = vunpack.c.h.b16 %v419
  %v1348 = vpack.c.b16 %v784, %v772
  %v1349 = vpack.c.b16 %v785, %v773
  %v1350 = vpack.c.b16 %v786, %v774
  %v1351 = vpack.c.b16 %v787, %v775
  %v1352 = vpack.c.b16 %v788, %v776
  %v1353 = vpack.c.b16 %v789, %v777
  %v1354 = vpack.c.b16 %v790, %v778
  %v1355 = vpack.c.b16 %v791, %v779
  %v1356 = vpack.c.b16 %v792, %v780
  %v1357 = vpack.c.b16 %v793, %v781
  %v1358 = vpack.c.b16 %v794, %v782
  %v1359 = vpack.c.b16 %v795, %v783
  %v1360 = vpack.c.b16 %v808, %v796
  %v1361 = vpack.c.b16 %v809, %v797
  %v1362 = vpack.c.b16 %v810, %v798
  %v1363 = vpack.c.b16 %v811, %v799
  %v1364 = vpack.c.b16 %v812, %v800
  %v1365 = vpack.c.b16 %v813, %v801
  %v1366 = vpack.c.b16 %v814, %v802
  %v1367 = vpack.c.b16 %v815, %v803
  %v1368 = vpack.c.b16 %v816, %v804
  %v1369 = vpack.c.b16 %v817, %v805
  %v1370 = vpack.c.b16 %v818, %v806
  %v1371 = vpack.c.b16 %v819, %v807
  %v1372 = vpack.c.b16 %v832, %v820
  %v1373 = vpack.c.b16 %v833, %v821
  %v1374 = vpack.c.b16 %v834, %v822
  %v1375 = vpack.c.b16 %v835, %v823
  %v1376 = vpack.c.b16 %v836, %v824
  %v1377 = vpack.c.b16 %v837, %v825
  %v1378 = vpack.c.b16 %v838, %v826
  %v1379 = vpack.c.b16 %v839, %v827
  %v1380 = vpack.c.b16 %v840, %v828
  %v1381 = vpack.c.b16 %v841, %v829
  %v1382 = vpack.c.b16 %v842, %v830
  %v1383 = vpack.c.b16 %v843, %v831
  %v1384 = vpack.c.b16 %v856, %v844
  %v1385 = vpack.c.b16 %v857, %v845
  %v1386 = vpack.c.b16 %v858, %v846
  %v1387 = vpack.c.b16 %v859, %v847
  %v1388 = vpack.c.b16 %v860, %v848
  %v1389 = vpack.c.b16 %v861, %v849
  %v1390 = vpack.c.b16 %v862, %v850
  %v1391 = vpack.c.b16 %v863, %v851
  %v1392 = vpack.c.b16 %v864, %v852
  %v1393 = vpack.c.b16 %v865, %v853
  %v1394 = vpack.c.b16 %v866, %v854
  %v1395 = vpack.c.b16 %v867, %v855
  %v1396 = vpack.c.b16 %v880, %v868
  %v1397 = vpack.c.b16 %v881, %v869
  %v1398 = vpack.c.b16 %v882, %v870
  %v1399 = vpack.c.b16 %v883, %v871
  %v1400 = vpack.c.b16 %v884, %v872
  %v1401 = vpack.c.b16 %v885, %v873
  %v1402 = vpack.c.b16 %v886, %v874
  %v1403 = vpack.c.b16 %v887, %v875
  %v1404 = vpack.c.b16 %v888, %v876
  %v1405 = vpack.c.b16 %v889, %v877
  %v1406 = vpack.c.b16 %v890, %v878
  %v1407 = vpack.c.b16 %v891, %v879
  %v1408 = vpack.c.b16 %v904, %v892
  %v1409 = vpack.c.b16 %v905, %v893
  %v1410 = vpack.c.b16 %v906, %v894
  %v1411 = vpack.c.b16 %v907, %v895
  %v1412 = vpack.c.b16 %v908, %v896
  %v1413 = vpack.c.b16 %v909, %v897
  %v1414 = vpack.c.b16 %v910, %v898
  %v1415 = vpack.c.b16 %v911, %v899
  %v1416 = vpack.c.b16 %v912, %v900
  %v1417 = vpack.c.b16 %v913, %v901
  %v1418 = vpack.c.b16 %v914, %v902
  %v1419 = vpack.c.b16 %v915, %v903
  %v1420 = vpack.c.b16 %v928, %v916
  %v1421 = vpack.c.b16 %v929, %v917
  %v1422 = vpack.c.b16 %v930, %v918
  %v1423 = vpack.c.b16 %v931, %v919
  %v1424 = vpack.c.b16 %v932, %v920
  %v1425 = vpack.c.b16 %v933, %v921
  %v1426 = vpack.c.b16 %v934, %v922
  %v1427 = vpack.c.b16 %v935, %v923
  %v1428 = vpack.c.b16 %v936, %v924
  %v1429 = vpack.c.b16 %v937, %v925
  %v1430 = vpack.c.b16 %v938, %v926
  %v1431 = vpack.c.b16 %v939, %v927
  %v1432 = vpack.c.b16 %v952, %v940
  %v1433 = vpack.c.b16 %v953, %v941
  %v1434 = vpack.c.b16 %v954, %v942
  %v1435 = vpack.c.b16 %v955, %v943
  %v1436 = vpack.c.b16 %v956, %v944
  %v1437 = vpack.c.b16 %v957, %v945
  %v1438 = vpack.c.b16 %v958, %v946
  %v1439 = vpack.c.b16 %v959, %v947
  %v1440 = vpack.c.b16 %v960, %v948
  %v1441 = vpack.c.b16 %v961, %v949
  %v1442 = vpack.c.b16 %v962, %v950
  %v1443 = vpack.c.b16 %v963, %v951
  %v1444 = vpack.c.b16 %v976, %v964
  %v1445 = vpack.c.b16 %v977, %v965
  %v1446 = vpack.c.b16 %v978, %v966
  %v1447 = vpack.c.b16 %v979, %v967
  %v1448 = vpack.c.b16 %v980, %v968
  %v1449 = vpack.c.b16 %v981, %v969
  %v1450 = vpack.c.b16 %v982, %v970
  %v1451 = vpack.c.b16 %v983, %v971
  %v1452 = vpack.c.b16 %v984, %v972
  %v1453 = vpack.c.b16 %v985, %v973
  %v1454 = vpack.c.b16 %v986, %v974
  %v1455 = vpack.c.b16 %v987, %v975
  %v1456 = vpack.c.b16 %v1000, %v988
  %v1457 = vpack.c.b16 %v1001, %v989
  %v1458 = vpack.c.b16 %v1002, %v990
  %v1459 = vpack.c.b16 %v1003, %v991
  %v1460 = vpack.c.b16 %v1004, %v992
  %v1461 = vpack.c.b16 %v1005, %v993
  %v1462 = vpack.c.b16 %v1006, %v994
  %v1463 = vpack.c.b16 %v1007, %v995
  %v1464 = vpack.c.b16 %v1008, %v996
  %v1465 = vpack.c.b16 %v1009, %v997
  %v1466 = vpack.c.b16 %v1010, %v998
  %v1467 = vpack.c.b16 %v1011, %v999
  %v1468 = vpack.c.b16 %v1024, %v1012
  %v1469 = vpack.c.b16 %v1025, %v1013
  %v1470 = vpack.c.b16 %v1026, %v1014
  %v1471 = vpack.c.b16 %v1027, %v1015
  %v1472 = vpack.c.b16 %v1028, %v1016
  %v1473 = vpack.c.b16 %v1029, %v1017
  %v1474 = vpack.c.b16 %v1030, %v1018
  %v1475 = vpack.c.b16 %v1031, %v1019
  %v1476 = vpack.c.b16 %v1032, %v1020
  %v1477 = vpack.c.b16 %v1033, %v1021
  %v1478 = vpack.c.b16 %v1034, %v1022
  %v1479 = vpack.c.b16 %v1035, %v1023
  %v1480 = vpack.c.b16 %v1048, %v1036
  %v1481 = vpack.c.b16 %v1049, %v1037
  %v1482 = vpack.c.b16 %v1050, %v1038
  %v1483 = vpack.c.b16 %v1051, %v1039
  %v1484 = vpack.c.b16 %v1052, %v1040
  %v1485 = vpack.c.b16 %v1053, %v1041
  %v1486 = vpack.c.b16 %v1054, %v1042
  %v1487 = vpack.c.b16 %v1055, %v1043
  %v1488 = vpack.c.b16 %v1056, %v1044
  %v1489 = vpack.c.b16 %v1057, %v1045
  %v1490 = vpack.c.b16 %v1058, %v1046
  %v1491 = vpack.c.b16 %v1059, %v1047
  %v1492 = vpack.c.b16 %v1072, %v1060
  %v1493 = vpack.c.b16 %v1073, %v1061
  %v1494 = vpack.c.b16 %v1074, %v1062
  %v1495 = vpack.c.b16 %v1075, %v1063
  %v1496 = vpack.c.b16 %v1076, %v1064
  %v1497 = vpack.c.b16 %v1077, %v1065
  %v1498 = vpack.c.b16 %v1078, %v1066
  %v1499 = vpack.c.b16 %v1079, %v1067
  %v1500 = vpack.c.b16 %v1080, %v1068
  %v1501 = vpack.c.b16 %v1081, %v1069
  %v1502 = vpack.c.b16 %v1082, %v1070
  %v1503 = vpack.c.b16 %v1083, %v1071
  %v1504 = vpack.c.b16 %v1096, %v1084
  %v1505 = vpack.c.b16 %v1097, %v1085
  %v1506 = vpack.c.b16 %v1098, %v1086
  %v1507 = vpack.c.b16 %v1099, %v1087
  %v1508 = vpack.c.b16 %v1100, %v1088
  %v1509 = vpack.c.b16 %v1101, %v1089
  %v1510 = vpack.c.b16 %v1102, %v1090
  %v1511 = vpack.c.b16 %v1103, %v1091
  %v1512 = vpack.c.b16 %v1104, %v1092
  %v1513 = vpack.c.b16 %v1105, %v1093
  %v1514 = vpack.c.b16 %v1106, %v1094
  %v1515 = vpack.c.b16 %v1107, %v1095
  %v1516 = vpack.c.b16 %v1120, %v1108
  %v1517 = vpack.c.b16 %v1121, %v1109
  %v1518 = vpack.c.b16 %v1122, %v1110
  %v1519 = vpack.c.b16 %v1123, %v1111
  %v1520 = vpack.c.b16 %v1124, %v1112
  %v1521 = vpack.c.b16 %v1125, %v1113
  %v1522 = vpack.c.b16 %v1126, %v1114
  %v1523 = vpack.c.b16 %v1127, %v1115
  %v1524 = vpack.c.b16 %v1128, %v1116
  %v1525 = vpack.c.b16 %v1129, %v1117
  %v1526 = vpack.c.b16 %v1130, %v1118
  %v1527 = vpack.c.b16 %v1131, %v1119
  %v1528 = vpack.c.b16 %v1144, %v1132
  %v1529 = vpack.c.b16 %v1145, %v1133
  %v1530 = vpack.c.b16 %v1146, %v1134
  %v1531 = vpack.c.b16 %v1147, %v1135
  %v1532 = vpack.c.b16 %v1148, %v1136
  %v1533 = vpack.c.b16 %v1149, %v1137
  %v1534 = vpack.c.b16 %v1150, %v1138
  %v1535 = vpack.c.b16 %v1151, %v1139
  %v1536 = vpack.c.b16 %v1152, %v1140
  %v1537 = vpack.c.b16 %v1153, %v1141
  %v1538 = vpack.c.b16 %v1154, %v1142
  %v1539 = vpack.c.b16 %v1155, %v1143
  %v1540 = vpack.c.b16 %v1168, %v1156
  %v1541 = vpack.c.b16 %v1169, %v1157
  %v1542 = vpack.c.b16 %v1170, %v1158
  %v1543 = vpack.c.b16 %v1171, %v1159
  %v1544 = vpack.c.b16 %v1172, %v1160
  %v1545 = vpack.c.b16 %v1173, %v1161
  %v1546 = vpack.c.b16 %v1174, %v1162
  %v1547 = vpack.c.b16 %v1175, %v1163
  %v1548 = vpack.c.b16 %v1176, %v1164
  %v1549 = vpack.c.b16 %v1177, %v1165
  %v1550 = vpack.c.b16 %v1178, %v1166
  %v1551 = vpack.c.b16 %v1179, %v1167
  %v1552 = vpack.c.b16 %v1192, %v1180
  %v1553 = vpack.c.b16 %v1193, %v1181
  %v1554 = vpack.c.b16 %v1194, %v1182
  %v1555 = vpack.c.b16 %v1195, %v1183
  %v1556 = vpack.c.b16 %v1196, %v1184
  %v1557 = vpack.c.b16 %v1197, %v1185
  %v1558 = vpack.c.b16 %v1198, %v1186
  %v1559 = vpack.c.b16 %v1199, %v1187
  %v1560 = vpack.c.b16 %v1200, %v1188
  %v1561 = vpack.c.b16 %v1201, %v1189
  %v1562 = vpack.c.b16 %v1202, %v1190
  %v1563 = vpack.c.b16 %v1203, %v1191
  %v1564 = vpack.c.b16 %v1216, %v1204
  %v1565 = vpack.c.b16 %v1217, %v1205
  %v1566 = vpack.c.b16 %v1218, %v1206
  %v1567 = vpack.c.b16 %v1219, %v1207
  %v1568 = vpack.c.b16 %v1220, %v1208
  %v1569 = vpack.c.b16 %v1221, %v1209
  %v1570 = vpack.c.b16 %v1222, %v1210
  %v1571 = vpack.c.b16 %v1223, %v1211
  %v1572 = vpack.c.b16 %v1224, %v1212
  %v1573 = vpack.c.b16 %v1225, %v1213
  %v1574 = vpack.c.b16 %v1226, %v1214
  %v1575 = vpack.c.b16 %v1227, %v1215
  %v1576 = vpack.c.b16 %v1240, %v1228
  %v1577 = vpack.c.b16 %v1241, %v1229
  %v1578 = vpack.c.b16 %v1242, %v1230
  %v1579 = vpack.c.b16 %v1243, %v1231
  %v1580 = vpack.c.b16 %v1244, %v1232
  %v1581 = vpack.c.b16 %v1245, %v1233
  %v1582 = vpack.c.b16 %v1246, %v1234
  %v1583 = vpack.c.b16 %v1247, %v1235
  %v1584 = vpack.c.b16 %v1248, %v1236
  %v1585 = vpack.c.b16 %v1249, %v1237
  %v1586 = vpack.c.b16 %v1250, %v1238
  %v1587 = vpack.c.b16 %v1251, %v1239
  %v1588 = vpack.c.b16 %v1264, %v1252
  %v1589 = vpack.c.b16 %v1265, %v1253
  %v1590 = vpack.c.b16 %v1266, %v1254
  %v1591 = vpack.c.b16 %v1267, %v1255
  %v1592 = vpack.c.b16 %v1268, %v1256
  %v1593 = vpack.c.b16 %v1269, %v1257
  %v1594 = vpack.c.b16 %v1270, %v1258
  %v1595 = vpack.c.b16 %v1271, %v1259
  %v1596 = vpack.c.b16 %v1272, %v1260
  %v1597 = vpack.c.b16 %v1273, %v1261
  %v1598 = vpack.c.b16 %v1274, %v1262
  %v1599 = vpack.c.b16 %v1275, %v1263
  %v1600 = vpack.c.b16 %v1288, %v1276
  %v1601 = vpack.c.b16 %v1289, %v1277
  %v1602 = vpack.c.b16 %v1290, %v1278
  %v1603 = vpack.c.b16 %v1291, %v1279
  %v1604 = vpack.c.b16 %v1292, %v1280
  %v1605 = vpack.c.b16 %v1293, %v1281
  %v1606 = vpack.c.b16 %v1294, %v1282
  %v1607 = vpack.c.b16 %v1295, %v1283
  %v1608 = vpack.c.b16 %v1296, %v1284
  %v1609 = vpack.c.b16 %v1297, %v1285
  %v1610 = vpack.c.b16 %v1298, %v1286
  %v1611 = vpack.c.b16 %v1299, %v1287
  %v1612 = vpack.c.b16 %v1312, %v1300
  %v1613 = vpack.c.b16 %v1313, %v1301
  %v1614 = vpack.c.b16 %v1314, %v1302
  %v1615 = vpack.c.b16 %v1315, %v1303
  %v1616 = vpack.c.b16 %v1316, %v1304
  %v1617 = vpack.c.b16 %v1317, %v1305
  %v1618 = vpack.c.b16 %v1318, %v1306
  %v1619 = vpack.c.b16 %v1319, %v1307
  %v1620 = vpack.c.b16 %v1320, %v1308
  %v1621 = vpack.c.b16 %v1321, %v1309
  %v1622 = vpack.c.b16 %v1322, %v1310
  %v1623 = vpack.c.b16 %v1323, %v1311
  %v1624 = vpack.c.b16 %v1336, %v1324
  %v1625 = vpack.c.b16 %v1337, %v1325
  %v1626 = vpack.c.b16 %v1338, %v1326
  %v1627 = vpack.c.b16 %v1339, %v1327
  %v1628 = vpack.c.b16 %v1340, %v1328
  %v1629 = vpack.c.b16 %v1341, %v1329
  %v1630 = vpack.c.b16 %v1342, %v1330
  %v1631 = vpack.c.b16 %v1343, %v1331
  %v1632 = vpack.c.b16 %v1344, %v1332
  %v1633 = vpack.c.b16 %v1345, %v1333
  %v1634 = vpack.c.b16 %v1346, %v1334
  %v1635 = vpack.c.b16 %v1347, %v1335
  %1924 = vmatprep.subr.bf16.mxu0 %v1349
  %1925 = vmatpush1.bf16.msra.mxu0 %v1348
  %1926 = vmatprep.subr.bf16.mxu0 %v1361
  %1927 = vmatpush1.bf16.msra.mxu0 %v1360
  %1928 = vmatprep.subr.bf16.mxu0 %v1373
  %1929 = vmatpush1.bf16.msra.mxu0 %v1372
  %1930 = vmatprep.subr.bf16.mxu0 %v1385
  %1931 = vmatpush1.bf16.msra.mxu0 %v1384
  %1932 = vmatprep.subr.bf16.mxu0 %v1397
  %1933 = vmatpush1.bf16.msra.mxu0 %v1396
  %1934 = vmatprep.subr.bf16.mxu0 %v1409
  %1935 = vmatpush1.bf16.msra.mxu0 %v1408
  %1936 = vmatprep.subr.bf16.mxu0 %v1421
  %1937 = vmatpush1.bf16.msra.mxu0 %v1420
  %1938 = vmatprep.subr.bf16.mxu0 %v1433
  %1939 = vmatpush1.bf16.msra.mxu0 %v1432
  %1940 = vmatprep.subr.bf16.mxu0 %v1445
  %1941 = vmatpush1.bf16.msra.mxu0 %v1444
  %1942 = vmatprep.subr.bf16.mxu0 %v1457
  %1943 = vmatpush1.bf16.msra.mxu0 %v1456
  %1944 = vmatprep.subr.bf16.mxu0 %v1469
  %1945 = vmatpush1.bf16.msra.mxu0 %v1468
  %1946 = vmatprep.subr.bf16.mxu0 %v1481
  %1947 = vmatpush1.bf16.msra.mxu0 %v1480
  %1948 = vmatprep.subr.bf16.mxu0 %v1493
  %1949 = vmatpush1.bf16.msra.mxu0 %v1492
  %1950 = vmatprep.subr.bf16.mxu0 %v1505
  %1951 = vmatpush1.bf16.msra.mxu0 %v1504
  %1952 = vmatprep.subr.bf16.mxu0 %v1517
  %1953 = vmatpush1.bf16.msra.mxu0 %v1516
  %1954 = vmatprep.subr.bf16.mxu0 %v1529
  %1955 = vmatpush1.bf16.msra.mxu0 %v1528
  %1956 = vmatprep.mubr.bf16.mxu0 %v130
  %1957 = vmatmul.mubr.bf16.gmra.mrb[0].mxu0 %v129
  %v1958 = vpop.f32.mrb[0].mxu0
  %v1959 = vadd.f32 %v427, %v1958
  %v1960 = vpop.f32.mrb[0].mxu0
  %v1961 = vadd.f32 %v431, %v1960
  %v1962 = vpop.f32.mrb[0].mxu0
  %v1963 = vadd.f32 %v427, %v1962
  %v1964 = vpop.f32.mrb[0].mxu0
  %v1965 = vadd.f32 %v431, %v1964
  %1966 = vdwg.mxu0
  %1967 = vmatprep.subr.bf16.mxu0 %v1541
  %1968 = vmatpush1.bf16.msra.mxu0 %v1540
  %1969 = vmatprep.subr.bf16.mxu0 %v1553
  %1970 = vmatpush1.bf16.msra.mxu0 %v1552
  %1971 = vmatprep.subr.bf16.mxu0 %v1565
  %1972 = vmatpush1.bf16.msra.mxu0 %v1564
  %1973 = vmatprep.subr.bf16.mxu0 %v1577
  %1974 = vmatpush1.bf16.msra.mxu0 %v1576
  %1975 = vmatprep.subr.bf16.mxu0 %v1589
  %1976 = vmatpush1.bf16.msra.mxu0 %v1588
  %1977 = vmatprep.subr.bf16.mxu0 %v1601
  %1978 = vmatpush1.bf16.msra.mxu0 %v1600
  %1979 = vmatprep.subr.bf16.mxu0 %v1613
  %1980 = vmatpush1.bf16.msra.mxu0 %v1612
  %1981 = vmatprep.subr.bf16.mxu0 %v1625
  %1982 = vmatpush1.bf16.msra.mxu0 %v1624
  %1983 = vmatprep.subr.bf16.mxu0 0
  %1984 = vmatpush1.bf16.msra.mxu0 0
  %1985 = vmatprep.subr.bf16.mxu0 0
  %1986 = vmatpush1.bf16.msra.mxu0 0
  %1987 = vmatprep.subr.bf16.mxu0 0
  %1988 = vmatpush1.bf16.msra.mxu0 0
  %1989 = vmatprep.subr.bf16.mxu0 0
  %1990 = vmatpush1.bf16.msra.mxu0 0
  %1991 = vmatprep.subr.bf16.mxu0 0
  %1992 = vmatpush1.bf16.msra.mxu0 0
  %1993 = vmatprep.subr.bf16.mxu0 0
  %1994 = vmatpush1.bf16.msra.mxu0 0
  %1995 = vmatprep.subr.bf16.mxu0 0
  %1996 = vmatpush1.bf16.msra.mxu0 0
  %1997 = vmatprep.subr.bf16.mxu0 0
  %1998 = vmatpush1.bf16.msra.mxu0 0
  %1999 = vmatprep.mubr.bf16.mxu0 0
  %2000 = vmatmul.mubr.bf16.gmra.mrb[0].mxu0 %v131
  %v2001 = vpop.f32.mrb[0].mxu0
  %v2002 = vadd.f32 %v1959, %v2001
  %v2003 = vpop.f32.mrb[0].mxu0
  %v2004 = vadd.f32 %v1961, %v2003
  %v2005 = vpop.f32.mrb[0].mxu0
  %v2006 = vadd.f32 %v1963, %v2005
  %v2007 = vpop.f32.mrb[0].mxu0
  %v2008 = vadd.f32 %v1965, %v2007
  %2009 = vdwg.mxu0
  %2010 = vmatprep.subr.bf16.mxu0 %v1351
  %2011 = vmatpush1.bf16.msra.mxu0 %v1350
  %2012 = vmatprep.subr.bf16.mxu0 %v1363
  %2013 = vmatpush1.bf16.msra.mxu0 %v1362
  %2014 = vmatprep.subr.bf16.mxu0 %v1375
  %2015 = vmatpush1.bf16.msra.mxu0 %v1374
  %2016 = vmatprep.subr.bf16.mxu0 %v1387
  %2017 = vmatpush1.bf16.msra.mxu0 %v1386
  %2018 = vmatprep.subr.bf16.mxu0 %v1399
  %2019 = vmatpush1.bf16.msra.mxu0 %v1398
  %2020 = vmatprep.subr.bf16.mxu0 %v1411
  %2021 = vmatpush1.bf16.msra.mxu0 %v1410
  %2022 = vmatprep.subr.bf16.mxu0 %v1423
  %2023 = vmatpush1.bf16.msra.mxu0 %v1422
  %2024 = vmatprep.subr.bf16.mxu0 %v1435
  %2025 = vmatpush1.bf16.msra.mxu0 %v1434
  %2026 = vmatprep.subr.bf16.mxu0 %v1447
  %2027 = vmatpush1.bf16.msra.mxu0 %v1446
  %2028 = vmatprep.subr.bf16.mxu0 %v1459
  %2029 = vmatpush1.bf16.msra.mxu0 %v1458
  %2030 = vmatprep.subr.bf16.mxu0 %v1471
  %2031 = vmatpush1.bf16.msra.mxu0 %v1470
  %2032 = vmatprep.subr.bf16.mxu0 %v1483
  %2033 = vmatpush1.bf16.msra.mxu0 %v1482
  %2034 = vmatprep.subr.bf16.mxu0 %v1495
  %2035 = vmatpush1.bf16.msra.mxu0 %v1494
  %2036 = vmatprep.subr.bf16.mxu0 %v1507
  %2037 = vmatpush1.bf16.msra.mxu0 %v1506
  %2038 = vmatprep.subr.bf16.mxu0 %v1519
  %2039 = vmatpush1.bf16.msra.mxu0 %v1518
  %2040 = vmatprep.subr.bf16.mxu0 %v1531
  %2041 = vmatpush1.bf16.msra.mxu0 %v1530
  %2042 = vmatprep.mubr.bf16.mxu0 %v130
  %2043 = vmatmul.mubr.bf16.gmra.mrb[0].mxu0 %v129
  %v2044 = vpop.f32.mrb[0].mxu0
  %v2045 = vadd.f32 %v435, %v2044
  %v2046 = vpop.f32.mrb[0].mxu0
  %v2047 = vadd.f32 %v439, %v2046
  %v2048 = vpop.f32.mrb[0].mxu0
  %v2049 = vadd.f32 %v435, %v2048
  %v2050 = vpop.f32.mrb[0].mxu0
  %v2051 = vadd.f32 %v439, %v2050
  %2052 = vdwg.mxu0
  %2053 = vmatprep.subr.bf16.mxu0 %v1543
  %2054 = vmatpush1.bf16.msra.mxu0 %v1542
  %2055 = vmatprep.subr.bf16.mxu0 %v1555
  %2056 = vmatpush1.bf16.msra.mxu0 %v1554
  %2057 = vmatprep.subr.bf16.mxu0 %v1567
  %2058 = vmatpush1.bf16.msra.mxu0 %v1566
  %2059 = vmatprep.subr.bf16.mxu0 %v1579
  %2060 = vmatpush1.bf16.msra.mxu0 %v1578
  %2061 = vmatprep.subr.bf16.mxu0 %v1591
  %2062 = vmatpush1.bf16.msra.mxu0 %v1590
  %2063 = vmatprep.subr.bf16.mxu0 %v1603
  %2064 = vmatpush1.bf16.msra.mxu0 %v1602
  %2065 = vmatprep.subr.bf16.mxu0 %v1615
  %2066 = vmatpush1.bf16.msra.mxu0 %v1614
  %2067 = vmatprep.subr.bf16.mxu0 %v1627
  %2068 = vmatpush1.bf16.msra.mxu0 %v1626
  %2069 = vmatprep.subr.bf16.mxu0 0
  %2070 = vmatpush1.bf16.msra.mxu0 0
  %2071 = vmatprep.subr.bf16.mxu0 0
  %2072 = vmatpush1.bf16.msra.mxu0 0
  %2073 = vmatprep.subr.bf16.mxu0 0
  %2074 = vmatpush1.bf16.msra.mxu0 0
  %2075 = vmatprep.subr.bf16.mxu0 0
  %2076 = vmatpush1.bf16.msra.mxu0 0
  %2077 = vmatprep.subr.bf16.mxu0 0
  %2078 = vmatpush1.bf16.msra.mxu0 0
  %2079 = vmatprep.subr.bf16.mxu0 0
  %2080 = vmatpush1.bf16.msra.mxu0 0
  %2081 = vmatprep.subr.bf16.mxu0 0
  %2082 = vmatpush1.bf16.msra.mxu0 0
  %2083 = vmatprep.subr.bf16.mxu0 0
  %2084 = vmatpush1.bf16.msra.mxu0 0
  %2085 = vmatprep.mubr.bf16.mxu0 0
  %2086 = vmatmul.mubr.bf16.gmra.mrb[0].mxu0 %v131
  %v2087 = vpop.f32.mrb[0].mxu0
  %v2088 = vadd.f32 %v2045, %v2087
  %v2089 = vpop.f32.mrb[0].mxu0
  %v2090 = vadd.f32 %v2047, %v2089
  %v2091 = vpop.f32.mrb[0].mxu0
  %v2092 = vadd.f32 %v2049, %v2091
  %v2093 = vpop.f32.mrb[0].mxu0
  %v2094 = vadd.f32 %v2051, %v2093
  %2095 = vdwg.mxu0
  %2096 = vmatprep.subr.bf16.mxu0 %v1353
  %2097 = vmatpush1.bf16.msra.mxu0 %v1352
  %2098 = vmatprep.subr.bf16.mxu0 %v1365
  %2099 = vmatpush1.bf16.msra.mxu0 %v1364
  %2100 = vmatprep.subr.bf16.mxu0 %v1377
  %2101 = vmatpush1.bf16.msra.mxu0 %v1376
  %2102 = vmatprep.subr.bf16.mxu0 %v1389
  %2103 = vmatpush1.bf16.msra.mxu0 %v1388
  %2104 = vmatprep.subr.bf16.mxu0 %v1401
  %2105 = vmatpush1.bf16.msra.mxu0 %v1400
  %2106 = vmatprep.subr.bf16.mxu0 %v1413
  %2107 = vmatpush1.bf16.msra.mxu0 %v1412
  %2108 = vmatprep.subr.bf16.mxu0 %v1425
  %2109 = vmatpush1.bf16.msra.mxu0 %v1424
  %2110 = vmatprep.subr.bf16.mxu0 %v1437
  %2111 = vmatpush1.bf16.msra.mxu0 %v1436
  %2112 = vmatprep.subr.bf16.mxu0 %v1449
  %2113 = vmatpush1.bf16.msra.mxu0 %v1448
  %2114 = vmatprep.subr.bf16.mxu0 %v1461
  %2115 = vmatpush1.bf16.msra.mxu0 %v1460
  %2116 = vmatprep.subr.bf16.mxu0 %v1473
  %2117 = vmatpush1.bf16.msra.mxu0 %v1472
  %2118 = vmatprep.subr.bf16.mxu0 %v1485
  %2119 = vmatpush1.bf16.msra.mxu0 %v1484
  %2120 = vmatprep.subr.bf16.mxu0 %v1497
  %2121 = vmatpush1.bf16.msra.mxu0 %v1496
  %2122 = vmatprep.subr.bf16.mxu0 %v1509
  %2123 = vmatpush1.bf16.msra.mxu0 %v1508
  %2124 = vmatprep.subr.bf16.mxu0 %v1521
  %2125 = vmatpush1.bf16.msra.mxu0 %v1520
  %2126 = vmatprep.subr.bf16.mxu0 %v1533
  %2127 = vmatpush1.bf16.msra.mxu0 %v1532
  %2128 = vmatprep.mubr.bf16.mxu0 %v130
  %2129 = vmatmul.mubr.bf16.gmra.mrb[0].mxu0 %v129
  %v2130 = vpop.f32.mrb[0].mxu0
  %v2131 = vadd.f32 %v443, %v2130
  %v2132 = vpop.f32.mrb[0].mxu0
  %v2133 = vadd.f32 %v447, %v2132
  %v2134 = vpop.f32.mrb[0].mxu0
  %v2135 = vadd.f32 %v443, %v2134
  %v2136 = vpop.f32.mrb[0].mxu0
  %v2137 = vadd.f32 %v447, %v2136
  %2138 = vdwg.mxu0
  %2139 = vmatprep.subr.bf16.mxu0 %v1545
  %2140 = vmatpush1.bf16.msra.mxu0 %v1544
  %2141 = vmatprep.subr.bf16.mxu0 %v1557
  %2142 = vmatpush1.bf16.msra.mxu0 %v1556
  %2143 = vmatprep.subr.bf16.mxu0 %v1569
  %2144 = vmatpush1.bf16.msra.mxu0 %v1568
  %2145 = vmatprep.subr.bf16.mxu0 %v1581
  %2146 = vmatpush1.bf16.msra.mxu0 %v1580
  %2147 = vmatprep.subr.bf16.mxu0 %v1593
  %2148 = vmatpush1.bf16.msra.mxu0 %v1592
  %2149 = vmatprep.subr.bf16.mxu0 %v1605
  %2150 = vmatpush1.bf16.msra.mxu0 %v1604
  %2151 = vmatprep.subr.bf16.mxu0 %v1617
  %2152 = vmatpush1.bf16.msra.mxu0 %v1616
  %2153 = vmatprep.subr.bf16.mxu0 %v1629
  %2154 = vmatpush1.bf16.msra.mxu0 %v1628
  %2155 = vmatprep.subr.bf16.mxu0 0
  %2156 = vmatpush1.bf16.msra.mxu0 0
  %2157 = vmatprep.subr.bf16.mxu0 0
  %2158 = vmatpush1.bf16.msra.mxu0 0
  %2159 = vmatprep.subr.bf16.mxu0 0
  %2160 = vmatpush1.bf16.msra.mxu0 0
  %2161 = vmatprep.subr.bf16.mxu0 0
  %2162 = vmatpush1.bf16.msra.mxu0 0
  %2163 = vmatprep.subr.bf16.mxu0 0
  %2164 = vmatpush1.bf16.msra.mxu0 0
  %2165 = vmatprep.subr.bf16.mxu0 0
  %2166 = vmatpush1.bf16.msra.mxu0 0
  %2167 = vmatprep.subr.bf16.mxu0 0
  %2168 = vmatpush1.bf16.msra.mxu0 0
  %2169 = vmatprep.subr.bf16.mxu0 0
  %2170 = vmatpush1.bf16.msra.mxu0 0
  %2171 = vmatprep.mubr.bf16.mxu0 0
  %2172 = vmatmul.mubr.bf16.gmra.mrb[0].mxu0 %v131
  %v2173 = vpop.f32.mrb[0].mxu0
  %v2174 = vadd.f32 %v2131, %v2173
  %v2175 = vpop.f32.mrb[0].mxu0
  %v2176 = vadd.f32 %v2133, %v2175
  %v2177 = vpop.f32.mrb[0].mxu0
  %v2178 = vadd.f32 %v2135, %v2177
  %v2179 = vpop.f32.mrb[0].mxu0
  %v2180 = vadd.f32 %v2137, %v2179
  %2181 = vdwg.mxu0
  %2182 = vmatprep.subr.bf16.mxu0 %v1355
  %2183 = vmatpush1.bf16.msra.mxu0 %v1354
  %2184 = vmatprep.subr.bf16.mxu0 %v1367
  %2185 = vmatpush1.bf16.msra.mxu0 %v1366
  %2186 = vmatprep.subr.bf16.mxu0 %v1379
  %2187 = vmatpush1.bf16.msra.mxu0 %v1378
  %2188 = vmatprep.subr.bf16.mxu0 %v1391
  %2189 = vmatpush1.bf16.msra.mxu0 %v1390
  %2190 = vmatprep.subr.bf16.mxu0 %v1403
  %2191 = vmatpush1.bf16.msra.mxu0 %v1402
  %2192 = vmatprep.subr.bf16.mxu0 %v1415
  %2193 = vmatpush1.bf16.msra.mxu0 %v1414
  %2194 = vmatprep.subr.bf16.mxu0 %v1427
  %2195 = vmatpush1.bf16.msra.mxu0 %v1426
  %2196 = vmatprep.subr.bf16.mxu0 %v1439
  %2197 = vmatpush1.bf16.msra.mxu0 %v1438
  %2198 = vmatprep.subr.bf16.mxu0 %v1451
  %2199 = vmatpush1.bf16.msra.mxu0 %v1450
  %2200 = vmatprep.subr.bf16.mxu0 %v1463
  %2201 = vmatpush1.bf16.msra.mxu0 %v1462
  %2202 = vmatprep.subr.bf16.mxu0 %v1475
  %2203 = vmatpush1.bf16.msra.mxu0 %v1474
  %2204 = vmatprep.subr.bf16.mxu0 %v1487
  %2205 = vmatpush1.bf16.msra.mxu0 %v1486
  %2206 = vmatprep.subr.bf16.mxu0 %v1499
  %2207 = vmatpush1.bf16.msra.mxu0 %v1498
  %2208 = vmatprep.subr.bf16.mxu0 %v1511
  %2209 = vmatpush1.bf16.msra.mxu0 %v1510
  %2210 = vmatprep.subr.bf16.mxu0 %v1523
  %2211 = vmatpush1.bf16.msra.mxu0 %v1522
  %2212 = vmatprep.subr.bf16.mxu0 %v1535
  %2213 = vmatpush1.bf16.msra.mxu0 %v1534
  %2214 = vmatprep.mubr.bf16.mxu0 %v130
  %2215 = vmatmul.mubr.bf16.gmra.mrb[0].mxu0 %v129
  %v2216 = vpop.f32.mrb[0].mxu0
  %v2217 = vadd.f32 %v451, %v2216
  %v2218 = vpop.f32.mrb[0].mxu0
  %v2219 = vadd.f32 %v455, %v2218
  %v2220 = vpop.f32.mrb[0].mxu0
  %v2221 = vadd.f32 %v451, %v2220
  %v2222 = vpop.f32.mrb[0].mxu0
  %v2223 = vadd.f32 %v455, %v2222
  %2224 = vdwg.mxu0
  %2225 = vmatprep.subr.bf16.mxu0 %v1547
  %2226 = vmatpush1.bf16.msra.mxu0 %v1546
  %2227 = vmatprep.subr.bf16.mxu0 %v1559
  %2228 = vmatpush1.bf16.msra.mxu0 %v1558
  %2229 = vmatprep.subr.bf16.mxu0 %v1571
  %2230 = vmatpush1.bf16.msra.mxu0 %v1570
  %2231 = vmatprep.subr.bf16.mxu0 %v1583
  %2232 = vmatpush1.bf16.msra.mxu0 %v1582
  %2233 = vmatprep.subr.bf16.mxu0 %v1595
  %2234 = vmatpush1.bf16.msra.mxu0 %v1594
  %2235 = vmatprep.subr.bf16.mxu0 %v1607
  %2236 = vmatpush1.bf16.msra.mxu0 %v1606
  %2237 = vmatprep.subr.bf16.mxu0 %v1619
  %2238 = vmatpush1.bf16.msra.mxu0 %v1618
  %2239 = vmatprep.subr.bf16.mxu0 %v1631
  %2240 = vmatpush1.bf16.msra.mxu0 %v1630
  %2241 = vmatprep.subr.bf16.mxu0 0
  %2242 = vmatpush1.bf16.msra.mxu0 0
  %2243 = vmatprep.subr.bf16.mxu0 0
  %2244 = vmatpush1.bf16.msra.mxu0 0
  %2245 = vmatprep.subr.bf16.mxu0 0
  %2246 = vmatpush1.bf16.msra.mxu0 0
  %2247 = vmatprep.subr.bf16.mxu0 0
  %2248 = vmatpush1.bf16.msra.mxu0 0
  %2249 = vmatprep.subr.bf16.mxu0 0
  %2250 = vmatpush1.bf16.msra.mxu0 0
  %2251 = vmatprep.subr.bf16.mxu0 0
  %2252 = vmatpush1.bf16.msra.mxu0 0
  %2253 = vmatprep.subr.bf16.mxu0 0
  %2254 = vmatpush1.bf16.msra.mxu0 0
  %2255 = vmatprep.subr.bf16.mxu0 0
  %2256 = vmatpush1.bf16.msra.mxu0 0
  %2257 = vmatprep.mubr.bf16.mxu0 0
  %2258 = vmatmul.mubr.bf16.gmra.mrb[0].mxu0 %v131
  %v2259 = vpop.f32.mrb[0].mxu0
  %v2260 = vadd.f32 %v2217, %v2259
  %v2261 = vpop.f32.mrb[0].mxu0
  %v2262 = vadd.f32 %v2219, %v2261
  %v2263 = vpop.f32.mrb[0].mxu0
  %v2264 = vadd.f32 %v2221, %v2263
  %v2265 = vpop.f32.mrb[0].mxu0
  %v2266 = vadd.f32 %v2223, %v2265
  %2267 = vdwg.mxu0
  %2268 = vmatprep.subr.bf16.mxu0 %v1357
  %2269 = vmatpush1.bf16.msra.mxu0 %v1356
  %2270 = vmatprep.subr.bf16.mxu0 %v1369
  %2271 = vmatpush1.bf16.msra.mxu0 %v1368
  %2272 = vmatprep.subr.bf16.mxu0 %v1381
  %2273 = vmatpush1.bf16.msra.mxu0 %v1380
  %2274 = vmatprep.subr.bf16.mxu0 %v1393
  %2275 = vmatpush1.bf16.msra.mxu0 %v1392
  %2276 = vmatprep.subr.bf16.mxu0 %v1405
  %2277 = vmatpush1.bf16.msra.mxu0 %v1404
  %2278 = vmatprep.subr.bf16.mxu0 %v1417
  %2279 = vmatpush1.bf16.msra.mxu0 %v1416
  %2280 = vmatprep.subr.bf16.mxu0 %v1429
  %2281 = vmatpush1.bf16.msra.mxu0 %v1428
  %2282 = vmatprep.subr.bf16.mxu0 %v1441
  %2283 = vmatpush1.bf16.msra.mxu0 %v1440
  %2284 = vmatprep.subr.bf16.mxu0 %v1453
  %2285 = vmatpush1.bf16.msra.mxu0 %v1452
  %2286 = vmatprep.subr.bf16.mxu0 %v1465
  %2287 = vmatpush1.bf16.msra.mxu0 %v1464
  %2288 = vmatprep.subr.bf16.mxu0 %v1477
  %2289 = vmatpush1.bf16.msra.mxu0 %v1476
  %2290 = vmatprep.subr.bf16.mxu0 %v1489
  %2291 = vmatpush1.bf16.msra.mxu0 %v1488
  %2292 = vmatprep.subr.bf16.mxu0 %v1501
  %2293 = vmatpush1.bf16.msra.mxu0 %v1500
  %2294 = vmatprep.subr.bf16.mxu0 %v1513
  %2295 = vmatpush1.bf16.msra.mxu0 %v1512
  %2296 = vmatprep.subr.bf16.mxu0 %v1525
  %2297 = vmatpush1.bf16.msra.mxu0 %v1524
  %2298 = vmatprep.subr.bf16.mxu0 %v1537
  %2299 = vmatpush1.bf16.msra.mxu0 %v1536
  %2300 = vmatprep.mubr.bf16.mxu0 %v130
  %2301 = vmatmul.mubr.bf16.gmra.mrb[0].mxu0 %v129
  %v2302 = vpop.f32.mrb[0].mxu0
  %v2303 = vadd.f32 %v459, %v2302
  %v2304 = vpop.f32.mrb[0].mxu0
  %v2305 = vadd.f32 %v463, %v2304
  %v2306 = vpop.f32.mrb[0].mxu0
  %v2307 = vadd.f32 %v459, %v2306
  %v2308 = vpop.f32.mrb[0].mxu0
  %v2309 = vadd.f32 %v463, %v2308
  %2310 = vdwg.mxu0
  %2311 = vmatprep.subr.bf16.mxu0 %v1549
  %2312 = vmatpush1.bf16.msra.mxu0 %v1548
  %2313 = vmatprep.subr.bf16.mxu0 %v1561
  %2314 = vmatpush1.bf16.msra.mxu0 %v1560
  %2315 = vmatprep.subr.bf16.mxu0 %v1573
  %2316 = vmatpush1.bf16.msra.mxu0 %v1572
  %2317 = vmatprep.subr.bf16.mxu0 %v1585
  %2318 = vmatpush1.bf16.msra.mxu0 %v1584
  %2319 = vmatprep.subr.bf16.mxu0 %v1597
  %2320 = vmatpush1.bf16.msra.mxu0 %v1596
  %2321 = vmatprep.subr.bf16.mxu0 %v1609
  %2322 = vmatpush1.bf16.msra.mxu0 %v1608
  %2323 = vmatprep.subr.bf16.mxu0 %v1621
  %2324 = vmatpush1.bf16.msra.mxu0 %v1620
  %2325 = vmatprep.subr.bf16.mxu0 %v1633
  %2326 = vmatpush1.bf16.msra.mxu0 %v1632
  %2327 = vmatprep.subr.bf16.mxu0 0
  %2328 = vmatpush1.bf16.msra.mxu0 0
  %2329 = vmatprep.subr.bf16.mxu0 0
  %2330 = vmatpush1.bf16.msra.mxu0 0
  %2331 = vmatprep.subr.bf16.mxu0 0
  %2332 = vmatpush1.bf16.msra.mxu0 0
  %2333 = vmatprep.subr.bf16.mxu0 0
  %2334 = vmatpush1.bf16.msra.mxu0 0
  %2335 = vmatprep.subr.bf16.mxu0 0
  %2336 = vmatpush1.bf16.msra.mxu0 0
  %2337 = vmatprep.subr.bf16.mxu0 0
  %2338 = vmatpush1.bf16.msra.mxu0 0
  %2339 = vmatprep.subr.bf16.mxu0 0
  %2340 = vmatpush1.bf16.msra.mxu0 0
  %2341 = vmatprep.subr.bf16.mxu0 0
  %2342 = vmatpush1.bf16.msra.mxu0 0
  %2343 = vmatprep.mubr.bf16.mxu0 0
  %2344 = vmatmul.mubr.bf16.gmra.mrb[0].mxu0 %v131
  %v2345 = vpop.f32.mrb[0].mxu0
  %v2346 = vadd.f32 %v2303, %v2345
  %v2347 = vpop.f32.mrb[0].mxu0
  %v2348 = vadd.f32 %v2305, %v2347
  %v2349 = vpop.f32.mrb[0].mxu0
  %v2350 = vadd.f32 %v2307, %v2349
  %v2351 = vpop.f32.mrb[0].mxu0
  %v2352 = vadd.f32 %v2309, %v2351
  %2353 = vdwg.mxu0
  %2354 = vmatprep.subr.bf16.mxu0 %v1359
  %2355 = vmatpush1.bf16.msra.mxu0 %v1358
  %2356 = vmatprep.subr.bf16.mxu0 %v1371
  %2357 = vmatpush1.bf16.msra.mxu0 %v1370
  %2358 = vmatprep.subr.bf16.mxu0 %v1383
  %2359 = vmatpush1.bf16.msra.mxu0 %v1382
  %2360 = vmatprep.subr.bf16.mxu0 %v1395
  %2361 = vmatpush1.bf16.msra.mxu0 %v1394
  %2362 = vmatprep.subr.bf16.mxu0 %v1407
  %2363 = vmatpush1.bf16.msra.mxu0 %v1406
  %2364 = vmatprep.subr.bf16.mxu0 %v1419
  %2365 = vmatpush1.bf16.msra.mxu0 %v1418
  %2366 = vmatprep.subr.bf16.mxu0 %v1431
  %2367 = vmatpush1.bf16.msra.mxu0 %v1430
  %2368 = vmatprep.subr.bf16.mxu0 %v1443
  %2369 = vmatpush1.bf16.msra.mxu0 %v1442
  %2370 = vmatprep.subr.bf16.mxu0 %v1455
  %2371 = vmatpush1.bf16.msra.mxu0 %v1454
  %2372 = vmatprep.subr.bf16.mxu0 %v1467
  %2373 = vmatpush1.bf16.msra.mxu0 %v1466
  %2374 = vmatprep.subr.bf16.mxu0 %v1479
  %2375 = vmatpush1.bf16.msra.mxu0 %v1478
  %2376 = vmatprep.subr.bf16.mxu0 %v1491
  %2377 = vmatpush1.bf16.msra.mxu0 %v1490
  %2378 = vmatprep.subr.bf16.mxu0 %v1503
  %2379 = vmatpush1.bf16.msra.mxu0 %v1502
  %2380 = vmatprep.subr.bf16.mxu0 %v1515
  %2381 = vmatpush1.bf16.msra.mxu0 %v1514
  %2382 = vmatprep.subr.bf16.mxu0 %v1527
  %2383 = vmatpush1.bf16.msra.mxu0 %v1526
  %2384 = vmatprep.subr.bf16.mxu0 %v1539
  %2385 = vmatpush1.bf16.msra.mxu0 %v1538
  %2386 = vmatprep.mubr.bf16.mxu0 %v130
  %2387 = vmatmul.mubr.bf16.gmra.mrb[0].mxu0 %v129
  %v2388 = vpop.f32.mrb[0].mxu0
  %v2389 = vadd.f32 %v467, %v2388
  %v2390 = vpop.f32.mrb[0].mxu0
  %v2391 = vadd.f32 %v471, %v2390
  %v2392 = vpop.f32.mrb[0].mxu0
  %v2393 = vadd.f32 %v467, %v2392
  %v2394 = vpop.f32.mrb[0].mxu0
  %v2395 = vadd.f32 %v471, %v2394
  %2396 = vdwg.mxu0
  %2397 = vmatprep.subr.bf16.mxu0 %v1551
  %2398 = vmatpush1.bf16.msra.mxu0 %v1550
  %2399 = vmatprep.subr.bf16.mxu0 %v1563
  %2400 = vmatpush1.bf16.msra.mxu0 %v1562
  %2401 = vmatprep.subr.bf16.mxu0 %v1575
  %2402 = vmatpush1.bf16.msra.mxu0 %v1574
  %2403 = vmatprep.subr.bf16.mxu0 %v1587
  %2404 = vmatpush1.bf16.msra.mxu0 %v1586
  %2405 = vmatprep.subr.bf16.mxu0 %v1599
  %2406 = vmatpush1.bf16.msra.mxu0 %v1598
  %2407 = vmatprep.subr.bf16.mxu0 %v1611
  %2408 = vmatpush1.bf16.msra.mxu0 %v1610
  %2409 = vmatprep.subr.bf16.mxu0 %v1623
  %2410 = vmatpush1.bf16.msra.mxu0 %v1622
  %2411 = vmatprep.subr.bf16.mxu0 %v1635
  %2412 = vmatpush1.bf16.msra.mxu0 %v1634
  %2413 = vmatprep.subr.bf16.mxu0 0
  %2414 = vmatpush1.bf16.msra.mxu0 0
  %2415 = vmatprep.subr.bf16.mxu0 0
  %2416 = vmatpush1.bf16.msra.mxu0 0
  %2417 = vmatprep.subr.bf16.mxu0 0
  %2418 = vmatpush1.bf16.msra.mxu0 0
  %2419 = vmatprep.subr.bf16.mxu0 0
  %2420 = vmatpush1.bf16.msra.mxu0 0
  %2421 = vmatprep.subr.bf16.mxu0 0
  %2422 = vmatpush1.bf16.msra.mxu0 0
  %2423 = vmatprep.subr.bf16.mxu0 0
  %2424 = vmatpush1.bf16.msra.mxu0 0
  %2425 = vmatprep.subr.bf16.mxu0 0
  %2426 = vmatpush1.bf16.msra.mxu0 0
  %2427 = vmatprep.subr.bf16.mxu0 0
  %2428 = vmatpush1.bf16.msra.mxu0 0
  %2429 = vmatprep.mubr.bf16.mxu0 0
  %2430 = vmatmul.mubr.bf16.gmra.mrb[0].mxu0 %v131
  %v2431 = vpop.f32.mrb[0].mxu0
  %v2432 = vadd.f32 %v2389, %v2431
  %v2433 = vpop.f32.mrb[0].mxu0
  %v2434 = vadd.f32 %v2391, %v2433
  %v2435 = vpop.f32.mrb[0].mxu0
  %v2436 = vadd.f32 %v2393, %v2435
  %v2437 = vpop.f32.mrb[0].mxu0
  %v2438 = vadd.f32 %v2395, %v2437
  %2439 = vdwg.mxu0
  %v2440 = vmul.f32 %v2002, 0.5
  %v2441 = vmul.f32 %v2004, 0.5
  %v2442 = vmul.f32 %v2088, 0.5
  %v2443 = vmul.f32 %v2090, 0.5
  %v2444 = vmul.f32 %v2174, 0.5
  %v2445 = vmul.f32 %v2176, 0.5
  %v2446 = vmul.f32 %v2260, 0.5
  %v2447 = vmul.f32 %v2262, 0.5
  %v2448 = vmul.f32 %v2346, 0.5
  %v2449 = vmul.f32 %v2348, 0.5
  %v2450 = vmul.f32 %v2432, 0.5
  %v2451 = vmul.f32 %v2434, 0.5
  %v2452 = vmul.f32 %v2006, 0.5
  %v2453 = vmul.f32 %v2008, 0.5
  %v2454 = vmul.f32 %v2092, 0.5
  %v2455 = vmul.f32 %v2094, 0.5
  %v2456 = vmul.f32 %v2178, 0.5
  %v2457 = vmul.f32 %v2180, 0.5
  %v2458 = vmul.f32 %v2264, 0.5
  %v2459 = vmul.f32 %v2266, 0.5
  %v2460 = vmul.f32 %v2350, 0.5
  %v2461 = vmul.f32 %v2352, 0.5
  %v2462 = vmul.f32 %v2436, 0.5
  %v2463 = vmul.f32 %v2438, 0.5
  %v2464 = vmul.f32 %v2002, 0.044715
  %v2465 = vmul.f32 %v2004, 0.044715
  %v2466 = vmul.f32 %v2088, 0.044715
  %v2467 = vmul.f32 %v2090, 0.044715
  %v2468 = vmul.f32 %v2174, 0.044715
  %v2469 = vmul.f32 %v2176, 0.044715
  %v2470 = vmul.f32 %v2260, 0.044715
  %v2471 = vmul.f32 %v2262, 0.044715
  %v2472 = vmul.f32 %v2346, 0.044715
  %v2473 = vmul.f32 %v2348, 0.044715
  %v2474 = vmul.f32 %v2432, 0.044715
  %v2475 = vmul.f32 %v2434, 0.044715
  %v2476 = vmul.f32 %v2006, 0.044715
  %v2477 = vmul.f32 %v2008, 0.044715
  %v2478 = vmul.f32 %v2092, 0.044715
  %v2479 = vmul.f32 %v2094, 0.044715
  %v2480 = vmul.f32 %v2178, 0.044715
  %v2481 = vmul.f32 %v2180, 0.044715
  %v2482 = vmul.f32 %v2264, 0.044715
  %v2483 = vmul.f32 %v2266, 0.044715
  %v2484 = vmul.f32 %v2350, 0.044715
  %v2485 = vmul.f32 %v2352, 0.044715
  %v2486 = vmul.f32 %v2436, 0.044715
  %v2487 = vmul.f32 %v2438, 0.044715
  %v2488 = vmul.f32 %v2464, %v2002
  %v2489 = vmul.f32 %v2465, %v2004
  %v2490 = vmul.f32 %v2466, %v2088
  %v2491 = vmul.f32 %v2467, %v2090
  %v2492 = vmul.f32 %v2468, %v2174
  %v2493 = vmul.f32 %v2469, %v2176
  %v2494 = vmul.f32 %v2470, %v2260
  %v2495 = vmul.f32 %v2471, %v2262
  %v2496 = vmul.f32 %v2472, %v2346
  %v2497 = vmul.f32 %v2473, %v2348
  %v2498 = vmul.f32 %v2474, %v2432
  %v2499 = vmul.f32 %v2475, %v2434
  %v2500 = vmul.f32 %v2476, %v2006
  %v2501 = vmul.f32 %v2477, %v2008
  %v2502 = vmul.f32 %v2478, %v2092
  %v2503 = vmul.f32 %v2479, %v2094
  %v2504 = vmul.f32 %v2480, %v2178
  %v2505 = vmul.f32 %v2481, %v2180
  %v2506 = vmul.f32 %v2482, %v2264
  %v2507 = vmul.f32 %v2483, %v2266
  %v2508 = vmul.f32 %v2484, %v2350
  %v2509 = vmul.f32 %v2485, %v2352
  %v2510 = vmul.f32 %v2486, %v2436
  %v2511 = vmul.f32 %v2487, %v2438
  %v2512 = vmul.f32 %v2488, %v2002
  %v2513 = vmul.f32 %v2489, %v2004
  %v2514 = vmul.f32 %v2490, %v2088
  %v2515 = vmul.f32 %v2491, %v2090
  %v2516 = vmul.f32 %v2492, %v2174
  %v2517 = vmul.f32 %v2493, %v2176
  %v2518 = vmul.f32 %v2494, %v2260
  %v2519 = vmul.f32 %v2495, %v2262
  %v2520 = vmul.f32 %v2496, %v2346
  %v2521 = vmul.f32 %v2497, %v2348
  %v2522 = vmul.f32 %v2498, %v2432
  %v2523 = vmul.f32 %v2499, %v2434
  %v2524 = vmul.f32 %v2500, %v2006
  %v2525 = vmul.f32 %v2501, %v2008
  %v2526 = vmul.f32 %v2502, %v2092
  %v2527 = vmul.f32 %v2503, %v2094
  %v2528 = vmul.f32 %v2504, %v2178
  %v2529 = vmul.f32 %v2505, %v2180
  %v2530 = vmul.f32 %v2506, %v2264
  %v2531 = vmul.f32 %v2507, %v2266
  %v2532 = vmul.f32 %v2508, %v2350
  %v2533 = vmul.f32 %v2509, %v2352
  %v2534 = vmul.f32 %v2510, %v2436
  %v2535 = vmul.f32 %v2511, %v2438
  %v2536 = vadd.f32 %v2002, %v2512
  %v2537 = vadd.f32 %v2004, %v2513
  %v2538 = vadd.f32 %v2088, %v2514
  %v2539 = vadd.f32 %v2090, %v2515
  %v2540 = vadd.f32 %v2174, %v2516
  %v2541 = vadd.f32 %v2176, %v2517
  %v2542 = vadd.f32 %v2260, %v2518
  %v2543 = vadd.f32 %v2262, %v2519
  %v2544 = vadd.f32 %v2346, %v2520
  %v2545 = vadd.f32 %v2348, %v2521
  %v2546 = vadd.f32 %v2432, %v2522
  %v2547 = vadd.f32 %v2434, %v2523
  %v2548 = vadd.f32 %v2006, %v2524
  %v2549 = vadd.f32 %v2008, %v2525
  %v2550 = vadd.f32 %v2092, %v2526
  %v2551 = vadd.f32 %v2094, %v2527
  %v2552 = vadd.f32 %v2178, %v2528
  %v2553 = vadd.f32 %v2180, %v2529
  %v2554 = vadd.f32 %v2264, %v2530
  %v2555 = vadd.f32 %v2266, %v2531
  %v2556 = vadd.f32 %v2350, %v2532
  %v2557 = vadd.f32 %v2352, %v2533
  %v2558 = vadd.f32 %v2436, %v2534
  %v2559 = vadd.f32 %v2438, %v2535
  %v2560 = vmul.f32 %v2536, 0.7978846
  %v2561 = vmul.f32 %v2537, 0.7978846
  %v2562 = vmul.f32 %v2538, 0.7978846
  %v2563 = vmul.f32 %v2539, 0.7978846
  %v2564 = vmul.f32 %v2540, 0.7978846
  %v2565 = vmul.f32 %v2541, 0.7978846
  %v2566 = vmul.f32 %v2542, 0.7978846
  %v2567 = vmul.f32 %v2543, 0.7978846
  %v2568 = vmul.f32 %v2544, 0.7978846
  %v2569 = vmul.f32 %v2545, 0.7978846
  %v2570 = vmul.f32 %v2546, 0.7978846
  %v2571 = vmul.f32 %v2547, 0.7978846
  %v2572 = vmul.f32 %v2548, 0.7978846
  %v2573 = vmul.f32 %v2549, 0.7978846
  %v2574 = vmul.f32 %v2550, 0.7978846
  %v2575 = vmul.f32 %v2551, 0.7978846
  %v2576 = vmul.f32 %v2552, 0.7978846
  %v2577 = vmul.f32 %v2553, 0.7978846
  %v2578 = vmul.f32 %v2554, 0.7978846
  %v2579 = vmul.f32 %v2555, 0.7978846
  %v2580 = vmul.f32 %v2556, 0.7978846
  %v2581 = vmul.f32 %v2557, 0.7978846
  %v2582 = vmul.f32 %v2558, 0.7978846
  %v2583 = vmul.f32 %v2559, 0.7978846
  %v2584 = vtanh.pop %v2560
  %v2585 = vtanh.pop %v2561
  %v2586 = vtanh.pop %v2562
  %v2587 = vtanh.pop %v2563
  %v2588 = vtanh.pop %v2564
  %v2589 = vtanh.pop %v2565
  %v2590 = vtanh.pop %v2566
  %v2591 = vtanh.pop %v2567
  %v2592 = vtanh.pop %v2568
  %v2593 = vtanh.pop %v2569
  %v2594 = vtanh.pop %v2570
  %v2595 = vtanh.pop %v2571
  %v2596 = vtanh.pop %v2572
  %v2597 = vtanh.pop %v2573
  %v2598 = vtanh.pop %v2574
  %v2599 = vtanh.pop %v2575
  %v2600 = vtanh.pop %v2576
  %v2601 = vtanh.pop %v2577
  %v2602 = vtanh.pop %v2578
  %v2603 = vtanh.pop %v2579
  %v2604 = vtanh.pop %v2580
  %v2605 = vtanh.pop %v2581
  %v2606 = vtanh.pop %v2582
  %v2607 = vtanh.pop %v2583
  %v2608 = vadd.f32 %v2584, 1.0
  %v2609 = vadd.f32 %v2585, 1.0
  %v2610 = vadd.f32 %v2586, 1.0
  %v2611 = vadd.f32 %v2587, 1.0
  %v2612 = vadd.f32 %v2588, 1.0
  %v2613 = vadd.f32 %v2589, 1.0
  %v2614 = vadd.f32 %v2590, 1.0
  %v2615 = vadd.f32 %v2591, 1.0
  %v2616 = vadd.f32 %v2592, 1.0
  %v2617 = vadd.f32 %v2593, 1.0
  %v2618 = vadd.f32 %v2594, 1.0
  %v2619 = vadd.f32 %v2595, 1.0
  %v2620 = vadd.f32 %v2596, 1.0
  %v2621 = vadd.f32 %v2597, 1.0
  %v2622 = vadd.f32 %v2598, 1.0
  %v2623 = vadd.f32 %v2599, 1.0
  %v2624 = vadd.f32 %v2600, 1.0
  %v2625 = vadd.f32 %v2601, 1.0
  %v2626 = vadd.f32 %v2602, 1.0
  %v2627 = vadd.f32 %v2603, 1.0
  %v2628 = vadd.f32 %v2604, 1.0
  %v2629 = vadd.f32 %v2605, 1.0
  %v2630 = vadd.f32 %v2606, 1.0
  %v2631 = vadd.f32 %v2607, 1.0
  %v2632 = vmul.f32 %v2440, %v2608
  %v2633 = vmul.f32 %v2441, %v2609
  %v2634 = vmul.f32 %v2442, %v2610
  %v2635 = vmul.f32 %v2443, %v2611
  %v2636 = vmul.f32 %v2444, %v2612
  %v2637 = vmul.f32 %v2445, %v2613
  %v2638 = vmul.f32 %v2446, %v2614
  %v2639 = vmul.f32 %v2447, %v2615
  %v2640 = vmul.f32 %v2448, %v2616
  %v2641 = vmul.f32 %v2449, %v2617
  %v2642 = vmul.f32 %v2450, %v2618
  %v2643 = vmul.f32 %v2451, %v2619
  %v2644 = vmul.f32 %v2452, %v2620
  %v2645 = vmul.f32 %v2453, %v2621
  %v2646 = vmul.f32 %v2454, %v2622
  %v2647 = vmul.f32 %v2455, %v2623
  %v2648 = vmul.f32 %v2456, %v2624
  %v2649 = vmul.f32 %v2457, %v2625
  %v2650 = vmul.f32 %v2458, %v2626
  %v2651 = vmul.f32 %v2459, %v2627
  %v2652 = vmul.f32 %v2460, %v2628
  %v2653 = vmul.f32 %v2461, %v2629
  %v2654 = vmul.f32 %v2462, %v2630
  %v2655 = vmul.f32 %v2463, %v2631
  %v2656 = vpack.c.bf16 %v2644, %v2632
  %v2657 = vpack.c.bf16 %v2645, %v2633
  %v2658 = vpack.c.bf16 %v2646, %v2634
  %v2659 = vpack.c.bf16 %v2647, %v2635
  %v2660 = vpack.c.bf16 %v2648, %v2636
  %v2661 = vpack.c.bf16 %v2649, %v2637
  %v2662 = vpack.c.bf16 %v2650, %v2638
  %v2663 = vpack.c.bf16 %v2651, %v2639
  %v2664 = vpack.c.bf16 %v2652, %v2640
  %v2665 = vpack.c.bf16 %v2653, %v2641
  %v2666 = vpack.c.bf16 %v2654, %v2642
  %v2667 = vpack.c.bf16 %v2655, %v2643
  %v2668 = vld [vmem:[%s5] sm:$0xff]
  %v2669 = vld [vmem:[%s5 + $0x8] sm:$0xf]
  %v2670 = vld [vmem:[%s5 + $0xc] sm:$0xff]
  %v2671 = vld [vmem:[%s5 + $0x14] sm:$0xf]
  %v2672 = vld [vmem:[%s5 + $0x18] sm:$0xff]
  %v2673 = vld [vmem:[%s5 + $0x20] sm:$0xf]
  %v2674 = vld [vmem:[%s5 + $0x24] sm:$0xff]
  %v2675 = vld [vmem:[%s5 + $0x2c] sm:$0xf]
  %v2676 = vld [vmem:[%s5 + $0x30] sm:$0xff]
  %v2677 = vld [vmem:[%s5 + $0x38] sm:$0xf]
  %v2678 = vld [vmem:[%s5 + $0x3c] sm:$0xff]
  %v2679 = vld [vmem:[%s5 + $0x44] sm:$0xf]
  %v2680 = vld [vmem:[%s5 + $0x48] sm:$0xff]
  %v2681 = vld [vmem:[%s5 + $0x50] sm:$0xf]
  %v2682 = vld [vmem:[%s5 + $0x54] sm:$0xff]
  %v2683 = vld [vmem:[%s5 + $0x5c] sm:$0xf]
  %v2684 = vld [vmem:[%s5 + $0x60] sm:$0xff]
  %v2685 = vld [vmem:[%s5 + $0x68] sm:$0xf]
  %v2686 = vld [vmem:[%s5 + $0x6c] sm:$0xff]
  %v2687 = vld [vmem:[%s5 + $0x74] sm:$0xf]
  %v2688 = vld [vmem:[%s5 + $0x78] sm:$0xff]
  %v2689 = vld [vmem:[%s5 + $0x80] sm:$0xf]
  %v2690 = vld [vmem:[%s5 + $0x84] sm:$0xff]
  %v2691 = vld [vmem:[%s5 + $0x8c] sm:$0xf]
  %v2692 = vld [vmem:[%s5 + $0x90] sm:$0xff]
  %v2693 = vld [vmem:[%s5 + $0x98] sm:$0xf]
  %v2694 = vld [vmem:[%s5 + $0x9c] sm:$0xff]
  %v2695 = vld [vmem:[%s5 + $0xa4] sm:$0xf]
  %v2696 = vld [vmem:[%s5 + $0xa8] sm:$0xff]
  %v2697 = vld [vmem:[%s5 + $0xb0] sm:$0xf]
  %v2698 = vld [vmem:[%s5 + $0xb4] sm:$0xff]
  %v2699 = vld [vmem:[%s5 + $0xbc] sm:$0xf]
  %v2700 = vld [vmem:[%s5 + $0xc0] sm:$0xff]
  %v2701 = vld [vmem:[%s5 + $0xc8] sm:$0xf]
  %v2702 = vld [vmem:[%s5 + $0xcc] sm:$0xff]
  %v2703 = vld [vmem:[%s5 + $0xd4] sm:$0xf]
  %v2704 = vld [vmem:[%s5 + $0xd8] sm:$0xff]
  %v2705 = vld [vmem:[%s5 + $0xe0] sm:$0xf]
  %v2706 = vld [vmem:[%s5 + $0xe4] sm:$0xff]
  %v2707 = vld [vmem:[%s5 + $0xec] sm:$0xf]
  %v2708 = vld [vmem:[%s5 + $0xf0] sm:$0xff]
  %v2709 = vld [vmem:[%s5 + $0xf8] sm:$0xf]
  %v2710 = vld [vmem:[%s5 + $0xfc] sm:$0xff]
  %v2711 = vld [vmem:[%s5 + $0x104] sm:$0xf]
  %v2712 = vld [vmem:[%s5 + $0x108] sm:$0xff]
  %v2713 = vld [vmem:[%s5 + $0x110] sm:$0xf]
  %v2714 = vld [vmem:[%s5 + $0x114] sm:$0xff]
  %v2715 = vld [vmem:[%s5 + $0x11c] sm:$0xf]
  %v2716 = vld [vmem:[%s5 + $0x120] sm:$0xff]
  %v2717 = vld [vmem:[%s5 + $0x128] sm:$0xf]
  %v2718 = vld [vmem:[%s5 + $0x12c] sm:$0xff]
  %v2719 = vld [vmem:[%s5 + $0x134] sm:$0xf]
  %v2720 = vld [vmem:[%s5 + $0x138] sm:$0xff]
  %v2721 = vld [vmem:[%s5 + $0x140] sm:$0xf]
  %v2722 = vld [vmem:[%s5 + $0x144] sm:$0xff]
  %v2723 = vld [vmem:[%s5 + $0x14c] sm:$0xf]
  %v2724 = vld [vmem:[%s5 + $0x150] sm:$0xff]
  %v2725 = vld [vmem:[%s5 + $0x158] sm:$0xf]
  %v2726 = vld [vmem:[%s5 + $0x15c] sm:$0xff]
  %v2727 = vld [vmem:[%s5 + $0x164] sm:$0xf]
  %v2728 = vld [vmem:[%s5 + $0x168] sm:$0xff]
  %v2729 = vld [vmem:[%s5 + $0x170] sm:$0xf]
  %v2730 = vld [vmem:[%s5 + $0x174] sm:$0xff]
  %v2731 = vld [vmem:[%s5 + $0x17c] sm:$0xf]
  %v2732 = vld [vmem:[%s5 + $0x180] sm:$0xff]
  %v2733 = vld [vmem:[%s5 + $0x188] sm:$0xf]
  %v2734 = vld [vmem:[%s5 + $0x18c] sm:$0xff]
  %v2735 = vld [vmem:[%s5 + $0x194] sm:$0xf]
  %v2736 = vld [vmem:[%s5 + $0x198] sm:$0xff]
  %v2737 = vld [vmem:[%s5 + $0x1a0] sm:$0xf]
  %v2738 = vld [vmem:[%s5 + $0x1a4] sm:$0xff]
  %v2739 = vld [vmem:[%s5 + $0x1ac] sm:$0xf]
  %v2740 = vld [vmem:[%s5 + $0x1b0] sm:$0xff]
  %v2741 = vld [vmem:[%s5 + $0x1b8] sm:$0xf]
  %v2742 = vld [vmem:[%s5 + $0x1bc] sm:$0xff]
  %v2743 = vld [vmem:[%s5 + $0x1c4] sm:$0xf]
  %v2744 = vld [vmem:[%s5 + $0x1c8] sm:$0xff]
  %v2745 = vld [vmem:[%s5 + $0x1d0] sm:$0xf]
  %v2746 = vld [vmem:[%s5 + $0x1d4] sm:$0xff]
  %v2747 = vld [vmem:[%s5 + $0x1dc] sm:$0xf]
  %v2748 = vld [vmem:[%s5 + $0x1e0] sm:$0xff]
  %v2749 = vld [vmem:[%s5 + $0x1e8] sm:$0xf]
  %v2750 = vld [vmem:[%s5 + $0x1ec] sm:$0xff]
  %v2751 = vld [vmem:[%s5 + $0x1f4] sm:$0xf]
  %v2752 = vld [vmem:[%s5 + $0x1f8] sm:$0xff]
  %v2753 = vld [vmem:[%s5 + $0x200] sm:$0xf]
  %v2754 = vld [vmem:[%s5 + $0x204] sm:$0xff]
  %v2755 = vld [vmem:[%s5 + $0x20c] sm:$0xf]
  %v2756 = vld [vmem:[%s5 + $0x210] sm:$0xff]
  %v2757 = vld [vmem:[%s5 + $0x218] sm:$0xf]
  %v2758 = vld [vmem:[%s5 + $0x21c] sm:$0xff]
  %v2759 = vld [vmem:[%s5 + $0x224] sm:$0xf]
  %v2760 = vld [vmem:[%s5 + $0x228] sm:$0xff]
  %v2761 = vld [vmem:[%s5 + $0x230] sm:$0xf]
  %v2762 = vld [vmem:[%s5 + $0x234] sm:$0xff]
  %v2763 = vld [vmem:[%s5 + $0x23c] sm:$0xf]
  %v2764 = vld [vmem:[%s5 + $0x240] sm:$0xff]
  %v2765 = vld [vmem:[%s5 + $0x248] sm:$0xf]
  %v2766 = vld [vmem:[%s5 + $0x24c] sm:$0xff]
  %v2767 = vld [vmem:[%s5 + $0x254] sm:$0xf]
  %v2768 = vld [vmem:[%s5 + $0x258] sm:$0xff]
  %v2769 = vld [vmem:[%s5 + $0x260] sm:$0xf]
  %v2770 = vld [vmem:[%s5 + $0x264] sm:$0xff]
  %v2771 = vld [vmem:[%s5 + $0x26c] sm:$0xf]
  %v2772 = vld [vmem:[%s5 + $0x270] sm:$0xff]
  %v2773 = vld [vmem:[%s5 + $0x278] sm:$0xf]
  %v2774 = vld [vmem:[%s5 + $0x27c] sm:$0xff]
  %v2775 = vld [vmem:[%s5 + $0x284] sm:$0xf]
  %v2776 = vld [vmem:[%s5 + $0x288] sm:$0xff]
  %v2777 = vld [vmem:[%s5 + $0x290] sm:$0xf]
  %v2778 = vld [vmem:[%s5 + $0x294] sm:$0xff]
  %v2779 = vld [vmem:[%s5 + $0x29c] sm:$0xf]
  %v2780 = vld [vmem:[%s5 + $0x2a0] sm:$0xff]
  %v2781 = vld [vmem:[%s5 + $0x2a8] sm:$0xf]
  %v2782 = vld [vmem:[%s5 + $0x2ac] sm:$0xff]
  %v2783 = vld [vmem:[%s5 + $0x2b4] sm:$0xf]
  %v2784 = vld [vmem:[%s5 + $0x2b8] sm:$0xff]
  %v2785 = vld [vmem:[%s5 + $0x2c0] sm:$0xf]
  %v2786 = vld [vmem:[%s5 + $0x2c4] sm:$0xff]
  %v2787 = vld [vmem:[%s5 + $0x2cc] sm:$0xf]
  %v2788 = vld [vmem:[%s5 + $0x2d0] sm:$0xff]
  %v2789 = vld [vmem:[%s5 + $0x2d8] sm:$0xf]
  %v2790 = vld [vmem:[%s5 + $0x2dc] sm:$0xff]
  %v2791 = vld [vmem:[%s5 + $0x2e4] sm:$0xf]
  %v2792 = vld [vmem:[%s5 + $0x2e8] sm:$0xff]
  %v2793 = vld [vmem:[%s5 + $0x2f0] sm:$0xf]
  %v2794 = vld [vmem:[%s5 + $0x2f4] sm:$0xff]
  %v2795 = vld [vmem:[%s5 + $0x2fc] sm:$0xf]
  %v2796 = vld [vmem:[%s5 + $0x300] sm:$0xff]
  %v2797 = vld [vmem:[%s5 + $0x308] sm:$0xf]
  %v2798 = vld [vmem:[%s5 + $0x30c] sm:$0xff]
  %v2799 = vld [vmem:[%s5 + $0x314] sm:$0xf]
  %v2800 = vld [vmem:[%s5 + $0x318] sm:$0xff]
  %v2801 = vld [vmem:[%s5 + $0x320] sm:$0xf]
  %v2802 = vld [vmem:[%s5 + $0x324] sm:$0xff]
  %v2803 = vld [vmem:[%s5 + $0x32c] sm:$0xf]
  %v2804 = vld [vmem:[%s5 + $0x330] sm:$0xff]
  %v2805 = vld [vmem:[%s5 + $0x338] sm:$0xf]
  %v2806 = vld [vmem:[%s5 + $0x33c] sm:$0xff]
  %v2807 = vld [vmem:[%s5 + $0x344] sm:$0xf]
  %v2808 = vld [vmem:[%s5 + $0x348] sm:$0xff]
  %v2809 = vld [vmem:[%s5 + $0x350] sm:$0xf]
  %v2810 = vld [vmem:[%s5 + $0x354] sm:$0xff]
  %v2811 = vld [vmem:[%s5 + $0x35c] sm:$0xf]
  %v2812 = vld [vmem:[%s5 + $0x360] sm:$0xff]
  %v2813 = vld [vmem:[%s5 + $0x368] sm:$0xf]
  %v2814 = vld [vmem:[%s5 + $0x36c] sm:$0xff]
  %v2815 = vld [vmem:[%s5 + $0x374] sm:$0xf]
  %v2816 = vld [vmem:[%s5 + $0x378] sm:$0xff]
  %v2817 = vld [vmem:[%s5 + $0x380] sm:$0xf]
  %v2818 = vld [vmem:[%s5 + $0x384] sm:$0xff]
  %v2819 = vld [vmem:[%s5 + $0x38c] sm:$0xf]
  %v2820 = vld [vmem:[%s5 + $0x390] sm:$0xff]
  %v2821 = vld [vmem:[%s5 + $0x398] sm:$0xf]
  %v2822 = vld [vmem:[%s5 + $0x39c] sm:$0xff]
  %v2823 = vld [vmem:[%s5 + $0x3a4] sm:$0xf]
  %v2824 = vld [vmem:[%s5 + $0x3a8] sm:$0xff]
  %v2825 = vld [vmem:[%s5 + $0x3b0] sm:$0xf]
  %v2826 = vld [vmem:[%s5 + $0x3b4] sm:$0xff]
  %v2827 = vld [vmem:[%s5 + $0x3bc] sm:$0xf]
  %v2828 = vld [vmem:[%s5 + $0x3c0] sm:$0xff]
  %v2829 = vld [vmem:[%s5 + $0x3c8] sm:$0xf]
  %v2830 = vld [vmem:[%s5 + $0x3cc] sm:$0xff]
  %v2831 = vld [vmem:[%s5 + $0x3d4] sm:$0xf]
  %v2832 = vld [vmem:[%s5 + $0x3d8] sm:$0xff]
  %v2833 = vld [vmem:[%s5 + $0x3e0] sm:$0xf]
  %v2834 = vld [vmem:[%s5 + $0x3e4] sm:$0xff]
  %v2835 = vld [vmem:[%s5 + $0x3ec] sm:$0xf]
  %v2836 = vld [vmem:[%s5 + $0x3f0] sm:$0xff]
  %v2837 = vld [vmem:[%s5 + $0x3f8] sm:$0xf]
  %v2838 = vld [vmem:[%s5 + $0x3fc] sm:$0xff]
  %v2839 = vld [vmem:[%s5 + $0x404] sm:$0xf]
  %v2840 = vld [vmem:[%s5 + $0x408] sm:$0xff]
  %v2841 = vld [vmem:[%s5 + $0x410] sm:$0xf]
  %v2842 = vld [vmem:[%s5 + $0x414] sm:$0xff]
  %v2843 = vld [vmem:[%s5 + $0x41c] sm:$0xf]
  %v2844 = vld [vmem:[%s5 + $0x420] sm:$0xff]
  %v2845 = vld [vmem:[%s5 + $0x428] sm:$0xf]
  %v2846 = vld [vmem:[%s5 + $0x42c] sm:$0xff]
  %v2847 = vld [vmem:[%s5 + $0x434] sm:$0xf]
  %v2848 = vld [vmem:[%s5 + $0x438] sm:$0xff]
  %v2849 = vld [vmem:[%s5 + $0x440] sm:$0xf]
  %v2850 = vld [vmem:[%s5 + $0x444] sm:$0xff]
  %v2851 = vld [vmem:[%s5 + $0x44c] sm:$0xf]
  %v2852 = vld [vmem:[%s5 + $0x450] sm:$0xff]
  %v2853 = vld [vmem:[%s5 + $0x458] sm:$0xf]
  %v2854 = vld [vmem:[%s5 + $0x45c] sm:$0xff]
  %v2855 = vld [vmem:[%s5 + $0x464] sm:$0xf]
  %v2856 = vld [vmem:[%s5 + $0x468] sm:$0xff]
  %v2857 = vld [vmem:[%s5 + $0x470] sm:$0xf]
  %v2858 = vld [vmem:[%s5 + $0x474] sm:$0xff]
  %v2859 = vld [vmem:[%s5 + $0x47c] sm:$0xf]
  %v2860 = vld [vmem:[%s5 + $0x480] sm:$0xff]
  %v2861 = vld [vmem:[%s5 + $0x488] sm:$0xf]
  %v2862 = vld [vmem:[%s5 + $0x48c] sm:$0xff]
  %v2863 = vld [vmem:[%s5 + $0x494] sm:$0xf]
  %v2864 = vld [vmem:[%s5 + $0x498] sm:$0xff]
  %v2865 = vld [vmem:[%s5 + $0x4a0] sm:$0xf]
  %v2866 = vld [vmem:[%s5 + $0x4a4] sm:$0xff]
  %v2867 = vld [vmem:[%s5 + $0x4ac] sm:$0xf]
  %v2868 = vld [vmem:[%s5 + $0x4b0] sm:$0xff]
  %v2869 = vld [vmem:[%s5 + $0x4b8] sm:$0xf]
  %v2870 = vld [vmem:[%s5 + $0x4bc] sm:$0xff]
  %v2871 = vld [vmem:[%s5 + $0x4c4] sm:$0xf]
  %v2872 = vld [vmem:[%s5 + $0x4c8] sm:$0xff]
  %v2873 = vld [vmem:[%s5 + $0x4d0] sm:$0xf]
  %v2874 = vld [vmem:[%s5 + $0x4d4] sm:$0xff]
  %v2875 = vld [vmem:[%s5 + $0x4dc] sm:$0xf]
  %v2876 = vld [vmem:[%s5 + $0x4e0] sm:$0xff]
  %v2877 = vld [vmem:[%s5 + $0x4e8] sm:$0xf]
  %v2878 = vld [vmem:[%s5 + $0x4ec] sm:$0xff]
  %v2879 = vld [vmem:[%s5 + $0x4f4] sm:$0xf]
  %v2880 = vld [vmem:[%s5 + $0x4f8] sm:$0xff]
  %v2881 = vld [vmem:[%s5 + $0x500] sm:$0xf]
  %v2882 = vld [vmem:[%s5 + $0x504] sm:$0xff]
  %v2883 = vld [vmem:[%s5 + $0x50c] sm:$0xf]
  %v2884 = vld [vmem:[%s5 + $0x510] sm:$0xff]
  %v2885 = vld [vmem:[%s5 + $0x518] sm:$0xf]
  %v2886 = vld [vmem:[%s5 + $0x51c] sm:$0xff]
  %v2887 = vld [vmem:[%s5 + $0x524] sm:$0xf]
  %v2888 = vld [vmem:[%s5 + $0x528] sm:$0xff]
  %v2889 = vld [vmem:[%s5 + $0x530] sm:$0xf]
  %v2890 = vld [vmem:[%s5 + $0x534] sm:$0xff]
  %v2891 = vld [vmem:[%s5 + $0x53c] sm:$0xf]
  %v2892 = vld [vmem:[%s5 + $0x540] sm:$0xff]
  %v2893 = vld [vmem:[%s5 + $0x548] sm:$0xf]
  %v2894 = vld [vmem:[%s5 + $0x54c] sm:$0xff]
  %v2895 = vld [vmem:[%s5 + $0x554] sm:$0xf]
  %v2896 = vld [vmem:[%s5 + $0x558] sm:$0xff]
  %v2897 = vld [vmem:[%s5 + $0x560] sm:$0xf]
  %v2898 = vld [vmem:[%s5 + $0x564] sm:$0xff]
  %v2899 = vld [vmem:[%s5 + $0x56c] sm:$0xf]
  %v2900 = vld [vmem:[%s5 + $0x570] sm:$0xff]
  %v2901 = vld [vmem:[%s5 + $0x578] sm:$0xf]
  %v2902 = vld [vmem:[%s5 + $0x57c] sm:$0xff]
  %v2903 = vld [vmem:[%s5 + $0x584] sm:$0xf]
  %v2904 = vld [vmem:[%s5 + $0x588] sm:$0xff]
  %v2905 = vld [vmem:[%s5 + $0x590] sm:$0xf]
  %v2906 = vld [vmem:[%s5 + $0x594] sm:$0xff]
  %v2907 = vld [vmem:[%s5 + $0x59c] sm:$0xf]
  %v2908 = vld [vmem:[%s5 + $0x5a0] sm:$0xff]
  %v2909 = vld [vmem:[%s5 + $0x5a8] sm:$0xf]
  %v2910 = vld [vmem:[%s5 + $0x5ac] sm:$0xff]
  %v2911 = vld [vmem:[%s5 + $0x5b4] sm:$0xf]
  %v2912 = vld [vmem:[%s5 + $0x5b8] sm:$0xff]
  %v2913 = vld [vmem:[%s5 + $0x5c0] sm:$0xf]
  %v2914 = vld [vmem:[%s5 + $0x5c4] sm:$0xff]
  %v2915 = vld [vmem:[%s5 + $0x5cc] sm:$0xf]
  %v2916 = vld [vmem:[%s5 + $0x5d0] sm:$0xff]
  %v2917 = vld [vmem:[%s5 + $0x5d8] sm:$0xf]
  %v2918 = vld [vmem:[%s5 + $0x5dc] sm:$0xff]
  %v2919 = vld [vmem:[%s5 + $0x5e4] sm:$0xf]
  %v2920 = vld [vmem:[%s5 + $0x5e8] sm:$0xff]
  %v2921 = vld [vmem:[%s5 + $0x5f0] sm:$0xf]
  %v2922 = vld [vmem:[%s5 + $0x5f4] sm:$0xff]
  %v2923 = vld [vmem:[%s5 + $0x5fc] sm:$0xf]
  %v2924 = vld [vmem:[%s5 + $0x600] sm:$0xff]
  %v2925 = vld [vmem:[%s5 + $0x608] sm:$0xf]
  %v2926 = vld [vmem:[%s5 + $0x60c] sm:$0xff]
  %v2927 = vld [vmem:[%s5 + $0x614] sm:$0xf]
  %v2928 = vld [vmem:[%s5 + $0x618] sm:$0xff]
  %v2929 = vld [vmem:[%s5 + $0x620] sm:$0xf]
  %v2930 = vld [vmem:[%s5 + $0x624] sm:$0xff]
  %v2931 = vld [vmem:[%s5 + $0x62c] sm:$0xf]
  %v2932 = vld [vmem:[%s5 + $0x630] sm:$0xff]
  %v2933 = vld [vmem:[%s5 + $0x638] sm:$0xf]
  %v2934 = vld [vmem:[%s5 + $0x63c] sm:$0xff]
  %v2935 = vld [vmem:[%s5 + $0x644] sm:$0xf]
  %v2936 = vld [vmem:[%s5 + $0x648] sm:$0xff]
  %v2937 = vld [vmem:[%s5 + $0x650] sm:$0xf]
  %v2938 = vld [vmem:[%s5 + $0x654] sm:$0xff]
  %v2939 = vld [vmem:[%s5 + $0x65c] sm:$0xf]
  %v2940 = vld [vmem:[%s5 + $0x660] sm:$0xff]
  %v2941 = vld [vmem:[%s5 + $0x668] sm:$0xf]
  %v2942 = vld [vmem:[%s5 + $0x66c] sm:$0xff]
  %v2943 = vld [vmem:[%s5 + $0x674] sm:$0xf]
  %v2944 = vld [vmem:[%s5 + $0x678] sm:$0xff]
  %v2945 = vld [vmem:[%s5 + $0x680] sm:$0xf]
  %v2946 = vld [vmem:[%s5 + $0x684] sm:$0xff]
  %v2947 = vld [vmem:[%s5 + $0x68c] sm:$0xf]
  %v2948 = vld [vmem:[%s5 + $0x690] sm:$0xff]
  %v2949 = vld [vmem:[%s5 + $0x698] sm:$0xf]
  %v2950 = vld [vmem:[%s5 + $0x69c] sm:$0xff]
  %v2951 = vld [vmem:[%s5 + $0x6a4] sm:$0xf]
  %v2952 = vld [vmem:[%s5 + $0x6a8] sm:$0xff]
  %v2953 = vld [vmem:[%s5 + $0x6b0] sm:$0xf]
  %v2954 = vld [vmem:[%s5 + $0x6b4] sm:$0xff]
  %v2955 = vld [vmem:[%s5 + $0x6bc] sm:$0xf]
  %v2956 = vld [vmem:[%s5 + $0x6c0] sm:$0xff]
  %v2957 = vld [vmem:[%s5 + $0x6c8] sm:$0xf]
  %v2958 = vld [vmem:[%s5 + $0x6cc] sm:$0xff]
  %v2959 = vld [vmem:[%s5 + $0x6d4] sm:$0xf]
  %v2960 = vld [vmem:[%s5 + $0x6d8] sm:$0xff]
  %v2961 = vld [vmem:[%s5 + $0x6e0] sm:$0xf]
  %v2962 = vld [vmem:[%s5 + $0x6e4] sm:$0xff]
  %v2963 = vld [vmem:[%s5 + $0x6ec] sm:$0xf]
  %v2964 = vld [vmem:[%s5 + $0x6f0] sm:$0xff]
  %v2965 = vld [vmem:[%s5 + $0x6f8] sm:$0xf]
  %v2966 = vld [vmem:[%s5 + $0x6fc] sm:$0xff]
  %v2967 = vld [vmem:[%s5 + $0x704] sm:$0xf]
  %v2968 = vld [vmem:[%s5 + $0x708] sm:$0xff]
  %v2969 = vld [vmem:[%s5 + $0x710] sm:$0xf]
  %v2970 = vld [vmem:[%s5 + $0x714] sm:$0xff]
  %v2971 = vld [vmem:[%s5 + $0x71c] sm:$0xf]
  %v2972 = vld [vmem:[%s5 + $0x720] sm:$0xff]
  %v2973 = vld [vmem:[%s5 + $0x728] sm:$0xf]
  %v2974 = vld [vmem:[%s5 + $0x72c] sm:$0xff]
  %v2975 = vld [vmem:[%s5 + $0x734] sm:$0xf]
  %v2976 = vld [vmem:[%s5 + $0x738] sm:$0xff]
  %v2977 = vld [vmem:[%s5 + $0x740] sm:$0xf]
  %v2978 = vld [vmem:[%s5 + $0x744] sm:$0xff]
  %v2979 = vld [vmem:[%s5 + $0x74c] sm:$0xf]
  %v2980 = vld [vmem:[%s5 + $0x750] sm:$0xff]
  %v2981 = vld [vmem:[%s5 + $0x758] sm:$0xf]
  %v2982 = vld [vmem:[%s5 + $0x75c] sm:$0xff]
  %v2983 = vld [vmem:[%s5 + $0x764] sm:$0xf]
  %v2984 = vld [vmem:[%s5 + $0x768] sm:$0xff]
  %v2985 = vld [vmem:[%s5 + $0x770] sm:$0xf]
  %v2986 = vld [vmem:[%s5 + $0x774] sm:$0xff]
  %v2987 = vld [vmem:[%s5 + $0x77c] sm:$0xf]
  %v2988 = vld [vmem:[%s5 + $0x780] sm:$0xff]
  %v2989 = vld [vmem:[%s5 + $0x788] sm:$0xf]
  %v2990 = vld [vmem:[%s5 + $0x78c] sm:$0xff]
  %v2991 = vld [vmem:[%s5 + $0x794] sm:$0xf]
  %v2992 = vld [vmem:[%s5 + $0x798] sm:$0xff]
  %v2993 = vld [vmem:[%s5 + $0x7a0] sm:$0xf]
  %v2994 = vld [vmem:[%s5 + $0x7a4] sm:$0xff]
  %v2995 = vld [vmem:[%s5 + $0x7ac] sm:$0xf]
  %v2996 = vld [vmem:[%s5 + $0x7b0] sm:$0xff]
  %v2997 = vld [vmem:[%s5 + $0x7b8] sm:$0xf]
  %v2998 = vld [vmem:[%s5 + $0x7bc] sm:$0xff]
  %v2999 = vld [vmem:[%s5 + $0x7c4] sm:$0xf]
  %v3000 = vld [vmem:[%s5 + $0x7c8] sm:$0xff]
  %v3001 = vld [vmem:[%s5 + $0x7d0] sm:$0xf]
  %v3002 = vld [vmem:[%s5 + $0x7d4] sm:$0xff]
  %v3003 = vld [vmem:[%s5 + $0x7dc] sm:$0xf]
  %v3004 = vld [vmem:[%s5 + $0x7e0] sm:$0xff]
  %v3005 = vld [vmem:[%s5 + $0x7e8] sm:$0xf]
  %v3006 = vld [vmem:[%s5 + $0x7ec] sm:$0xff]
  %v3007 = vld [vmem:[%s5 + $0x7f4] sm:$0xf]
  %v3008 = vld [vmem:[%s5 + $0x7f8] sm:$0xff]
  %v3009 = vld [vmem:[%s5 + $0x800] sm:$0xf]
  %v3010 = vld [vmem:[%s5 + $0x804] sm:$0xff]
  %v3011 = vld [vmem:[%s5 + $0x80c] sm:$0xf]
  %v3012 = vld [vmem:[%s5 + $0x810] sm:$0xff]
  %v3013 = vld [vmem:[%s5 + $0x818] sm:$0xf]
  %v3014 = vld [vmem:[%s5 + $0x81c] sm:$0xff]
  %v3015 = vld [vmem:[%s5 + $0x824] sm:$0xf]
  %v3016 = vld [vmem:[%s5 + $0x828] sm:$0xff]
  %v3017 = vld [vmem:[%s5 + $0x830] sm:$0xf]
  %v3018 = vld [vmem:[%s5 + $0x834] sm:$0xff]
  %v3019 = vld [vmem:[%s5 + $0x83c] sm:$0xf]
  %v3020 = vld [vmem:[%s5 + $0x840] sm:$0xff]
  %v3021 = vld [vmem:[%s5 + $0x848] sm:$0xf]
  %v3022 = vld [vmem:[%s5 + $0x84c] sm:$0xff]
  %v3023 = vld [vmem:[%s5 + $0x854] sm:$0xf]
  %v3024 = vld [vmem:[%s5 + $0x858] sm:$0xff]
  %v3025 = vld [vmem:[%s5 + $0x860] sm:$0xf]
  %v3026 = vld [vmem:[%s5 + $0x864] sm:$0xff]
  %v3027 = vld [vmem:[%s5 + $0x86c] sm:$0xf]
  %v3028 = vld [vmem:[%s5 + $0x870] sm:$0xff]
  %v3029 = vld [vmem:[%s5 + $0x878] sm:$0xf]
  %v3030 = vld [vmem:[%s5 + $0x87c] sm:$0xff]
  %v3031 = vld [vmem:[%s5 + $0x884] sm:$0xf]
  %v3032 = vld [vmem:[%s5 + $0x888] sm:$0xff]
  %v3033 = vld [vmem:[%s5 + $0x890] sm:$0xf]
  %v3034 = vld [vmem:[%s5 + $0x894] sm:$0xff]
  %v3035 = vld [vmem:[%s5 + $0x89c] sm:$0xf]
  %v3036 = vld [vmem:[%s5 + $0x8a0] sm:$0xff]
  %v3037 = vld [vmem:[%s5 + $0x8a8] sm:$0xf]
  %v3038 = vld [vmem:[%s5 + $0x8ac] sm:$0xff]
  %v3039 = vld [vmem:[%s5 + $0x8b4] sm:$0xf]
  %v3040 = vld [vmem:[%s5 + $0x8b8] sm:$0xff]
  %v3041 = vld [vmem:[%s5 + $0x8c0] sm:$0xf]
  %v3042 = vld [vmem:[%s5 + $0x8c4] sm:$0xff]
  %v3043 = vld [vmem:[%s5 + $0x8cc] sm:$0xf]
  %v3044 = vld [vmem:[%s5 + $0x8d0] sm:$0xff]
  %v3045 = vld [vmem:[%s5 + $0x8d8] sm:$0xf]
  %v3046 = vld [vmem:[%s5 + $0x8dc] sm:$0xff]
  %v3047 = vld [vmem:[%s5 + $0x8e4] sm:$0xf]
  %v3048 = vld [vmem:[%s5 + $0x8e8] sm:$0xff]
  %v3049 = vld [vmem:[%s5 + $0x8f0] sm:$0xf]
  %v3050 = vld [vmem:[%s5 + $0x8f4] sm:$0xff]
  %v3051 = vld [vmem:[%s5 + $0x8fc] sm:$0xf]
  %v3052 = vld [vmem:[%s6] sm:$0x7]
  %v3054 = vlaneseq
  %v3055 = vshrl.u32 %v3054, 7
  %v3056 = vsub.s32 0, %v3055
  %v3057 = vrot.slane %v3052, %v3056
  %v3058 = vlaneseq
  %v3059 = vshrl.u32 %v3058, 7
  %v3060 = vsub.s32 1, %v3059
  %v3061 = vrot.slane %v3052, %v3060
  %v3062 = vlaneseq
  %v3063 = vshrl.u32 %v3062, 7
  %v3064 = vsub.s32 2, %v3063
  %v3065 = vrot.slane %v3052, %v3064
  %v3453 = vunpack.c.l.b16 %v2668
  %v3454 = vunpack.c.h.b16 %v2668
  %v3455 = vunpack.c.l.b16 %v2669
  %v3456 = vunpack.c.l.b16 %v2670
  %v3457 = vunpack.c.h.b16 %v2670
  %v3458 = vunpack.c.l.b16 %v2671
  %v3459 = vunpack.c.l.b16 %v2672
  %v3460 = vunpack.c.h.b16 %v2672
  %v3461 = vunpack.c.l.b16 %v2673
  %v3462 = vunpack.c.l.b16 %v2674
  %v3463 = vunpack.c.h.b16 %v2674
  %v3464 = vunpack.c.l.b16 %v2675
  %v3465 = vunpack.c.l.b16 %v2676
  %v3466 = vunpack.c.h.b16 %v2676
  %v3467 = vunpack.c.l.b16 %v2677
  %v3468 = vunpack.c.l.b16 %v2678
  %v3469 = vunpack.c.h.b16 %v2678
  %v3470 = vunpack.c.l.b16 %v2679
  %v3471 = vunpack.c.l.b16 %v2680
  %v3472 = vunpack.c.h.b16 %v2680
  %v3473 = vunpack.c.l.b16 %v2681
  %v3474 = vunpack.c.l.b16 %v2682
  %v3475 = vunpack.c.h.b16 %v2682
  %v3476 = vunpack.c.l.b16 %v2683
  %v3477 = vunpack.c.l.b16 %v2684
  %v3478 = vunpack.c.h.b16 %v2684
  %v3479 = vunpack.c.l.b16 %v2685
  %v3480 = vunpack.c.l.b16 %v2686
  %v3481 = vunpack.c.h.b16 %v2686
  %v3482 = vunpack.c.l.b16 %v2687
  %v3483 = vunpack.c.l.b16 %v2688
  %v3484 = vunpack.c.h.b16 %v2688
  %v3485 = vunpack.c.l.b16 %v2689
  %v3486 = vunpack.c.l.b16 %v2690
  %v3487 = vunpack.c.h.b16 %v2690
  %v3488 = vunpack.c.l.b16 %v2691
  %v3489 = vunpack.c.l.b16 %v2692
  %v3490 = vunpack.c.h.b16 %v2692
  %v3491 = vunpack.c.l.b16 %v2693
  %v3492 = vunpack.c.l.b16 %v2694
  %v3493 = vunpack.c.h.b16 %v2694
  %v3494 = vunpack.c.l.b16 %v2695
  %v3495 = vunpack.c.l.b16 %v2696
  %v3496 = vunpack.c.h.b16 %v2696
  %v3497 = vunpack.c.l.b16 %v2697
  %v3498 = vunpack.c.l.b16 %v2698
  %v3499 = vunpack.c.h.b16 %v2698
  %v3500 = vunpack.c.l.b16 %v2699
  %v3501 = vunpack.c.l.b16 %v2700
  %v3502 = vunpack.c.h.b16 %v2700
  %v3503 = vunpack.c.l.b16 %v2701
  %v3504 = vunpack.c.l.b16 %v2702
  %v3505 = vunpack.c.h.b16 %v2702
  %v3506 = vunpack.c.l.b16 %v2703
  %v3507 = vunpack.c.l.b16 %v2704
  %v3508 = vunpack.c.h.b16 %v2704
  %v3509 = vunpack.c.l.b16 %v2705
  %v3510 = vunpack.c.l.b16 %v2706
  %v3511 = vunpack.c.h.b16 %v2706
  %v3512 = vunpack.c.l.b16 %v2707
  %v3513 = vunpack.c.l.b16 %v2708
  %v3514 = vunpack.c.h.b16 %v2708
  %v3515 = vunpack.c.l.b16 %v2709
  %v3516 = vunpack.c.l.b16 %v2710
  %v3517 = vunpack.c.h.b16 %v2710
  %v3518 = vunpack.c.l.b16 %v2711
  %v3519 = vunpack.c.l.b16 %v2712
  %v3520 = vunpack.c.h.b16 %v2712
  %v3521 = vunpack.c.l.b16 %v2713
  %v3522 = vunpack.c.l.b16 %v2714
  %v3523 = vunpack.c.h.b16 %v2714
  %v3524 = vunpack.c.l.b16 %v2715
  %v3525 = vunpack.c.l.b16 %v2716
  %v3526 = vunpack.c.h.b16 %v2716
  %v3527 = vunpack.c.l.b16 %v2717
  %v3528 = vunpack.c.l.b16 %v2718
  %v3529 = vunpack.c.h.b16 %v2718
  %v3530 = vunpack.c.l.b16 %v2719
  %v3531 = vunpack.c.l.b16 %v2720
  %v3532 = vunpack.c.h.b16 %v2720
  %v3533 = vunpack.c.l.b16 %v2721
  %v3534 = vunpack.c.l.b16 %v2722
  %v3535 = vunpack.c.h.b16 %v2722
  %v3536 = vunpack.c.l.b16 %v2723
  %v3537 = vunpack.c.l.b16 %v2724
  %v3538 = vunpack.c.h.b16 %v2724
  %v3539 = vunpack.c.l.b16 %v2725
  %v3540 = vunpack.c.l.b16 %v2726
  %v3541 = vunpack.c.h.b16 %v2726
  %v3542 = vunpack.c.l.b16 %v2727
  %v3543 = vunpack.c.l.b16 %v2728
  %v3544 = vunpack.c.h.b16 %v2728
  %v3545 = vunpack.c.l.b16 %v2729
  %v3546 = vunpack.c.l.b16 %v2730
  %v3547 = vunpack.c.h.b16 %v2730
  %v3548 = vunpack.c.l.b16 %v2731
  %v3549 = vunpack.c.l.b16 %v2732
  %v3550 = vunpack.c.h.b16 %v2732
  %v3551 = vunpack.c.l.b16 %v2733
  %v3552 = vunpack.c.l.b16 %v2734
  %v3553 = vunpack.c.h.b16 %v2734
  %v3554 = vunpack.c.l.b16 %v2735
  %v3555 = vunpack.c.l.b16 %v2736
  %v3556 = vunpack.c.h.b16 %v2736
  %v3557 = vunpack.c.l.b16 %v2737
  %v3558 = vunpack.c.l.b16 %v2738
  %v3559 = vunpack.c.h.b16 %v2738
  %v3560 = vunpack.c.l.b16 %v2739
  %v3561 = vunpack.c.l.b16 %v2740
  %v3562 = vunpack.c.h.b16 %v2740
  %v3563 = vunpack.c.l.b16 %v2741
  %v3564 = vunpack.c.l.b16 %v2742
  %v3565 = vunpack.c.h.b16 %v2742
  %v3566 = vunpack.c.l.b16 %v2743
  %v3567 = vunpack.c.l.b16 %v2744
  %v3568 = vunpack.c.h.b16 %v2744
  %v3569 = vunpack.c.l.b16 %v2745
  %v3570 = vunpack.c.l.b16 %v2746
  %v3571 = vunpack.c.h.b16 %v2746
  %v3572 = vunpack.c.l.b16 %v2747
  %v3573 = vunpack.c.l.b16 %v2748
  %v3574 = vunpack.c.h.b16 %v2748
  %v3575 = vunpack.c.l.b16 %v2749
  %v3576 = vunpack.c.l.b16 %v2750
  %v3577 = vunpack.c.h.b16 %v2750
  %v3578 = vunpack.c.l.b16 %v2751
  %v3579 = vunpack.c.l.b16 %v2752
  %v3580 = vunpack.c.h.b16 %v2752
  %v3581 = vunpack.c.l.b16 %v2753
  %v3582 = vunpack.c.l.b16 %v2754
  %v3583 = vunpack.c.h.b16 %v2754
  %v3584 = vunpack.c.l.b16 %v2755
  %v3585 = vunpack.c.l.b16 %v2756
  %v3586 = vunpack.c.h.b16 %v2756
  %v3587 = vunpack.c.l.b16 %v2757
  %v3588 = vunpack.c.l.b16 %v2758
  %v3589 = vunpack.c.h.b16 %v2758
  %v3590 = vunpack.c.l.b16 %v2759
  %v3591 = vunpack.c.l.b16 %v2760
  %v3592 = vunpack.c.h.b16 %v2760
  %v3593 = vunpack.c.l.b16 %v2761
  %v3594 = vunpack.c.l.b16 %v2762
  %v3595 = vunpack.c.h.b16 %v2762
  %v3596 = vunpack.c.l.b16 %v2763
  %v3597 = vunpack.c.l.b16 %v2764
  %v3598 = vunpack.c.h.b16 %v2764
  %v3599 = vunpack.c.l.b16 %v2765
  %v3600 = vunpack.c.l.b16 %v2766
  %v3601 = vunpack.c.h.b16 %v2766
  %v3602 = vunpack.c.l.b16 %v2767
  %v3603 = vunpack.c.l.b16 %v2768
  %v3604 = vunpack.c.h.b16 %v2768
  %v3605 = vunpack.c.l.b16 %v2769
  %v3606 = vunpack.c.l.b16 %v2770
  %v3607 = vunpack.c.h.b16 %v2770
  %v3608 = vunpack.c.l.b16 %v2771
  %v3609 = vunpack.c.l.b16 %v2772
  %v3610 = vunpack.c.h.b16 %v2772
  %v3611 = vunpack.c.l.b16 %v2773
  %v3612 = vunpack.c.l.b16 %v2774
  %v3613 = vunpack.c.h.b16 %v2774
  %v3614 = vunpack.c.l.b16 %v2775
  %v3615 = vunpack.c.l.b16 %v2776
  %v3616 = vunpack.c.h.b16 %v2776
  %v3617 = vunpack.c.l.b16 %v2777
  %v3618 = vunpack.c.l.b16 %v2778
  %v3619 = vunpack.c.h.b16 %v2778
  %v3620 = vunpack.c.l.b16 %v2779
  %v3621 = vunpack.c.l.b16 %v2780
  %v3622 = vunpack.c.h.b16 %v2780
  %v3623 = vunpack.c.l.b16 %v2781
  %v3624 = vunpack.c.l.b16 %v2782
  %v3625 = vunpack.c.h.b16 %v2782
  %v3626 = vunpack.c.l.b16 %v2783
  %v3627 = vunpack.c.l.b16 %v2784
  %v3628 = vunpack.c.h.b16 %v2784
  %v3629 = vunpack.c.l.b16 %v2785
  %v3630 = vunpack.c.l.b16 %v2786
  %v3631 = vunpack.c.h.b16 %v2786
  %v3632 = vunpack.c.l.b16 %v2787
  %v3633 = vunpack.c.l.b16 %v2788
  %v3634 = vunpack.c.h.b16 %v2788
  %v3635 = vunpack.c.l.b16 %v2789
  %v3636 = vunpack.c.l.b16 %v2790
  %v3637 = vunpack.c.h.b16 %v2790
  %v3638 = vunpack.c.l.b16 %v2791
  %v3639 = vunpack.c.l.b16 %v2792
  %v3640 = vunpack.c.h.b16 %v2792
  %v3641 = vunpack.c.l.b16 %v2793
  %v3642 = vunpack.c.l.b16 %v2794
  %v3643 = vunpack.c.h.b16 %v2794
  %v3644 = vunpack.c.l.b16 %v2795
  %v3645 = vunpack.c.l.b16 %v2796
  %v3646 = vunpack.c.h.b16 %v2796
  %v3647 = vunpack.c.l.b16 %v2797
  %v3648 = vunpack.c.l.b16 %v2798
  %v3649 = vunpack.c.h.b16 %v2798
  %v3650 = vunpack.c.l.b16 %v2799
  %v3651 = vunpack.c.l.b16 %v2800
  %v3652 = vunpack.c.h.b16 %v2800
  %v3653 = vunpack.c.l.b16 %v2801
  %v3654 = vunpack.c.l.b16 %v2802
  %v3655 = vunpack.c.h.b16 %v2802
  %v3656 = vunpack.c.l.b16 %v2803
  %v3657 = vunpack.c.l.b16 %v2804
  %v3658 = vunpack.c.h.b16 %v2804
  %v3659 = vunpack.c.l.b16 %v2805
  %v3660 = vunpack.c.l.b16 %v2806
  %v3661 = vunpack.c.h.b16 %v2806
  %v3662 = vunpack.c.l.b16 %v2807
  %v3663 = vunpack.c.l.b16 %v2808
  %v3664 = vunpack.c.h.b16 %v2808
  %v3665 = vunpack.c.l.b16 %v2809
  %v3666 = vunpack.c.l.b16 %v2810
  %v3667 = vunpack.c.h.b16 %v2810
  %v3668 = vunpack.c.l.b16 %v2811
  %v3669 = vunpack.c.l.b16 %v2812
  %v3670 = vunpack.c.h.b16 %v2812
  %v3671 = vunpack.c.l.b16 %v2813
  %v3672 = vunpack.c.l.b16 %v2814
  %v3673 = vunpack.c.h.b16 %v2814
  %v3674 = vunpack.c.l.b16 %v2815
  %v3675 = vunpack.c.l.b16 %v2816
  %v3676 = vunpack.c.h.b16 %v2816
  %v3677 = vunpack.c.l.b16 %v2817
  %v3678 = vunpack.c.l.b16 %v2818
  %v3679 = vunpack.c.h.b16 %v2818
  %v3680 = vunpack.c.l.b16 %v2819
  %v3681 = vunpack.c.l.b16 %v2820
  %v3682 = vunpack.c.h.b16 %v2820
  %v3683 = vunpack.c.l.b16 %v2821
  %v3684 = vunpack.c.l.b16 %v2822
  %v3685 = vunpack.c.h.b16 %v2822
  %v3686 = vunpack.c.l.b16 %v2823
  %v3687 = vunpack.c.l.b16 %v2824
  %v3688 = vunpack.c.h.b16 %v2824
  %v3689 = vunpack.c.l.b16 %v2825
  %v3690 = vunpack.c.l.b16 %v2826
  %v3691 = vunpack.c.h.b16 %v2826
  %v3692 = vunpack.c.l.b16 %v2827
  %v3693 = vunpack.c.l.b16 %v2828
  %v3694 = vunpack.c.h.b16 %v2828
  %v3695 = vunpack.c.l.b16 %v2829
  %v3696 = vunpack.c.l.b16 %v2830
  %v3697 = vunpack.c.h.b16 %v2830
  %v3698 = vunpack.c.l.b16 %v2831
  %v3699 = vunpack.c.l.b16 %v2832
  %v3700 = vunpack.c.h.b16 %v2832
  %v3701 = vunpack.c.l.b16 %v2833
  %v3702 = vunpack.c.l.b16 %v2834
  %v3703 = vunpack.c.h.b16 %v2834
  %v3704 = vunpack.c.l.b16 %v2835
  %v3705 = vunpack.c.l.b16 %v2836
  %v3706 = vunpack.c.h.b16 %v2836
  %v3707 = vunpack.c.l.b16 %v2837
  %v3708 = vunpack.c.l.b16 %v2838
  %v3709 = vunpack.c.h.b16 %v2838
  %v3710 = vunpack.c.l.b16 %v2839
  %v3711 = vunpack.c.l.b16 %v2840
  %v3712 = vunpack.c.h.b16 %v2840
  %v3713 = vunpack.c.l.b16 %v2841
  %v3714 = vunpack.c.l.b16 %v2842
  %v3715 = vunpack.c.h.b16 %v2842
  %v3716 = vunpack.c.l.b16 %v2843
  %v3717 = vunpack.c.l.b16 %v2844
  %v3718 = vunpack.c.h.b16 %v2844
  %v3719 = vunpack.c.l.b16 %v2845
  %v3720 = vunpack.c.l.b16 %v2846
  %v3721 = vunpack.c.h.b16 %v2846
  %v3722 = vunpack.c.l.b16 %v2847
  %v3723 = vunpack.c.l.b16 %v2848
  %v3724 = vunpack.c.h.b16 %v2848
  %v3725 = vunpack.c.l.b16 %v2849
  %v3726 = vunpack.c.l.b16 %v2850
  %v3727 = vunpack.c.h.b16 %v2850
  %v3728 = vunpack.c.l.b16 %v2851
  %v3729 = vunpack.c.l.b16 %v2852
  %v3730 = vunpack.c.h.b16 %v2852
  %v3731 = vunpack.c.l.b16 %v2853
  %v3732 = vunpack.c.l.b16 %v2854
  %v3733 = vunpack.c.h.b16 %v2854
  %v3734 = vunpack.c.l.b16 %v2855
  %v3735 = vunpack.c.l.b16 %v2856
  %v3736 = vunpack.c.h.b16 %v2856
  %v3737 = vunpack.c.l.b16 %v2857
  %v3738 = vunpack.c.l.b16 %v2858
  %v3739 = vunpack.c.h.b16 %v2858
  %v3740 = vunpack.c.l.b16 %v2859
  %v3741 = vunpack.c.l.b16 %v2860
  %v3742 = vunpack.c.h.b16 %v2860
  %v3743 = vunpack.c.l.b16 %v2861
  %v3744 = vunpack.c.l.b16 %v2862
  %v3745 = vunpack.c.h.b16 %v2862
  %v3746 = vunpack.c.l.b16 %v2863
  %v3747 = vunpack.c.l.b16 %v2864
  %v3748 = vunpack.c.h.b16 %v2864
  %v3749 = vunpack.c.l.b16 %v2865
  %v3750 = vunpack.c.l.b16 %v2866
  %v3751 = vunpack.c.h.b16 %v2866
  %v3752 = vunpack.c.l.b16 %v2867
  %v3753 = vunpack.c.l.b16 %v2868
  %v3754 = vunpack.c.h.b16 %v2868
  %v3755 = vunpack.c.l.b16 %v2869
  %v3756 = vunpack.c.l.b16 %v2870
  %v3757 = vunpack.c.h.b16 %v2870
  %v3758 = vunpack.c.l.b16 %v2871
  %v3759 = vunpack.c.l.b16 %v2872
  %v3760 = vunpack.c.h.b16 %v2872
  %v3761 = vunpack.c.l.b16 %v2873
  %v3762 = vunpack.c.l.b16 %v2874
  %v3763 = vunpack.c.h.b16 %v2874
  %v3764 = vunpack.c.l.b16 %v2875
  %v3765 = vunpack.c.l.b16 %v2876
  %v3766 = vunpack.c.h.b16 %v2876
  %v3767 = vunpack.c.l.b16 %v2877
  %v3768 = vunpack.c.l.b16 %v2878
  %v3769 = vunpack.c.h.b16 %v2878
  %v3770 = vunpack.c.l.b16 %v2879
  %v3771 = vunpack.c.l.b16 %v2880
  %v3772 = vunpack.c.h.b16 %v2880
  %v3773 = vunpack.c.l.b16 %v2881
  %v3774 = vunpack.c.l.b16 %v2882
  %v3775 = vunpack.c.h.b16 %v2882
  %v3776 = vunpack.c.l.b16 %v2883
  %v3777 = vunpack.c.l.b16 %v2884
  %v3778 = vunpack.c.h.b16 %v2884
  %v3779 = vunpack.c.l.b16 %v2885
  %v3780 = vunpack.c.l.b16 %v2886
  %v3781 = vunpack.c.h.b16 %v2886
  %v3782 = vunpack.c.l.b16 %v2887
  %v3783 = vunpack.c.l.b16 %v2888
  %v3784 = vunpack.c.h.b16 %v2888
  %v3785 = vunpack.c.l.b16 %v2889
  %v3786 = vunpack.c.l.b16 %v2890
  %v3787 = vunpack.c.h.b16 %v2890
  %v3788 = vunpack.c.l.b16 %v2891
  %v3789 = vunpack.c.l.b16 %v2892
  %v3790 = vunpack.c.h.b16 %v2892
  %v3791 = vunpack.c.l.b16 %v2893
  %v3792 = vunpack.c.l.b16 %v2894
  %v3793 = vunpack.c.h.b16 %v2894
  %v3794 = vunpack.c.l.b16 %v2895
  %v3795 = vunpack.c.l.b16 %v2896
  %v3796 = vunpack.c.h.b16 %v2896
  %v3797 = vunpack.c.l.b16 %v2897
  %v3798 = vunpack.c.l.b16 %v2898
  %v3799 = vunpack.c.h.b16 %v2898
  %v3800 = vunpack.c.l.b16 %v2899
  %v3801 = vunpack.c.l.b16 %v2900
  %v3802 = vunpack.c.h.b16 %v2900
  %v3803 = vunpack.c.l.b16 %v2901
  %v3804 = vunpack.c.l.b16 %v2902
  %v3805 = vunpack.c.h.b16 %v2902
  %v3806 = vunpack.c.l.b16 %v2903
  %v3807 = vunpack.c.l.b16 %v2904
  %v3808 = vunpack.c.h.b16 %v2904
  %v3809 = vunpack.c.l.b16 %v2905
  %v3810 = vunpack.c.l.b16 %v2906
  %v3811 = vunpack.c.h.b16 %v2906
  %v3812 = vunpack.c.l.b16 %v2907
  %v3813 = vunpack.c.l.b16 %v2908
  %v3814 = vunpack.c.h.b16 %v2908
  %v3815 = vunpack.c.l.b16 %v2909
  %v3816 = vunpack.c.l.b16 %v2910
  %v3817 = vunpack.c.h.b16 %v2910
  %v3818 = vunpack.c.l.b16 %v2911
  %v3819 = vunpack.c.l.b16 %v2912
  %v3820 = vunpack.c.h.b16 %v2912
  %v3821 = vunpack.c.l.b16 %v2913
  %v3822 = vunpack.c.l.b16 %v2914
  %v3823 = vunpack.c.h.b16 %v2914
  %v3824 = vunpack.c.l.b16 %v2915
  %v3825 = vunpack.c.l.b16 %v2916
  %v3826 = vunpack.c.h.b16 %v2916
  %v3827 = vunpack.c.l.b16 %v2917
  %v3828 = vunpack.c.l.b16 %v2918
  %v3829 = vunpack.c.h.b16 %v2918
  %v3830 = vunpack.c.l.b16 %v2919
  %v3831 = vunpack.c.l.b16 %v2920
  %v3832 = vunpack.c.h.b16 %v2920
  %v3833 = vunpack.c.l.b16 %v2921
  %v3834 = vunpack.c.l.b16 %v2922
  %v3835 = vunpack.c.h.b16 %v2922
  %v3836 = vunpack.c.l.b16 %v2923
  %v3837 = vunpack.c.l.b16 %v2924
  %v3838 = vunpack.c.h.b16 %v2924
  %v3839 = vunpack.c.l.b16 %v2925
  %v3840 = vunpack.c.l.b16 %v2926
  %v3841 = vunpack.c.h.b16 %v2926
  %v3842 = vunpack.c.l.b16 %v2927
  %v3843 = vunpack.c.l.b16 %v2928
  %v3844 = vunpack.c.h.b16 %v2928
  %v3845 = vunpack.c.l.b16 %v2929
  %v3846 = vunpack.c.l.b16 %v2930
  %v3847 = vunpack.c.h.b16 %v2930
  %v3848 = vunpack.c.l.b16 %v2931
  %v3849 = vunpack.c.l.b16 %v2932
  %v3850 = vunpack.c.h.b16 %v2932
  %v3851 = vunpack.c.l.b16 %v2933
  %v3852 = vunpack.c.l.b16 %v2934
  %v3853 = vunpack.c.h.b16 %v2934
  %v3854 = vunpack.c.l.b16 %v2935
  %v3855 = vunpack.c.l.b16 %v2936
  %v3856 = vunpack.c.h.b16 %v2936
  %v3857 = vunpack.c.l.b16 %v2937
  %v3858 = vunpack.c.l.b16 %v2938
  %v3859 = vunpack.c.h.b16 %v2938
  %v3860 = vunpack.c.l.b16 %v2939
  %v3861 = vunpack.c.l.b16 %v2940
  %v3862 = vunpack.c.h.b16 %v2940
  %v3863 = vunpack.c.l.b16 %v2941
  %v3864 = vunpack.c.l.b16 %v2942
  %v3865 = vunpack.c.h.b16 %v2942
  %v3866 = vunpack.c.l.b16 %v2943
  %v3867 = vunpack.c.l.b16 %v2944
  %v3868 = vunpack.c.h.b16 %v2944
  %v3869 = vunpack.c.l.b16 %v2945
  %v3870 = vunpack.c.l.b16 %v2946
  %v3871 = vunpack.c.h.b16 %v2946
  %v3872 = vunpack.c.l.b16 %v2947
  %v3873 = vunpack.c.l.b16 %v2948
  %v3874 = vunpack.c.h.b16 %v2948
  %v3875 = vunpack.c.l.b16 %v2949
  %v3876 = vunpack.c.l.b16 %v2950
  %v3877 = vunpack.c.h.b16 %v2950
  %v3878 = vunpack.c.l.b16 %v2951
  %v3879 = vunpack.c.l.b16 %v2952
  %v3880 = vunpack.c.h.b16 %v2952
  %v3881 = vunpack.c.l.b16 %v2953
  %v3882 = vunpack.c.l.b16 %v2954
  %v3883 = vunpack.c.h.b16 %v2954
  %v3884 = vunpack.c.l.b16 %v2955
  %v3885 = vunpack.c.l.b16 %v2956
  %v3886 = vunpack.c.h.b16 %v2956
  %v3887 = vunpack.c.l.b16 %v2957
  %v3888 = vunpack.c.l.b16 %v2958
  %v3889 = vunpack.c.h.b16 %v2958
  %v3890 = vunpack.c.l.b16 %v2959
  %v3891 = vunpack.c.l.b16 %v2960
  %v3892 = vunpack.c.h.b16 %v2960
  %v3893 = vunpack.c.l.b16 %v2961
  %v3894 = vunpack.c.l.b16 %v2962
  %v3895 = vunpack.c.h.b16 %v2962
  %v3896 = vunpack.c.l.b16 %v2963
  %v3897 = vunpack.c.l.b16 %v2964
  %v3898 = vunpack.c.h.b16 %v2964
  %v3899 = vunpack.c.l.b16 %v2965
  %v3900 = vunpack.c.l.b16 %v2966
  %v3901 = vunpack.c.h.b16 %v2966
  %v3902 = vunpack.c.l.b16 %v2967
  %v3903 = vunpack.c.l.b16 %v2968
  %v3904 = vunpack.c.h.b16 %v2968
  %v3905 = vunpack.c.l.b16 %v2969
  %v3906 = vunpack.c.l.b16 %v2970
  %v3907 = vunpack.c.h.b16 %v2970
  %v3908 = vunpack.c.l.b16 %v2971
  %v3909 = vunpack.c.l.b16 %v2972
  %v3910 = vunpack.c.h.b16 %v2972
  %v3911 = vunpack.c.l.b16 %v2973
  %v3912 = vunpack.c.l.b16 %v2974
  %v3913 = vunpack.c.h.b16 %v2974
  %v3914 = vunpack.c.l.b16 %v2975
  %v3915 = vunpack.c.l.b16 %v2976
  %v3916 = vunpack.c.h.b16 %v2976
  %v3917 = vunpack.c.l.b16 %v2977
  %v3918 = vunpack.c.l.b16 %v2978
  %v3919 = vunpack.c.h.b16 %v2978
  %v3920 = vunpack.c.l.b16 %v2979
  %v3921 = vunpack.c.l.b16 %v2980
  %v3922 = vunpack.c.h.b16 %v2980
  %v3923 = vunpack.c.l.b16 %v2981
  %v3924 = vunpack.c.l.b16 %v2982
  %v3925 = vunpack.c.h.b16 %v2982
  %v3926 = vunpack.c.l.b16 %v2983
  %v3927 = vunpack.c.l.b16 %v2984
  %v3928 = vunpack.c.h.b16 %v2984
  %v3929 = vunpack.c.l.b16 %v2985
  %v3930 = vunpack.c.l.b16 %v2986
  %v3931 = vunpack.c.h.b16 %v2986
  %v3932 = vunpack.c.l.b16 %v2987
  %v3933 = vunpack.c.l.b16 %v2988
  %v3934 = vunpack.c.h.b16 %v2988
  %v3935 = vunpack.c.l.b16 %v2989
  %v3936 = vunpack.c.l.b16 %v2990
  %v3937 = vunpack.c.h.b16 %v2990
  %v3938 = vunpack.c.l.b16 %v2991
  %v3939 = vunpack.c.l.b16 %v2992
  %v3940 = vunpack.c.h.b16 %v2992
  %v3941 = vunpack.c.l.b16 %v2993
  %v3942 = vunpack.c.l.b16 %v2994
  %v3943 = vunpack.c.h.b16 %v2994
  %v3944 = vunpack.c.l.b16 %v2995
  %v3945 = vunpack.c.l.b16 %v2996
  %v3946 = vunpack.c.h.b16 %v2996
  %v3947 = vunpack.c.l.b16 %v2997
  %v3948 = vunpack.c.l.b16 %v2998
  %v3949 = vunpack.c.h.b16 %v2998
  %v3950 = vunpack.c.l.b16 %v2999
  %v3951 = vunpack.c.l.b16 %v3000
  %v3952 = vunpack.c.h.b16 %v3000
  %v3953 = vunpack.c.l.b16 %v3001
  %v3954 = vunpack.c.l.b16 %v3002
  %v3955 = vunpack.c.h.b16 %v3002
  %v3956 = vunpack.c.l.b16 %v3003
  %v3957 = vunpack.c.l.b16 %v3004
  %v3958 = vunpack.c.h.b16 %v3004
  %v3959 = vunpack.c.l.b16 %v3005
  %v3960 = vunpack.c.l.b16 %v3006
  %v3961 = vunpack.c.h.b16 %v3006
  %v3962 = vunpack.c.l.b16 %v3007
  %v3963 = vunpack.c.l.b16 %v3008
  %v3964 = vunpack.c.h.b16 %v3008
  %v3965 = vunpack.c.l.b16 %v3009
  %v3966 = vunpack.c.l.b16 %v3010
  %v3967 = vunpack.c.h.b16 %v3010
  %v3968 = vunpack.c.l.b16 %v3011
  %v3969 = vunpack.c.l.b16 %v3012
  %v3970 = vunpack.c.h.b16 %v3012
  %v3971 = vunpack.c.l.b16 %v3013
  %v3972 = vunpack.c.l.b16 %v3014
  %v3973 = vunpack.c.h.b16 %v3014
  %v3974 = vunpack.c.l.b16 %v3015
  %v3975 = vunpack.c.l.b16 %v3016
  %v3976 = vunpack.c.h.b16 %v3016
  %v3977 = vunpack.c.l.b16 %v3017
  %v3978 = vunpack.c.l.b16 %v3018
  %v3979 = vunpack.c.h.b16 %v3018
  %v3980 = vunpack.c.l.b16 %v3019
  %v3981 = vunpack.c.l.b16 %v3020
  %v3982 = vunpack.c.h.b16 %v3020
  %v3983 = vunpack.c.l.b16 %v3021
  %v3984 = vunpack.c.l.b16 %v3022
  %v3985 = vunpack.c.h.b16 %v3022
  %v3986 = vunpack.c.l.b16 %v3023
  %v3987 = vunpack.c.l.b16 %v3024
  %v3988 = vunpack.c.h.b16 %v3024
  %v3989 = vunpack.c.l.b16 %v3025
  %v3990 = vunpack.c.l.b16 %v3026
  %v3991 = vunpack.c.h.b16 %v3026
  %v3992 = vunpack.c.l.b16 %v3027
  %v3993 = vunpack.c.l.b16 %v3028
  %v3994 = vunpack.c.h.b16 %v3028
  %v3995 = vunpack.c.l.b16 %v3029
  %v3996 = vunpack.c.l.b16 %v3030
  %v3997 = vunpack.c.h.b16 %v3030
  %v3998 = vunpack.c.l.b16 %v3031
  %v3999 = vunpack.c.l.b16 %v3032
  %v4000 = vunpack.c.h.b16 %v3032
  %v4001 = vunpack.c.l.b16 %v3033
  %v4002 = vunpack.c.l.b16 %v3034
  %v4003 = vunpack.c.h.b16 %v3034
  %v4004 = vunpack.c.l.b16 %v3035
  %v4005 = vunpack.c.l.b16 %v3036
  %v4006 = vunpack.c.h.b16 %v3036
  %v4007 = vunpack.c.l.b16 %v3037
  %v4008 = vunpack.c.l.b16 %v3038
  %v4009 = vunpack.c.h.b16 %v3038
  %v4010 = vunpack.c.l.b16 %v3039
  %v4011 = vunpack.c.l.b16 %v3040
  %v4012 = vunpack.c.h.b16 %v3040
  %v4013 = vunpack.c.l.b16 %v3041
  %v4014 = vunpack.c.l.b16 %v3042
  %v4015 = vunpack.c.h.b16 %v3042
  %v4016 = vunpack.c.l.b16 %v3043
  %v4017 = vunpack.c.l.b16 %v3044
  %v4018 = vunpack.c.h.b16 %v3044
  %v4019 = vunpack.c.l.b16 %v3045
  %v4020 = vunpack.c.l.b16 %v3046
  %v4021 = vunpack.c.h.b16 %v3046
  %v4022 = vunpack.c.l.b16 %v3047
  %v4023 = vunpack.c.l.b16 %v3048
  %v4024 = vunpack.c.h.b16 %v3048
  %v4025 = vunpack.c.l.b16 %v3049
  %v4026 = vunpack.c.l.b16 %v3050
  %v4027 = vunpack.c.h.b16 %v3050
  %v4028 = vunpack.c.l.b16 %v3051
  %v4029 = vpack.c.b16 %v3456, %v3453
  %v4030 = vpack.c.b16 %v3457, %v3454
  %v4031 = vpack.c.b16 %v3458, %v3455
  %v4032 = vpack.c.b16 %v3462, %v3459
  %v4033 = vpack.c.b16 %v3463, %v3460
  %v4034 = vpack.c.b16 %v3464, %v3461
  %v4035 = vpack.c.b16 %v3468, %v3465
  %v4036 = vpack.c.b16 %v3469, %v3466
  %v4037 = vpack.c.b16 %v3470, %v3467
  %v4038 = vpack.c.b16 %v3474, %v3471
  %v4039 = vpack.c.b16 %v3475, %v3472
  %v4040 = vpack.c.b16 %v3476, %v3473
  %v4041 = vpack.c.b16 %v3480, %v3477
  %v4042 = vpack.c.b16 %v3481, %v3478
  %v4043 = vpack.c.b16 %v3482, %v3479
  %v4044 = vpack.c.b16 %v3486, %v3483
  %v4045 = vpack.c.b16 %v3487, %v3484
  %v4046 = vpack.c.b16 %v3488, %v3485
  %v4047 = vpack.c.b16 %v3492, %v3489
  %v4048 = vpack.c.b16 %v3493, %v3490
  %v4049 = vpack.c.b16 %v3494, %v3491
  %v4050 = vpack.c.b16 %v3498, %v3495
  %v4051 = vpack.c.b16 %v3499, %v3496
  %v4052 = vpack.c.b16 %v3500, %v3497
  %v4053 = vpack.c.b16 %v3504, %v3501
  %v4054 = vpack.c.b16 %v3505, %v3502
  %v4055 = vpack.c.b16 %v3506, %v3503
  %v4056 = vpack.c.b16 %v3510, %v3507
  %v4057 = vpack.c.b16 %v3511, %v3508
  %v4058 = vpack.c.b16 %v3512, %v3509
  %v4059 = vpack.c.b16 %v3516, %v3513
  %v4060 = vpack.c.b16 %v3517, %v3514
  %v4061 = vpack.c.b16 %v3518, %v3515
  %v4062 = vpack.c.b16 %v3522, %v3519
  %v4063 = vpack.c.b16 %v3523, %v3520
  %v4064 = vpack.c.b16 %v3524, %v3521
  %v4065 = vpack.c.b16 %v3528, %v3525
  %v4066 = vpack.c.b16 %v3529, %v3526
  %v4067 = vpack.c.b16 %v3530, %v3527
  %v4068 = vpack.c.b16 %v3534, %v3531
  %v4069 = vpack.c.b16 %v3535, %v3532
  %v4070 = vpack.c.b16 %v3536, %v3533
  %v4071 = vpack.c.b16 %v3540, %v3537
  %v4072 = vpack.c.b16 %v3541, %v3538
  %v4073 = vpack.c.b16 %v3542, %v3539
  %v4074 = vpack.c.b16 %v3546, %v3543
  %v4075 = vpack.c.b16 %v3547, %v3544
  %v4076 = vpack.c.b16 %v3548, %v3545
  %v4077 = vpack.c.b16 %v3552, %v3549
  %v4078 = vpack.c.b16 %v3553, %v3550
  %v4079 = vpack.c.b16 %v3554, %v3551
  %v4080 = vpack.c.b16 %v3558, %v3555
  %v4081 = vpack.c.b16 %v3559, %v3556
  %v4082 = vpack.c.b16 %v3560, %v3557
  %v4083 = vpack.c.b16 %v3564, %v3561
  %v4084 = vpack.c.b16 %v3565, %v3562
  %v4085 = vpack.c.b16 %v3566, %v3563
  %v4086 = vpack.c.b16 %v3570, %v3567
  %v4087 = vpack.c.b16 %v3571, %v3568
  %v4088 = vpack.c.b16 %v3572, %v3569
  %v4089 = vpack.c.b16 %v3576, %v3573
  %v4090 = vpack.c.b16 %v3577, %v3574
  %v4091 = vpack.c.b16 %v3578, %v3575
  %v4092 = vpack.c.b16 %v3582, %v3579
  %v4093 = vpack.c.b16 %v3583, %v3580
  %v4094 = vpack.c.b16 %v3584, %v3581
  %v4095 = vpack.c.b16 %v3588, %v3585
  %v4096 = vpack.c.b16 %v3589, %v3586
  %v4097 = vpack.c.b16 %v3590, %v3587
  %v4098 = vpack.c.b16 %v3594, %v3591
  %v4099 = vpack.c.b16 %v3595, %v3592
  %v4100 = vpack.c.b16 %v3596, %v3593
  %v4101 = vpack.c.b16 %v3600, %v3597
  %v4102 = vpack.c.b16 %v3601, %v3598
  %v4103 = vpack.c.b16 %v3602, %v3599
  %v4104 = vpack.c.b16 %v3606, %v3603
  %v4105 = vpack.c.b16 %v3607, %v3604
  %v4106 = vpack.c.b16 %v3608, %v3605
  %v4107 = vpack.c.b16 %v3612, %v3609
  %v4108 = vpack.c.b16 %v3613, %v3610
  %v4109 = vpack.c.b16 %v3614, %v3611
  %v4110 = vpack.c.b16 %v3618, %v3615
  %v4111 = vpack.c.b16 %v3619, %v3616
  %v4112 = vpack.c.b16 %v3620, %v3617
  %v4113 = vpack.c.b16 %v3624, %v3621
  %v4114 = vpack.c.b16 %v3625, %v3622
  %v4115 = vpack.c.b16 %v3626, %v3623
  %v4116 = vpack.c.b16 %v3630, %v3627
  %v4117 = vpack.c.b16 %v3631, %v3628
  %v4118 = vpack.c.b16 %v3632, %v3629
  %v4119 = vpack.c.b16 %v3636, %v3633
  %v4120 = vpack.c.b16 %v3637, %v3634
  %v4121 = vpack.c.b16 %v3638, %v3635
  %v4122 = vpack.c.b16 %v3642, %v3639
  %v4123 = vpack.c.b16 %v3643, %v3640
  %v4124 = vpack.c.b16 %v3644, %v3641
  %v4125 = vpack.c.b16 %v3648, %v3645
  %v4126 = vpack.c.b16 %v3649, %v3646
  %v4127 = vpack.c.b16 %v3650, %v3647
  %v4128 = vpack.c.b16 %v3654, %v3651
  %v4129 = vpack.c.b16 %v3655, %v3652
  %v4130 = vpack.c.b16 %v3656, %v3653
  %v4131 = vpack.c.b16 %v3660, %v3657
  %v4132 = vpack.c.b16 %v3661, %v3658
  %v4133 = vpack.c.b16 %v3662, %v3659
  %v4134 = vpack.c.b16 %v3666, %v3663
  %v4135 = vpack.c.b16 %v3667, %v3664
  %v4136 = vpack.c.b16 %v3668, %v3665
  %v4137 = vpack.c.b16 %v3672, %v3669
  %v4138 = vpack.c.b16 %v3673, %v3670
  %v4139 = vpack.c.b16 %v3674, %v3671
  %v4140 = vpack.c.b16 %v3678, %v3675
  %v4141 = vpack.c.b16 %v3679, %v3676
  %v4142 = vpack.c.b16 %v3680, %v3677
  %v4143 = vpack.c.b16 %v3684, %v3681
  %v4144 = vpack.c.b16 %v3685, %v3682
  %v4145 = vpack.c.b16 %v3686, %v3683
  %v4146 = vpack.c.b16 %v3690, %v3687
  %v4147 = vpack.c.b16 %v3691, %v3688
  %v4148 = vpack.c.b16 %v3692, %v3689
  %v4149 = vpack.c.b16 %v3696, %v3693
  %v4150 = vpack.c.b16 %v3697, %v3694
  %v4151 = vpack.c.b16 %v3698, %v3695
  %v4152 = vpack.c.b16 %v3702, %v3699
  %v4153 = vpack.c.b16 %v3703, %v3700
  %v4154 = vpack.c.b16 %v3704, %v3701
  %v4155 = vpack.c.b16 %v3708, %v3705
  %v4156 = vpack.c.b16 %v3709, %v3706
  %v4157 = vpack.c.b16 %v3710, %v3707
  %v4158 = vpack.c.b16 %v3714, %v3711
  %v4159 = vpack.c.b16 %v3715, %v3712
  %v4160 = vpack.c.b16 %v3716, %v3713
  %v4161 = vpack.c.b16 %v3720, %v3717
  %v4162 = vpack.c.b16 %v3721, %v3718
  %v4163 = vpack.c.b16 %v3722, %v3719
  %v4164 = vpack.c.b16 %v3726, %v3723
  %v4165 = vpack.c.b16 %v3727, %v3724
  %v4166 = vpack.c.b16 %v3728, %v3725
  %v4167 = vpack.c.b16 %v3732, %v3729
  %v4168 = vpack.c.b16 %v3733, %v3730
  %v4169 = vpack.c.b16 %v3734, %v3731
  %v4170 = vpack.c.b16 %v3738, %v3735
  %v4171 = vpack.c.b16 %v3739, %v3736
  %v4172 = vpack.c.b16 %v3740, %v3737
  %v4173 = vpack.c.b16 %v3744, %v3741
  %v4174 = vpack.c.b16 %v3745, %v3742
  %v4175 = vpack.c.b16 %v3746, %v3743
  %v4176 = vpack.c.b16 %v3750, %v3747
  %v4177 = vpack.c.b16 %v3751, %v3748
  %v4178 = vpack.c.b16 %v3752, %v3749
  %v4179 = vpack.c.b16 %v3756, %v3753
  %v4180 = vpack.c.b16 %v3757, %v3754
  %v4181 = vpack.c.b16 %v3758, %v3755
  %v4182 = vpack.c.b16 %v3762, %v3759
  %v4183 = vpack.c.b16 %v3763, %v3760
  %v4184 = vpack.c.b16 %v3764, %v3761
  %v4185 = vpack.c.b16 %v3768, %v3765
  %v4186 = vpack.c.b16 %v3769, %v3766
  %v4187 = vpack.c.b16 %v3770, %v3767
  %v4188 = vpack.c.b16 %v3774, %v3771
  %v4189 = vpack.c.b16 %v3775, %v3772
  %v4190 = vpack.c.b16 %v3776, %v3773
  %v4191 = vpack.c.b16 %v3780, %v3777
  %v4192 = vpack.c.b16 %v3781, %v3778
  %v4193 = vpack.c.b16 %v3782, %v3779
  %v4194 = vpack.c.b16 %v3786, %v3783
  %v4195 = vpack.c.b16 %v3787, %v3784
  %v4196 = vpack.c.b16 %v3788, %v3785
  %v4197 = vpack.c.b16 %v3792, %v3789
  %v4198 = vpack.c.b16 %v3793, %v3790
  %v4199 = vpack.c.b16 %v3794, %v3791
  %v4200 = vpack.c.b16 %v3798, %v3795
  %v4201 = vpack.c.b16 %v3799, %v3796
  %v4202 = vpack.c.b16 %v3800, %v3797
  %v4203 = vpack.c.b16 %v3804, %v3801
  %v4204 = vpack.c.b16 %v3805, %v3802
  %v4205 = vpack.c.b16 %v3806, %v3803
  %v4206 = vpack.c.b16 %v3810, %v3807
  %v4207 = vpack.c.b16 %v3811, %v3808
  %v4208 = vpack.c.b16 %v3812, %v3809
  %v4209 = vpack.c.b16 %v3816, %v3813
  %v4210 = vpack.c.b16 %v3817, %v3814
  %v4211 = vpack.c.b16 %v3818, %v3815
  %v4212 = vpack.c.b16 %v3822, %v3819
  %v4213 = vpack.c.b16 %v3823, %v3820
  %v4214 = vpack.c.b16 %v3824, %v3821
  %v4215 = vpack.c.b16 %v3828, %v3825
  %v4216 = vpack.c.b16 %v3829, %v3826
  %v4217 = vpack.c.b16 %v3830, %v3827
  %v4218 = vpack.c.b16 %v3834, %v3831
  %v4219 = vpack.c.b16 %v3835, %v3832
  %v4220 = vpack.c.b16 %v3836, %v3833
  %v4221 = vpack.c.b16 %v3840, %v3837
  %v4222 = vpack.c.b16 %v3841, %v3838
  %v4223 = vpack.c.b16 %v3842, %v3839
  %v4224 = vpack.c.b16 %v3846, %v3843
  %v4225 = vpack.c.b16 %v3847, %v3844
  %v4226 = vpack.c.b16 %v3848, %v3845
  %v4227 = vpack.c.b16 %v3852, %v3849
  %v4228 = vpack.c.b16 %v3853, %v3850
  %v4229 = vpack.c.b16 %v3854, %v3851
  %v4230 = vpack.c.b16 %v3858, %v3855
  %v4231 = vpack.c.b16 %v3859, %v3856
  %v4232 = vpack.c.b16 %v3860, %v3857
  %v4233 = vpack.c.b16 %v3864, %v3861
  %v4234 = vpack.c.b16 %v3865, %v3862
  %v4235 = vpack.c.b16 %v3866, %v3863
  %v4236 = vpack.c.b16 %v3870, %v3867
  %v4237 = vpack.c.b16 %v3871, %v3868
  %v4238 = vpack.c.b16 %v3872, %v3869
  %v4239 = vpack.c.b16 %v3876, %v3873
  %v4240 = vpack.c.b16 %v3877, %v3874
  %v4241 = vpack.c.b16 %v3878, %v3875
  %v4242 = vpack.c.b16 %v3882, %v3879
  %v4243 = vpack.c.b16 %v3883, %v3880
  %v4244 = vpack.c.b16 %v3884, %v3881
  %v4245 = vpack.c.b16 %v3888, %v3885
  %v4246 = vpack.c.b16 %v3889, %v3886
  %v4247 = vpack.c.b16 %v3890, %v3887
  %v4248 = vpack.c.b16 %v3894, %v3891
  %v4249 = vpack.c.b16 %v3895, %v3892
  %v4250 = vpack.c.b16 %v3896, %v3893
  %v4251 = vpack.c.b16 %v3900, %v3897
  %v4252 = vpack.c.b16 %v3901, %v3898
  %v4253 = vpack.c.b16 %v3902, %v3899
  %v4254 = vpack.c.b16 %v3906, %v3903
  %v4255 = vpack.c.b16 %v3907, %v3904
  %v4256 = vpack.c.b16 %v3908, %v3905
  %v4257 = vpack.c.b16 %v3912, %v3909
  %v4258 = vpack.c.b16 %v3913, %v3910
  %v4259 = vpack.c.b16 %v3914, %v3911
  %v4260 = vpack.c.b16 %v3918, %v3915
  %v4261 = vpack.c.b16 %v3919, %v3916
  %v4262 = vpack.c.b16 %v3920, %v3917
  %v4263 = vpack.c.b16 %v3924, %v3921
  %v4264 = vpack.c.b16 %v3925, %v3922
  %v4265 = vpack.c.b16 %v3926, %v3923
  %v4266 = vpack.c.b16 %v3930, %v3927
  %v4267 = vpack.c.b16 %v3931, %v3928
  %v4268 = vpack.c.b16 %v3932, %v3929
  %v4269 = vpack.c.b16 %v3936, %v3933
  %v4270 = vpack.c.b16 %v3937, %v3934
  %v4271 = vpack.c.b16 %v3938, %v3935
  %v4272 = vpack.c.b16 %v3942, %v3939
  %v4273 = vpack.c.b16 %v3943, %v3940
  %v4274 = vpack.c.b16 %v3944, %v3941
  %v4275 = vpack.c.b16 %v3948, %v3945
  %v4276 = vpack.c.b16 %v3949, %v3946
  %v4277 = vpack.c.b16 %v3950, %v3947
  %v4278 = vpack.c.b16 %v3954, %v3951
  %v4279 = vpack.c.b16 %v3955, %v3952
  %v4280 = vpack.c.b16 %v3956, %v3953
  %v4281 = vpack.c.b16 %v3960, %v3957
  %v4282 = vpack.c.b16 %v3961, %v3958
  %v4283 = vpack.c.b16 %v3962, %v3959
  %v4284 = vpack.c.b16 %v3966, %v3963
  %v4285 = vpack.c.b16 %v3967, %v3964
  %v4286 = vpack.c.b16 %v3968, %v3965
  %v4287 = vpack.c.b16 %v3972, %v3969
  %v4288 = vpack.c.b16 %v3973, %v3970
  %v4289 = vpack.c.b16 %v3974, %v3971
  %v4290 = vpack.c.b16 %v3978, %v3975
  %v4291 = vpack.c.b16 %v3979, %v3976
  %v4292 = vpack.c.b16 %v3980, %v3977
  %v4293 = vpack.c.b16 %v3984, %v3981
  %v4294 = vpack.c.b16 %v3985, %v3982
  %v4295 = vpack.c.b16 %v3986, %v3983
  %v4296 = vpack.c.b16 %v3990, %v3987
  %v4297 = vpack.c.b16 %v3991, %v3988
  %v4298 = vpack.c.b16 %v3992, %v3989
  %v4299 = vpack.c.b16 %v3996, %v3993
  %v4300 = vpack.c.b16 %v3997, %v3994
  %v4301 = vpack.c.b16 %v3998, %v3995
  %v4302 = vpack.c.b16 %v4002, %v3999
  %v4303 = vpack.c.b16 %v4003, %v4000
  %v4304 = vpack.c.b16 %v4004, %v4001
  %v4305 = vpack.c.b16 %v4008, %v4005
  %v4306 = vpack.c.b16 %v4009, %v4006
  %v4307 = vpack.c.b16 %v4010, %v4007
  %v4308 = vpack.c.b16 %v4014, %v4011
  %v4309 = vpack.c.b16 %v4015, %v4012
  %v4310 = vpack.c.b16 %v4016, %v4013
  %v4311 = vpack.c.b16 %v4020, %v4017
  %v4312 = vpack.c.b16 %v4021, %v4018
  %v4313 = vpack.c.b16 %v4022, %v4019
  %v4314 = vpack.c.b16 %v4026, %v4023
  %v4315 = vpack.c.b16 %v4027, %v4024
  %v4316 = vpack.c.b16 %v4028, %v4025
  %4605 = vmatprep.subr.bf16.mxu0 %v4030
  %4606 = vmatpush1.bf16.msra.mxu0 %v4029
  %4607 = vmatprep.subr.bf16.mxu0 %v4033
  %4608 = vmatpush1.bf16.msra.mxu0 %v4032
  %4609 = vmatprep.subr.bf16.mxu0 %v4036
  %4610 = vmatpush1.bf16.msra.mxu0 %v4035
  %4611 = vmatprep.subr.bf16.mxu0 %v4039
  %4612 = vmatpush1.bf16.msra.mxu0 %v4038
  %4613 = vmatprep.subr.bf16.mxu0 %v4042
  %4614 = vmatpush1.bf16.msra.mxu0 %v4041
  %4615 = vmatprep.subr.bf16.mxu0 %v4045
  %4616 = vmatpush1.bf16.msra.mxu0 %v4044
  %4617 = vmatprep.subr.bf16.mxu0 %v4048
  %4618 = vmatpush1.bf16.msra.mxu0 %v4047
  %4619 = vmatprep.subr.bf16.mxu0 %v4051
  %4620 = vmatpush1.bf16.msra.mxu0 %v4050
  %4621 = vmatprep.subr.bf16.mxu0 %v4054
  %4622 = vmatpush1.bf16.msra.mxu0 %v4053
  %4623 = vmatprep.subr.bf16.mxu0 %v4057
  %4624 = vmatpush1.bf16.msra.mxu0 %v4056
  %4625 = vmatprep.subr.bf16.mxu0 %v4060
  %4626 = vmatpush1.bf16.msra.mxu0 %v4059
  %4627 = vmatprep.subr.bf16.mxu0 %v4063
  %4628 = vmatpush1.bf16.msra.mxu0 %v4062
  %4629 = vmatprep.subr.bf16.mxu0 %v4066
  %4630 = vmatpush1.bf16.msra.mxu0 %v4065
  %4631 = vmatprep.subr.bf16.mxu0 %v4069
  %4632 = vmatpush1.bf16.msra.mxu0 %v4068
  %4633 = vmatprep.subr.bf16.mxu0 %v4072
  %4634 = vmatpush1.bf16.msra.mxu0 %v4071
  %4635 = vmatprep.subr.bf16.mxu0 %v4075
  %4636 = vmatpush1.bf16.msra.mxu0 %v4074
  %4637 = vmatprep.mubr.bf16.mxu0 %v2657
  %4638 = vmatmul.mubr.bf16.gmra.mrb[0].mxu0 %v2656
  %v4639 = vpop.f32.mrb[0].mxu0
  %v4640 = vadd.f32 %v3057, %v4639
  %v4641 = vpop.f32.mrb[0].mxu0
  %v4642 = vadd.f32 %v3061, %v4641
  %v4643 = vpop.f32.mrb[0].mxu0
  %v4644 = vadd.f32 %v3057, %v4643
  %v4645 = vpop.f32.mrb[0].mxu0
  %v4646 = vadd.f32 %v3061, %v4645
  %4647 = vdwg.mxu0
  %4648 = vmatprep.subr.bf16.mxu0 %v4078
  %4649 = vmatpush1.bf16.msra.mxu0 %v4077
  %4650 = vmatprep.subr.bf16.mxu0 %v4081
  %4651 = vmatpush1.bf16.msra.mxu0 %v4080
  %4652 = vmatprep.subr.bf16.mxu0 %v4084
  %4653 = vmatpush1.bf16.msra.mxu0 %v4083
  %4654 = vmatprep.subr.bf16.mxu0 %v4087
  %4655 = vmatpush1.bf16.msra.mxu0 %v4086
  %4656 = vmatprep.subr.bf16.mxu0 %v4090
  %4657 = vmatpush1.bf16.msra.mxu0 %v4089
  %4658 = vmatprep.subr.bf16.mxu0 %v4093
  %4659 = vmatpush1.bf16.msra.mxu0 %v4092
  %4660 = vmatprep.subr.bf16.mxu0 %v4096
  %4661 = vmatpush1.bf16.msra.mxu0 %v4095
  %4662 = vmatprep.subr.bf16.mxu0 %v4099
  %4663 = vmatpush1.bf16.msra.mxu0 %v4098
  %4664 = vmatprep.subr.bf16.mxu0 %v4102
  %4665 = vmatpush1.bf16.msra.mxu0 %v4101
  %4666 = vmatprep.subr.bf16.mxu0 %v4105
  %4667 = vmatpush1.bf16.msra.mxu0 %v4104
  %4668 = vmatprep.subr.bf16.mxu0 %v4108
  %4669 = vmatpush1.bf16.msra.mxu0 %v4107
  %4670 = vmatprep.subr.bf16.mxu0 %v4111
  %4671 = vmatpush1.bf16.msra.mxu0 %v4110
  %4672 = vmatprep.subr.bf16.mxu0 %v4114
  %4673 = vmatpush1.bf16.msra.mxu0 %v4113
  %4674 = vmatprep.subr.bf16.mxu0 %v4117
  %4675 = vmatpush1.bf16.msra.mxu0 %v4116
  %4676 = vmatprep.subr.bf16.mxu0 %v4120
  %4677 = vmatpush1.bf16.msra.mxu0 %v4119
  %4678 = vmatprep.subr.bf16.mxu0 %v4123
  %4679 = vmatpush1.bf16.msra.mxu0 %v4122
  %4680 = vmatprep.mubr.bf16.mxu0 %v2659
  %4681 = vmatmul.mubr.bf16.gmra.mrb[0].mxu0 %v2658
  %v4682 = vpop.f32.mrb[0].mxu0
  %v4683 = vadd.f32 %v4640, %v4682
  %v4684 = vpop.f32.mrb[0].mxu0
  %v4685 = vadd.f32 %v4642, %v4684
  %v4686 = vpop.f32.mrb[0].mxu0
  %v4687 = vadd.f32 %v4644, %v4686
  %v4688 = vpop.f32.mrb[0].mxu0
  %v4689 = vadd.f32 %v4646, %v4688
  %4690 = vdwg.mxu0
  %4691 = vmatprep.subr.bf16.mxu0 %v4126
  %4692 = vmatpush1.bf16.msra.mxu0 %v4125
  %4693 = vmatprep.subr.bf16.mxu0 %v4129
  %4694 = vmatpush1.bf16.msra.mxu0 %v4128
  %4695 = vmatprep.subr.bf16.mxu0 %v4132
  %4696 = vmatpush1.bf16.msra.mxu0 %v4131
  %4697 = vmatprep.subr.bf16.mxu0 %v4135
  %4698 = vmatpush1.bf16.msra.mxu0 %v4134
  %4699 = vmatprep.subr.bf16.mxu0 %v4138
  %4700 = vmatpush1.bf16.msra.mxu0 %v4137
  %4701 = vmatprep.subr.bf16.mxu0 %v4141
  %4702 = vmatpush1.bf16.msra.mxu0 %v4140
  %4703 = vmatprep.subr.bf16.mxu0 %v4144
  %4704 = vmatpush1.bf16.msra.mxu0 %v4143
  %4705 = vmatprep.subr.bf16.mxu0 %v4147
  %4706 = vmatpush1.bf16.msra.mxu0 %v4146
  %4707 = vmatprep.subr.bf16.mxu0 %v4150
  %4708 = vmatpush1.bf16.msra.mxu0 %v4149
  %4709 = vmatprep.subr.bf16.mxu0 %v4153
  %4710 = vmatpush1.bf16.msra.mxu0 %v4152
  %4711 = vmatprep.subr.bf16.mxu0 %v4156
  %4712 = vmatpush1.bf16.msra.mxu0 %v4155
  %4713 = vmatprep.subr.bf16.mxu0 %v4159
  %4714 = vmatpush1.bf16.msra.mxu0 %v4158
  %4715 = vmatprep.subr.bf16.mxu0 %v4162
  %4716 = vmatpush1.bf16.msra.mxu0 %v4161
  %4717 = vmatprep.subr.bf16.mxu0 %v4165
  %4718 = vmatpush1.bf16.msra.mxu0 %v4164
  %4719 = vmatprep.subr.bf16.mxu0 %v4168
  %4720 = vmatpush1.bf16.msra.mxu0 %v4167
  %4721 = vmatprep.subr.bf16.mxu0 %v4171
  %4722 = vmatpush1.bf16.msra.mxu0 %v4170
  %4723 = vmatprep.mubr.bf16.mxu0 %v2661
  %4724 = vmatmul.mubr.bf16.gmra.mrb[0].mxu0 %v2660
  %v4725 = vpop.f32.mrb[0].mxu0
  %v4726 = vadd.f32 %v4683, %v4725
  %v4727 = vpop.f32.mrb[0].mxu0
  %v4728 = vadd.f32 %v4685, %v4727
  %v4729 = vpop.f32.mrb[0].mxu0
  %v4730 = vadd.f32 %v4687, %v4729
  %v4731 = vpop.f32.mrb[0].mxu0
  %v4732 = vadd.f32 %v4689, %v4731
  %4733 = vdwg.mxu0
  %4734 = vmatprep.subr.bf16.mxu0 %v4174
  %4735 = vmatpush1.bf16.msra.mxu0 %v4173
  %4736 = vmatprep.subr.bf16.mxu0 %v4177
  %4737 = vmatpush1.bf16.msra.mxu0 %v4176
  %4738 = vmatprep.subr.bf16.mxu0 %v4180
  %4739 = vmatpush1.bf16.msra.mxu0 %v4179
  %4740 = vmatprep.subr.bf16.mxu0 %v4183
  %4741 = vmatpush1.bf16.msra.mxu0 %v4182
  %4742 = vmatprep.subr.bf16.mxu0 %v4186
  %4743 = vmatpush1.bf16.msra.mxu0 %v4185
  %4744 = vmatprep.subr.bf16.mxu0 %v4189
  %4745 = vmatpush1.bf16.msra.mxu0 %v4188
  %4746 = vmatprep.subr.bf16.mxu0 %v4192
  %4747 = vmatpush1.bf16.msra.mxu0 %v4191
  %4748 = vmatprep.subr.bf16.mxu0 %v4195
  %4749 = vmatpush1.bf16.msra.mxu0 %v4194
  %4750 = vmatprep.subr.bf16.mxu0 %v4198
  %4751 = vmatpush1.bf16.msra.mxu0 %v4197
  %4752 = vmatprep.subr.bf16.mxu0 %v4201
  %4753 = vmatpush1.bf16.msra.mxu0 %v4200
  %4754 = vmatprep.subr.bf16.mxu0 %v4204
  %4755 = vmatpush1.bf16.msra.mxu0 %v4203
  %4756 = vmatprep.subr.bf16.mxu0 %v4207
  %4757 = vmatpush1.bf16.msra.mxu0 %v4206
  %4758 = vmatprep.subr.bf16.mxu0 %v4210
  %4759 = vmatpush1.bf16.msra.mxu0 %v4209
  %4760 = vmatprep.subr.bf16.mxu0 %v4213
  %4761 = vmatpush1.bf16.msra.mxu0 %v4212
  %4762 = vmatprep.subr.bf16.mxu0 %v4216
  %4763 = vmatpush1.bf16.msra.mxu0 %v4215
  %4764 = vmatprep.subr.bf16.mxu0 %v4219
  %4765 = vmatpush1.bf16.msra.mxu0 %v4218
  %4766 = vmatprep.mubr.bf16.mxu0 %v2663
  %4767 = vmatmul.mubr.bf16.gmra.mrb[0].mxu0 %v2662
  %v4768 = vpop.f32.mrb[0].mxu0
  %v4769 = vadd.f32 %v4726, %v4768
  %v4770 = vpop.f32.mrb[0].mxu0
  %v4771 = vadd.f32 %v4728, %v4770
  %v4772 = vpop.f32.mrb[0].mxu0
  %v4773 = vadd.f32 %v4730, %v4772
  %v4774 = vpop.f32.mrb[0].mxu0
  %v4775 = vadd.f32 %v4732, %v4774
  %4776 = vdwg.mxu0
  %4777 = vmatprep.subr.bf16.mxu0 %v4222
  %4778 = vmatpush1.bf16.msra.mxu0 %v4221
  %4779 = vmatprep.subr.bf16.mxu0 %v4225
  %4780 = vmatpush1.bf16.msra.mxu0 %v4224
  %4781 = vmatprep.subr.bf16.mxu0 %v4228
  %4782 = vmatpush1.bf16.msra.mxu0 %v4227
  %4783 = vmatprep.subr.bf16.mxu0 %v4231
  %4784 = vmatpush1.bf16.msra.mxu0 %v4230
  %4785 = vmatprep.subr.bf16.mxu0 %v4234
  %4786 = vmatpush1.bf16.msra.mxu0 %v4233
  %4787 = vmatprep.subr.bf16.mxu0 %v4237
  %4788 = vmatpush1.bf16.msra.mxu0 %v4236
  %4789 = vmatprep.subr.bf16.mxu0 %v4240
  %4790 = vmatpush1.bf16.msra.mxu0 %v4239
  %4791 = vmatprep.subr.bf16.mxu0 %v4243
  %4792 = vmatpush1.bf16.msra.mxu0 %v4242
  %4793 = vmatprep.subr.bf16.mxu0 %v4246
  %4794 = vmatpush1.bf16.msra.mxu0 %v4245
  %4795 = vmatprep.subr.bf16.mxu0 %v4249
  %4796 = vmatpush1.bf16.msra.mxu0 %v4248
  %4797 = vmatprep.subr.bf16.mxu0 %v4252
  %4798 = vmatpush1.bf16.msra.mxu0 %v4251
  %4799 = vmatprep.subr.bf16.mxu0 %v4255
  %4800 = vmatpush1.bf16.msra.mxu0 %v4254
  %4801 = vmatprep.subr.bf16.mxu0 %v4258
  %4802 = vmatpush1.bf16.msra.mxu0 %v4257
  %4803 = vmatprep.subr.bf16.mxu0 %v4261
  %4804 = vmatpush1.bf16.msra.mxu0 %v4260
  %4805 = vmatprep.subr.bf16.mxu0 %v4264
  %4806 = vmatpush1.bf16.msra.mxu0 %v4263
  %4807 = vmatprep.subr.bf16.mxu0 %v4267
  %4808 = vmatpush1.bf16.msra.mxu0 %v4266
  %4809 = vmatprep.mubr.bf16.mxu0 %v2665
  %4810 = vmatmul.mubr.bf16.gmra.mrb[0].mxu0 %v2664
  %v4811 = vpop.f32.mrb[0].mxu0
  %v4812 = vadd.f32 %v4769, %v4811
  %v4813 = vpop.f32.mrb[0].mxu0
  %v4814 = vadd.f32 %v4771, %v4813
  %v4815 = vpop.f32.mrb[0].mxu0
  %v4816 = vadd.f32 %v4773, %v4815
  %v4817 = vpop.f32.mrb[0].mxu0
  %v4818 = vadd.f32 %v4775, %v4817
  %4819 = vdwg.mxu0
  %4820 = vmatprep.subr.bf16.mxu0 %v4270
  %4821 = vmatpush1.bf16.msra.mxu0 %v4269
  %4822 = vmatprep.subr.bf16.mxu0 %v4273
  %4823 = vmatpush1.bf16.msra.mxu0 %v4272
  %4824 = vmatprep.subr.bf16.mxu0 %v4276
  %4825 = vmatpush1.bf16.msra.mxu0 %v4275
  %4826 = vmatprep.subr.bf16.mxu0 %v4279
  %4827 = vmatpush1.bf16.msra.mxu0 %v4278
  %4828 = vmatprep.subr.bf16.mxu0 %v4282
  %4829 = vmatpush1.bf16.msra.mxu0 %v4281
  %4830 = vmatprep.subr.bf16.mxu0 %v4285
  %4831 = vmatpush1.bf16.msra.mxu0 %v4284
  %4832 = vmatprep.subr.bf16.mxu0 %v4288
  %4833 = vmatpush1.bf16.msra.mxu0 %v4287
  %4834 = vmatprep.subr.bf16.mxu0 %v4291
  %4835 = vmatpush1.bf16.msra.mxu0 %v4290
  %4836 = vmatprep.subr.bf16.mxu0 %v4294
  %4837 = vmatpush1.bf16.msra.mxu0 %v4293
  %4838 = vmatprep.subr.bf16.mxu0 %v4297
  %4839 = vmatpush1.bf16.msra.mxu0 %v4296
  %4840 = vmatprep.subr.bf16.mxu0 %v4300
  %4841 = vmatpush1.bf16.msra.mxu0 %v4299
  %4842 = vmatprep.subr.bf16.mxu0 %v4303
  %4843 = vmatpush1.bf16.msra.mxu0 %v4302
  %4844 = vmatprep.subr.bf16.mxu0 %v4306
  %4845 = vmatpush1.bf16.msra.mxu0 %v4305
  %4846 = vmatprep.subr.bf16.mxu0 %v4309
  %4847 = vmatpush1.bf16.msra.mxu0 %v4308
  %4848 = vmatprep.subr.bf16.mxu0 %v4312
  %4849 = vmatpush1.bf16.msra.mxu0 %v4311
  %4850 = vmatprep.subr.bf16.mxu0 %v4315
  %4851 = vmatpush1.bf16.msra.mxu0 %v4314
  %4852 = vmatprep.mubr.bf16.mxu0 %v2667
  %4853 = vmatmul.mubr.bf16.gmra.mrb[0].mxu0 %v2666
  %v4854 = vpop.f32.mrb[0].mxu0
  %v4855 = vadd.f32 %v4812, %v4854
  %v4856 = vpop.f32.mrb[0].mxu0
  %v4857 = vadd.f32 %v4814, %v4856
  %v4858 = vpop.f32.mrb[0].mxu0
  %v4859 = vadd.f32 %v4816, %v4858
  %v4860 = vpop.f32.mrb[0].mxu0
  %v4861 = vadd.f32 %v4818, %v4860
  %4862 = vdwg.mxu0
  %4863 = vmatprep.subr.bf16.mxu0 0
  %4864 = vmatpush1.bf16.msra.mxu0 %v4031
  %4865 = vmatprep.subr.bf16.mxu0 0
  %4866 = vmatpush1.bf16.msra.mxu0 %v4034
  %4867 = vmatprep.subr.bf16.mxu0 0
  %4868 = vmatpush1.bf16.msra.mxu0 %v4037
  %4869 = vmatprep.subr.bf16.mxu0 0
  %4870 = vmatpush1.bf16.msra.mxu0 %v4040
  %4871 = vmatprep.subr.bf16.mxu0 0
  %4872 = vmatpush1.bf16.msra.mxu0 %v4043
  %4873 = vmatprep.subr.bf16.mxu0 0
  %4874 = vmatpush1.bf16.msra.mxu0 %v4046
  %4875 = vmatprep.subr.bf16.mxu0 0
  %4876 = vmatpush1.bf16.msra.mxu0 %v4049
  %4877 = vmatprep.subr.bf16.mxu0 0
  %4878 = vmatpush1.bf16.msra.mxu0 %v4052
  %4879 = vmatprep.subr.bf16.mxu0 0
  %4880 = vmatpush1.bf16.msra.mxu0 %v4055
  %4881 = vmatprep.subr.bf16.mxu0 0
  %4882 = vmatpush1.bf16.msra.mxu0 %v4058
  %4883 = vmatprep.subr.bf16.mxu0 0
  %4884 = vmatpush1.bf16.msra.mxu0 %v4061
  %4885 = vmatprep.subr.bf16.mxu0 0
  %4886 = vmatpush1.bf16.msra.mxu0 %v4064
  %4887 = vmatprep.subr.bf16.mxu0 0
  %4888 = vmatpush1.bf16.msra.mxu0 %v4067
  %4889 = vmatprep.subr.bf16.mxu0 0
  %4890 = vmatpush1.bf16.msra.mxu0 %v4070
  %4891 = vmatprep.subr.bf16.mxu0 0
  %4892 = vmatpush1.bf16.msra.mxu0 %v4073
  %4893 = vmatprep.subr.bf16.mxu0 0
  %4894 = vmatpush1.bf16.msra.mxu0 %v4076
  %4895 = vmatprep.mubr.bf16.mxu0 %v2657
  %4896 = vmatmul.mubr.bf16.gmra.mrb[0].mxu0 %v2656
  %v4897 = vpop.f32.mrb[0].mxu0
  %v4898 = vadd.f32 %v3065, %v4897
  %v4899 = vpop.f32.mrb[0].mxu0
  %v4900 = vpop.f32.mrb[0].mxu0
  %v4901 = vadd.f32 %v3065, %v4900
  %v4902 = vpop.f32.mrb[0].mxu0
  %4903 = vdwg.mxu0
  %4904 = vmatprep.subr.bf16.mxu0 0
  %4905 = vmatpush1.bf16.msra.mxu0 %v4079
  %4906 = vmatprep.subr.bf16.mxu0 0
  %4907 = vmatpush1.bf16.msra.mxu0 %v4082
  %4908 = vmatprep.subr.bf16.mxu0 0
  %4909 = vmatpush1.bf16.msra.mxu0 %v4085
  %4910 = vmatprep.subr.bf16.mxu0 0
  %4911 = vmatpush1.bf16.msra.mxu0 %v4088
  %4912 = vmatprep.subr.bf16.mxu0 0
  %4913 = vmatpush1.bf16.msra.mxu0 %v4091
  %4914 = vmatprep.subr.bf16.mxu0 0
  %4915 = vmatpush1.bf16.msra.mxu0 %v4094
  %4916 = vmatprep.subr.bf16.mxu0 0
  %4917 = vmatpush1.bf16.msra.mxu0 %v4097
  %4918 = vmatprep.subr.bf16.mxu0 0
  %4919 = vmatpush1.bf16.msra.mxu0 %v4100
  %4920 = vmatprep.subr.bf16.mxu0 0
  %4921 = vmatpush1.bf16.msra.mxu0 %v4103
  %4922 = vmatprep.subr.bf16.mxu0 0
  %4923 = vmatpush1.bf16.msra.mxu0 %v4106
  %4924 = vmatprep.subr.bf16.mxu0 0
  %4925 = vmatpush1.bf16.msra.mxu0 %v4109
  %4926 = vmatprep.subr.bf16.mxu0 0
  %4927 = vmatpush1.bf16.msra.mxu0 %v4112
  %4928 = vmatprep.subr.bf16.mxu0 0
  %4929 = vmatpush1.bf16.msra.mxu0 %v4115
  %4930 = vmatprep.subr.bf16.mxu0 0
  %4931 = vmatpush1.bf16.msra.mxu0 %v4118
  %4932 = vmatprep.subr.bf16.mxu0 0
  %4933 = vmatpush1.bf16.msra.mxu0 %v4121
  %4934 = vmatprep.subr.bf16.mxu0 0
  %4935 = vmatpush1.bf16.msra.mxu0 %v4124
  %4936 = vmatprep.mubr.bf16.mxu0 %v2659
  %4937 = vmatmul.mubr.bf16.gmra.mrb[0].mxu0 %v2658
  %v4938 = vpop.f32.mrb[0].mxu0
  %v4939 = vadd.f32 %v4898, %v4938
  %v4940 = vpop.f32.mrb[0].mxu0
  %v4941 = vpop.f32.mrb[0].mxu0
  %v4942 = vadd.f32 %v4901, %v4941
  %v4943 = vpop.f32.mrb[0].mxu0
  %4944 = vdwg.mxu0
  %4945 = vmatprep.subr.bf16.mxu0 0
  %4946 = vmatpush1.bf16.msra.mxu0 %v4127
  %4947 = vmatprep.subr.bf16.mxu0 0
  %4948 = vmatpush1.bf16.msra.mxu0 %v4130
  %4949 = vmatprep.subr.bf16.mxu0 0
  %4950 = vmatpush1.bf16.msra.mxu0 %v4133
  %4951 = vmatprep.subr.bf16.mxu0 0
  %4952 = vmatpush1.bf16.msra.mxu0 %v4136
  %4953 = vmatprep.subr.bf16.mxu0 0
  %4954 = vmatpush1.bf16.msra.mxu0 %v4139
  %4955 = vmatprep.subr.bf16.mxu0 0
  %4956 = vmatpush1.bf16.msra.mxu0 %v4142
  %4957 = vmatprep.subr.bf16.mxu0 0
  %4958 = vmatpush1.bf16.msra.mxu0 %v4145
  %4959 = vmatprep.subr.bf16.mxu0 0
  %4960 = vmatpush1.bf16.msra.mxu0 %v4148
  %4961 = vmatprep.subr.bf16.mxu0 0
  %4962 = vmatpush1.bf16.msra.mxu0 %v4151
  %4963 = vmatprep.subr.bf16.mxu0 0
  %4964 = vmatpush1.bf16.msra.mxu0 %v4154
  %4965 = vmatprep.subr.bf16.mxu0 0
  %4966 = vmatpush1.bf16.msra.mxu0 %v4157
  %4967 = vmatprep.subr.bf16.mxu0 0
  %4968 = vmatpush1.bf16.msra.mxu0 %v4160
  %4969 = vmatprep.subr.bf16.mxu0 0
  %4970 = vmatpush1.bf16.msra.mxu0 %v4163
  %4971 = vmatprep.subr.bf16.mxu0 0
  %4972 = vmatpush1.bf16.msra.mxu0 %v4166
  %4973 = vmatprep.subr.bf16.mxu0 0
  %4974 = vmatpush1.bf16.msra.mxu0 %v4169
  %4975 = vmatprep.subr.bf16.mxu0 0
  %4976 = vmatpush1.bf16.msra.mxu0 %v4172
  %4977 = vmatprep.mubr.bf16.mxu0 %v2661
  %4978 = vmatmul.mubr.bf16.gmra.mrb[0].mxu0 %v2660
  %v4979 = vpop.f32.mrb[0].mxu0
  %v4980 = vadd.f32 %v4939, %v4979
  %v4981 = vpop.f32.mrb[0].mxu0
  %v4982 = vpop.f32.mrb[0].mxu0
  %v4983 = vadd.f32 %v4942, %v4982
  %v4984 = vpop.f32.mrb[0].mxu0
  %4985 = vdwg.mxu0
  %4986 = vmatprep.subr.bf16.mxu0 0
  %4987 = vmatpush1.bf16.msra.mxu0 %v4175
  %4988 = vmatprep.subr.bf16.mxu0 0
  %4989 = vmatpush1.bf16.msra.mxu0 %v4178
  %4990 = vmatprep.subr.bf16.mxu0 0
  %4991 = vmatpush1.bf16.msra.mxu0 %v4181
  %4992 = vmatprep.subr.bf16.mxu0 0
  %4993 = vmatpush1.bf16.msra.mxu0 %v4184
  %4994 = vmatprep.subr.bf16.mxu0 0
  %4995 = vmatpush1.bf16.msra.mxu0 %v4187
  %4996 = vmatprep.subr.bf16.mxu0 0
  %4997 = vmatpush1.bf16.msra.mxu0 %v4190
  %4998 = vmatprep.subr.bf16.mxu0 0
  %4999 = vmatpush1.bf16.msra.mxu0 %v4193
  %5000 = vmatprep.subr.bf16.mxu0 0
  %5001 = vmatpush1.bf16.msra.mxu0 %v4196
  %5002 = vmatprep.subr.bf16.mxu0 0
  %5003 = vmatpush1.bf16.msra.mxu0 %v4199
  %5004 = vmatprep.subr.bf16.mxu0 0
  %5005 = vmatpush1.bf16.msra.mxu0 %v4202
  %5006 = vmatprep.subr.bf16.mxu0 0
  %5007 = vmatpush1.bf16.msra.mxu0 %v4205
  %5008 = vmatprep.subr.bf16.mxu0 0
  %5009 = vmatpush1.bf16.msra.mxu0 %v4208
  %5010 = vmatprep.subr.bf16.mxu0 0
  %5011 = vmatpush1.bf16.msra.mxu0 %v4211
  %5012 = vmatprep.subr.bf16.mxu0 0
  %5013 = vmatpush1.bf16.msra.mxu0 %v4214
  %5014 = vmatprep.subr.bf16.mxu0 0
  %5015 = vmatpush1.bf16.msra.mxu0 %v4217
  %5016 = vmatprep.subr.bf16.mxu0 0
  %5017 = vmatpush1.bf16.msra.mxu0 %v4220
  %5018 = vmatprep.mubr.bf16.mxu0 %v2663
  %5019 = vmatmul.mubr.bf16.gmra.mrb[0].mxu0 %v2662
  %v5020 = vpop.f32.mrb[0].mxu0
  %v5021 = vadd.f32 %v4980, %v5020
  %v5022 = vpop.f32.mrb[0].mxu0
  %v5023 = vpop.f32.mrb[0].mxu0
  %v5024 = vadd.f32 %v4983, %v5023
  %v5025 = vpop.f32.mrb[0].mxu0
  %5026 = vdwg.mxu0
  %5027 = vmatprep.subr.bf16.mxu0 0
  %5028 = vmatpush1.bf16.msra.mxu0 %v4223
  %5029 = vmatprep.subr.bf16.mxu0 0
  %5030 = vmatpush1.bf16.msra.mxu0 %v4226
  %5031 = vmatprep.subr.bf16.mxu0 0
  %5032 = vmatpush1.bf16.msra.mxu0 %v4229
  %5033 = vmatprep.subr.bf16.mxu0 0
  %5034 = vmatpush1.bf16.msra.mxu0 %v4232
  %5035 = vmatprep.subr.bf16.mxu0 0
  %5036 = vmatpush1.bf16.msra.mxu0 %v4235
  %5037 = vmatprep.subr.bf16.mxu0 0
  %5038 = vmatpush1.bf16.msra.mxu0 %v4238
  %5039 = vmatprep.subr.bf16.mxu0 0
  %5040 = vmatpush1.bf16.msra.mxu0 %v4241
  %5041 = vmatprep.subr.bf16.mxu0 0
  %5042 = vmatpush1.bf16.msra.mxu0 %v4244
  %5043 = vmatprep.subr.bf16.mxu0 0
  %5044 = vmatpush1.bf16.msra.mxu0 %v4247
  %5045 = vmatprep.subr.bf16.mxu0 0
  %5046 = vmatpush1.bf16.msra.mxu0 %v4250
  %5047 = vmatprep.subr.bf16.mxu0 0
  %5048 = vmatpush1.bf16.msra.mxu0 %v4253
  %5049 = vmatprep.subr.bf16.mxu0 0
  %5050 = vmatpush1.bf16.msra.mxu0 %v4256
  %5051 = vmatprep.subr.bf16.mxu0 0
  %5052 = vmatpush1.bf16.msra.mxu0 %v4259
  %5053 = vmatprep.subr.bf16.mxu0 0
  %5054 = vmatpush1.bf16.msra.mxu0 %v4262
  %5055 = vmatprep.subr.bf16.mxu0 0
  %5056 = vmatpush1.bf16.msra.mxu0 %v4265
  %5057 = vmatprep.subr.bf16.mxu0 0
  %5058 = vmatpush1.bf16.msra.mxu0 %v4268
  %5059 = vmatprep.mubr.bf16.mxu0 %v2665
  %5060 = vmatmul.mubr.bf16.gmra.mrb[0].mxu0 %v2664
  %v5061 = vpop.f32.mrb[0].mxu0
  %v5062 = vadd.f32 %v5021, %v5061
  %v5063 = vpop.f32.mrb[0].mxu0
  %v5064 = vpop.f32.mrb[0].mxu0
  %v5065 = vadd.f32 %v5024, %v5064
  %v5066 = vpop.f32.mrb[0].mxu0
  %5067 = vdwg.mxu0
  %5068 = vmatprep.subr.bf16.mxu0 0
  %5069 = vmatpush1.bf16.msra.mxu0 %v4271
  %5070 = vmatprep.subr.bf16.mxu0 0
  %5071 = vmatpush1.bf16.msra.mxu0 %v4274
  %5072 = vmatprep.subr.bf16.mxu0 0
  %5073 = vmatpush1.bf16.msra.mxu0 %v4277
  %5074 = vmatprep.subr.bf16.mxu0 0
  %5075 = vmatpush1.bf16.msra.mxu0 %v4280
  %5076 = vmatprep.subr.bf16.mxu0 0
  %5077 = vmatpush1.bf16.msra.mxu0 %v4283
  %5078 = vmatprep.subr.bf16.mxu0 0
  %5079 = vmatpush1.bf16.msra.mxu0 %v4286
  %5080 = vmatprep.subr.bf16.mxu0 0
  %5081 = vmatpush1.bf16.msra.mxu0 %v4289
  %5082 = vmatprep.subr.bf16.mxu0 0
  %5083 = vmatpush1.bf16.msra.mxu0 %v4292
  %5084 = vmatprep.subr.bf16.mxu0 0
  %5085 = vmatpush1.bf16.msra.mxu0 %v4295
  %5086 = vmatprep.subr.bf16.mxu0 0
  %5087 = vmatpush1.bf16.msra.mxu0 %v4298
  %5088 = vmatprep.subr.bf16.mxu0 0
  %5089 = vmatpush1.bf16.msra.mxu0 %v4301
  %5090 = vmatprep.subr.bf16.mxu0 0
  %5091 = vmatpush1.bf16.msra.mxu0 %v4304
  %5092 = vmatprep.subr.bf16.mxu0 0
  %5093 = vmatpush1.bf16.msra.mxu0 %v4307
  %5094 = vmatprep.subr.bf16.mxu0 0
  %5095 = vmatpush1.bf16.msra.mxu0 %v4310
  %5096 = vmatprep.subr.bf16.mxu0 0
  %5097 = vmatpush1.bf16.msra.mxu0 %v4313
  %5098 = vmatprep.subr.bf16.mxu0 0
  %5099 = vmatpush1.bf16.msra.mxu0 %v4316
  %5100 = vmatprep.mubr.bf16.mxu0 %v2667
  %5101 = vmatmul.mubr.bf16.gmra.mrb[0].mxu0 %v2666
  %v5102 = vpop.f32.mrb[0].mxu0
  %v5103 = vadd.f32 %v5062, %v5102
  %v5104 = vpop.f32.mrb[0].mxu0
  %v5105 = vpop.f32.mrb[0].mxu0
  %v5106 = vadd.f32 %v5065, %v5105
  %v5107 = vpop.f32.mrb[0].mxu0
  %5108 = vdwg.mxu0
  %v5109 = vadd.f32 %v27, %v4855
  %v5110 = vadd.f32 %v28, %v4857
  %v5111 = vadd.f32 %v29, %v5103
  %v5112 = vadd.f32 %v30, %v4859
  %v5113 = vadd.f32 %v31, %v4861
  %v5114 = vadd.f32 %v32, %v5106
  %5115 = vst [vmem:[%s7] sm:$0xff] %v5109
  %5116 = vst [vmem:[%s7 + $0x8] sm:$0xff] %v5110
  %5117 = vst [vmem:[%s7 + $0x10] sm:$0xff] %v5111
  %5118 = vst [vmem:[%s7 + $0x18] sm:$0x3] %v5112
  %5119 = vst [vmem:[%s7 + $0x20] sm:$0x3] %v5113
  %5120 = vst [vmem:[%s7 + $0x28] sm:$0x3] %v5114
  // Predicated region
  $region30: #{vit_mt_forward.11} parent=0 // pred_check
    _
  $region31: #{vit_mt_forward.11} parent=0 // pred_check_branch
    %5122 = sbr.rel (0) target = $region33
  $region32: #{vit_mt_forward.11} parent=0 // pred_region
    _
  $region33: #{vit_mt_forward.11} parent=0 // pred_fallthru
    _
  // Predicated region
  $region34: #{vit_mt_forward.11} parent=0 // pred_check
    _
  $region35: #{vit_mt_forward.11} parent=0 // pred_check_branch
    %5124 = sbr.rel (0) target = $region37
  $region36: #{vit_mt_forward.11} parent=0 // pred_region
    _
  $region37: #{vit_mt_forward.11} parent=0 // pred_fallthru
    _

</llo_original>
